<compile_context>
chip_gen: v7x
topology: tpu7x:2x2x1
jax: 0.10.0
libtpu: 0.0.40
codegen_flags: <defaults>
</compile_context>

<pallas_src>
import functools

import jax
import jax.numpy as jnp
from jax import lax
from jax.experimental import pallas as pl
from jax.experimental.pallas import tpu as pltpu

K = 5      # 5x5 conv kernel size of the first conv in each block
P = 2      # its spatial padding


def _round_up(x, m):
    return (x + m - 1) // m * m


def _pool_out_hw(h, w):
    # MaxPool2d(kernel=3, stride=2, padding=1)
    return (h - 1) // 2 + 1, (w - 1) // 2 + 1


# ---------------------------------------------------------------------------
# Shared fused epilogue: MaxPool2d(3, stride=2, padding=1) + stride-2
# decimation (and optional scatter into the next block's padded layout) via a
# 0/1 bf16 selection matmul.
# ---------------------------------------------------------------------------
def _fused_pool(pool_ref, sel_ref, o_ref, h, *, Wp, MW, base, Rpool):
    C = h.shape[-1]
    # Zero only the padding rows (the h region is fully overwritten below).
    # Done every step (cheap) so the kernel stays correct when the "parallel"
    # grid axis is split across TensorCores (each core has its own scratch and
    # may never execute program_id == 0).
    pool_ref[pl.ds(0, base), :] = jnp.zeros((base, C), jnp.float32)
    tail = Rpool - (base + MW)
    pool_ref[pl.ds(base + MW, tail), :] = jnp.zeros((tail, C), jnp.float32)

    # Post-ReLU values are >= 0, so zero padding is equivalent to -inf padding.
    pool_ref[pl.ds(base, MW), :] = h
    # Separable 3x3 max: horizontal pass (dx = -1, 0, +1) ...
    mx = jnp.maximum(
        jnp.maximum(pool_ref[pl.ds(base - 1, MW), :],
                    pool_ref[pl.ds(base, MW), :]),
        pool_ref[pl.ds(base + 1, MW), :])
    pool_ref[pl.ds(base, MW), :] = mx
    # ... then vertical pass (dy = -1, 0, +1).
    m = jnp.maximum(
        jnp.maximum(pool_ref[pl.ds(base - Wp, MW), :],
                    pool_ref[pl.ds(base, MW), :]),
        pool_ref[pl.ds(base + Wp, MW), :])
    # Stride-2 decimation (plus, for block 1, the scatter into block 2's
    # zero-padded flat input layout) as one exact 0/1 bf16 selection matmul.
    o_ref[...] = jnp.dot(sel_ref[...], m.astype(jnp.bfloat16),
                         preferred_element_type=jnp.float32).astype(o_ref.dtype)


# ---------------------------------------------------------------------------
# Block 1 kernel: Conv5x5(im2col)+ReLU, 1x1+ReLU, 1x1+ReLU, MaxPool(3,2,1).
# One grid step == one image.  The im2col is built host-side (input is tiny).
# ---------------------------------------------------------------------------
def _nin_block1_kernel(col_ref, w5_ref, b5_ref, w1a_ref, b1a_ref, w1b_ref,
                       b1b_ref, mask_ref, sel_ref, o_ref, pool_ref,
                       *, Wp, MW, base, Rpool):
    # 5x5 conv as ONE deep-contraction MXU matmul.
    h = jnp.dot(col_ref[...], w5_ref[...], preferred_element_type=jnp.float32)
    h = jnp.maximum(h + b5_ref[...], 0.0)
    # Two 1x1 convs (pure channel matmuls), bf16 MXU + f32 epilogue.
    h = jnp.dot(h.astype(jnp.bfloat16), w1a_ref[...],
                preferred_element_type=jnp.float32)
    h = jnp.maximum(h + b1a_ref[...], 0.0)
    h = jnp.dot(h.astype(jnp.bfloat16), w1b_ref[...],
                preferred_element_type=jnp.float32)
    h = jnp.maximum(h + b1b_ref[...], 0.0)          # padded channels -> 0
    # Zero the (Wp - W) junk "wide" columns so they never win a pool max.
    h = h * mask_ref[...]
    _fused_pool(pool_ref, sel_ref, o_ref, h, Wp=Wp, MW=MW, base=base,
                Rpool=Rpool)


# ---------------------------------------------------------------------------
# Block 2 kernel: in-kernel im2col, Conv5x5+ReLU, 1x1+ReLU, 1x1+ReLU,
# MaxPool(3,2,1).  Input is block-1's output, already in the padded flat
# bf16 layout with channels padded to 128.
# ---------------------------------------------------------------------------
def _nin_block2_kernel(x_ref, w5_ref, b5_ref, w1a_ref, b1a_ref, w1b_ref,
                       b1b_ref, mask_ref, sel_ref, o_ref, col_ref, pool_ref,
                       *, Wp, MW, Cin, base, Rpool):
    # In-kernel im2col: 25 shifted bf16 slices into lane-aligned 128-wide
    # column slabs of a VMEM scratch (no HBM inflation).
    for t in range(K * K):
        dy, dx = divmod(t, K)
        col_ref[:, t * Cin:(t + 1) * Cin] = x_ref[pl.ds(dy * Wp + dx, MW), :]
    # 5x5 conv as ONE deep (contraction = 25*128) matmul.
    h = jnp.dot(col_ref[...], w5_ref[...], preferred_element_type=jnp.float32)
    h = jnp.maximum(h + b5_ref[...], 0.0)
    h = jnp.dot(h.astype(jnp.bfloat16), w1a_ref[...],
                preferred_element_type=jnp.float32)
    h = jnp.maximum(h + b1a_ref[...], 0.0)
    h = jnp.dot(h.astype(jnp.bfloat16), w1b_ref[...],
                preferred_element_type=jnp.float32)
    h = jnp.maximum(h + b1b_ref[...], 0.0)
    h = h * mask_ref[...]
    _fused_pool(pool_ref, sel_ref, o_ref, h, Wp=Wp, MW=MW, base=base,
                Rpool=Rpool)


# ---------------------------------------------------------------------------
# Wrappers
# ---------------------------------------------------------------------------
def nin_block1(x_nhwc, blk):
    """Fused features[0..6].  Returns block-2's padded flat bf16 input
    of shape (N, Rp2, 128)."""
    w5c, b5, w1a, b1a, w1b, b1b = blk
    N, H, W, Cin = x_nhwc.shape
    Wp = W + 2 * P                       # "wide" row width (incl. conv pad)
    MW = H * Wp                          # rows of the flat wide activation
    Kc = K * K * Cin                     # real contraction depth (75)
    Kc_pad = _round_up(Kc, 128)          # lane-dense contraction
    Cout = w1b.shape[-1]                 # 128 (96 zero-padded)
    base = _round_up(Wp + 1, 8)
    Rpool = _round_up(base + MW + Wp, 8)
    Ho, Wo = _pool_out_hw(H, W)
    Wp2 = Wo + 2 * P                     # block-2 wide row width
    Rp2 = _round_up((Ho + 2 * P + 1) * Wp2, 8)   # +guard rows, 8-aligned

    # Host-side im2col of the tiny input: wide output layout, column order
    # (dy, dx, cin) matching the prepped weight, zero-padded to 128.
    xp = jnp.pad(x_nhwc, ((0, 0), (P, P + 1), (P, P), (0, 0)))
    xf = xp.reshape(N, -1, Cin)
    taps = []
    for t in range(K * K):
        off = (t // K) * Wp + (t % K)
        taps.append(xf[:, off:off + MW, :])
    col = jnp.concatenate(taps, axis=-1)                       # (N, MW, 75)
    col = jnp.pad(col, ((0, 0), (0, 0), (0, Kc_pad - Kc))).astype(jnp.bfloat16)

    # Validity mask for the junk wide columns (tiny).
    mask = jnp.tile(jnp.arange(Wp) < W, H).astype(jnp.float32).reshape(MW, 1)

    # 0/1 selection matrix: stride-2 pool decimation fused with the scatter
    # into block 2's zero-padded flat layout (bf16 -> native MXU path).
    r = jnp.arange(Rp2)
    py, px = r // Wp2, r % Wp2
    valid = (py >= P) & (py < P + Ho) & (px >= P) & (px < P + Wo)
    src = 2 * (py - P) * Wp + 2 * (px - P)
    sel = (valid[:, None] & (jnp.arange(MW)[None, :] == src[:, None])
           ).astype(jnp.bfloat16)                              # (Rp2, MW)

    kernel = functools.partial(_nin_block1_kernel, Wp=Wp, MW=MW, base=base,
                               Rpool=Rpool)
    return pl.pallas_call(
        kernel,
        out_shape=jax.ShapeDtypeStruct((N, Rp2, Cout), jnp.bfloat16),
        grid=(N,),
        in_specs=[
            pl.BlockSpec((None, MW, Kc_pad), lambda b: (b, 0, 0)),
            pl.BlockSpec(w5c.shape, lambda b: (0, 0)),
            pl.BlockSpec(b5.shape, lambda b: (0, 0)),
            pl.BlockSpec(w1a.shape, lambda b: (0, 0)),
            pl.BlockSpec(b1a.shape, lambda b: (0, 0)),
            pl.BlockSpec(w1b.shape, lambda b: (0, 0)),
            pl.BlockSpec(b1b.shape, lambda b: (0, 0)),
            pl.BlockSpec((MW, 1), lambda b: (0, 0)),
            pl.BlockSpec((Rp2, MW), lambda b: (0, 0)),
        ],
        out_specs=pl.BlockSpec((None, Rp2, Cout), lambda b: (b, 0, 0)),
        scratch_shapes=[pltpu.VMEM((Rpool, Cout), jnp.float32)],
        compiler_params=pltpu.CompilerParams(
            dimension_semantics=("parallel",)),
    )(col, w5c, b5, w1a, b1a, w1b, b1b, mask, sel)


def nin_block2(x2, blk, H, W):
    """Fused features[7..13] on block-1's padded flat bf16 output.
    Returns (N, Ho*Wo, 192) f32 pooled activations, rows in (y, x) order."""
    w5c, b5, w1a, b1a, w1b, b1b = blk
    N, Rp, Cin = x2.shape
    Wp = W + 2 * P
    MW = H * Wp
    Cout = w1b.shape[-1]
    base = _round_up(Wp + 1, 8)
    Rpool = _round_up(base + MW + Wp, 8)
    Ho, Wo = _pool_out_hw(H, W)

    mask = jnp.tile(jnp.arange(Wp) < W, H).astype(jnp.float32).reshape(MW, 1)
    oy, ox = jnp.divmod(jnp.arange(Ho * Wo), Wo)
    src = 2 * oy * Wp + 2 * ox
    sel = (jnp.arange(MW)[None, :] == src[:, None]).astype(jnp.bfloat16)

    kernel = functools.partial(_nin_block2_kernel, Wp=Wp, MW=MW, Cin=Cin,
                               base=base, Rpool=Rpool)
    out = pl.pallas_call(
        kernel,
        out_shape=jax.ShapeDtypeStruct((N, Ho * Wo, Cout), jnp.float32),
        grid=(N,),
        in_specs=[
            pl.BlockSpec((None, Rp, Cin), lambda b: (b, 0, 0)),
            pl.BlockSpec(w5c.shape, lambda b: (0, 0)),
            pl.BlockSpec(b5.shape, lambda b: (0, 0)),
            pl.BlockSpec(w1a.shape, lambda b: (0, 0)),
            pl.BlockSpec(b1a.shape, lambda b: (0, 0)),
            pl.BlockSpec(w1b.shape, lambda b: (0, 0)),
            pl.BlockSpec(b1b.shape, lambda b: (0, 0)),
            pl.BlockSpec((MW, 1), lambda b: (0, 0)),
            pl.BlockSpec((Ho * Wo, MW), lambda b: (0, 0)),
        ],
        out_specs=pl.BlockSpec((None, Ho * Wo, Cout), lambda b: (b, 0, 0)),
        scratch_shapes=[pltpu.VMEM((MW, K * K * Cin), jnp.bfloat16),
                        pltpu.VMEM((Rpool, Cout), jnp.float32)],
        compiler_params=pltpu.CompilerParams(
            dimension_semantics=("parallel",)),
    )(x2, w5c, b5, w1a, b1a, w1b, b1b, mask, sel)
    return out, (Ho, Wo)


def nin_forward(x_nchw, params):
    """Reference torch forward(): features[0..13] then .view(B, -1)."""
    blk1, blk2 = params
    x = jnp.transpose(x_nchw, (0, 2, 3, 1))               # NCHW -> NHWC
    N, H, W, _ = x.shape
    x2 = nin_block1(x, blk1)                               # (N, Rp2, 128) bf16
    H2, W2 = _pool_out_hw(H, W)
    out, (Ho, Wo) = nin_block2(x2, blk2, H2, W2)           # (N, Ho*Wo, 192)
    C = out.shape[-1]
    out = out.reshape(N, Ho, Wo, C).transpose(0, 3, 1, 2)  # -> NCHW
    return out.reshape(N, -1)                              # torch .view(B, -1)


# ---------------------------------------------------------------------------
# Parameters (torch OIHW layout) + conversion to the fused-kernel layouts.
# ---------------------------------------------------------------------------
def init_raw_params(key):
    specs = [
        (192, 3, 5, 2),    # features[0]
        (160, 192, 1, 0),  # features[2]
        (96, 160, 1, 0),   # features[4]
        (192, 96, 5, 2),   # features[7]
        (192, 192, 1, 0),  # features[9]
        (192, 192, 1, 0),  # features[11]
    ]
    raw = []
    for i, (cout, cin, k, pad) in enumerate(specs):
        kw, kb = jax.random.split(jax.random.fold_in(key, i))
        w = jax.random.normal(kw, (cout, cin, k, k), jnp.float32) / jnp.sqrt(cin * k * k)
        b = jax.random.normal(kb, (cout,), jnp.float32) * 0.01
        raw.append((w, b, k, pad))
    return raw


def prep_block1(raw3):
    (w5, b5, k, _), (wa, ba, _, _), (wb, bb, _, _) = raw3
    cout, cin = w5.shape[0], w5.shape[1]
    kc, kc_pad = k * k * cin, _round_up(k * k * cin, 128)
    # (Cout,Cin,Kh,Kw) -> (Kh,Kw,Cin,Cout) -> (Kh*Kw*Cin, Cout), contraction
    # zero-padded to 128 (contiguous, matches the wrapper im2col columns).
    w5c = jnp.transpose(w5, (2, 3, 1, 0)).reshape(kc, cout)
    w5c = jnp.pad(w5c, ((0, kc_pad - kc), (0, 0))).astype(jnp.bfloat16)
    # Last 1x1 conv: zero-pad output channels 96 -> 128 so the block-1 output
    # (= block-2 input) is lane-dense.
    c2, c2p = wb.shape[0], _round_up(wb.shape[0], 128)
    wbp = jnp.pad(wb[:, :, 0, 0].T, ((0, 0), (0, c2p - c2))).astype(jnp.bfloat16)
    bbp = jnp.pad(bb, (0, c2p - c2))
    return (w5c, b5.reshape(1, -1),
            wa[:, :, 0, 0].T.astype(jnp.bfloat16), ba.reshape(1, -1),
            wbp, bbp.reshape(1, -1))


def prep_block2(raw3, cin_pad):
    (w5, b5, k, _), (wa, ba, _, _), (wb, bb, _, _) = raw3
    cout, cin = w5.shape[0], w5.shape[1]
    # (Cout,Cin,Kh,Kw) -> (Kh,Kw,Cin,Cout); zero-pad Cin 96 -> 128 to match the
    # channel-padded block-1 output, then flatten to (25*128, Cout).
    w5t = jnp.pad(jnp.transpose(w5, (2, 3, 1, 0)),
                  ((0, 0), (0, 0), (0, cin_pad - cin), (0, 0)))
    w5c = w5t.reshape(k * k * cin_pad, cout).astype(jnp.bfloat16)
    return (w5c, b5.reshape(1, -1),
            wa[:, :, 0, 0].T.astype(jnp.bfloat16), ba.reshape(1, -1),
            wb[:, :, 0, 0].T.astype(jnp.bfloat16), bb.reshape(1, -1))


# ---------------------------------------------------------------------------
# Pure-JAX (f32, XLA) reference of the torch forward(), for validation.
# ---------------------------------------------------------------------------
def reference_forward(x_nchw, raw):
    def conv(x, w, b, pad):
        y = lax.conv_general_dilated(
            x, w, window_strides=(1, 1), padding=[(pad, pad), (pad, pad)],
            dimension_numbers=("NCHW", "OIHW", "NCHW"))
        return jnp.maximum(y + b[None, :, None, None], 0.0)

    def pool(x):
        return lax.reduce_window(
            x, -jnp.inf, lax.max,
            window_dimensions=(1, 1, 3, 3), window_strides=(1, 1, 2, 2),
            padding=((0, 0), (0, 0), (1, 1), (1, 1)))

    x = x_nchw
    for i, (w, b, k, pad) in enumerate(raw):
        x = conv(x, w, b, pad)
        if i in (2, 5):
            x = pool(x)
    return x.reshape(x.shape[0], -1)


if __name__ == "__main__":
    key = jax.random.PRNGKey(0)
    kx, kp = jax.random.split(key)
    # Small CIFAR-like input: batch=2, 3 channels, 16x16 spatial.
    x = jax.random.normal(kx, (2, 3, 16, 16), jnp.float32)
    raw = init_raw_params(kp)
    blocks = (prep_block1(raw[0:3]), prep_block2(raw[3:6], cin_pad=128))

    fwd = jax.jit(lambda inp: nin_forward(inp, blocks))
    out = fwd(x)
    jax.block_until_ready(out)

    # 16 -> pool -> 8 -> pool -> 4; flattened = 192 * 4 * 4
    assert out.shape == (2, 192 * 4 * 4), out.shape
    assert bool(jnp.all(jnp.isfinite(out)))

    # Validate against the f32 XLA reference (kernel matmuls run bf16 on the
    # MXU with f32 accumulation), generous-but-bug-detecting tolerance.
    ref = reference_forward(x, raw)
    max_err = float(jnp.max(jnp.abs(out - ref)))
    assert max_err < 0.2, f"mismatch vs reference: max|diff| = {max_err}"

    print("KERNEL_OK")
</pallas_src>

<mosaic_0001>
module attributes {stable_mosaic.version = 11 : i64} {
  func.func @_nin_block1_kernel(%arg0: i32, %arg1: memref<1x320x128xbf16, #tpu.memory_space<vmem>>, %arg2: memref<128x192xbf16, #tpu.memory_space<vmem>>, %arg3: memref<1x192xf32, #tpu.memory_space<vmem>>, %arg4: memref<192x160xbf16, #tpu.memory_space<vmem>>, %arg5: memref<1x160xf32, #tpu.memory_space<vmem>>, %arg6: memref<160x128xbf16, #tpu.memory_space<vmem>>, %arg7: memref<1x128xf32, #tpu.memory_space<vmem>>, %arg8: memref<320x1xf32, #tpu.memory_space<vmem>>, %arg9: memref<160x320xbf16, #tpu.memory_space<vmem>>, %arg10: memref<1x160x128xbf16, #tpu.memory_space<vmem>>, %arg11: memref<368x128xf32, #tpu.memory_space<vmem>>) attributes {dimension_semantics = [#tpu.dimension_semantics<parallel>], iteration_bounds = array<i64: 2>, scalar_prefetch = 0 : i64, scratch_operands = 1 : i64, tpu.core_type = #tpu.core_type<tc>, window_params = [{transform_indices = @transform_0, window_bounds = array<i64: 1, 320, 128>}, {pipeline_mode = #tpu.pipeline_mode<synchronous>, transform_indices = @transform_1, window_bounds = array<i64: 128, 192>}, {pipeline_mode = #tpu.pipeline_mode<synchronous>, transform_indices = @transform_2, window_bounds = array<i64: 1, 192>}, {pipeline_mode = #tpu.pipeline_mode<synchronous>, transform_indices = @transform_3, window_bounds = array<i64: 192, 160>}, {pipeline_mode = #tpu.pipeline_mode<synchronous>, transform_indices = @transform_4, window_bounds = array<i64: 1, 160>}, {pipeline_mode = #tpu.pipeline_mode<synchronous>, transform_indices = @transform_5, window_bounds = array<i64: 160, 128>}, {pipeline_mode = #tpu.pipeline_mode<synchronous>, transform_indices = @transform_6, window_bounds = array<i64: 1, 128>}, {pipeline_mode = #tpu.pipeline_mode<synchronous>, transform_indices = @transform_7, window_bounds = array<i64: 320, 1>}, {pipeline_mode = #tpu.pipeline_mode<synchronous>, transform_indices = @transform_8, window_bounds = array<i64: 160, 320>}, {transform_indices = @transform_9, window_bounds = array<i64: 1, 160, 128>}]} {
    %c0 = arith.constant 0 : index
    %c0_0 = arith.constant 0 : index
    %c0_1 = arith.constant 0 : index
    %0 = vector.load %arg1[%c0, %c0_0, %c0_1] : memref<1x320x128xbf16, #tpu.memory_space<vmem>>, vector<1x320x128xbf16>
    %1 = vector.shape_cast %0 : vector<1x320x128xbf16> to vector<320x128xbf16>
    %c0_2 = arith.constant 0 : index
    %c0_3 = arith.constant 0 : index
    %2 = vector.load %arg2[%c0_2, %c0_3] : memref<128x192xbf16, #tpu.memory_space<vmem>>, vector<128x192xbf16>
    %cst = arith.constant dense<0.000000e+00> : vector<320x192xf32>
    %3 = tpu.matmul %1, %2, %cst {dimension_numbers = #tpu.dot_dimension_numbers<[1], [0], [0], [1], [0, 0, 1, 1], [], []>} : vector<320x128xbf16>, vector<128x192xbf16>, vector<320x192xf32> -> vector<320x192xf32>
    %c0_4 = arith.constant 0 : index
    %c0_5 = arith.constant 0 : index
    %4 = vector.load %arg3[%c0_4, %c0_5] : memref<1x192xf32, #tpu.memory_space<vmem>>, vector<1x192xf32>
    %5 = vector.broadcast %4 : vector<1x192xf32> to vector<320x192xf32>
    %6 = arith.addf %3, %5 : vector<320x192xf32>
    %cst_6 = arith.constant 0.000000e+00 : f32
    %7 = vector.broadcast %cst_6 : f32 to vector<320x192xf32>
    %8 = arith.maximumf %6, %7 : vector<320x192xf32>
    %9 = arith.truncf %8 : vector<320x192xf32> to vector<320x192xbf16>
    %c0_7 = arith.constant 0 : index
    %c0_8 = arith.constant 0 : index
    %10 = vector.load %arg4[%c0_7, %c0_8] : memref<192x160xbf16, #tpu.memory_space<vmem>>, vector<192x160xbf16>
    %cst_9 = arith.constant dense<0.000000e+00> : vector<320x160xf32>
    %11 = tpu.matmul %9, %10, %cst_9 {dimension_numbers = #tpu.dot_dimension_numbers<[1], [0], [0], [1], [0, 0, 1, 1], [], []>} : vector<320x192xbf16>, vector<192x160xbf16>, vector<320x160xf32> -> vector<320x160xf32>
    %c0_10 = arith.constant 0 : index
    %c0_11 = arith.constant 0 : index
    %12 = vector.load %arg5[%c0_10, %c0_11] : memref<1x160xf32, #tpu.memory_space<vmem>>, vector<1x160xf32>
    %13 = vector.broadcast %12 : vector<1x160xf32> to vector<320x160xf32>
    %14 = arith.addf %11, %13 : vector<320x160xf32>
    %cst_12 = arith.constant 0.000000e+00 : f32
    %15 = vector.broadcast %cst_12 : f32 to vector<320x160xf32>
    %16 = arith.maximumf %14, %15 : vector<320x160xf32>
    %17 = arith.truncf %16 : vector<320x160xf32> to vector<320x160xbf16>
    %c0_13 = arith.constant 0 : index
    %c0_14 = arith.constant 0 : index
    %18 = vector.load %arg6[%c0_13, %c0_14] : memref<160x128xbf16, #tpu.memory_space<vmem>>, vector<160x128xbf16>
    %cst_15 = arith.constant dense<0.000000e+00> : vector<320x128xf32>
    %19 = tpu.matmul %17, %18, %cst_15 {dimension_numbers = #tpu.dot_dimension_numbers<[1], [0], [0], [1], [0, 0, 1, 1], [], []>} : vector<320x160xbf16>, vector<160x128xbf16>, vector<320x128xf32> -> vector<320x128xf32>
    %c0_16 = arith.constant 0 : index
    %c0_17 = arith.constant 0 : index
    %20 = vector.load %arg7[%c0_16, %c0_17] : memref<1x128xf32, #tpu.memory_space<vmem>>, vector<1x128xf32>
    %21 = vector.broadcast %20 : vector<1x128xf32> to vector<320x128xf32>
    %22 = arith.addf %19, %21 : vector<320x128xf32>
    %cst_18 = arith.constant 0.000000e+00 : f32
    %23 = vector.broadcast %cst_18 : f32 to vector<320x128xf32>
    %24 = arith.maximumf %22, %23 : vector<320x128xf32>
    %c0_19 = arith.constant 0 : index
    %c0_20 = arith.constant 0 : index
    %25 = vector.load %arg8[%c0_19, %c0_20] : memref<320x1xf32, #tpu.memory_space<vmem>>, vector<320x1xf32>
    %26 = vector.broadcast %25 : vector<320x1xf32> to vector<320x128xf32>
    %27 = arith.mulf %24, %26 : vector<320x128xf32>
    %cst_21 = arith.constant 0.000000e+00 : f32
    %28 = vector.broadcast %cst_21 : f32 to vector<24x128xf32>
    %c0_22 = arith.constant 0 : index
    %c0_23 = arith.constant 0 : index
    %29 = vector.load %arg11[%c0_22, %c0_23] : memref<368x128xf32, #tpu.memory_space<vmem>>, vector<24x128xf32>
    tpu.vector_store %arg11[%c0_22, %c0_23], %28 {strides = array<i32>} : memref<368x128xf32, #tpu.memory_space<vmem>>, vector<24x128xf32>,
    %cst_24 = arith.constant 0.000000e+00 : f32
    %30 = vector.broadcast %cst_24 : f32 to vector<24x128xf32>
    %c344 = arith.constant 344 : index
    %c0_25 = arith.constant 0 : index
    %31 = vector.load %arg11[%c344, %c0_25] : memref<368x128xf32, #tpu.memory_space<vmem>>, vector<24x128xf32>
    tpu.vector_store %arg11[%c344, %c0_25], %30 {strides = array<i32>} : memref<368x128xf32, #tpu.memory_space<vmem>>, vector<24x128xf32>,
    %c24 = arith.constant 24 : index
    %c0_26 = arith.constant 0 : index
    %32 = vector.load %arg11[%c24, %c0_26] : memref<368x128xf32, #tpu.memory_space<vmem>>, vector<320x128xf32>
    tpu.vector_store %arg11[%c24, %c0_26], %27 {strides = array<i32>} : memref<368x128xf32, #tpu.memory_space<vmem>>, vector<320x128xf32>,
    %c23 = arith.constant 23 : index
    %c0_27 = arith.constant 0 : index
    %33 = vector.load %arg11[%c23, %c0_27] : memref<368x128xf32, #tpu.memory_space<vmem>>, vector<320x128xf32>
    %c24_28 = arith.constant 24 : index
    %c0_29 = arith.constant 0 : index
    %34 = vector.load %arg11[%c24_28, %c0_29] : memref<368x128xf32, #tpu.memory_space<vmem>>, vector<320x128xf32>
    %35 = arith.maximumf %33, %34 : vector<320x128xf32>
    %c25 = arith.constant 25 : index
    %c0_30 = arith.constant 0 : index
    %36 = vector.load %arg11[%c25, %c0_30] : memref<368x128xf32, #tpu.memory_space<vmem>>, vector<320x128xf32>
    %37 = arith.maximumf %35, %36 : vector<320x128xf32>
    %c24_31 = arith.constant 24 : index
    %c0_32 = arith.constant 0 : index
    %38 = vector.load %arg11[%c24_31, %c0_32] : memref<368x128xf32, #tpu.memory_space<vmem>>, vector<320x128xf32>
    tpu.vector_store %arg11[%c24_31, %c0_32], %37 {strides = array<i32>} : memref<368x128xf32, #tpu.memory_space<vmem>>, vector<320x128xf32>,
    %c4 = arith.constant 4 : index
    %c0_33 = arith.constant 0 : index
    %39 = vector.load %arg11[%c4, %c0_33] : memref<368x128xf32, #tpu.memory_space<vmem>>, vector<320x128xf32>
    %c24_34 = arith.constant 24 : index
    %c0_35 = arith.constant 0 : index
    %40 = vector.load %arg11[%c24_34, %c0_35] : memref<368x128xf32, #tpu.memory_space<vmem>>, vector<320x128xf32>
    %41 = arith.maximumf %39, %40 : vector<320x128xf32>
    %c44 = arith.constant 44 : index
    %c0_36 = arith.constant 0 : index
    %42 = vector.load %arg11[%c44, %c0_36] : memref<368x128xf32, #tpu.memory_space<vmem>>, vector<320x128xf32>
    %43 = arith.maximumf %41, %42 : vector<320x128xf32>
    %c0_37 = arith.constant 0 : index
    %c0_38 = arith.constant 0 : index
    %44 = vector.load %arg9[%c0_37, %c0_38] : memref<160x320xbf16, #tpu.memory_space<vmem>>, vector<160x320xbf16>
    %45 = arith.truncf %43 : vector<320x128xf32> to vector<320x128xbf16>
    %cst_39 = arith.constant dense<0.000000e+00> : vector<160x128xf32>
    %46 = tpu.matmul %44, %45, %cst_39 {dimension_numbers = #tpu.dot_dimension_numbers<[1], [0], [0], [1], [0, 0, 1, 1], [], []>} : vector<160x320xbf16>, vector<320x128xbf16>, vector<160x128xf32> -> vector<160x128xf32>
    %47 = arith.truncf %46 : vector<160x128xf32> to vector<160x128xbf16>
    %c0_40 = arith.constant 0 : index
    %c0_41 = arith.constant 0 : index
    %c0_42 = arith.constant 0 : index
    %48 = vector.load %arg10[%c0_40, %c0_41, %c0_42] : memref<1x160x128xbf16, #tpu.memory_space<vmem>>, vector<1x160x128xbf16>
    %49 = vector.shape_cast %48 : vector<1x160x128xbf16> to vector<160x128xbf16>
    %50 = vector.shape_cast %47 : vector<160x128xbf16> to vector<1x160x128xbf16>
    tpu.vector_store %arg10[%c0_40, %c0_41, %c0_42], %50 {strides = array<i32>} : memref<1x160x128xbf16, #tpu.memory_space<vmem>>, vector<1x160x128xbf16>,
    return
  }
  func.func @transform_0(%arg0: i32) -> (i32, i32, i32) {
    %c0_i32 = arith.constant 0 : i32
    %c0_i32_0 = arith.constant 0 : i32
    %c0_i32_1 = arith.constant 0 : i32
    return %arg0, %c0_i32, %c0_i32_0 : i32, i32, i32
  }
  func.func @transform_1(%arg0: i32) -> (i32, i32) {
    %c0_i32 = arith.constant 0 : i32
    %c0_i32_0 = arith.constant 0 : i32
    %c0_i32_1 = arith.constant 0 : i32
    return %c0_i32, %c0_i32_0 : i32, i32
  }
  func.func @transform_2(%arg0: i32) -> (i32, i32) {
    %c0_i32 = arith.constant 0 : i32
    %c0_i32_0 = arith.constant 0 : i32
    %c0_i32_1 = arith.constant 0 : i32
    return %c0_i32, %c0_i32_0 : i32, i32
  }
  func.func @transform_3(%arg0: i32) -> (i32, i32) {
    %c0_i32 = arith.constant 0 : i32
    %c0_i32_0 = arith.constant 0 : i32
    %c0_i32_1 = arith.constant 0 : i32
    return %c0_i32, %c0_i32_0 : i32, i32
  }
  func.func @transform_4(%arg0: i32) -> (i32, i32) {
    %c0_i32 = arith.constant 0 : i32
    %c0_i32_0 = arith.constant 0 : i32
    %c0_i32_1 = arith.constant 0 : i32
    return %c0_i32, %c0_i32_0 : i32, i32
  }
  func.func @transform_5(%arg0: i32) -> (i32, i32) {
    %c0_i32 = arith.constant 0 : i32
    %c0_i32_0 = arith.constant 0 : i32
    %c0_i32_1 = arith.constant 0 : i32
    return %c0_i32, %c0_i32_0 : i32, i32
  }
  func.func @transform_6(%arg0: i32) -> (i32, i32) {
    %c0_i32 = arith.constant 0 : i32
    %c0_i32_0 = arith.constant 0 : i32
    %c0_i32_1 = arith.constant 0 : i32
    return %c0_i32, %c0_i32_0 : i32, i32
  }
  func.func @transform_7(%arg0: i32) -> (i32, i32) {
    %c0_i32 = arith.constant 0 : i32
    %c0_i32_0 = arith.constant 0 : i32
    %c0_i32_1 = arith.constant 0 : i32
    return %c0_i32, %c0_i32_0 : i32, i32
  }
  func.func @transform_8(%arg0: i32) -> (i32, i32) {
    %c0_i32 = arith.constant 0 : i32
    %c0_i32_0 = arith.constant 0 : i32
    %c0_i32_1 = arith.constant 0 : i32
    return %c0_i32, %c0_i32_0 : i32, i32
  }
  func.func @transform_9(%arg0: i32) -> (i32, i32, i32) {
    %c0_i32 = arith.constant 0 : i32
    %c0_i32_0 = arith.constant 0 : i32
    %c0_i32_1 = arith.constant 0 : i32
    return %arg0, %c0_i32, %c0_i32_0 : i32, i32, i32
  }
}

module attributes {stable_mosaic.version = 11 : i64} {
  func.func @_nin_block2_kernel(%arg0: i32, %arg1: memref<1x160x128xbf16, #tpu.memory_space<vmem>>, %arg2: memref<3200x192xbf16, #tpu.memory_space<vmem>>, %arg3: memref<1x192xf32, #tpu.memory_space<vmem>>, %arg4: memref<192x192xbf16, #tpu.memory_space<vmem>>, %arg5: memref<1x192xf32, #tpu.memory_space<vmem>>, %arg6: memref<192x192xbf16, #tpu.memory_space<vmem>>, %arg7: memref<1x192xf32, #tpu.memory_space<vmem>>, %arg8: memref<96x1xf32, #tpu.memory_space<vmem>>, %arg9: memref<16x96xbf16, #tpu.memory_space<vmem>>, %arg10: memref<1x16x192xf32, #tpu.memory_space<vmem>>, %arg11: memref<96x3200xbf16, #tpu.memory_space<vmem>>, %arg12: memref<128x192xf32, #tpu.memory_space<vmem>>) attributes {dimension_semantics = [#tpu.dimension_semantics<parallel>], iteration_bounds = array<i64: 2>, scalar_prefetch = 0 : i64, scratch_operands = 2 : i64, tpu.core_type = #tpu.core_type<tc>, window_params = [{transform_indices = @transform_0, window_bounds = array<i64: 1, 160, 128>}, {pipeline_mode = #tpu.pipeline_mode<synchronous>, transform_indices = @transform_1, window_bounds = array<i64: 3200, 192>}, {pipeline_mode = #tpu.pipeline_mode<synchronous>, transform_indices = @transform_2, window_bounds = array<i64: 1, 192>}, {pipeline_mode = #tpu.pipeline_mode<synchronous>, transform_indices = @transform_3, window_bounds = array<i64: 192, 192>}, {pipeline_mode = #tpu.pipeline_mode<synchronous>, transform_indices = @transform_4, window_bounds = array<i64: 1, 192>}, {pipeline_mode = #tpu.pipeline_mode<synchronous>, transform_indices = @transform_5, window_bounds = array<i64: 192, 192>}, {pipeline_mode = #tpu.pipeline_mode<synchronous>, transform_indices = @transform_6, window_bounds = array<i64: 1, 192>}, {pipeline_mode = #tpu.pipeline_mode<synchronous>, transform_indices = @transform_7, window_bounds = array<i64: 96, 1>}, {pipeline_mode = #tpu.pipeline_mode<synchronous>, transform_indices = @transform_8, window_bounds = array<i64: 16, 96>}, {transform_indices = @transform_9, window_bounds = array<i64: 1, 16, 192>}]} {
    %c0 = arith.constant 0 : index
    %c0_0 = arith.constant 0 : index
    %c0_1 = arith.constant 0 : index
    %0 = vector.load %arg1[%c0, %c0_0, %c0_1] : memref<1x160x128xbf16, #tpu.memory_space<vmem>>, vector<1x96x128xbf16>
    %1 = vector.shape_cast %0 : vector<1x96x128xbf16> to vector<96x128xbf16>
    %c0_2 = arith.constant 0 : index
    %c0_3 = arith.constant 0 : index
    %2 = vector.load %arg11[%c0_2, %c0_3] : memref<96x3200xbf16, #tpu.memory_space<vmem>>, vector<96x128xbf16>
    tpu.vector_store %arg11[%c0_2, %c0_3], %1 {strides = array<i32>} : memref<96x3200xbf16, #tpu.memory_space<vmem>>, vector<96x128xbf16>,
    %c0_4 = arith.constant 0 : index
    %c1 = arith.constant 1 : index
    %c0_5 = arith.constant 0 : index
    %3 = vector.load %arg1[%c0_4, %c1, %c0_5] : memref<1x160x128xbf16, #tpu.memory_space<vmem>>, vector<1x96x128xbf16>
    %4 = vector.shape_cast %3 : vector<1x96x128xbf16> to vector<96x128xbf16>
    %c0_6 = arith.constant 0 : index
    %c128 = arith.constant 128 : index
    %5 = vector.load %arg11[%c0_6, %c128] : memref<96x3200xbf16, #tpu.memory_space<vmem>>, vector<96x128xbf16>
    tpu.vector_store %arg11[%c0_6, %c128], %4 {strides = array<i32>} : memref<96x3200xbf16, #tpu.memory_space<vmem>>, vector<96x128xbf16>,
    %c0_7 = arith.constant 0 : index
    %c2 = arith.constant 2 : index
    %c0_8 = arith.constant 0 : index
    %6 = vector.load %arg1[%c0_7, %c2, %c0_8] : memref<1x160x128xbf16, #tpu.memory_space<vmem>>, vector<1x96x128xbf16>
    %7 = vector.shape_cast %6 : vector<1x96x128xbf16> to vector<96x128xbf16>
    %c0_9 = arith.constant 0 : index
    %c256 = arith.constant 256 : index
    %8 = vector.load %arg11[%c0_9, %c256] : memref<96x3200xbf16, #tpu.memory_space<vmem>>, vector<96x128xbf16>
    tpu.vector_store %arg11[%c0_9, %c256], %7 {strides = array<i32>} : memref<96x3200xbf16, #tpu.memory_space<vmem>>, vector<96x128xbf16>,
    %c0_10 = arith.constant 0 : index
    %c3 = arith.constant 3 : index
    %c0_11 = arith.constant 0 : index
    %9 = vector.load %arg1[%c0_10, %c3, %c0_11] : memref<1x160x128xbf16, #tpu.memory_space<vmem>>, vector<1x96x128xbf16>
    %10 = vector.shape_cast %9 : vector<1x96x128xbf16> to vector<96x128xbf16>
    %c0_12 = arith.constant 0 : index
    %c384 = arith.constant 384 : index
    %11 = vector.load %arg11[%c0_12, %c384] : memref<96x3200xbf16, #tpu.memory_space<vmem>>, vector<96x128xbf16>
    tpu.vector_store %arg11[%c0_12, %c384], %10 {strides = array<i32>} : memref<96x3200xbf16, #tpu.memory_space<vmem>>, vector<96x128xbf16>,
    %c0_13 = arith.constant 0 : index
    %c4 = arith.constant 4 : index
    %c0_14 = arith.constant 0 : index
    %12 = vector.load %arg1[%c0_13, %c4, %c0_14] : memref<1x160x128xbf16, #tpu.memory_space<vmem>>, vector<1x96x128xbf16>
    %13 = vector.shape_cast %12 : vector<1x96x128xbf16> to vector<96x128xbf16>
    %c0_15 = arith.constant 0 : index
    %c512 = arith.constant 512 : index
    %14 = vector.load %arg11[%c0_15, %c512] : memref<96x3200xbf16, #tpu.memory_space<vmem>>, vector<96x128xbf16>
    tpu.vector_store %arg11[%c0_15, %c512], %13 {strides = array<i32>} : memref<96x3200xbf16, #tpu.memory_space<vmem>>, vector<96x128xbf16>,
    %c0_16 = arith.constant 0 : index
    %c12 = arith.constant 12 : index
    %c0_17 = arith.constant 0 : index
    %15 = vector.load %arg1[%c0_16, %c12, %c0_17] : memref<1x160x128xbf16, #tpu.memory_space<vmem>>, vector<1x96x128xbf16>
    %16 = vector.shape_cast %15 : vector<1x96x128xbf16> to vector<96x128xbf16>
    %c0_18 = arith.constant 0 : index
    %c640 = arith.constant 640 : index
    %17 = vector.load %arg11[%c0_18, %c640] : memref<96x3200xbf16, #tpu.memory_space<vmem>>, vector<96x128xbf16>
    tpu.vector_store %arg11[%c0_18, %c640], %16 {strides = array<i32>} : memref<96x3200xbf16, #tpu.memory_space<vmem>>, vector<96x128xbf16>,
    %c0_19 = arith.constant 0 : index
    %c13 = arith.constant 13 : index
    %c0_20 = arith.constant 0 : index
    %18 = vector.load %arg1[%c0_19, %c13, %c0_20] : memref<1x160x128xbf16, #tpu.memory_space<vmem>>, vector<1x96x128xbf16>
    %19 = vector.shape_cast %18 : vector<1x96x128xbf16> to vector<96x128xbf16>
    %c0_21 = arith.constant 0 : index
    %c768 = arith.constant 768 : index
    %20 = vector.load %arg11[%c0_21, %c768] : memref<96x3200xbf16, #tpu.memory_space<vmem>>, vector<96x128xbf16>
    tpu.vector_store %arg11[%c0_21, %c768], %19 {strides = array<i32>} : memref<96x3200xbf16, #tpu.memory_space<vmem>>, vector<96x128xbf16>,
    %c0_22 = arith.constant 0 : index
    %c14 = arith.constant 14 : index
    %c0_23 = arith.constant 0 : index
    %21 = vector.load %arg1[%c0_22, %c14, %c0_23] : memref<1x160x128xbf16, #tpu.memory_space<vmem>>, vector<1x96x128xbf16>
    %22 = vector.shape_cast %21 : vector<1x96x128xbf16> to vector<96x128xbf16>
    %c0_24 = arith.constant 0 : index
    %c896 = arith.constant 896 : index
    %23 = vector.load %arg11[%c0_24, %c896] : memref<96x3200xbf16, #tpu.memory_space<vmem>>, vector<96x128xbf16>
    tpu.vector_store %arg11[%c0_24, %c896], %22 {strides = array<i32>} : memref<96x3200xbf16, #tpu.memory_space<vmem>>, vector<96x128xbf16>,
    %c0_25 = arith.constant 0 : index
    %c15 = arith.constant 15 : index
    %c0_26 = arith.constant 0 : index
    %24 = vector.load %arg1[%c0_25, %c15, %c0_26] : memref<1x160x128xbf16, #tpu.memory_space<vmem>>, vector<1x96x128xbf16>
    %25 = vector.shape_cast %24 : vector<1x96x128xbf16> to vector<96x128xbf16>
    %c0_27 = arith.constant 0 : index
    %c1024 = arith.constant 1024 : index
    %26 = vector.load %arg11[%c0_27, %c1024] : memref<96x3200xbf16, #tpu.memory_space<vmem>>, vector<96x128xbf16>
    tpu.vector_store %arg11[%c0_27, %c1024], %25 {strides = array<i32>} : memref<96x3200xbf16, #tpu.memory_space<vmem>>, vector<96x128xbf16>,
    %c0_28 = arith.constant 0 : index
    %c16 = arith.constant 16 : index
    %c0_29 = arith.constant 0 : index
    %27 = vector.load %arg1[%c0_28, %c16, %c0_29] : memref<1x160x128xbf16, #tpu.memory_space<vmem>>, vector<1x96x128xbf16>
    %28 = vector.shape_cast %27 : vector<1x96x128xbf16> to vector<96x128xbf16>
    %c0_30 = arith.constant 0 : index
    %c1152 = arith.constant 1152 : index
    %29 = vector.load %arg11[%c0_30, %c1152] : memref<96x3200xbf16, #tpu.memory_space<vmem>>, vector<96x128xbf16>
    tpu.vector_store %arg11[%c0_30, %c1152], %28 {strides = array<i32>} : memref<96x3200xbf16, #tpu.memory_space<vmem>>, vector<96x128xbf16>,
    %c0_31 = arith.constant 0 : index
    %c24 = arith.constant 24 : index
    %c0_32 = arith.constant 0 : index
    %30 = vector.load %arg1[%c0_31, %c24, %c0_32] : memref<1x160x128xbf16, #tpu.memory_space<vmem>>, vector<1x96x128xbf16>
    %31 = vector.shape_cast %30 : vector<1x96x128xbf16> to vector<96x128xbf16>
    %c0_33 = arith.constant 0 : index
    %c1280 = arith.constant 1280 : index
    %32 = vector.load %arg11[%c0_33, %c1280] : memref<96x3200xbf16, #tpu.memory_space<vmem>>, vector<96x128xbf16>
    tpu.vector_store %arg11[%c0_33, %c1280], %31 {strides = array<i32>} : memref<96x3200xbf16, #tpu.memory_space<vmem>>, vector<96x128xbf16>,
    %c0_34 = arith.constant 0 : index
    %c25 = arith.constant 25 : index
    %c0_35 = arith.constant 0 : index
    %33 = vector.load %arg1[%c0_34, %c25, %c0_35] : memref<1x160x128xbf16, #tpu.memory_space<vmem>>, vector<1x96x128xbf16>
    %34 = vector.shape_cast %33 : vector<1x96x128xbf16> to vector<96x128xbf16>
    %c0_36 = arith.constant 0 : index
    %c1408 = arith.constant 1408 : index
    %35 = vector.load %arg11[%c0_36, %c1408] : memref<96x3200xbf16, #tpu.memory_space<vmem>>, vector<96x128xbf16>
    tpu.vector_store %arg11[%c0_36, %c1408], %34 {strides = array<i32>} : memref<96x3200xbf16, #tpu.memory_space<vmem>>, vector<96x128xbf16>,
    %c0_37 = arith.constant 0 : index
    %c26 = arith.constant 26 : index
    %c0_38 = arith.constant 0 : index
    %36 = vector.load %arg1[%c0_37, %c26, %c0_38] : memref<1x160x128xbf16, #tpu.memory_space<vmem>>, vector<1x96x128xbf16>
    %37 = vector.shape_cast %36 : vector<1x96x128xbf16> to vector<96x128xbf16>
    %c0_39 = arith.constant 0 : index
    %c1536 = arith.constant 1536 : index
    %38 = vector.load %arg11[%c0_39, %c1536] : memref<96x3200xbf16, #tpu.memory_space<vmem>>, vector<96x128xbf16>
    tpu.vector_store %arg11[%c0_39, %c1536], %37 {strides = array<i32>} : memref<96x3200xbf16, #tpu.memory_space<vmem>>, vector<96x128xbf16>,
    %c0_40 = arith.constant 0 : index
    %c27 = arith.constant 27 : index
    %c0_41 = arith.constant 0 : index
    %39 = vector.load %arg1[%c0_40, %c27, %c0_41] : memref<1x160x128xbf16, #tpu.memory_space<vmem>>, vector<1x96x128xbf16>
    %40 = vector.shape_cast %39 : vector<1x96x128xbf16> to vector<96x128xbf16>
    %c0_42 = arith.constant 0 : index
    %c1664 = arith.constant 1664 : index
    %41 = vector.load %arg11[%c0_42, %c1664] : memref<96x3200xbf16, #tpu.memory_space<vmem>>, vector<96x128xbf16>
    tpu.vector_store %arg11[%c0_42, %c1664], %40 {strides = array<i32>} : memref<96x3200xbf16, #tpu.memory_space<vmem>>, vector<96x128xbf16>,
    %c0_43 = arith.constant 0 : index
    %c28 = arith.constant 28 : index
    %c0_44 = arith.constant 0 : index
    %42 = vector.load %arg1[%c0_43, %c28, %c0_44] : memref<1x160x128xbf16, #tpu.memory_space<vmem>>, vector<1x96x128xbf16>
    %43 = vector.shape_cast %42 : vector<1x96x128xbf16> to vector<96x128xbf16>
    %c0_45 = arith.constant 0 : index
    %c1792 = arith.constant 1792 : index
    %44 = vector.load %arg11[%c0_45, %c1792] : memref<96x3200xbf16, #tpu.memory_space<vmem>>, vector<96x128xbf16>
    tpu.vector_store %arg11[%c0_45, %c1792], %43 {strides = array<i32>} : memref<96x3200xbf16, #tpu.memory_space<vmem>>, vector<96x128xbf16>,
    %c0_46 = arith.constant 0 : index
    %c36 = arith.constant 36 : index
    %c0_47 = arith.constant 0 : index
    %45 = vector.load %arg1[%c0_46, %c36, %c0_47] : memref<1x160x128xbf16, #tpu.memory_space<vmem>>, vector<1x96x128xbf16>
    %46 = vector.shape_cast %45 : vector<1x96x128xbf16> to vector<96x128xbf16>
    %c0_48 = arith.constant 0 : index
    %c1920 = arith.constant 1920 : index
    %47 = vector.load %arg11[%c0_48, %c1920] : memref<96x3200xbf16, #tpu.memory_space<vmem>>, vector<96x128xbf16>
    tpu.vector_store %arg11[%c0_48, %c1920], %46 {strides = array<i32>} : memref<96x3200xbf16, #tpu.memory_space<vmem>>, vector<96x128xbf16>,
    %c0_49 = arith.constant 0 : index
    %c37 = arith.constant 37 : index
    %c0_50 = arith.constant 0 : index
    %48 = vector.load %arg1[%c0_49, %c37, %c0_50] : memref<1x160x128xbf16, #tpu.memory_space<vmem>>, vector<1x96x128xbf16>
    %49 = vector.shape_cast %48 : vector<1x96x128xbf16> to vector<96x128xbf16>
    %c0_51 = arith.constant 0 : index
    %c2048 = arith.constant 2048 : index
    %50 = vector.load %arg11[%c0_51, %c2048] : memref<96x3200xbf16, #tpu.memory_space<vmem>>, vector<96x128xbf16>
    tpu.vector_store %arg11[%c0_51, %c2048], %49 {strides = array<i32>} : memref<96x3200xbf16, #tpu.memory_space<vmem>>, vector<96x128xbf16>,
    %c0_52 = arith.constant 0 : index
    %c38 = arith.constant 38 : index
    %c0_53 = arith.constant 0 : index
    %51 = vector.load %arg1[%c0_52, %c38, %c0_53] : memref<1x160x128xbf16, #tpu.memory_space<vmem>>, vector<1x96x128xbf16>
    %52 = vector.shape_cast %51 : vector<1x96x128xbf16> to vector<96x128xbf16>
    %c0_54 = arith.constant 0 : index
    %c2176 = arith.constant 2176 : index
    %53 = vector.load %arg11[%c0_54, %c2176] : memref<96x3200xbf16, #tpu.memory_space<vmem>>, vector<96x128xbf16>
    tpu.vector_store %arg11[%c0_54, %c2176], %52 {strides = array<i32>} : memref<96x3200xbf16, #tpu.memory_space<vmem>>, vector<96x128xbf16>,
    %c0_55 = arith.constant 0 : index
    %c39 = arith.constant 39 : index
    %c0_56 = arith.constant 0 : index
    %54 = vector.load %arg1[%c0_55, %c39, %c0_56] : memref<1x160x128xbf16, #tpu.memory_space<vmem>>, vector<1x96x128xbf16>
    %55 = vector.shape_cast %54 : vector<1x96x128xbf16> to vector<96x128xbf16>
    %c0_57 = arith.constant 0 : index
    %c2304 = arith.constant 2304 : index
    %56 = vector.load %arg11[%c0_57, %c2304] : memref<96x3200xbf16, #tpu.memory_space<vmem>>, vector<96x128xbf16>
    tpu.vector_store %arg11[%c0_57, %c2304], %55 {strides = array<i32>} : memref<96x3200xbf16, #tpu.memory_space<vmem>>, vector<96x128xbf16>,
    %c0_58 = arith.constant 0 : index
    %c40 = arith.constant 40 : index
    %c0_59 = arith.constant 0 : index
    %57 = vector.load %arg1[%c0_58, %c40, %c0_59] : memref<1x160x128xbf16, #tpu.memory_space<vmem>>, vector<1x96x128xbf16>
    %58 = vector.shape_cast %57 : vector<1x96x128xbf16> to vector<96x128xbf16>
    %c0_60 = arith.constant 0 : index
    %c2432 = arith.constant 2432 : index
    %59 = vector.load %arg11[%c0_60, %c2432] : memref<96x3200xbf16, #tpu.memory_space<vmem>>, vector<96x128xbf16>
    tpu.vector_store %arg11[%c0_60, %c2432], %58 {strides = array<i32>} : memref<96x3200xbf16, #tpu.memory_space<vmem>>, vector<96x128xbf16>,
    %c0_61 = arith.constant 0 : index
    %c48 = arith.constant 48 : index
    %c0_62 = arith.constant 0 : index
    %60 = vector.load %arg1[%c0_61, %c48, %c0_62] : memref<1x160x128xbf16, #tpu.memory_space<vmem>>, vector<1x96x128xbf16>
    %61 = vector.shape_cast %60 : vector<1x96x128xbf16> to vector<96x128xbf16>
    %c0_63 = arith.constant 0 : index
    %c2560 = arith.constant 2560 : index
    %62 = vector.load %arg11[%c0_63, %c2560] : memref<96x3200xbf16, #tpu.memory_space<vmem>>, vector<96x128xbf16>
    tpu.vector_store %arg11[%c0_63, %c2560], %61 {strides = array<i32>} : memref<96x3200xbf16, #tpu.memory_space<vmem>>, vector<96x128xbf16>,
    %c0_64 = arith.constant 0 : index
    %c49 = arith.constant 49 : index
    %c0_65 = arith.constant 0 : index
    %63 = vector.load %arg1[%c0_64, %c49, %c0_65] : memref<1x160x128xbf16, #tpu.memory_space<vmem>>, vector<1x96x128xbf16>
    %64 = vector.shape_cast %63 : vector<1x96x128xbf16> to vector<96x128xbf16>
    %c0_66 = arith.constant 0 : index
    %c2688 = arith.constant 2688 : index
    %65 = vector.load %arg11[%c0_66, %c2688] : memref<96x3200xbf16, #tpu.memory_space<vmem>>, vector<96x128xbf16>
    tpu.vector_store %arg11[%c0_66, %c2688], %64 {strides = array<i32>} : memref<96x3200xbf16, #tpu.memory_space<vmem>>, vector<96x128xbf16>,
    %c0_67 = arith.constant 0 : index
    %c50 = arith.constant 50 : index
    %c0_68 = arith.constant 0 : index
    %66 = vector.load %arg1[%c0_67, %c50, %c0_68] : memref<1x160x128xbf16, #tpu.memory_space<vmem>>, vector<1x96x128xbf16>
    %67 = vector.shape_cast %66 : vector<1x96x128xbf16> to vector<96x128xbf16>
    %c0_69 = arith.constant 0 : index
    %c2816 = arith.constant 2816 : index
    %68 = vector.load %arg11[%c0_69, %c2816] : memref<96x3200xbf16, #tpu.memory_space<vmem>>, vector<96x128xbf16>
    tpu.vector_store %arg11[%c0_69, %c2816], %67 {strides = array<i32>} : memref<96x3200xbf16, #tpu.memory_space<vmem>>, vector<96x128xbf16>,
    %c0_70 = arith.constant 0 : index
    %c51 = arith.constant 51 : index
    %c0_71 = arith.constant 0 : index
    %69 = vector.load %arg1[%c0_70, %c51, %c0_71] : memref<1x160x128xbf16, #tpu.memory_space<vmem>>, vector<1x96x128xbf16>
    %70 = vector.shape_cast %69 : vector<1x96x128xbf16> to vector<96x128xbf16>
    %c0_72 = arith.constant 0 : index
    %c2944 = arith.constant 2944 : index
    %71 = vector.load %arg11[%c0_72, %c2944] : memref<96x3200xbf16, #tpu.memory_space<vmem>>, vector<96x128xbf16>
    tpu.vector_store %arg11[%c0_72, %c2944], %70 {strides = array<i32>} : memref<96x3200xbf16, #tpu.memory_space<vmem>>, vector<96x128xbf16>,
    %c0_73 = arith.constant 0 : index
    %c52 = arith.constant 52 : index
    %c0_74 = arith.constant 0 : index
    %72 = vector.load %arg1[%c0_73, %c52, %c0_74] : memref<1x160x128xbf16, #tpu.memory_space<vmem>>, vector<1x96x128xbf16>
    %73 = vector.shape_cast %72 : vector<1x96x128xbf16> to vector<96x128xbf16>
    %c0_75 = arith.constant 0 : index
    %c3072 = arith.constant 3072 : index
    %74 = vector.load %arg11[%c0_75, %c3072] : memref<96x3200xbf16, #tpu.memory_space<vmem>>, vector<96x128xbf16>
    tpu.vector_store %arg11[%c0_75, %c3072], %73 {strides = array<i32>} : memref<96x3200xbf16, #tpu.memory_space<vmem>>, vector<96x128xbf16>,
    %c0_76 = arith.constant 0 : index
    %c0_77 = arith.constant 0 : index
    %75 = vector.load %arg11[%c0_76, %c0_77] : memref<96x3200xbf16, #tpu.memory_space<vmem>>, vector<96x3200xbf16>
    %c0_78 = arith.constant 0 : index
    %c0_79 = arith.constant 0 : index
    %76 = vector.load %arg2[%c0_78, %c0_79] : memref<3200x192xbf16, #tpu.memory_space<vmem>>, vector<3200x192xbf16>
    %cst = arith.constant dense<0.000000e+00> : vector<96x192xf32>
    %77 = tpu.matmul %75, %76, %cst {dimension_numbers = #tpu.dot_dimension_numbers<[1], [0], [0], [1], [0, 0, 1, 1], [], []>} : vector<96x3200xbf16>, vector<3200x192xbf16>, vector<96x192xf32> -> vector<96x192xf32>
    %c0_80 = arith.constant 0 : index
    %c0_81 = arith.constant 0 : index
    %78 = vector.load %arg3[%c0_80, %c0_81] : memref<1x192xf32, #tpu.memory_space<vmem>>, vector<1x192xf32>
    %79 = vector.broadcast %78 : vector<1x192xf32> to vector<96x192xf32>
    %80 = arith.addf %77, %79 : vector<96x192xf32>
    %cst_82 = arith.constant 0.000000e+00 : f32
    %81 = vector.broadcast %cst_82 : f32 to vector<96x192xf32>
    %82 = arith.maximumf %80, %81 : vector<96x192xf32>
    %83 = arith.truncf %82 : vector<96x192xf32> to vector<96x192xbf16>
    %c0_83 = arith.constant 0 : index
    %c0_84 = arith.constant 0 : index
    %84 = vector.load %arg4[%c0_83, %c0_84] : memref<192x192xbf16, #tpu.memory_space<vmem>>, vector<192x192xbf16>
    %cst_85 = arith.constant dense<0.000000e+00> : vector<96x192xf32>
    %85 = tpu.matmul %83, %84, %cst_85 {dimension_numbers = #tpu.dot_dimension_numbers<[1], [0], [0], [1], [0, 0, 1, 1], [], []>} : vector<96x192xbf16>, vector<192x192xbf16>, vector<96x192xf32> -> vector<96x192xf32>
    %c0_86 = arith.constant 0 : index
    %c0_87 = arith.constant 0 : index
    %86 = vector.load %arg5[%c0_86, %c0_87] : memref<1x192xf32, #tpu.memory_space<vmem>>, vector<1x192xf32>
    %87 = vector.broadcast %86 : vector<1x192xf32> to vector<96x192xf32>
    %88 = arith.addf %85, %87 : vector<96x192xf32>
    %cst_88 = arith.constant 0.000000e+00 : f32
    %89 = vector.broadcast %cst_88 : f32 to vector<96x192xf32>
    %90 = arith.maximumf %88, %89 : vector<96x192xf32>
    %91 = arith.truncf %90 : vector<96x192xf32> to vector<96x192xbf16>
    %c0_89 = arith.constant 0 : index
    %c0_90 = arith.constant 0 : index
    %92 = vector.load %arg6[%c0_89, %c0_90] : memref<192x192xbf16, #tpu.memory_space<vmem>>, vector<192x192xbf16>
    %cst_91 = arith.constant dense<0.000000e+00> : vector<96x192xf32>
    %93 = tpu.matmul %91, %92, %cst_91 {dimension_numbers = #tpu.dot_dimension_numbers<[1], [0], [0], [1], [0, 0, 1, 1], [], []>} : vector<96x192xbf16>, vector<192x192xbf16>, vector<96x192xf32> -> vector<96x192xf32>
    %c0_92 = arith.constant 0 : index
    %c0_93 = arith.constant 0 : index
    %94 = vector.load %arg7[%c0_92, %c0_93] : memref<1x192xf32, #tpu.memory_space<vmem>>, vector<1x192xf32>
    %95 = vector.broadcast %94 : vector<1x192xf32> to vector<96x192xf32>
    %96 = arith.addf %93, %95 : vector<96x192xf32>
    %cst_94 = arith.constant 0.000000e+00 : f32
    %97 = vector.broadcast %cst_94 : f32 to vector<96x192xf32>
    %98 = arith.maximumf %96, %97 : vector<96x192xf32>
    %c0_95 = arith.constant 0 : index
    %c0_96 = arith.constant 0 : index
    %99 = vector.load %arg8[%c0_95, %c0_96] : memref<96x1xf32, #tpu.memory_space<vmem>>, vector<96x1xf32>
    %100 = vector.broadcast %99 : vector<96x1xf32> to vector<96x192xf32>
    %101 = arith.mulf %98, %100 : vector<96x192xf32>
    %cst_97 = arith.constant 0.000000e+00 : f32
    %102 = vector.broadcast %cst_97 : f32 to vector<16x192xf32>
    %c0_98 = arith.constant 0 : index
    %c0_99 = arith.constant 0 : index
    %103 = vector.load %arg12[%c0_98, %c0_99] : memref<128x192xf32, #tpu.memory_space<vmem>>, vector<16x192xf32>
    tpu.vector_store %arg12[%c0_98, %c0_99], %102 {strides = array<i32>} : memref<128x192xf32, #tpu.memory_space<vmem>>, vector<16x192xf32>,
    %cst_100 = arith.constant 0.000000e+00 : f32
    %104 = vector.broadcast %cst_100 : f32 to vector<16x192xf32>
    %c112 = arith.constant 112 : index
    %c0_101 = arith.constant 0 : index
    %105 = vector.load %arg12[%c112, %c0_101] : memref<128x192xf32, #tpu.memory_space<vmem>>, vector<16x192xf32>
    tpu.vector_store %arg12[%c112, %c0_101], %104 {strides = array<i32>} : memref<128x192xf32, #tpu.memory_space<vmem>>, vector<16x192xf32>,
    %c16_102 = arith.constant 16 : index
    %c0_103 = arith.constant 0 : index
    %106 = vector.load %arg12[%c16_102, %c0_103] : memref<128x192xf32, #tpu.memory_space<vmem>>, vector<96x192xf32>
    tpu.vector_store %arg12[%c16_102, %c0_103], %101 {strides = array<i32>} : memref<128x192xf32, #tpu.memory_space<vmem>>, vector<96x192xf32>,
    %c15_104 = arith.constant 15 : index
    %c0_105 = arith.constant 0 : index
    %107 = vector.load %arg12[%c15_104, %c0_105] : memref<128x192xf32, #tpu.memory_space<vmem>>, vector<96x192xf32>
    %c16_106 = arith.constant 16 : index
    %c0_107 = arith.constant 0 : index
    %108 = vector.load %arg12[%c16_106, %c0_107] : memref<128x192xf32, #tpu.memory_space<vmem>>, vector<96x192xf32>
    %109 = arith.maximumf %107, %108 : vector<96x192xf32>
    %c17 = arith.constant 17 : index
    %c0_108 = arith.constant 0 : index
    %110 = vector.load %arg12[%c17, %c0_108] : memref<128x192xf32, #tpu.memory_space<vmem>>, vector<96x192xf32>
    %111 = arith.maximumf %109, %110 : vector<96x192xf32>
    %c16_109 = arith.constant 16 : index
    %c0_110 = arith.constant 0 : index
    %112 = vector.load %arg12[%c16_109, %c0_110] : memref<128x192xf32, #tpu.memory_space<vmem>>, vector<96x192xf32>
    tpu.vector_store %arg12[%c16_109, %c0_110], %111 {strides = array<i32>} : memref<128x192xf32, #tpu.memory_space<vmem>>, vector<96x192xf32>,
    %c4_111 = arith.constant 4 : index
    %c0_112 = arith.constant 0 : index
    %113 = vector.load %arg12[%c4_111, %c0_112] : memref<128x192xf32, #tpu.memory_space<vmem>>, vector<96x192xf32>
    %c16_113 = arith.constant 16 : index
    %c0_114 = arith.constant 0 : index
    %114 = vector.load %arg12[%c16_113, %c0_114] : memref<128x192xf32, #tpu.memory_space<vmem>>, vector<96x192xf32>
    %115 = arith.maximumf %113, %114 : vector<96x192xf32>
    %c28_115 = arith.constant 28 : index
    %c0_116 = arith.constant 0 : index
    %116 = vector.load %arg12[%c28_115, %c0_116] : memref<128x192xf32, #tpu.memory_space<vmem>>, vector<96x192xf32>
    %117 = arith.maximumf %115, %116 : vector<96x192xf32>
    %c0_117 = arith.constant 0 : index
    %c0_118 = arith.constant 0 : index
    %118 = vector.load %arg9[%c0_117, %c0_118] : memref<16x96xbf16, #tpu.memory_space<vmem>>, vector<16x96xbf16>
    %119 = arith.truncf %117 : vector<96x192xf32> to vector<96x192xbf16>
    %cst_119 = arith.constant dense<0.000000e+00> : vector<16x192xf32>
    %120 = tpu.matmul %118, %119, %cst_119 {dimension_numbers = #tpu.dot_dimension_numbers<[1], [0], [0], [1], [0, 0, 1, 1], [], []>} : vector<16x96xbf16>, vector<96x192xbf16>, vector<16x192xf32> -> vector<16x192xf32>
    %c0_120 = arith.constant 0 : index
    %c0_121 = arith.constant 0 : index
    %c0_122 = arith.constant 0 : index
    %121 = vector.load %arg10[%c0_120, %c0_121, %c0_122] : memref<1x16x192xf32, #tpu.memory_space<vmem>>, vector<1x16x192xf32>
    %122 = vector.shape_cast %121 : vector<1x16x192xf32> to vector<16x192xf32>
    %123 = vector.shape_cast %120 : vector<16x192xf32> to vector<1x16x192xf32>
    tpu.vector_store %arg10[%c0_120, %c0_121, %c0_122], %123 {strides = array<i32>} : memref<1x16x192xf32, #tpu.memory_space<vmem>>, vector<1x16x192xf32>,
    return
  }
  func.func @transform_0(%arg0: i32) -> (i32, i32, i32) {
    %c0_i32 = arith.constant 0 : i32
    %c0_i32_0 = arith.constant 0 : i32
    %c0_i32_1 = arith.constant 0 : i32
    return %arg0, %c0_i32, %c0_i32_0 : i32, i32, i32
  }
  func.func @transform_1(%arg0: i32) -> (i32, i32) {
    %c0_i32 = arith.constant 0 : i32
    %c0_i32_0 = arith.constant 0 : i32
    %c0_i32_1 = arith.constant 0 : i32
    return %c0_i32, %c0_i32_0 : i32, i32
  }
  func.func @transform_2(%arg0: i32) -> (i32, i32) {
    %c0_i32 = arith.constant 0 : i32
    %c0_i32_0 = arith.constant 0 : i32
    %c0_i32_1 = arith.constant 0 : i32
    return %c0_i32, %c0_i32_0 : i32, i32
  }
  func.func @transform_3(%arg0: i32) -> (i32, i32) {
    %c0_i32 = arith.constant 0 : i32
    %c0_i32_0 = arith.constant 0 : i32
    %c0_i32_1 = arith.constant 0 : i32
    return %c0_i32, %c0_i32_0 : i32, i32
  }
  func.func @transform_4(%arg0: i32) -> (i32, i32) {
    %c0_i32 = arith.constant 0 : i32
    %c0_i32_0 = arith.constant 0 : i32
    %c0_i32_1 = arith.constant 0 : i32
    return %c0_i32, %c0_i32_0 : i32, i32
  }
  func.func @transform_5(%arg0: i32) -> (i32, i32) {
    %c0_i32 = arith.constant 0 : i32
    %c0_i32_0 = arith.constant 0 : i32
    %c0_i32_1 = arith.constant 0 : i32
    return %c0_i32, %c0_i32_0 : i32, i32
  }
  func.func @transform_6(%arg0: i32) -> (i32, i32) {
    %c0_i32 = arith.constant 0 : i32
    %c0_i32_0 = arith.constant 0 : i32
    %c0_i32_1 = arith.constant 0 : i32
    return %c0_i32, %c0_i32_0 : i32, i32
  }
  func.func @transform_7(%arg0: i32) -> (i32, i32) {
    %c0_i32 = arith.constant 0 : i32
    %c0_i32_0 = arith.constant 0 : i32
    %c0_i32_1 = arith.constant 0 : i32
    return %c0_i32, %c0_i32_0 : i32, i32
  }
  func.func @transform_8(%arg0: i32) -> (i32, i32) {
    %c0_i32 = arith.constant 0 : i32
    %c0_i32_0 = arith.constant 0 : i32
    %c0_i32_1 = arith.constant 0 : i32
    return %c0_i32, %c0_i32_0 : i32, i32
  }
  func.func @transform_9(%arg0: i32) -> (i32, i32, i32) {
    %c0_i32 = arith.constant 0 : i32
    %c0_i32_0 = arith.constant 0 : i32
    %c0_i32_1 = arith.constant 0 : i32
    return %arg0, %c0_i32, %c0_i32_0 : i32, i32, i32
  }
}

</mosaic_0001>

<llo_original>
// kernel: _lambda_.2
$region0: #{_lambda_.2}
  #allocation0 [shape = 'u32[]', space=smem, size = 0x4, offset = 0x4, fixed_abs, tag = 'smem constant byte address 0x4 - core index']
  #allocation1 [shape = 'u32[144,128]{1,0:T(1,128)}', space=vmem, size = 0x12000, scoped, tag = 'internal scratch']
  #allocation2 [shape = 'f32[368,128]{1,0:T(8,128)}', space=vmem, size = 0x2e000, scoped, tag = 'scratch operand']
  %s0 = inlined_call_operand.vmem [shape: bf16[2,320,128], index: 0, kind: input, shape index: {}]
  %s1 = inlined_call_operand.vmem [shape: bf16[128,192], index: 1, kind: input, shape index: {}]
  %s2 = inlined_call_operand.vmem [shape: f32[1,192], index: 2, kind: input, shape index: {}]
  %s3 = inlined_call_operand.vmem [shape: bf16[192,160], index: 3, kind: input, shape index: {}]
  %s4 = inlined_call_operand.vmem [shape: f32[1,160], index: 4, kind: input, shape index: {}]
  %s5 = inlined_call_operand.vmem [shape: bf16[160,128], index: 5, kind: input, shape index: {}]
  %s6 = inlined_call_operand.vmem [shape: f32[1,128], index: 6, kind: input, shape index: {}]
  %s7 = inlined_call_operand.vmem [shape: f32[320,1], index: 7, kind: input, shape index: {}]
  %s8 = inlined_call_operand.vmem [shape: bf16[160,320], index: 8, kind: input, shape index: {}]
  %s9 = inlined_call_operand.vmem [shape: bf16[2,160,128], index: 9, kind: output, shape index: {}]
  %s10 = sld [smem:[#allocation0]]
  $region69: #{_lambda_.2} parent=0
    _
  %s12 = ssub.s32 1, %s10
  %s13 = scalar_select 0, %s12, %s10
  loop: start=0, step=1, limit=4
  $region2: #{_lambda_.2} parent=0 // loop_pre_header
    _
  $region3: #{_lambda_.2} parent=0 // loop_header
    %s15 = sphi 0, %s19
    %p16 = scmp.ge.s32.totalorder %s15, 4
    %s25 = sphi 0, %s27
    %s28 = sphi 0, %s25
    %s29 = sphi 0, %s28
    %s45 = sphi 0, %s29
    %s49 = sphi 0, %s49
    %s51 = sphi 0, %s49
    %s52 = sphi 0, %s51
    %s66 = sphi 0, %s52
    %s70 = sphi 0, %s70
    %s72 = sphi 0, %s70
    %s73 = sphi 0, %s72
    %s87 = sphi 0, %s73
    %s91 = sphi 0, %s91
    %s93 = sphi 0, %s91
    %s94 = sphi 0, %s93
    %s108 = sphi 0, %s94
    %s112 = sphi 0, %s112
    %s114 = sphi 0, %s112
    %s115 = sphi 0, %s114
    %s129 = sphi 0, %s115
    %s133 = sphi 0, %s133
    %s135 = sphi 0, %s133
    %s136 = sphi 0, %s135
    %s150 = sphi 0, %s136
    %s154 = sphi 0, %s154
    %s156 = sphi 0, %s154
    %s157 = sphi 0, %s156
    %s171 = sphi 0, %s157
    %s175 = sphi 0, %s175
    %s177 = sphi 0, %s175
    %s178 = sphi 0, %s177
    %s192 = sphi 0, %s178
    %s196 = sphi 0, %s196
    %s198 = sphi 0, %s196
    %s199 = sphi 0, %s198
    %s213 = sphi 0, %s199
    %s219 = sphi 0, %s221
    %s222 = sphi 0, %s219
    %s223 = sphi 0, %s222
    %s239 = sphi 0, %s223
  $region4: #{_lambda_.2} parent=0 // loop_header_branch
    %18 = sbr.rel (%p16) target = $region8
  $region5: #{_lambda_.2} parent=0 // loop_body
    %s20 = ssub.s32 %s15, 1
    %s21 = ssub.s32 %s15, 2
    %s22 = sadd.s32 %s15, 1
    %s23 = ssub.s32 %s15, %s22
    %p24 = scmp.eq.s32.totalorder %s23, 0
    %s26 = sadd.s32 %s25, 1
    %s27 = scalar_select %p24, %s25, %s26
    %p30 = pneg %p24
    %p31 = scmp.eq.s32.totalorder %s15, 1
    %p32 = por %p30, %p31
    %p33 = scmp.ne.s32.totalorder %s25, %s28
    %p34 = scmp.eq.s32.totalorder %s15, 0
    %p35 = por %p33, %p34
    %p36 = scmp.ne.s32.totalorder %s25, %s28
    %p37 = scmp.eq.s32.totalorder %s20, 1
    %p38 = por %p36, %p37
    %p39 = scmp.ne.s32.totalorder %s28, %s29
    %p40 = scmp.eq.s32.totalorder %s20, 0
    %p41 = por %p39, %p40
    %p42 = scmp.ne.s32.totalorder %s28, %s29
    %p43 = scmp.eq.s32.totalorder %s21, 1
    %p44 = por %p42, %p43
    %p46 = scmp.ne.s32.totalorder %s29, %s45
    %p47 = scmp.eq.s32.totalorder %s21, 0
    %p48 = por %p46, %p47
    %s50 = sadd.s32 %s49, 1
    %p53 = scmp.eq.s32.totalorder %s15, 1
    %p54 = scmp.ne.s32.totalorder %s49, %s51
    %p55 = scmp.eq.s32.totalorder %s15, 0
    %p56 = por %p54, %p55
    %p57 = scmp.ne.s32.totalorder %s49, %s51
    %p58 = scmp.eq.s32.totalorder %s20, 1
    %p59 = por %p57, %p58
    %p60 = scmp.ne.s32.totalorder %s51, %s52
    %p61 = scmp.eq.s32.totalorder %s20, 0
    %p62 = por %p60, %p61
    %p63 = scmp.ne.s32.totalorder %s51, %s52
    %p64 = scmp.eq.s32.totalorder %s21, 1
    %p65 = por %p63, %p64
    %p67 = scmp.ne.s32.totalorder %s52, %s66
    %p68 = scmp.eq.s32.totalorder %s21, 0
    %p69 = por %p67, %p68
    %s71 = sadd.s32 %s70, 1
    %p74 = scmp.eq.s32.totalorder %s15, 1
    %p75 = scmp.ne.s32.totalorder %s70, %s72
    %p76 = scmp.eq.s32.totalorder %s15, 0
    %p77 = por %p75, %p76
    %p78 = scmp.ne.s32.totalorder %s70, %s72
    %p79 = scmp.eq.s32.totalorder %s20, 1
    %p80 = por %p78, %p79
    %p81 = scmp.ne.s32.totalorder %s72, %s73
    %p82 = scmp.eq.s32.totalorder %s20, 0
    %p83 = por %p81, %p82
    %p84 = scmp.ne.s32.totalorder %s72, %s73
    %p85 = scmp.eq.s32.totalorder %s21, 1
    %p86 = por %p84, %p85
    %p88 = scmp.ne.s32.totalorder %s73, %s87
    %p89 = scmp.eq.s32.totalorder %s21, 0
    %p90 = por %p88, %p89
    %s92 = sadd.s32 %s91, 1
    %p95 = scmp.eq.s32.totalorder %s15, 1
    %p96 = scmp.ne.s32.totalorder %s91, %s93
    %p97 = scmp.eq.s32.totalorder %s15, 0
    %p98 = por %p96, %p97
    %p99 = scmp.ne.s32.totalorder %s91, %s93
    %p100 = scmp.eq.s32.totalorder %s20, 1
    %p101 = por %p99, %p100
    %p102 = scmp.ne.s32.totalorder %s93, %s94
    %p103 = scmp.eq.s32.totalorder %s20, 0
    %p104 = por %p102, %p103
    %p105 = scmp.ne.s32.totalorder %s93, %s94
    %p106 = scmp.eq.s32.totalorder %s21, 1
    %p107 = por %p105, %p106
    %p109 = scmp.ne.s32.totalorder %s94, %s108
    %p110 = scmp.eq.s32.totalorder %s21, 0
    %p111 = por %p109, %p110
    %s113 = sadd.s32 %s112, 1
    %p116 = scmp.eq.s32.totalorder %s15, 1
    %p117 = scmp.ne.s32.totalorder %s112, %s114
    %p118 = scmp.eq.s32.totalorder %s15, 0
    %p119 = por %p117, %p118
    %p120 = scmp.ne.s32.totalorder %s112, %s114
    %p121 = scmp.eq.s32.totalorder %s20, 1
    %p122 = por %p120, %p121
    %p123 = scmp.ne.s32.totalorder %s114, %s115
    %p124 = scmp.eq.s32.totalorder %s20, 0
    %p125 = por %p123, %p124
    %p126 = scmp.ne.s32.totalorder %s114, %s115
    %p127 = scmp.eq.s32.totalorder %s21, 1
    %p128 = por %p126, %p127
    %p130 = scmp.ne.s32.totalorder %s115, %s129
    %p131 = scmp.eq.s32.totalorder %s21, 0
    %p132 = por %p130, %p131
    %s134 = sadd.s32 %s133, 1
    %p137 = scmp.eq.s32.totalorder %s15, 1
    %p138 = scmp.ne.s32.totalorder %s133, %s135
    %p139 = scmp.eq.s32.totalorder %s15, 0
    %p140 = por %p138, %p139
    %p141 = scmp.ne.s32.totalorder %s133, %s135
    %p142 = scmp.eq.s32.totalorder %s20, 1
    %p143 = por %p141, %p142
    %p144 = scmp.ne.s32.totalorder %s135, %s136
    %p145 = scmp.eq.s32.totalorder %s20, 0
    %p146 = por %p144, %p145
    %p147 = scmp.ne.s32.totalorder %s135, %s136
    %p148 = scmp.eq.s32.totalorder %s21, 1
    %p149 = por %p147, %p148
    %p151 = scmp.ne.s32.totalorder %s136, %s150
    %p152 = scmp.eq.s32.totalorder %s21, 0
    %p153 = por %p151, %p152
    %s155 = sadd.s32 %s154, 1
    %p158 = scmp.eq.s32.totalorder %s15, 1
    %p159 = scmp.ne.s32.totalorder %s154, %s156
    %p160 = scmp.eq.s32.totalorder %s15, 0
    %p161 = por %p159, %p160
    %p162 = scmp.ne.s32.totalorder %s154, %s156
    %p163 = scmp.eq.s32.totalorder %s20, 1
    %p164 = por %p162, %p163
    %p165 = scmp.ne.s32.totalorder %s156, %s157
    %p166 = scmp.eq.s32.totalorder %s20, 0
    %p167 = por %p165, %p166
    %p168 = scmp.ne.s32.totalorder %s156, %s157
    %p169 = scmp.eq.s32.totalorder %s21, 1
    %p170 = por %p168, %p169
    %p172 = scmp.ne.s32.totalorder %s157, %s171
    %p173 = scmp.eq.s32.totalorder %s21, 0
    %p174 = por %p172, %p173
    %s176 = sadd.s32 %s175, 1
    %p179 = scmp.eq.s32.totalorder %s15, 1
    %p180 = scmp.ne.s32.totalorder %s175, %s177
    %p181 = scmp.eq.s32.totalorder %s15, 0
    %p182 = por %p180, %p181
    %p183 = scmp.ne.s32.totalorder %s175, %s177
    %p184 = scmp.eq.s32.totalorder %s20, 1
    %p185 = por %p183, %p184
    %p186 = scmp.ne.s32.totalorder %s177, %s178
    %p187 = scmp.eq.s32.totalorder %s20, 0
    %p188 = por %p186, %p187
    %p189 = scmp.ne.s32.totalorder %s177, %s178
    %p190 = scmp.eq.s32.totalorder %s21, 1
    %p191 = por %p189, %p190
    %p193 = scmp.ne.s32.totalorder %s178, %s192
    %p194 = scmp.eq.s32.totalorder %s21, 0
    %p195 = por %p193, %p194
    %s197 = sadd.s32 %s196, 1
    %p200 = scmp.eq.s32.totalorder %s15, 1
    %p201 = scmp.ne.s32.totalorder %s196, %s198
    %p202 = scmp.eq.s32.totalorder %s15, 0
    %p203 = por %p201, %p202
    %p204 = scmp.ne.s32.totalorder %s196, %s198
    %p205 = scmp.eq.s32.totalorder %s20, 1
    %p206 = por %p204, %p205
    %p207 = scmp.ne.s32.totalorder %s198, %s199
    %p208 = scmp.eq.s32.totalorder %s20, 0
    %p209 = por %p207, %p208
    %p210 = scmp.ne.s32.totalorder %s198, %s199
    %p211 = scmp.eq.s32.totalorder %s21, 1
    %p212 = por %p210, %p211
    %p214 = scmp.ne.s32.totalorder %s199, %s213
    %p215 = scmp.eq.s32.totalorder %s21, 0
    %p216 = por %p214, %p215
    %s217 = ssub.s32 %s15, %s22
    %p218 = scmp.eq.s32.totalorder %s217, 0
    %s220 = sadd.s32 %s219, 1
    %s221 = scalar_select %p218, %s219, %s220
    %p224 = pneg %p218
    %p225 = scmp.eq.s32.totalorder %s15, 1
    %p226 = por %p224, %p225
    %p227 = scmp.ne.s32.totalorder %s219, %s222
    %p228 = scmp.eq.s32.totalorder %s15, 0
    %p229 = por %p227, %p228
    %p230 = scmp.ne.s32.totalorder %s219, %s222
    %p231 = scmp.eq.s32.totalorder %s20, 1
    %p232 = por %p230, %p231
    %p233 = scmp.ne.s32.totalorder %s222, %s223
    %p234 = scmp.eq.s32.totalorder %s20, 0
    %p235 = por %p233, %p234
    %p236 = scmp.ne.s32.totalorder %s222, %s223
    %p237 = scmp.eq.s32.totalorder %s21, 1
    %p238 = por %p236, %p237
    %p240 = scmp.ne.s32.totalorder %s223, %s239
    %p241 = scmp.eq.s32.totalorder %s21, 0
    %p242 = por %p240, %p241
    %p243 = scmp.le.s32.totalorder 1, %s15
    %p244 = scmp.lt.s32.totalorder %s15, 3
    %p245 = pnand %p243, %p244
    %p246 = pneg %p245
    // Predicated region
    $region9: #{_lambda_.2} parent=5 // pred_check
      _
    $region10: #{_lambda_.2} parent=5 // pred_check_branch
      %248 = sbr.rel (%p245) target = $region12
    $region11: #{_lambda_.2} parent=5 // pred_region
      %s249 = ssub.s32 %s15, 1
      // Predicated region
      $region13: #{_lambda_.2} parent=11 // pred_check
        %p250 = pneg %p62
      $region14: #{_lambda_.2} parent=11 // pred_check_branch
        %252 = sbr.rel (%p250) target = $region16
      $region15: #{_lambda_.2} parent=11 // pred_region
        _
      $region16: #{_lambda_.2} parent=11 // pred_fallthru
        _
      // Predicated region
      $region17: #{_lambda_.2} parent=11 // pred_check
        %p253 = pneg %p83
      $region18: #{_lambda_.2} parent=11 // pred_check_branch
        %255 = sbr.rel (%p253) target = $region20
      $region19: #{_lambda_.2} parent=11 // pred_region
        _
      $region20: #{_lambda_.2} parent=11 // pred_fallthru
        _
      // Predicated region
      $region21: #{_lambda_.2} parent=11 // pred_check
        %p256 = pneg %p104
      $region22: #{_lambda_.2} parent=11 // pred_check_branch
        %258 = sbr.rel (%p256) target = $region24
      $region23: #{_lambda_.2} parent=11 // pred_region
        _
      $region24: #{_lambda_.2} parent=11 // pred_fallthru
        _
      // Predicated region
      $region25: #{_lambda_.2} parent=11 // pred_check
        %p259 = pneg %p125
      $region26: #{_lambda_.2} parent=11 // pred_check_branch
        %261 = sbr.rel (%p259) target = $region28
      $region27: #{_lambda_.2} parent=11 // pred_region
        _
      $region28: #{_lambda_.2} parent=11 // pred_fallthru
        _
      // Predicated region
      $region29: #{_lambda_.2} parent=11 // pred_check
        %p262 = pneg %p146
      $region30: #{_lambda_.2} parent=11 // pred_check_branch
        %264 = sbr.rel (%p262) target = $region32
      $region31: #{_lambda_.2} parent=11 // pred_region
        _
      $region32: #{_lambda_.2} parent=11 // pred_fallthru
        _
      // Predicated region
      $region33: #{_lambda_.2} parent=11 // pred_check
        %p265 = pneg %p167
      $region34: #{_lambda_.2} parent=11 // pred_check_branch
        %267 = sbr.rel (%p265) target = $region36
      $region35: #{_lambda_.2} parent=11 // pred_region
        _
      $region36: #{_lambda_.2} parent=11 // pred_fallthru
        _
      // Predicated region
      $region37: #{_lambda_.2} parent=11 // pred_check
        %p268 = pneg %p188
      $region38: #{_lambda_.2} parent=11 // pred_check_branch
        %270 = sbr.rel (%p268) target = $region40
      $region39: #{_lambda_.2} parent=11 // pred_region
        _
      $region40: #{_lambda_.2} parent=11 // pred_fallthru
        _
      // Predicated region
      $region41: #{_lambda_.2} parent=11 // pred_check
        %p271 = pneg %p209
      $region42: #{_lambda_.2} parent=11 // pred_check_branch
        %273 = sbr.rel (%p271) target = $region44
      $region43: #{_lambda_.2} parent=11 // pred_region
        _
      $region44: #{_lambda_.2} parent=11 // pred_fallthru
        _
    $region12: #{_lambda_.2} parent=5 // pred_fallthru
      _
    %p274 = scmp.lt.s32.totalorder %s15, 2
    // Predicated region
    $region45: #{_lambda_.2} parent=5 // pred_check
      %p275 = pneg %p274
    $region46: #{_lambda_.2} parent=5 // pred_check_branch
      %277 = sbr.rel (%p275) target = $region48
    $region47: #{_lambda_.2} parent=5 // pred_region
      // Predicated region
      $region49: #{_lambda_.2} parent=47 // pred_check
        %p278 = pneg %p35
      $region50: #{_lambda_.2} parent=47 // pred_check_branch
        %280 = sbr.rel (%p278) target = $region52
      $region51: #{_lambda_.2} parent=47 // pred_region
        %p281 = scmp.lt.s32.totalorder %s15, 1
        %s282 = scalar_select %p281, %s15, 1
        %s283 = smul.addr %s282, 40
        %s284 = smul.addr %s283, 4
        %s285 = scalar_lea.vmem %s0, %s284
      $region52: #{_lambda_.2} parent=47 // pred_fallthru
        _
    $region48: #{_lambda_.2} parent=5 // pred_fallthru
      _
    %p286 = scmp.le.s32.totalorder 1, %s15
    %p287 = scmp.lt.s32.totalorder %s15, 3
    %p288 = pnand %p286, %p287
    %p289 = pneg %p288
    // Predicated region
    $region53: #{_lambda_.2} parent=5 // pred_check
      _
    $region54: #{_lambda_.2} parent=5 // pred_check_branch
      %291 = sbr.rel (%p288) target = $region56
    $region55: #{_lambda_.2} parent=5 // pred_region
      %s292 = ssub.s32 %s15, 1
      %p293 = scmp.lt.s32.totalorder %s20, 1
      %s294 = scalar_select %p293, %s20, 1
      %s295 = smul.addr %s294, 40
      %s296 = smul.addr %s295, 4
      %s297 = scalar_lea.vmem %s0, %s296
      %p298 = pneg %p41
      %p299 = pneg %p38
      %p300 = pneg %p62
      %p301 = pneg %p59
      %p302 = pneg %p83
      %p303 = pneg %p80
      %p304 = pneg %p104
      %p305 = pneg %p101
      %p306 = pneg %p125
      %p307 = pneg %p122
      %p308 = pneg %p146
      %p309 = pneg %p143
      %p310 = pneg %p167
      %p311 = pneg %p164
      %p312 = pneg %p188
      %p313 = pneg %p185
      %p314 = pneg %p209
      %p315 = pneg %p206
      %p316 = pneg %p235
      %p317 = pneg %p232
      %p318 = scmp.lt.s32.totalorder %s20, 1
      %s319 = scalar_select %p318, %s20, 1
      %s320 = smul.addr %s319, 20
      %s321 = smul.addr %s320, 4
      %s322 = scalar_lea.vmem %s9, %s321
      %p323 = scmp.lt.s32.totalorder %s20, 1
      %s324 = scalar_select %p323, %s20, 1
      %s325 = smul.addr %s324, 40
      %s326 = smul.addr %s325, 4
      %s327 = scalar_lea.vmem %s0, %s326
      %p328 = scmp.lt.s32.totalorder %s20, 1
      %s329 = scalar_select %p328, %s20, 1
      %s330 = smul.addr %s329, 20
      %s331 = smul.addr %s330, 4
      %s332 = scalar_lea.vmem %s9, %s331
      %v334 = vld [vmem:[%s327] sm:$0xf]
      %v335 = vld [vmem:[%s327 + $0x4] sm:$0xf]
      %v336 = vld [vmem:[%s327 + $0x8] sm:$0xf]
      %v337 = vld [vmem:[%s327 + $0xc] sm:$0xf]
      %v338 = vld [vmem:[%s327 + $0x10] sm:$0xf]
      %v339 = vld [vmem:[%s327 + $0x14] sm:$0xf]
      %v340 = vld [vmem:[%s327 + $0x18] sm:$0xf]
      %v341 = vld [vmem:[%s327 + $0x1c] sm:$0xf]
      %v342 = vld [vmem:[%s327 + $0x20] sm:$0xf]
      %v343 = vld [vmem:[%s327 + $0x24] sm:$0xf]
      %v344 = vld [vmem:[%s327 + $0x28] sm:$0xf]
      %v345 = vld [vmem:[%s327 + $0x2c] sm:$0xf]
      %v346 = vld [vmem:[%s327 + $0x30] sm:$0xf]
      %v347 = vld [vmem:[%s327 + $0x34] sm:$0xf]
      %v348 = vld [vmem:[%s327 + $0x38] sm:$0xf]
      %v349 = vld [vmem:[%s327 + $0x3c] sm:$0xf]
      %v350 = vld [vmem:[%s327 + $0x40] sm:$0xf]
      %v351 = vld [vmem:[%s327 + $0x44] sm:$0xf]
      %v352 = vld [vmem:[%s327 + $0x48] sm:$0xf]
      %v353 = vld [vmem:[%s327 + $0x4c] sm:$0xf]
      %v354 = vld [vmem:[%s327 + $0x50] sm:$0xf]
      %v355 = vld [vmem:[%s327 + $0x54] sm:$0xf]
      %v356 = vld [vmem:[%s327 + $0x58] sm:$0xf]
      %v357 = vld [vmem:[%s327 + $0x5c] sm:$0xf]
      %v358 = vld [vmem:[%s327 + $0x60] sm:$0xf]
      %v359 = vld [vmem:[%s327 + $0x64] sm:$0xf]
      %v360 = vld [vmem:[%s327 + $0x68] sm:$0xf]
      %v361 = vld [vmem:[%s327 + $0x6c] sm:$0xf]
      %v362 = vld [vmem:[%s327 + $0x70] sm:$0xf]
      %v363 = vld [vmem:[%s327 + $0x74] sm:$0xf]
      %v364 = vld [vmem:[%s327 + $0x78] sm:$0xf]
      %v365 = vld [vmem:[%s327 + $0x7c] sm:$0xf]
      %v366 = vld [vmem:[%s327 + $0x80] sm:$0xf]
      %v367 = vld [vmem:[%s327 + $0x84] sm:$0xf]
      %v368 = vld [vmem:[%s327 + $0x88] sm:$0xf]
      %v369 = vld [vmem:[%s327 + $0x8c] sm:$0xf]
      %v370 = vld [vmem:[%s327 + $0x90] sm:$0xf]
      %v371 = vld [vmem:[%s327 + $0x94] sm:$0xf]
      %v372 = vld [vmem:[%s327 + $0x98] sm:$0xf]
      %v373 = vld [vmem:[%s327 + $0x9c] sm:$0xf]
      %v374 = vld [vmem:[%s1] sm:$0xff]
      %v375 = vld [vmem:[%s1 + $0x8] sm:$0xff]
      %v376 = vld [vmem:[%s1 + $0x10] sm:$0xff]
      %v377 = vld [vmem:[%s1 + $0x18] sm:$0xff]
      %v378 = vld [vmem:[%s1 + $0x20] sm:$0xff]
      %v379 = vld [vmem:[%s1 + $0x28] sm:$0xff]
      %v380 = vld [vmem:[%s1 + $0x30] sm:$0xff]
      %v381 = vld [vmem:[%s1 + $0x38] sm:$0xff]
      %v382 = vld [vmem:[%s1 + $0x40] sm:$0xff]
      %v383 = vld [vmem:[%s1 + $0x48] sm:$0xff]
      %v384 = vld [vmem:[%s1 + $0x50] sm:$0xff]
      %v385 = vld [vmem:[%s1 + $0x58] sm:$0xff]
      %v386 = vld [vmem:[%s1 + $0x60] sm:$0xff]
      %v387 = vld [vmem:[%s1 + $0x68] sm:$0xff]
      %v388 = vld [vmem:[%s1 + $0x70] sm:$0xff]
      %v389 = vld [vmem:[%s1 + $0x78] sm:$0xff]
      %v390 = vld [vmem:[%s2] sm:$0x3]
      %v392 = vlaneseq
      %v393 = vshrl.u32 %v392, 7
      %v394 = vsub.s32 0, %v393
      %v395 = vrot.slane %v390, %v394
      %v396 = vlaneseq
      %v397 = vshrl.u32 %v396, 7
      %v398 = vsub.s32 1, %v397
      %v399 = vrot.slane %v390, %v398
      %v442 = vunpack.c.l.b16 %v334
      %v443 = vunpack.c.l.b16 %v335
      %v444 = vunpack.c.l.b16 %v336
      %v445 = vunpack.c.l.b16 %v337
      %v446 = vunpack.c.l.b16 %v338
      %v447 = vunpack.c.l.b16 %v339
      %v448 = vunpack.c.l.b16 %v340
      %v449 = vunpack.c.l.b16 %v341
      %v450 = vunpack.c.l.b16 %v342
      %v451 = vunpack.c.l.b16 %v343
      %v452 = vunpack.c.l.b16 %v344
      %v453 = vunpack.c.l.b16 %v345
      %v454 = vunpack.c.l.b16 %v346
      %v455 = vunpack.c.l.b16 %v347
      %v456 = vunpack.c.l.b16 %v348
      %v457 = vunpack.c.l.b16 %v349
      %v458 = vunpack.c.l.b16 %v350
      %v459 = vunpack.c.l.b16 %v351
      %v460 = vunpack.c.l.b16 %v352
      %v461 = vunpack.c.l.b16 %v353
      %v462 = vunpack.c.l.b16 %v354
      %v463 = vunpack.c.l.b16 %v355
      %v464 = vunpack.c.l.b16 %v356
      %v465 = vunpack.c.l.b16 %v357
      %v466 = vunpack.c.l.b16 %v358
      %v467 = vunpack.c.l.b16 %v359
      %v468 = vunpack.c.l.b16 %v360
      %v469 = vunpack.c.l.b16 %v361
      %v470 = vunpack.c.l.b16 %v362
      %v471 = vunpack.c.l.b16 %v363
      %v472 = vunpack.c.l.b16 %v364
      %v473 = vunpack.c.l.b16 %v365
      %v474 = vunpack.c.l.b16 %v366
      %v475 = vunpack.c.l.b16 %v367
      %v476 = vunpack.c.l.b16 %v368
      %v477 = vunpack.c.l.b16 %v369
      %v478 = vunpack.c.l.b16 %v370
      %v479 = vunpack.c.l.b16 %v371
      %v480 = vunpack.c.l.b16 %v372
      %v481 = vunpack.c.l.b16 %v373
      %v482 = vpack.c.b16 %v443, %v442
      %v483 = vpack.c.b16 %v445, %v444
      %v484 = vpack.c.b16 %v447, %v446
      %v485 = vpack.c.b16 %v449, %v448
      %v486 = vpack.c.b16 %v451, %v450
      %v487 = vpack.c.b16 %v453, %v452
      %v488 = vpack.c.b16 %v455, %v454
      %v489 = vpack.c.b16 %v457, %v456
      %v490 = vpack.c.b16 %v459, %v458
      %v491 = vpack.c.b16 %v461, %v460
      %v492 = vpack.c.b16 %v463, %v462
      %v493 = vpack.c.b16 %v465, %v464
      %v494 = vpack.c.b16 %v467, %v466
      %v495 = vpack.c.b16 %v469, %v468
      %v496 = vpack.c.b16 %v471, %v470
      %v497 = vpack.c.b16 %v473, %v472
      %v498 = vpack.c.b16 %v475, %v474
      %v499 = vpack.c.b16 %v477, %v476
      %v500 = vpack.c.b16 %v479, %v478
      %v501 = vpack.c.b16 %v481, %v480
      %v538 = vunpack.c.l.b16 %v374
      %v539 = vunpack.c.h.b16 %v374
      %v540 = vunpack.c.l.b16 %v375
      %v541 = vunpack.c.h.b16 %v375
      %v542 = vunpack.c.l.b16 %v376
      %v543 = vunpack.c.h.b16 %v376
      %v544 = vunpack.c.l.b16 %v377
      %v545 = vunpack.c.h.b16 %v377
      %v546 = vunpack.c.l.b16 %v378
      %v547 = vunpack.c.h.b16 %v378
      %v548 = vunpack.c.l.b16 %v379
      %v549 = vunpack.c.h.b16 %v379
      %v550 = vunpack.c.l.b16 %v380
      %v551 = vunpack.c.h.b16 %v380
      %v552 = vunpack.c.l.b16 %v381
      %v553 = vunpack.c.h.b16 %v381
      %v554 = vunpack.c.l.b16 %v382
      %v555 = vunpack.c.h.b16 %v382
      %v556 = vunpack.c.l.b16 %v383
      %v557 = vunpack.c.h.b16 %v383
      %v558 = vunpack.c.l.b16 %v384
      %v559 = vunpack.c.h.b16 %v384
      %v560 = vunpack.c.l.b16 %v385
      %v561 = vunpack.c.h.b16 %v385
      %v562 = vunpack.c.l.b16 %v386
      %v563 = vunpack.c.h.b16 %v386
      %v564 = vunpack.c.l.b16 %v387
      %v565 = vunpack.c.h.b16 %v387
      %v566 = vunpack.c.l.b16 %v388
      %v567 = vunpack.c.h.b16 %v388
      %v568 = vunpack.c.l.b16 %v389
      %v569 = vunpack.c.h.b16 %v389
      %v570 = vpack.c.b16 %v540, %v538
      %v571 = vpack.c.b16 %v541, %v539
      %v572 = vpack.c.b16 %v544, %v542
      %v573 = vpack.c.b16 %v545, %v543
      %v574 = vpack.c.b16 %v548, %v546
      %v575 = vpack.c.b16 %v549, %v547
      %v576 = vpack.c.b16 %v552, %v550
      %v577 = vpack.c.b16 %v553, %v551
      %v578 = vpack.c.b16 %v556, %v554
      %v579 = vpack.c.b16 %v557, %v555
      %v580 = vpack.c.b16 %v560, %v558
      %v581 = vpack.c.b16 %v561, %v559
      %v582 = vpack.c.b16 %v564, %v562
      %v583 = vpack.c.b16 %v565, %v563
      %v584 = vpack.c.b16 %v568, %v566
      %v585 = vpack.c.b16 %v569, %v567
      %602 = vmatprep.subr.bf16.mxu0 %v571
      %603 = vmatpush1.bf16.msra.mxu0 %v570
      %604 = vmatprep.subr.bf16.mxu0 %v573
      %605 = vmatpush1.bf16.msra.mxu0 %v572
      %606 = vmatprep.subr.bf16.mxu0 %v575
      %607 = vmatpush1.bf16.msra.mxu0 %v574
      %608 = vmatprep.subr.bf16.mxu0 %v577
      %609 = vmatpush1.bf16.msra.mxu0 %v576
      %610 = vmatprep.subr.bf16.mxu0 %v579
      %611 = vmatpush1.bf16.msra.mxu0 %v578
      %612 = vmatprep.subr.bf16.mxu0 %v581
      %613 = vmatpush1.bf16.msra.mxu0 %v580
      %614 = vmatprep.subr.bf16.mxu0 %v583
      %615 = vmatpush1.bf16.msra.mxu0 %v582
      %616 = vmatprep.subr.bf16.mxu0 %v585
      %617 = vmatpush1.bf16.msra.mxu0 %v584
      %618 = vmatprep.subr.bf16.mxu0 0
      %619 = vmatpush1.bf16.msra.mxu0 0
      %620 = vmatprep.subr.bf16.mxu0 0
      %621 = vmatpush1.bf16.msra.mxu0 0
      %622 = vmatprep.subr.bf16.mxu0 0
      %623 = vmatpush1.bf16.msra.mxu0 0
      %624 = vmatprep.subr.bf16.mxu0 0
      %625 = vmatpush1.bf16.msra.mxu0 0
      %626 = vmatprep.subr.bf16.mxu0 0
      %627 = vmatpush1.bf16.msra.mxu0 0
      %628 = vmatprep.subr.bf16.mxu0 0
      %629 = vmatpush1.bf16.msra.mxu0 0
      %630 = vmatprep.subr.bf16.mxu0 0
      %631 = vmatpush1.bf16.msra.mxu0 0
      %632 = vmatprep.subr.bf16.mxu0 0
      %633 = vmatpush1.bf16.msra.mxu0 0
      %634 = vmatprep.mubr.bf16.mxu0 0
      %635 = vmatmul.mubr.bf16.gmra.mrb[0].mxu0 %v482
      %v636 = vpop.f32.mrb[0].mxu0
      %v637 = vadd.f32 %v395, %v636
      %v638 = vpop.f32.mrb[0].mxu0
      %v639 = vadd.f32 %v399, %v638
      %v640 = vpop.f32.mrb[0].mxu0
      %v641 = vadd.f32 %v395, %v640
      %v642 = vpop.f32.mrb[0].mxu0
      %v643 = vadd.f32 %v399, %v642
      %644 = vmatprep.mubr.bf16.mxu0 0
      %645 = vmatmul.mubr.bf16.gmra.mrb[0].mxu0 %v483
      %v646 = vpop.f32.mrb[0].mxu0
      %v647 = vadd.f32 %v395, %v646
      %v648 = vpop.f32.mrb[0].mxu0
      %v649 = vadd.f32 %v399, %v648
      %v650 = vpop.f32.mrb[0].mxu0
      %v651 = vadd.f32 %v395, %v650
      %v652 = vpop.f32.mrb[0].mxu0
      %v653 = vadd.f32 %v399, %v652
      %654 = vmatprep.mubr.bf16.mxu0 0
      %655 = vmatmul.mubr.bf16.gmra.mrb[0].mxu0 %v484
      %v656 = vpop.f32.mrb[0].mxu0
      %v657 = vadd.f32 %v395, %v656
      %v658 = vpop.f32.mrb[0].mxu0
      %v659 = vadd.f32 %v399, %v658
      %v660 = vpop.f32.mrb[0].mxu0
      %v661 = vadd.f32 %v395, %v660
      %v662 = vpop.f32.mrb[0].mxu0
      %v663 = vadd.f32 %v399, %v662
      %664 = vmatprep.mubr.bf16.mxu0 0
      %665 = vmatmul.mubr.bf16.gmra.mrb[0].mxu0 %v485
      %v666 = vpop.f32.mrb[0].mxu0
      %v667 = vadd.f32 %v395, %v666
      %v668 = vpop.f32.mrb[0].mxu0
      %v669 = vadd.f32 %v399, %v668
      %v670 = vpop.f32.mrb[0].mxu0
      %v671 = vadd.f32 %v395, %v670
      %v672 = vpop.f32.mrb[0].mxu0
      %v673 = vadd.f32 %v399, %v672
      %674 = vmatprep.mubr.bf16.mxu0 0
      %675 = vmatmul.mubr.bf16.gmra.mrb[0].mxu0 %v486
      %v676 = vpop.f32.mrb[0].mxu0
      %v677 = vadd.f32 %v395, %v676
      %v678 = vpop.f32.mrb[0].mxu0
      %v679 = vadd.f32 %v399, %v678
      %v680 = vpop.f32.mrb[0].mxu0
      %v681 = vadd.f32 %v395, %v680
      %v682 = vpop.f32.mrb[0].mxu0
      %v683 = vadd.f32 %v399, %v682
      %684 = vmatprep.mubr.bf16.mxu0 0
      %685 = vmatmul.mubr.bf16.gmra.mrb[0].mxu0 %v487
      %v686 = vpop.f32.mrb[0].mxu0
      %v687 = vadd.f32 %v395, %v686
      %v688 = vpop.f32.mrb[0].mxu0
      %v689 = vadd.f32 %v399, %v688
      %v690 = vpop.f32.mrb[0].mxu0
      %v691 = vadd.f32 %v395, %v690
      %v692 = vpop.f32.mrb[0].mxu0
      %v693 = vadd.f32 %v399, %v692
      %694 = vmatprep.mubr.bf16.mxu0 0
      %695 = vmatmul.mubr.bf16.gmra.mrb[0].mxu0 %v488
      %v696 = vpop.f32.mrb[0].mxu0
      %v697 = vadd.f32 %v395, %v696
      %v698 = vpop.f32.mrb[0].mxu0
      %v699 = vadd.f32 %v399, %v698
      %v700 = vpop.f32.mrb[0].mxu0
      %v701 = vadd.f32 %v395, %v700
      %v702 = vpop.f32.mrb[0].mxu0
      %v703 = vadd.f32 %v399, %v702
      %704 = vmatprep.mubr.bf16.mxu0 0
      %705 = vmatmul.mubr.bf16.gmra.mrb[0].mxu0 %v489
      %v706 = vpop.f32.mrb[0].mxu0
      %v707 = vadd.f32 %v395, %v706
      %v708 = vpop.f32.mrb[0].mxu0
      %v709 = vadd.f32 %v399, %v708
      %v710 = vpop.f32.mrb[0].mxu0
      %v711 = vadd.f32 %v395, %v710
      %v712 = vpop.f32.mrb[0].mxu0
      %v713 = vadd.f32 %v399, %v712
      %714 = vmatprep.mubr.bf16.mxu0 0
      %715 = vmatmul.mubr.bf16.gmra.mrb[0].mxu0 %v490
      %v716 = vpop.f32.mrb[0].mxu0
      %v717 = vadd.f32 %v395, %v716
      %v718 = vpop.f32.mrb[0].mxu0
      %v719 = vadd.f32 %v399, %v718
      %v720 = vpop.f32.mrb[0].mxu0
      %v721 = vadd.f32 %v395, %v720
      %v722 = vpop.f32.mrb[0].mxu0
      %v723 = vadd.f32 %v399, %v722
      %724 = vmatprep.mubr.bf16.mxu0 0
      %725 = vmatmul.mubr.bf16.gmra.mrb[0].mxu0 %v491
      %v726 = vpop.f32.mrb[0].mxu0
      %v727 = vadd.f32 %v395, %v726
      %v728 = vpop.f32.mrb[0].mxu0
      %v729 = vadd.f32 %v399, %v728
      %v730 = vpop.f32.mrb[0].mxu0
      %v731 = vadd.f32 %v395, %v730
      %v732 = vpop.f32.mrb[0].mxu0
      %v733 = vadd.f32 %v399, %v732
      %734 = vmatprep.mubr.bf16.mxu0 0
      %735 = vmatmul.mubr.bf16.gmra.mrb[0].mxu0 %v492
      %v736 = vpop.f32.mrb[0].mxu0
      %v737 = vadd.f32 %v395, %v736
      %v738 = vpop.f32.mrb[0].mxu0
      %v739 = vadd.f32 %v399, %v738
      %v740 = vpop.f32.mrb[0].mxu0
      %v741 = vadd.f32 %v395, %v740
      %v742 = vpop.f32.mrb[0].mxu0
      %v743 = vadd.f32 %v399, %v742
      %744 = vmatprep.mubr.bf16.mxu0 0
      %745 = vmatmul.mubr.bf16.gmra.mrb[0].mxu0 %v493
      %v746 = vpop.f32.mrb[0].mxu0
      %v747 = vadd.f32 %v395, %v746
      %v748 = vpop.f32.mrb[0].mxu0
      %v749 = vadd.f32 %v399, %v748
      %v750 = vpop.f32.mrb[0].mxu0
      %v751 = vadd.f32 %v395, %v750
      %v752 = vpop.f32.mrb[0].mxu0
      %v753 = vadd.f32 %v399, %v752
      %754 = vmatprep.mubr.bf16.mxu0 0
      %755 = vmatmul.mubr.bf16.gmra.mrb[0].mxu0 %v494
      %v756 = vpop.f32.mrb[0].mxu0
      %v757 = vadd.f32 %v395, %v756
      %v758 = vpop.f32.mrb[0].mxu0
      %v759 = vadd.f32 %v399, %v758
      %v760 = vpop.f32.mrb[0].mxu0
      %v761 = vadd.f32 %v395, %v760
      %v762 = vpop.f32.mrb[0].mxu0
      %v763 = vadd.f32 %v399, %v762
      %764 = vmatprep.mubr.bf16.mxu0 0
      %765 = vmatmul.mubr.bf16.gmra.mrb[0].mxu0 %v495
      %v766 = vpop.f32.mrb[0].mxu0
      %v767 = vadd.f32 %v395, %v766
      %v768 = vpop.f32.mrb[0].mxu0
      %v769 = vadd.f32 %v399, %v768
      %v770 = vpop.f32.mrb[0].mxu0
      %v771 = vadd.f32 %v395, %v770
      %v772 = vpop.f32.mrb[0].mxu0
      %v773 = vadd.f32 %v399, %v772
      %774 = vmatprep.mubr.bf16.mxu0 0
      %775 = vmatmul.mubr.bf16.gmra.mrb[0].mxu0 %v496
      %v776 = vpop.f32.mrb[0].mxu0
      %v777 = vadd.f32 %v395, %v776
      %v778 = vpop.f32.mrb[0].mxu0
      %v779 = vadd.f32 %v399, %v778
      %v780 = vpop.f32.mrb[0].mxu0
      %v781 = vadd.f32 %v395, %v780
      %v782 = vpop.f32.mrb[0].mxu0
      %v783 = vadd.f32 %v399, %v782
      %784 = vmatprep.mubr.bf16.mxu0 0
      %785 = vmatmul.mubr.bf16.gmra.mrb[0].mxu0 %v497
      %v786 = vpop.f32.mrb[0].mxu0
      %v787 = vadd.f32 %v395, %v786
      %v788 = vpop.f32.mrb[0].mxu0
      %v789 = vadd.f32 %v399, %v788
      %v790 = vpop.f32.mrb[0].mxu0
      %v791 = vadd.f32 %v395, %v790
      %v792 = vpop.f32.mrb[0].mxu0
      %v793 = vadd.f32 %v399, %v792
      %794 = vmatprep.mubr.bf16.mxu0 0
      %795 = vmatmul.mubr.bf16.gmra.mrb[0].mxu0 %v498
      %v796 = vpop.f32.mrb[0].mxu0
      %v797 = vadd.f32 %v395, %v796
      %v798 = vpop.f32.mrb[0].mxu0
      %v799 = vadd.f32 %v399, %v798
      %v800 = vpop.f32.mrb[0].mxu0
      %v801 = vadd.f32 %v395, %v800
      %v802 = vpop.f32.mrb[0].mxu0
      %v803 = vadd.f32 %v399, %v802
      %804 = vmatprep.mubr.bf16.mxu0 0
      %805 = vmatmul.mubr.bf16.gmra.mrb[0].mxu0 %v499
      %v806 = vpop.f32.mrb[0].mxu0
      %v807 = vadd.f32 %v395, %v806
      %v808 = vpop.f32.mrb[0].mxu0
      %v809 = vadd.f32 %v399, %v808
      %v810 = vpop.f32.mrb[0].mxu0
      %v811 = vadd.f32 %v395, %v810
      %v812 = vpop.f32.mrb[0].mxu0
      %v813 = vadd.f32 %v399, %v812
      %814 = vmatprep.mubr.bf16.mxu0 0
      %815 = vmatmul.mubr.bf16.gmra.mrb[0].mxu0 %v500
      %v816 = vpop.f32.mrb[0].mxu0
      %v817 = vadd.f32 %v395, %v816
      %v818 = vpop.f32.mrb[0].mxu0
      %v819 = vadd.f32 %v399, %v818
      %v820 = vpop.f32.mrb[0].mxu0
      %v821 = vadd.f32 %v395, %v820
      %v822 = vpop.f32.mrb[0].mxu0
      %v823 = vadd.f32 %v399, %v822
      %824 = vmatprep.mubr.bf16.mxu0 0
      %825 = vmatmul.mubr.bf16.gmra.mrb[0].mxu0 %v501
      %v826 = vpop.f32.mrb[0].mxu0
      %v827 = vadd.f32 %v395, %v826
      %v828 = vpop.f32.mrb[0].mxu0
      %v829 = vadd.f32 %v399, %v828
      %v830 = vpop.f32.mrb[0].mxu0
      %v831 = vadd.f32 %v395, %v830
      %v832 = vpop.f32.mrb[0].mxu0
      %v833 = vadd.f32 %v399, %v832
      %834 = vdwg.mxu0
      %v835 = vmax.f32 %v637, 0.0
      %v836 = vmax.f32 %v639, 0.0
      %v837 = vmax.f32 %v641, 0.0
      %v838 = vmax.f32 %v643, 0.0
      %v839 = vmax.f32 %v647, 0.0
      %v840 = vmax.f32 %v649, 0.0
      %v841 = vmax.f32 %v651, 0.0
      %v842 = vmax.f32 %v653, 0.0
      %v843 = vmax.f32 %v657, 0.0
      %v844 = vmax.f32 %v659, 0.0
      %v845 = vmax.f32 %v661, 0.0
      %v846 = vmax.f32 %v663, 0.0
      %v847 = vmax.f32 %v667, 0.0
      %v848 = vmax.f32 %v669, 0.0
      %v849 = vmax.f32 %v671, 0.0
      %v850 = vmax.f32 %v673, 0.0
      %v851 = vmax.f32 %v677, 0.0
      %v852 = vmax.f32 %v679, 0.0
      %v853 = vmax.f32 %v681, 0.0
      %v854 = vmax.f32 %v683, 0.0
      %v855 = vmax.f32 %v687, 0.0
      %v856 = vmax.f32 %v689, 0.0
      %v857 = vmax.f32 %v691, 0.0
      %v858 = vmax.f32 %v693, 0.0
      %v859 = vmax.f32 %v697, 0.0
      %v860 = vmax.f32 %v699, 0.0
      %v861 = vmax.f32 %v701, 0.0
      %v862 = vmax.f32 %v703, 0.0
      %v863 = vmax.f32 %v707, 0.0
      %v864 = vmax.f32 %v709, 0.0
      %v865 = vmax.f32 %v711, 0.0
      %v866 = vmax.f32 %v713, 0.0
      %v867 = vmax.f32 %v717, 0.0
      %v868 = vmax.f32 %v719, 0.0
      %v869 = vmax.f32 %v721, 0.0
      %v870 = vmax.f32 %v723, 0.0
      %v871 = vmax.f32 %v727, 0.0
      %v872 = vmax.f32 %v729, 0.0
      %v873 = vmax.f32 %v731, 0.0
      %v874 = vmax.f32 %v733, 0.0
      %v875 = vmax.f32 %v737, 0.0
      %v876 = vmax.f32 %v739, 0.0
      %v877 = vmax.f32 %v741, 0.0
      %v878 = vmax.f32 %v743, 0.0
      %v879 = vmax.f32 %v747, 0.0
      %v880 = vmax.f32 %v749, 0.0
      %v881 = vmax.f32 %v751, 0.0
      %v882 = vmax.f32 %v753, 0.0
      %v883 = vmax.f32 %v757, 0.0
      %v884 = vmax.f32 %v759, 0.0
      %v885 = vmax.f32 %v761, 0.0
      %v886 = vmax.f32 %v763, 0.0
      %v887 = vmax.f32 %v767, 0.0
      %v888 = vmax.f32 %v769, 0.0
      %v889 = vmax.f32 %v771, 0.0
      %v890 = vmax.f32 %v773, 0.0
      %v891 = vmax.f32 %v777, 0.0
      %v892 = vmax.f32 %v779, 0.0
      %v893 = vmax.f32 %v781, 0.0
      %v894 = vmax.f32 %v783, 0.0
      %v895 = vmax.f32 %v787, 0.0
      %v896 = vmax.f32 %v789, 0.0
      %v897 = vmax.f32 %v791, 0.0
      %v898 = vmax.f32 %v793, 0.0
      %v899 = vmax.f32 %v797, 0.0
      %v900 = vmax.f32 %v799, 0.0
      %v901 = vmax.f32 %v801, 0.0
      %v902 = vmax.f32 %v803, 0.0
      %v903 = vmax.f32 %v807, 0.0
      %v904 = vmax.f32 %v809, 0.0
      %v905 = vmax.f32 %v811, 0.0
      %v906 = vmax.f32 %v813, 0.0
      %v907 = vmax.f32 %v817, 0.0
      %v908 = vmax.f32 %v819, 0.0
      %v909 = vmax.f32 %v821, 0.0
      %v910 = vmax.f32 %v823, 0.0
      %v911 = vmax.f32 %v827, 0.0
      %v912 = vmax.f32 %v829, 0.0
      %v913 = vmax.f32 %v831, 0.0
      %v914 = vmax.f32 %v833, 0.0
      %v915 = vpack.c.bf16 %v837, %v835
      %v916 = vpack.c.bf16 %v838, %v836
      %v917 = vpack.c.bf16 %v841, %v839
      %v918 = vpack.c.bf16 %v842, %v840
      %v919 = vpack.c.bf16 %v845, %v843
      %v920 = vpack.c.bf16 %v846, %v844
      %v921 = vpack.c.bf16 %v849, %v847
      %v922 = vpack.c.bf16 %v850, %v848
      %v923 = vpack.c.bf16 %v853, %v851
      %v924 = vpack.c.bf16 %v854, %v852
      %v925 = vpack.c.bf16 %v857, %v855
      %v926 = vpack.c.bf16 %v858, %v856
      %v927 = vpack.c.bf16 %v861, %v859
      %v928 = vpack.c.bf16 %v862, %v860
      %v929 = vpack.c.bf16 %v865, %v863
      %v930 = vpack.c.bf16 %v866, %v864
      %v931 = vpack.c.bf16 %v869, %v867
      %v932 = vpack.c.bf16 %v870, %v868
      %v933 = vpack.c.bf16 %v873, %v871
      %v934 = vpack.c.bf16 %v874, %v872
      %v935 = vpack.c.bf16 %v877, %v875
      %v936 = vpack.c.bf16 %v878, %v876
      %v937 = vpack.c.bf16 %v881, %v879
      %v938 = vpack.c.bf16 %v882, %v880
      %v939 = vpack.c.bf16 %v885, %v883
      %v940 = vpack.c.bf16 %v886, %v884
      %v941 = vpack.c.bf16 %v889, %v887
      %v942 = vpack.c.bf16 %v890, %v888
      %v943 = vpack.c.bf16 %v893, %v891
      %v944 = vpack.c.bf16 %v894, %v892
      %v945 = vpack.c.bf16 %v897, %v895
      %v946 = vpack.c.bf16 %v898, %v896
      %v947 = vpack.c.bf16 %v901, %v899
      %v948 = vpack.c.bf16 %v902, %v900
      %v949 = vpack.c.bf16 %v905, %v903
      %v950 = vpack.c.bf16 %v906, %v904
      %v951 = vpack.c.bf16 %v909, %v907
      %v952 = vpack.c.bf16 %v910, %v908
      %v953 = vpack.c.bf16 %v913, %v911
      %v954 = vpack.c.bf16 %v914, %v912
      %v955 = vld [vmem:[%s3] sm:$0xff]
      %v956 = vld [vmem:[%s3 + $0x8] sm:$0xff]
      %v957 = vld [vmem:[%s3 + $0x10] sm:$0xff]
      %v958 = vld [vmem:[%s3 + $0x18] sm:$0xff]
      %v959 = vld [vmem:[%s3 + $0x20] sm:$0xff]
      %v960 = vld [vmem:[%s3 + $0x28] sm:$0xff]
      %v961 = vld [vmem:[%s3 + $0x30] sm:$0xff]
      %v962 = vld [vmem:[%s3 + $0x38] sm:$0xff]
      %v963 = vld [vmem:[%s3 + $0x40] sm:$0xff]
      %v964 = vld [vmem:[%s3 + $0x48] sm:$0xff]
      %v965 = vld [vmem:[%s3 + $0x50] sm:$0xff]
      %v966 = vld [vmem:[%s3 + $0x58] sm:$0xff]
      %v967 = vld [vmem:[%s3 + $0x60] sm:$0xff]
      %v968 = vld [vmem:[%s3 + $0x68] sm:$0xff]
      %v969 = vld [vmem:[%s3 + $0x70] sm:$0xff]
      %v970 = vld [vmem:[%s3 + $0x78] sm:$0xff]
      %v971 = vld [vmem:[%s3 + $0x80] sm:$0xff]
      %v972 = vld [vmem:[%s3 + $0x88] sm:$0xff]
      %v973 = vld [vmem:[%s3 + $0x90] sm:$0xff]
      %v974 = vld [vmem:[%s3 + $0x98] sm:$0xff]
      %v975 = vld [vmem:[%s3 + $0xa0] sm:$0xff]
      %v976 = vld [vmem:[%s3 + $0xa8] sm:$0xff]
      %v977 = vld [vmem:[%s3 + $0xb0] sm:$0xff]
      %v978 = vld [vmem:[%s3 + $0xb8] sm:$0xff]
      %v979 = vld [vmem:[%s4] sm:$0x3]
      %v981 = vlaneseq
      %v982 = vshrl.u32 %v981, 7
      %v983 = vsub.s32 0, %v982
      %v984 = vrot.slane %v979, %v983
      %v985 = vlaneseq
      %v986 = vshrl.u32 %v985, 7
      %v987 = vsub.s32 1, %v986
      %v988 = vrot.slane %v979, %v987
      %v1015 = vunpack.c.l.b16 %v955
      %v1016 = vunpack.c.h.b16 %v955
      %v1017 = vunpack.c.l.b16 %v956
      %v1018 = vunpack.c.h.b16 %v956
      %v1019 = vunpack.c.l.b16 %v957
      %v1020 = vunpack.c.h.b16 %v957
      %v1021 = vunpack.c.l.b16 %v958
      %v1022 = vunpack.c.h.b16 %v958
      %v1023 = vunpack.c.l.b16 %v959
      %v1024 = vunpack.c.h.b16 %v959
      %v1025 = vunpack.c.l.b16 %v960
      %v1026 = vunpack.c.h.b16 %v960
      %v1027 = vunpack.c.l.b16 %v961
      %v1028 = vunpack.c.h.b16 %v961
      %v1029 = vunpack.c.l.b16 %v962
      %v1030 = vunpack.c.h.b16 %v962
      %v1031 = vunpack.c.l.b16 %v963
      %v1032 = vunpack.c.h.b16 %v963
      %v1033 = vunpack.c.l.b16 %v964
      %v1034 = vunpack.c.h.b16 %v964
      %v1035 = vunpack.c.l.b16 %v965
      %v1036 = vunpack.c.h.b16 %v965
      %v1037 = vunpack.c.l.b16 %v966
      %v1038 = vunpack.c.h.b16 %v966
      %v1039 = vunpack.c.l.b16 %v967
      %v1040 = vunpack.c.h.b16 %v967
      %v1041 = vunpack.c.l.b16 %v968
      %v1042 = vunpack.c.h.b16 %v968
      %v1043 = vunpack.c.l.b16 %v969
      %v1044 = vunpack.c.h.b16 %v969
      %v1045 = vunpack.c.l.b16 %v970
      %v1046 = vunpack.c.h.b16 %v970
      %v1047 = vunpack.c.l.b16 %v971
      %v1048 = vunpack.c.h.b16 %v971
      %v1049 = vunpack.c.l.b16 %v972
      %v1050 = vunpack.c.h.b16 %v972
      %v1051 = vunpack.c.l.b16 %v973
      %v1052 = vunpack.c.h.b16 %v973
      %v1053 = vunpack.c.l.b16 %v974
      %v1054 = vunpack.c.h.b16 %v974
      %v1055 = vunpack.c.l.b16 %v975
      %v1056 = vunpack.c.h.b16 %v975
      %v1057 = vunpack.c.l.b16 %v976
      %v1058 = vunpack.c.h.b16 %v976
      %v1059 = vunpack.c.l.b16 %v977
      %v1060 = vunpack.c.h.b16 %v977
      %v1061 = vunpack.c.l.b16 %v978
      %v1062 = vunpack.c.h.b16 %v978
      %v1063 = vpack.c.b16 %v1017, %v1015
      %v1064 = vpack.c.b16 %v1018, %v1016
      %v1065 = vpack.c.b16 %v1021, %v1019
      %v1066 = vpack.c.b16 %v1022, %v1020
      %v1067 = vpack.c.b16 %v1025, %v1023
      %v1068 = vpack.c.b16 %v1026, %v1024
      %v1069 = vpack.c.b16 %v1029, %v1027
      %v1070 = vpack.c.b16 %v1030, %v1028
      %v1071 = vpack.c.b16 %v1033, %v1031
      %v1072 = vpack.c.b16 %v1034, %v1032
      %v1073 = vpack.c.b16 %v1037, %v1035
      %v1074 = vpack.c.b16 %v1038, %v1036
      %v1075 = vpack.c.b16 %v1041, %v1039
      %v1076 = vpack.c.b16 %v1042, %v1040
      %v1077 = vpack.c.b16 %v1045, %v1043
      %v1078 = vpack.c.b16 %v1046, %v1044
      %v1079 = vpack.c.b16 %v1049, %v1047
      %v1080 = vpack.c.b16 %v1050, %v1048
      %v1081 = vpack.c.b16 %v1053, %v1051
      %v1082 = vpack.c.b16 %v1054, %v1052
      %v1083 = vpack.c.b16 %v1057, %v1055
      %v1084 = vpack.c.b16 %v1058, %v1056
      %v1085 = vpack.c.b16 %v1061, %v1059
      %v1086 = vpack.c.b16 %v1062, %v1060
      %vm1111 = vcmask 523264
      %v1113 = vsel %vm1111, %v916, 0
      %v1116 = vsel %vm1111, %v918, 0
      %v1119 = vsel %vm1111, %v920, 0
      %v1122 = vsel %vm1111, %v922, 0
      %v1125 = vsel %vm1111, %v924, 0
      %v1128 = vsel %vm1111, %v926, 0
      %v1131 = vsel %vm1111, %v928, 0
      %v1134 = vsel %vm1111, %v930, 0
      %v1137 = vsel %vm1111, %v932, 0
      %v1140 = vsel %vm1111, %v934, 0
      %v1143 = vsel %vm1111, %v936, 0
      %v1146 = vsel %vm1111, %v938, 0
      %v1149 = vsel %vm1111, %v940, 0
      %v1152 = vsel %vm1111, %v942, 0
      %v1155 = vsel %vm1111, %v944, 0
      %v1158 = vsel %vm1111, %v946, 0
      %v1161 = vsel %vm1111, %v948, 0
      %v1164 = vsel %vm1111, %v950, 0
      %v1167 = vsel %vm1111, %v952, 0
      %v1170 = vsel %vm1111, %v954, 0
      %1172 = vmatprep.subr.bf16.mxu0 %v1064
      %1173 = vmatpush1.bf16.msra.mxu0 %v1063
      %1174 = vmatprep.subr.bf16.mxu0 %v1066
      %1175 = vmatpush1.bf16.msra.mxu0 %v1065
      %1176 = vmatprep.subr.bf16.mxu0 %v1068
      %1177 = vmatpush1.bf16.msra.mxu0 %v1067
      %1178 = vmatprep.subr.bf16.mxu0 %v1070
      %1179 = vmatpush1.bf16.msra.mxu0 %v1069
      %1180 = vmatprep.subr.bf16.mxu0 %v1072
      %1181 = vmatpush1.bf16.msra.mxu0 %v1071
      %1182 = vmatprep.subr.bf16.mxu0 %v1074
      %1183 = vmatpush1.bf16.msra.mxu0 %v1073
      %1184 = vmatprep.subr.bf16.mxu0 %v1076
      %1185 = vmatpush1.bf16.msra.mxu0 %v1075
      %1186 = vmatprep.subr.bf16.mxu0 %v1078
      %1187 = vmatpush1.bf16.msra.mxu0 %v1077
      %1188 = vmatprep.subr.bf16.mxu0 %v1080
      %1189 = vmatpush1.bf16.msra.mxu0 %v1079
      %1190 = vmatprep.subr.bf16.mxu0 %v1082
      %1191 = vmatpush1.bf16.msra.mxu0 %v1081
      %1192 = vmatprep.subr.bf16.mxu0 %v1084
      %1193 = vmatpush1.bf16.msra.mxu0 %v1083
      %1194 = vmatprep.subr.bf16.mxu0 %v1086
      %1195 = vmatpush1.bf16.msra.mxu0 %v1085
      %1196 = vmatprep.subr.bf16.mxu0 0
      %1197 = vmatpush1.bf16.msra.mxu0 0
      %1198 = vmatprep.subr.bf16.mxu0 0
      %1199 = vmatpush1.bf16.msra.mxu0 0
      %1200 = vmatprep.subr.bf16.mxu0 0
      %1201 = vmatpush1.bf16.msra.mxu0 0
      %1202 = vmatprep.subr.bf16.mxu0 0
      %1203 = vmatpush1.bf16.msra.mxu0 0
      %1204 = vmatprep.mubr.bf16.mxu0 %v1113
      %1205 = vmatmul.mubr.bf16.gmra.mrb[0].mxu0 %v915
      %v1206 = vpop.f32.mrb[0].mxu0
      %v1207 = vadd.f32 %v984, %v1206
      %v1208 = vpop.f32.mrb[0].mxu0
      %v1209 = vadd.f32 %v988, %v1208
      %v1210 = vpop.f32.mrb[0].mxu0
      %v1211 = vadd.f32 %v984, %v1210
      %v1212 = vpop.f32.mrb[0].mxu0
      %v1213 = vadd.f32 %v988, %v1212
      %1214 = vmatprep.mubr.bf16.mxu0 %v1116
      %1215 = vmatmul.mubr.bf16.gmra.mrb[0].mxu0 %v917
      %v1216 = vpop.f32.mrb[0].mxu0
      %v1217 = vadd.f32 %v984, %v1216
      %v1218 = vpop.f32.mrb[0].mxu0
      %v1219 = vadd.f32 %v988, %v1218
      %v1220 = vpop.f32.mrb[0].mxu0
      %v1221 = vadd.f32 %v984, %v1220
      %v1222 = vpop.f32.mrb[0].mxu0
      %v1223 = vadd.f32 %v988, %v1222
      %1224 = vmatprep.mubr.bf16.mxu0 %v1119
      %1225 = vmatmul.mubr.bf16.gmra.mrb[0].mxu0 %v919
      %v1226 = vpop.f32.mrb[0].mxu0
      %v1227 = vadd.f32 %v984, %v1226
      %v1228 = vpop.f32.mrb[0].mxu0
      %v1229 = vadd.f32 %v988, %v1228
      %v1230 = vpop.f32.mrb[0].mxu0
      %v1231 = vadd.f32 %v984, %v1230
      %v1232 = vpop.f32.mrb[0].mxu0
      %v1233 = vadd.f32 %v988, %v1232
      %1234 = vmatprep.mubr.bf16.mxu0 %v1122
      %1235 = vmatmul.mubr.bf16.gmra.mrb[0].mxu0 %v921
      %v1236 = vpop.f32.mrb[0].mxu0
      %v1237 = vadd.f32 %v984, %v1236
      %v1238 = vpop.f32.mrb[0].mxu0
      %v1239 = vadd.f32 %v988, %v1238
      %v1240 = vpop.f32.mrb[0].mxu0
      %v1241 = vadd.f32 %v984, %v1240
      %v1242 = vpop.f32.mrb[0].mxu0
      %v1243 = vadd.f32 %v988, %v1242
      %1244 = vmatprep.mubr.bf16.mxu0 %v1125
      %1245 = vmatmul.mubr.bf16.gmra.mrb[0].mxu0 %v923
      %v1246 = vpop.f32.mrb[0].mxu0
      %v1247 = vadd.f32 %v984, %v1246
      %v1248 = vpop.f32.mrb[0].mxu0
      %v1249 = vadd.f32 %v988, %v1248
      %v1250 = vpop.f32.mrb[0].mxu0
      %v1251 = vadd.f32 %v984, %v1250
      %v1252 = vpop.f32.mrb[0].mxu0
      %v1253 = vadd.f32 %v988, %v1252
      %1254 = vmatprep.mubr.bf16.mxu0 %v1128
      %1255 = vmatmul.mubr.bf16.gmra.mrb[0].mxu0 %v925
      %v1256 = vpop.f32.mrb[0].mxu0
      %v1257 = vadd.f32 %v984, %v1256
      %v1258 = vpop.f32.mrb[0].mxu0
      %v1259 = vadd.f32 %v988, %v1258
      %v1260 = vpop.f32.mrb[0].mxu0
      %v1261 = vadd.f32 %v984, %v1260
      %v1262 = vpop.f32.mrb[0].mxu0
      %v1263 = vadd.f32 %v988, %v1262
      %1264 = vmatprep.mubr.bf16.mxu0 %v1131
      %1265 = vmatmul.mubr.bf16.gmra.mrb[0].mxu0 %v927
      %v1266 = vpop.f32.mrb[0].mxu0
      %v1267 = vadd.f32 %v984, %v1266
      %v1268 = vpop.f32.mrb[0].mxu0
      %v1269 = vadd.f32 %v988, %v1268
      %v1270 = vpop.f32.mrb[0].mxu0
      %v1271 = vadd.f32 %v984, %v1270
      %v1272 = vpop.f32.mrb[0].mxu0
      %v1273 = vadd.f32 %v988, %v1272
      %1274 = vmatprep.mubr.bf16.mxu0 %v1134
      %1275 = vmatmul.mubr.bf16.gmra.mrb[0].mxu0 %v929
      %v1276 = vpop.f32.mrb[0].mxu0
      %v1277 = vadd.f32 %v984, %v1276
      %v1278 = vpop.f32.mrb[0].mxu0
      %v1279 = vadd.f32 %v988, %v1278
      %v1280 = vpop.f32.mrb[0].mxu0
      %v1281 = vadd.f32 %v984, %v1280
      %v1282 = vpop.f32.mrb[0].mxu0
      %v1283 = vadd.f32 %v988, %v1282
      %1284 = vmatprep.mubr.bf16.mxu0 %v1137
      %1285 = vmatmul.mubr.bf16.gmra.mrb[0].mxu0 %v931
      %v1286 = vpop.f32.mrb[0].mxu0
      %v1287 = vadd.f32 %v984, %v1286
      %v1288 = vpop.f32.mrb[0].mxu0
      %v1289 = vadd.f32 %v988, %v1288
      %v1290 = vpop.f32.mrb[0].mxu0
      %v1291 = vadd.f32 %v984, %v1290
      %v1292 = vpop.f32.mrb[0].mxu0
      %v1293 = vadd.f32 %v988, %v1292
      %1294 = vmatprep.mubr.bf16.mxu0 %v1140
      %1295 = vmatmul.mubr.bf16.gmra.mrb[0].mxu0 %v933
      %v1296 = vpop.f32.mrb[0].mxu0
      %v1297 = vadd.f32 %v984, %v1296
      %v1298 = vpop.f32.mrb[0].mxu0
      %v1299 = vadd.f32 %v988, %v1298
      %v1300 = vpop.f32.mrb[0].mxu0
      %v1301 = vadd.f32 %v984, %v1300
      %v1302 = vpop.f32.mrb[0].mxu0
      %v1303 = vadd.f32 %v988, %v1302
      %1304 = vmatprep.mubr.bf16.mxu0 %v1143
      %1305 = vmatmul.mubr.bf16.gmra.mrb[0].mxu0 %v935
      %v1306 = vpop.f32.mrb[0].mxu0
      %v1307 = vadd.f32 %v984, %v1306
      %v1308 = vpop.f32.mrb[0].mxu0
      %v1309 = vadd.f32 %v988, %v1308
      %v1310 = vpop.f32.mrb[0].mxu0
      %v1311 = vadd.f32 %v984, %v1310
      %v1312 = vpop.f32.mrb[0].mxu0
      %v1313 = vadd.f32 %v988, %v1312
      %1314 = vmatprep.mubr.bf16.mxu0 %v1146
      %1315 = vmatmul.mubr.bf16.gmra.mrb[0].mxu0 %v937
      %v1316 = vpop.f32.mrb[0].mxu0
      %v1317 = vadd.f32 %v984, %v1316
      %v1318 = vpop.f32.mrb[0].mxu0
      %v1319 = vadd.f32 %v988, %v1318
      %v1320 = vpop.f32.mrb[0].mxu0
      %v1321 = vadd.f32 %v984, %v1320
      %v1322 = vpop.f32.mrb[0].mxu0
      %v1323 = vadd.f32 %v988, %v1322
      %1324 = vmatprep.mubr.bf16.mxu0 %v1149
      %1325 = vmatmul.mubr.bf16.gmra.mrb[0].mxu0 %v939
      %v1326 = vpop.f32.mrb[0].mxu0
      %v1327 = vadd.f32 %v984, %v1326
      %v1328 = vpop.f32.mrb[0].mxu0
      %v1329 = vadd.f32 %v988, %v1328
      %v1330 = vpop.f32.mrb[0].mxu0
      %v1331 = vadd.f32 %v984, %v1330
      %v1332 = vpop.f32.mrb[0].mxu0
      %v1333 = vadd.f32 %v988, %v1332
      %1334 = vmatprep.mubr.bf16.mxu0 %v1152
      %1335 = vmatmul.mubr.bf16.gmra.mrb[0].mxu0 %v941
      %v1336 = vpop.f32.mrb[0].mxu0
      %v1337 = vadd.f32 %v984, %v1336
      %v1338 = vpop.f32.mrb[0].mxu0
      %v1339 = vadd.f32 %v988, %v1338
      %v1340 = vpop.f32.mrb[0].mxu0
      %v1341 = vadd.f32 %v984, %v1340
      %v1342 = vpop.f32.mrb[0].mxu0
      %v1343 = vadd.f32 %v988, %v1342
      %1344 = vmatprep.mubr.bf16.mxu0 %v1155
      %1345 = vmatmul.mubr.bf16.gmra.mrb[0].mxu0 %v943
      %v1346 = vpop.f32.mrb[0].mxu0
      %v1347 = vadd.f32 %v984, %v1346
      %v1348 = vpop.f32.mrb[0].mxu0
      %v1349 = vadd.f32 %v988, %v1348
      %v1350 = vpop.f32.mrb[0].mxu0
      %v1351 = vadd.f32 %v984, %v1350
      %v1352 = vpop.f32.mrb[0].mxu0
      %v1353 = vadd.f32 %v988, %v1352
      %1354 = vmatprep.mubr.bf16.mxu0 %v1158
      %1355 = vmatmul.mubr.bf16.gmra.mrb[0].mxu0 %v945
      %v1356 = vpop.f32.mrb[0].mxu0
      %v1357 = vadd.f32 %v984, %v1356
      %v1358 = vpop.f32.mrb[0].mxu0
      %v1359 = vadd.f32 %v988, %v1358
      %v1360 = vpop.f32.mrb[0].mxu0
      %v1361 = vadd.f32 %v984, %v1360
      %v1362 = vpop.f32.mrb[0].mxu0
      %v1363 = vadd.f32 %v988, %v1362
      %1364 = vmatprep.mubr.bf16.mxu0 %v1161
      %1365 = vmatmul.mubr.bf16.gmra.mrb[0].mxu0 %v947
      %v1366 = vpop.f32.mrb[0].mxu0
      %v1367 = vadd.f32 %v984, %v1366
      %v1368 = vpop.f32.mrb[0].mxu0
      %v1369 = vadd.f32 %v988, %v1368
      %v1370 = vpop.f32.mrb[0].mxu0
      %v1371 = vadd.f32 %v984, %v1370
      %v1372 = vpop.f32.mrb[0].mxu0
      %v1373 = vadd.f32 %v988, %v1372
      %1374 = vmatprep.mubr.bf16.mxu0 %v1164
      %1375 = vmatmul.mubr.bf16.gmra.mrb[0].mxu0 %v949
      %v1376 = vpop.f32.mrb[0].mxu0
      %v1377 = vadd.f32 %v984, %v1376
      %v1378 = vpop.f32.mrb[0].mxu0
      %v1379 = vadd.f32 %v988, %v1378
      %v1380 = vpop.f32.mrb[0].mxu0
      %v1381 = vadd.f32 %v984, %v1380
      %v1382 = vpop.f32.mrb[0].mxu0
      %v1383 = vadd.f32 %v988, %v1382
      %1384 = vmatprep.mubr.bf16.mxu0 %v1167
      %1385 = vmatmul.mubr.bf16.gmra.mrb[0].mxu0 %v951
      %v1386 = vpop.f32.mrb[0].mxu0
      %v1387 = vadd.f32 %v984, %v1386
      %v1388 = vpop.f32.mrb[0].mxu0
      %v1389 = vadd.f32 %v988, %v1388
      %v1390 = vpop.f32.mrb[0].mxu0
      %v1391 = vadd.f32 %v984, %v1390
      %v1392 = vpop.f32.mrb[0].mxu0
      %v1393 = vadd.f32 %v988, %v1392
      %1394 = vmatprep.mubr.bf16.mxu0 %v1170
      %1395 = vmatmul.mubr.bf16.gmra.mrb[0].mxu0 %v953
      %v1396 = vpop.f32.mrb[0].mxu0
      %v1397 = vadd.f32 %v984, %v1396
      %v1398 = vpop.f32.mrb[0].mxu0
      %v1399 = vadd.f32 %v988, %v1398
      %v1400 = vpop.f32.mrb[0].mxu0
      %v1401 = vadd.f32 %v984, %v1400
      %v1402 = vpop.f32.mrb[0].mxu0
      %v1403 = vadd.f32 %v988, %v1402
      %1404 = vdwg.mxu0
      %v1405 = vmax.f32 %v1207, 0.0
      %v1406 = vmax.f32 %v1209, 0.0
      %v1407 = vmax.f32 %v1211, 0.0
      %v1408 = vmax.f32 %v1213, 0.0
      %v1409 = vmax.f32 %v1217, 0.0
      %v1410 = vmax.f32 %v1219, 0.0
      %v1411 = vmax.f32 %v1221, 0.0
      %v1412 = vmax.f32 %v1223, 0.0
      %v1413 = vmax.f32 %v1227, 0.0
      %v1414 = vmax.f32 %v1229, 0.0
      %v1415 = vmax.f32 %v1231, 0.0
      %v1416 = vmax.f32 %v1233, 0.0
      %v1417 = vmax.f32 %v1237, 0.0
      %v1418 = vmax.f32 %v1239, 0.0
      %v1419 = vmax.f32 %v1241, 0.0
      %v1420 = vmax.f32 %v1243, 0.0
      %v1421 = vmax.f32 %v1247, 0.0
      %v1422 = vmax.f32 %v1249, 0.0
      %v1423 = vmax.f32 %v1251, 0.0
      %v1424 = vmax.f32 %v1253, 0.0
      %v1425 = vmax.f32 %v1257, 0.0
      %v1426 = vmax.f32 %v1259, 0.0
      %v1427 = vmax.f32 %v1261, 0.0
      %v1428 = vmax.f32 %v1263, 0.0
      %v1429 = vmax.f32 %v1267, 0.0
      %v1430 = vmax.f32 %v1269, 0.0
      %v1431 = vmax.f32 %v1271, 0.0
      %v1432 = vmax.f32 %v1273, 0.0
      %v1433 = vmax.f32 %v1277, 0.0
      %v1434 = vmax.f32 %v1279, 0.0
      %v1435 = vmax.f32 %v1281, 0.0
      %v1436 = vmax.f32 %v1283, 0.0
      %v1437 = vmax.f32 %v1287, 0.0
      %v1438 = vmax.f32 %v1289, 0.0
      %v1439 = vmax.f32 %v1291, 0.0
      %v1440 = vmax.f32 %v1293, 0.0
      %v1441 = vmax.f32 %v1297, 0.0
      %v1442 = vmax.f32 %v1299, 0.0
      %v1443 = vmax.f32 %v1301, 0.0
      %v1444 = vmax.f32 %v1303, 0.0
      %v1445 = vmax.f32 %v1307, 0.0
      %v1446 = vmax.f32 %v1309, 0.0
      %v1447 = vmax.f32 %v1311, 0.0
      %v1448 = vmax.f32 %v1313, 0.0
      %v1449 = vmax.f32 %v1317, 0.0
      %v1450 = vmax.f32 %v1319, 0.0
      %v1451 = vmax.f32 %v1321, 0.0
      %v1452 = vmax.f32 %v1323, 0.0
      %v1453 = vmax.f32 %v1327, 0.0
      %v1454 = vmax.f32 %v1329, 0.0
      %v1455 = vmax.f32 %v1331, 0.0
      %v1456 = vmax.f32 %v1333, 0.0
      %v1457 = vmax.f32 %v1337, 0.0
      %v1458 = vmax.f32 %v1339, 0.0
      %v1459 = vmax.f32 %v1341, 0.0
      %v1460 = vmax.f32 %v1343, 0.0
      %v1461 = vmax.f32 %v1347, 0.0
      %v1462 = vmax.f32 %v1349, 0.0
      %v1463 = vmax.f32 %v1351, 0.0
      %v1464 = vmax.f32 %v1353, 0.0
      %v1465 = vmax.f32 %v1357, 0.0
      %v1466 = vmax.f32 %v1359, 0.0
      %v1467 = vmax.f32 %v1361, 0.0
      %v1468 = vmax.f32 %v1363, 0.0
      %v1469 = vmax.f32 %v1367, 0.0
      %v1470 = vmax.f32 %v1369, 0.0
      %v1471 = vmax.f32 %v1371, 0.0
      %v1472 = vmax.f32 %v1373, 0.0
      %v1473 = vmax.f32 %v1377, 0.0
      %v1474 = vmax.f32 %v1379, 0.0
      %v1475 = vmax.f32 %v1381, 0.0
      %v1476 = vmax.f32 %v1383, 0.0
      %v1477 = vmax.f32 %v1387, 0.0
      %v1478 = vmax.f32 %v1389, 0.0
      %v1479 = vmax.f32 %v1391, 0.0
      %v1480 = vmax.f32 %v1393, 0.0
      %v1481 = vmax.f32 %v1397, 0.0
      %v1482 = vmax.f32 %v1399, 0.0
      %v1483 = vmax.f32 %v1401, 0.0
      %v1484 = vmax.f32 %v1403, 0.0
      %v1485 = vpack.c.bf16 %v1407, %v1405
      %v1486 = vpack.c.bf16 %v1408, %v1406
      %v1487 = vpack.c.bf16 %v1411, %v1409
      %v1488 = vpack.c.bf16 %v1412, %v1410
      %v1489 = vpack.c.bf16 %v1415, %v1413
      %v1490 = vpack.c.bf16 %v1416, %v1414
      %v1491 = vpack.c.bf16 %v1419, %v1417
      %v1492 = vpack.c.bf16 %v1420, %v1418
      %v1493 = vpack.c.bf16 %v1423, %v1421
      %v1494 = vpack.c.bf16 %v1424, %v1422
      %v1495 = vpack.c.bf16 %v1427, %v1425
      %v1496 = vpack.c.bf16 %v1428, %v1426
      %v1497 = vpack.c.bf16 %v1431, %v1429
      %v1498 = vpack.c.bf16 %v1432, %v1430
      %v1499 = vpack.c.bf16 %v1435, %v1433
      %v1500 = vpack.c.bf16 %v1436, %v1434
      %v1501 = vpack.c.bf16 %v1439, %v1437
      %v1502 = vpack.c.bf16 %v1440, %v1438
      %v1503 = vpack.c.bf16 %v1443, %v1441
      %v1504 = vpack.c.bf16 %v1444, %v1442
      %v1505 = vpack.c.bf16 %v1447, %v1445
      %v1506 = vpack.c.bf16 %v1448, %v1446
      %v1507 = vpack.c.bf16 %v1451, %v1449
      %v1508 = vpack.c.bf16 %v1452, %v1450
      %v1509 = vpack.c.bf16 %v1455, %v1453
      %v1510 = vpack.c.bf16 %v1456, %v1454
      %v1511 = vpack.c.bf16 %v1459, %v1457
      %v1512 = vpack.c.bf16 %v1460, %v1458
      %v1513 = vpack.c.bf16 %v1463, %v1461
      %v1514 = vpack.c.bf16 %v1464, %v1462
      %v1515 = vpack.c.bf16 %v1467, %v1465
      %v1516 = vpack.c.bf16 %v1468, %v1466
      %v1517 = vpack.c.bf16 %v1471, %v1469
      %v1518 = vpack.c.bf16 %v1472, %v1470
      %v1519 = vpack.c.bf16 %v1475, %v1473
      %v1520 = vpack.c.bf16 %v1476, %v1474
      %v1521 = vpack.c.bf16 %v1479, %v1477
      %v1522 = vpack.c.bf16 %v1480, %v1478
      %v1523 = vpack.c.bf16 %v1483, %v1481
      %v1524 = vpack.c.bf16 %v1484, %v1482
      %v1525 = vld [vmem:[%s5] sm:$0xf]
      %v1526 = vld [vmem:[%s5 + $0x4] sm:$0xf]
      %v1527 = vld [vmem:[%s5 + $0x8] sm:$0xf]
      %v1528 = vld [vmem:[%s5 + $0xc] sm:$0xf]
      %v1529 = vld [vmem:[%s5 + $0x10] sm:$0xf]
      %v1530 = vld [vmem:[%s5 + $0x14] sm:$0xf]
      %v1531 = vld [vmem:[%s5 + $0x18] sm:$0xf]
      %v1532 = vld [vmem:[%s5 + $0x1c] sm:$0xf]
      %v1533 = vld [vmem:[%s5 + $0x20] sm:$0xf]
      %v1534 = vld [vmem:[%s5 + $0x24] sm:$0xf]
      %v1535 = vld [vmem:[%s5 + $0x28] sm:$0xf]
      %v1536 = vld [vmem:[%s5 + $0x2c] sm:$0xf]
      %v1537 = vld [vmem:[%s5 + $0x30] sm:$0xf]
      %v1538 = vld [vmem:[%s5 + $0x34] sm:$0xf]
      %v1539 = vld [vmem:[%s5 + $0x38] sm:$0xf]
      %v1540 = vld [vmem:[%s5 + $0x3c] sm:$0xf]
      %v1541 = vld [vmem:[%s5 + $0x40] sm:$0xf]
      %v1542 = vld [vmem:[%s5 + $0x44] sm:$0xf]
      %v1543 = vld [vmem:[%s5 + $0x48] sm:$0xf]
      %v1544 = vld [vmem:[%s5 + $0x4c] sm:$0xf]
      %v1545 = vld [vmem:[%s6] sm:$0x1]
      %v1547 = vlaneseq
      %v1548 = vshrl.u32 %v1547, 7
      %v1549 = vsub.s32 0, %v1548
      %v1550 = vrot.slane %v1545, %v1549
      %v1572 = vunpack.c.l.b16 %v1525
      %v1573 = vunpack.c.l.b16 %v1526
      %v1574 = vunpack.c.l.b16 %v1527
      %v1575 = vunpack.c.l.b16 %v1528
      %v1576 = vunpack.c.l.b16 %v1529
      %v1577 = vunpack.c.l.b16 %v1530
      %v1578 = vunpack.c.l.b16 %v1531
      %v1579 = vunpack.c.l.b16 %v1532
      %v1580 = vunpack.c.l.b16 %v1533
      %v1581 = vunpack.c.l.b16 %v1534
      %v1582 = vunpack.c.l.b16 %v1535
      %v1583 = vunpack.c.l.b16 %v1536
      %v1584 = vunpack.c.l.b16 %v1537
      %v1585 = vunpack.c.l.b16 %v1538
      %v1586 = vunpack.c.l.b16 %v1539
      %v1587 = vunpack.c.l.b16 %v1540
      %v1588 = vunpack.c.l.b16 %v1541
      %v1589 = vunpack.c.l.b16 %v1542
      %v1590 = vunpack.c.l.b16 %v1543
      %v1591 = vunpack.c.l.b16 %v1544
      %v1592 = vpack.c.b16 %v1573, %v1572
      %v1593 = vpack.c.b16 %v1575, %v1574
      %v1594 = vpack.c.b16 %v1577, %v1576
      %v1595 = vpack.c.b16 %v1579, %v1578
      %v1596 = vpack.c.b16 %v1581, %v1580
      %v1597 = vpack.c.b16 %v1583, %v1582
      %v1598 = vpack.c.b16 %v1585, %v1584
      %v1599 = vpack.c.b16 %v1587, %v1586
      %v1600 = vpack.c.b16 %v1589, %v1588
      %v1601 = vpack.c.b16 %v1591, %v1590
      %vm1612 = vcmask 261120
      %v1614 = vsel %vm1612, %v1486, 0
      %v1617 = vsel %vm1612, %v1488, 0
      %v1620 = vsel %vm1612, %v1490, 0
      %v1623 = vsel %vm1612, %v1492, 0
      %v1626 = vsel %vm1612, %v1494, 0
      %v1629 = vsel %vm1612, %v1496, 0
      %v1632 = vsel %vm1612, %v1498, 0
      %v1635 = vsel %vm1612, %v1500, 0
      %v1638 = vsel %vm1612, %v1502, 0
      %v1641 = vsel %vm1612, %v1504, 0
      %v1644 = vsel %vm1612, %v1506, 0
      %v1647 = vsel %vm1612, %v1508, 0
      %v1650 = vsel %vm1612, %v1510, 0
      %v1653 = vsel %vm1612, %v1512, 0
      %v1656 = vsel %vm1612, %v1514, 0
      %v1659 = vsel %vm1612, %v1516, 0
      %v1662 = vsel %vm1612, %v1518, 0
      %v1665 = vsel %vm1612, %v1520, 0
      %v1668 = vsel %vm1612, %v1522, 0
      %v1671 = vsel %vm1612, %v1524, 0
      %1673 = vmatprep.subr.bf16.mxu0 0
      %1674 = vmatpush1.bf16.msra.mxu0 %v1592
      %1675 = vmatprep.subr.bf16.mxu0 0
      %1676 = vmatpush1.bf16.msra.mxu0 %v1593
      %1677 = vmatprep.subr.bf16.mxu0 0
      %1678 = vmatpush1.bf16.msra.mxu0 %v1594
      %1679 = vmatprep.subr.bf16.mxu0 0
      %1680 = vmatpush1.bf16.msra.mxu0 %v1595
      %1681 = vmatprep.subr.bf16.mxu0 0
      %1682 = vmatpush1.bf16.msra.mxu0 %v1596
      %1683 = vmatprep.subr.bf16.mxu0 0
      %1684 = vmatpush1.bf16.msra.mxu0 %v1597
      %1685 = vmatprep.subr.bf16.mxu0 0
      %1686 = vmatpush1.bf16.msra.mxu0 %v1598
      %1687 = vmatprep.subr.bf16.mxu0 0
      %1688 = vmatpush1.bf16.msra.mxu0 %v1599
      %1689 = vmatprep.subr.bf16.mxu0 0
      %1690 = vmatpush1.bf16.msra.mxu0 %v1600
      %1691 = vmatprep.subr.bf16.mxu0 0
      %1692 = vmatpush1.bf16.msra.mxu0 %v1601
      %1693 = vmatprep.subr.bf16.mxu0 0
      %1694 = vmatpush1.bf16.msra.mxu0 0
      %1695 = vmatprep.subr.bf16.mxu0 0
      %1696 = vmatpush1.bf16.msra.mxu0 0
      %1697 = vmatprep.subr.bf16.mxu0 0
      %1698 = vmatpush1.bf16.msra.mxu0 0
      %1699 = vmatprep.subr.bf16.mxu0 0
      %1700 = vmatpush1.bf16.msra.mxu0 0
      %1701 = vmatprep.subr.bf16.mxu0 0
      %1702 = vmatpush1.bf16.msra.mxu0 0
      %1703 = vmatprep.subr.bf16.mxu0 0
      %1704 = vmatpush1.bf16.msra.mxu0 0
      %1705 = vmatprep.mubr.bf16.mxu0 %v1614
      %1706 = vmatmul.mubr.bf16.gmra.mrb[0].mxu0 %v1485
      %v1707 = vpop.f32.mrb[0].mxu0
      %v1708 = vadd.f32 %v1550, %v1707
      %v1709 = vpop.f32.mrb[0].mxu0
      %v1710 = vpop.f32.mrb[0].mxu0
      %v1711 = vadd.f32 %v1550, %v1710
      %v1712 = vpop.f32.mrb[0].mxu0
      %1713 = vmatprep.mubr.bf16.mxu0 %v1617
      %1714 = vmatmul.mubr.bf16.gmra.mrb[0].mxu0 %v1487
      %v1715 = vpop.f32.mrb[0].mxu0
      %v1716 = vadd.f32 %v1550, %v1715
      %v1717 = vpop.f32.mrb[0].mxu0
      %v1718 = vpop.f32.mrb[0].mxu0
      %v1719 = vadd.f32 %v1550, %v1718
      %v1720 = vpop.f32.mrb[0].mxu0
      %1721 = vmatprep.mubr.bf16.mxu0 %v1620
      %1722 = vmatmul.mubr.bf16.gmra.mrb[0].mxu0 %v1489
      %v1723 = vpop.f32.mrb[0].mxu0
      %v1724 = vadd.f32 %v1550, %v1723
      %v1725 = vpop.f32.mrb[0].mxu0
      %v1726 = vpop.f32.mrb[0].mxu0
      %v1727 = vadd.f32 %v1550, %v1726
      %v1728 = vpop.f32.mrb[0].mxu0
      %1729 = vmatprep.mubr.bf16.mxu0 %v1623
      %1730 = vmatmul.mubr.bf16.gmra.mrb[0].mxu0 %v1491
      %v1731 = vpop.f32.mrb[0].mxu0
      %v1732 = vadd.f32 %v1550, %v1731
      %v1733 = vpop.f32.mrb[0].mxu0
      %v1734 = vpop.f32.mrb[0].mxu0
      %v1735 = vadd.f32 %v1550, %v1734
      %v1736 = vpop.f32.mrb[0].mxu0
      %1737 = vmatprep.mubr.bf16.mxu0 %v1626
      %1738 = vmatmul.mubr.bf16.gmra.mrb[0].mxu0 %v1493
      %v1739 = vpop.f32.mrb[0].mxu0
      %v1740 = vadd.f32 %v1550, %v1739
      %v1741 = vpop.f32.mrb[0].mxu0
      %v1742 = vpop.f32.mrb[0].mxu0
      %v1743 = vadd.f32 %v1550, %v1742
      %v1744 = vpop.f32.mrb[0].mxu0
      %1745 = vmatprep.mubr.bf16.mxu0 %v1629
      %1746 = vmatmul.mubr.bf16.gmra.mrb[0].mxu0 %v1495
      %v1747 = vpop.f32.mrb[0].mxu0
      %v1748 = vadd.f32 %v1550, %v1747
      %v1749 = vpop.f32.mrb[0].mxu0
      %v1750 = vpop.f32.mrb[0].mxu0
      %v1751 = vadd.f32 %v1550, %v1750
      %v1752 = vpop.f32.mrb[0].mxu0
      %1753 = vmatprep.mubr.bf16.mxu0 %v1632
      %1754 = vmatmul.mubr.bf16.gmra.mrb[0].mxu0 %v1497
      %v1755 = vpop.f32.mrb[0].mxu0
      %v1756 = vadd.f32 %v1550, %v1755
      %v1757 = vpop.f32.mrb[0].mxu0
      %v1758 = vpop.f32.mrb[0].mxu0
      %v1759 = vadd.f32 %v1550, %v1758
      %v1760 = vpop.f32.mrb[0].mxu0
      %1761 = vmatprep.mubr.bf16.mxu0 %v1635
      %1762 = vmatmul.mubr.bf16.gmra.mrb[0].mxu0 %v1499
      %v1763 = vpop.f32.mrb[0].mxu0
      %v1764 = vadd.f32 %v1550, %v1763
      %v1765 = vpop.f32.mrb[0].mxu0
      %v1766 = vpop.f32.mrb[0].mxu0
      %v1767 = vadd.f32 %v1550, %v1766
      %v1768 = vpop.f32.mrb[0].mxu0
      %1769 = vmatprep.mubr.bf16.mxu0 %v1638
      %1770 = vmatmul.mubr.bf16.gmra.mrb[0].mxu0 %v1501
      %v1771 = vpop.f32.mrb[0].mxu0
      %v1772 = vadd.f32 %v1550, %v1771
      %v1773 = vpop.f32.mrb[0].mxu0
      %v1774 = vpop.f32.mrb[0].mxu0
      %v1775 = vadd.f32 %v1550, %v1774
      %v1776 = vpop.f32.mrb[0].mxu0
      %1777 = vmatprep.mubr.bf16.mxu0 %v1641
      %1778 = vmatmul.mubr.bf16.gmra.mrb[0].mxu0 %v1503
      %v1779 = vpop.f32.mrb[0].mxu0
      %v1780 = vadd.f32 %v1550, %v1779
      %v1781 = vpop.f32.mrb[0].mxu0
      %v1782 = vpop.f32.mrb[0].mxu0
      %v1783 = vadd.f32 %v1550, %v1782
      %v1784 = vpop.f32.mrb[0].mxu0
      %1785 = vmatprep.mubr.bf16.mxu0 %v1644
      %1786 = vmatmul.mubr.bf16.gmra.mrb[0].mxu0 %v1505
      %v1787 = vpop.f32.mrb[0].mxu0
      %v1788 = vadd.f32 %v1550, %v1787
      %v1789 = vpop.f32.mrb[0].mxu0
      %v1790 = vpop.f32.mrb[0].mxu0
      %v1791 = vadd.f32 %v1550, %v1790
      %v1792 = vpop.f32.mrb[0].mxu0
      %1793 = vmatprep.mubr.bf16.mxu0 %v1647
      %1794 = vmatmul.mubr.bf16.gmra.mrb[0].mxu0 %v1507
      %v1795 = vpop.f32.mrb[0].mxu0
      %v1796 = vadd.f32 %v1550, %v1795
      %v1797 = vpop.f32.mrb[0].mxu0
      %v1798 = vpop.f32.mrb[0].mxu0
      %v1799 = vadd.f32 %v1550, %v1798
      %v1800 = vpop.f32.mrb[0].mxu0
      %1801 = vmatprep.mubr.bf16.mxu0 %v1650
      %1802 = vmatmul.mubr.bf16.gmra.mrb[0].mxu0 %v1509
      %v1803 = vpop.f32.mrb[0].mxu0
      %v1804 = vadd.f32 %v1550, %v1803
      %v1805 = vpop.f32.mrb[0].mxu0
      %v1806 = vpop.f32.mrb[0].mxu0
      %v1807 = vadd.f32 %v1550, %v1806
      %v1808 = vpop.f32.mrb[0].mxu0
      %1809 = vmatprep.mubr.bf16.mxu0 %v1653
      %1810 = vmatmul.mubr.bf16.gmra.mrb[0].mxu0 %v1511
      %v1811 = vpop.f32.mrb[0].mxu0
      %v1812 = vadd.f32 %v1550, %v1811
      %v1813 = vpop.f32.mrb[0].mxu0
      %v1814 = vpop.f32.mrb[0].mxu0
      %v1815 = vadd.f32 %v1550, %v1814
      %v1816 = vpop.f32.mrb[0].mxu0
      %1817 = vmatprep.mubr.bf16.mxu0 %v1656
      %1818 = vmatmul.mubr.bf16.gmra.mrb[0].mxu0 %v1513
      %v1819 = vpop.f32.mrb[0].mxu0
      %v1820 = vadd.f32 %v1550, %v1819
      %v1821 = vpop.f32.mrb[0].mxu0
      %v1822 = vpop.f32.mrb[0].mxu0
      %v1823 = vadd.f32 %v1550, %v1822
      %v1824 = vpop.f32.mrb[0].mxu0
      %1825 = vmatprep.mubr.bf16.mxu0 %v1659
      %1826 = vmatmul.mubr.bf16.gmra.mrb[0].mxu0 %v1515
      %v1827 = vpop.f32.mrb[0].mxu0
      %v1828 = vadd.f32 %v1550, %v1827
      %v1829 = vpop.f32.mrb[0].mxu0
      %v1830 = vpop.f32.mrb[0].mxu0
      %v1831 = vadd.f32 %v1550, %v1830
      %v1832 = vpop.f32.mrb[0].mxu0
      %1833 = vmatprep.mubr.bf16.mxu0 %v1662
      %1834 = vmatmul.mubr.bf16.gmra.mrb[0].mxu0 %v1517
      %v1835 = vpop.f32.mrb[0].mxu0
      %v1836 = vadd.f32 %v1550, %v1835
      %v1837 = vpop.f32.mrb[0].mxu0
      %v1838 = vpop.f32.mrb[0].mxu0
      %v1839 = vadd.f32 %v1550, %v1838
      %v1840 = vpop.f32.mrb[0].mxu0
      %1841 = vmatprep.mubr.bf16.mxu0 %v1665
      %1842 = vmatmul.mubr.bf16.gmra.mrb[0].mxu0 %v1519
      %v1843 = vpop.f32.mrb[0].mxu0
      %v1844 = vadd.f32 %v1550, %v1843
      %v1845 = vpop.f32.mrb[0].mxu0
      %v1846 = vpop.f32.mrb[0].mxu0
      %v1847 = vadd.f32 %v1550, %v1846
      %v1848 = vpop.f32.mrb[0].mxu0
      %1849 = vmatprep.mubr.bf16.mxu0 %v1668
      %1850 = vmatmul.mubr.bf16.gmra.mrb[0].mxu0 %v1521
      %v1851 = vpop.f32.mrb[0].mxu0
      %v1852 = vadd.f32 %v1550, %v1851
      %v1853 = vpop.f32.mrb[0].mxu0
      %v1854 = vpop.f32.mrb[0].mxu0
      %v1855 = vadd.f32 %v1550, %v1854
      %v1856 = vpop.f32.mrb[0].mxu0
      %1857 = vmatprep.mubr.bf16.mxu0 %v1671
      %1858 = vmatmul.mubr.bf16.gmra.mrb[0].mxu0 %v1523
      %v1859 = vpop.f32.mrb[0].mxu0
      %v1860 = vadd.f32 %v1550, %v1859
      %v1861 = vpop.f32.mrb[0].mxu0
      %v1862 = vpop.f32.mrb[0].mxu0
      %v1863 = vadd.f32 %v1550, %v1862
      %v1864 = vpop.f32.mrb[0].mxu0
      %1865 = vdwg.mxu0
      %v1866 = vmax.f32 %v1708, 0.0
      %v1867 = vmax.f32 %v1711, 0.0
      %v1868 = vmax.f32 %v1716, 0.0
      %v1869 = vmax.f32 %v1719, 0.0
      %v1870 = vmax.f32 %v1724, 0.0
      %v1871 = vmax.f32 %v1727, 0.0
      %v1872 = vmax.f32 %v1732, 0.0
      %v1873 = vmax.f32 %v1735, 0.0
      %v1874 = vmax.f32 %v1740, 0.0
      %v1875 = vmax.f32 %v1743, 0.0
      %v1876 = vmax.f32 %v1748, 0.0
      %v1877 = vmax.f32 %v1751, 0.0
      %v1878 = vmax.f32 %v1756, 0.0
      %v1879 = vmax.f32 %v1759, 0.0
      %v1880 = vmax.f32 %v1764, 0.0
      %v1881 = vmax.f32 %v1767, 0.0
      %v1882 = vmax.f32 %v1772, 0.0
      %v1883 = vmax.f32 %v1775, 0.0
      %v1884 = vmax.f32 %v1780, 0.0
      %v1885 = vmax.f32 %v1783, 0.0
      %v1886 = vmax.f32 %v1788, 0.0
      %v1887 = vmax.f32 %v1791, 0.0
      %v1888 = vmax.f32 %v1796, 0.0
      %v1889 = vmax.f32 %v1799, 0.0
      %v1890 = vmax.f32 %v1804, 0.0
      %v1891 = vmax.f32 %v1807, 0.0
      %v1892 = vmax.f32 %v1812, 0.0
      %v1893 = vmax.f32 %v1815, 0.0
      %v1894 = vmax.f32 %v1820, 0.0
      %v1895 = vmax.f32 %v1823, 0.0
      %v1896 = vmax.f32 %v1828, 0.0
      %v1897 = vmax.f32 %v1831, 0.0
      %v1898 = vmax.f32 %v1836, 0.0
      %v1899 = vmax.f32 %v1839, 0.0
      %v1900 = vmax.f32 %v1844, 0.0
      %v1901 = vmax.f32 %v1847, 0.0
      %v1902 = vmax.f32 %v1852, 0.0
      %v1903 = vmax.f32 %v1855, 0.0
      %v1904 = vmax.f32 %v1860, 0.0
      %v1905 = vmax.f32 %v1863, 0.0
      %v1906 = vld [vmem:[%s7] sm:$0xff]
      %v1907 = vld [vmem:[%s7 + $0x8] sm:$0xff]
      %v1908 = vld [vmem:[%s7 + $0x10] sm:$0xff]
      %v1909 = vld [vmem:[%s7 + $0x18] sm:$0xff]
      %v1910 = vld [vmem:[%s7 + $0x20] sm:$0xff]
      %v1911 = vld [vmem:[%s7 + $0x28] sm:$0xff]
      %v1912 = vld [vmem:[%s7 + $0x30] sm:$0xff]
      %v1913 = vld [vmem:[%s7 + $0x38] sm:$0xff]
      %v1914 = vld [vmem:[%s7 + $0x40] sm:$0xff]
      %v1915 = vld [vmem:[%s7 + $0x48] sm:$0xff]
      %v1916 = vld [vmem:[%s7 + $0x50] sm:$0xff]
      %v1917 = vld [vmem:[%s7 + $0x58] sm:$0xff]
      %v1918 = vld [vmem:[%s7 + $0x60] sm:$0xff]
      %v1919 = vld [vmem:[%s7 + $0x68] sm:$0xff]
      %v1920 = vld [vmem:[%s7 + $0x70] sm:$0xff]
      %v1921 = vld [vmem:[%s7 + $0x78] sm:$0xff]
      %v1922 = vld [vmem:[%s7 + $0x80] sm:$0xff]
      %v1923 = vld [vmem:[%s7 + $0x88] sm:$0xff]
      %v1924 = vld [vmem:[%s7 + $0x90] sm:$0xff]
      %v1925 = vld [vmem:[%s7 + $0x98] sm:$0xff]
      %v1926 = vld [vmem:[%s7 + $0xa0] sm:$0xff]
      %v1927 = vld [vmem:[%s7 + $0xa8] sm:$0xff]
      %v1928 = vld [vmem:[%s7 + $0xb0] sm:$0xff]
      %v1929 = vld [vmem:[%s7 + $0xb8] sm:$0xff]
      %v1930 = vld [vmem:[%s7 + $0xc0] sm:$0xff]
      %v1931 = vld [vmem:[%s7 + $0xc8] sm:$0xff]
      %v1932 = vld [vmem:[%s7 + $0xd0] sm:$0xff]
      %v1933 = vld [vmem:[%s7 + $0xd8] sm:$0xff]
      %v1934 = vld [vmem:[%s7 + $0xe0] sm:$0xff]
      %v1935 = vld [vmem:[%s7 + $0xe8] sm:$0xff]
      %v1936 = vld [vmem:[%s7 + $0xf0] sm:$0xff]
      %v1937 = vld [vmem:[%s7 + $0xf8] sm:$0xff]
      %v1938 = vld [vmem:[%s7 + $0x100] sm:$0xff]
      %v1939 = vld [vmem:[%s7 + $0x108] sm:$0xff]
      %v1940 = vld [vmem:[%s7 + $0x110] sm:$0xff]
      %v1941 = vld [vmem:[%s7 + $0x118] sm:$0xff]
      %v1942 = vld [vmem:[%s7 + $0x120] sm:$0xff]
      %v1943 = vld [vmem:[%s7 + $0x128] sm:$0xff]
      %v1944 = vld [vmem:[%s7 + $0x130] sm:$0xff]
      %v1945 = vld [vmem:[%s7 + $0x138] sm:$0xff]
      %1947 = vset.pattern.permute.xlu0 0
      %1948 = vperm.xlu0 %1947, %v1906
      %v1949 = vpop.permute.xlu0 %1948
      %1952 = vset.pattern.permute.xlu0 0
      %1953 = vperm.xlu0 %1952, %v1907
      %v1954 = vpop.permute.xlu0 %1953
      %1957 = vset.pattern.permute.xlu0 0
      %1958 = vperm.xlu0 %1957, %v1908
      %v1959 = vpop.permute.xlu0 %1958
      %1962 = vset.pattern.permute.xlu0 0
      %1963 = vperm.xlu0 %1962, %v1909
      %v1964 = vpop.permute.xlu0 %1963
      %1967 = vset.pattern.permute.xlu0 0
      %1968 = vperm.xlu0 %1967, %v1910
      %v1969 = vpop.permute.xlu0 %1968
      %1972 = vset.pattern.permute.xlu0 0
      %1973 = vperm.xlu0 %1972, %v1911
      %v1974 = vpop.permute.xlu0 %1973
      %1977 = vset.pattern.permute.xlu0 0
      %1978 = vperm.xlu0 %1977, %v1912
      %v1979 = vpop.permute.xlu0 %1978
      %1982 = vset.pattern.permute.xlu0 0
      %1983 = vperm.xlu0 %1982, %v1913
      %v1984 = vpop.permute.xlu0 %1983
      %1987 = vset.pattern.permute.xlu0 0
      %1988 = vperm.xlu0 %1987, %v1914
      %v1989 = vpop.permute.xlu0 %1988
      %1992 = vset.pattern.permute.xlu0 0
      %1993 = vperm.xlu0 %1992, %v1915
      %v1994 = vpop.permute.xlu0 %1993
      %1997 = vset.pattern.permute.xlu0 0
      %1998 = vperm.xlu0 %1997, %v1916
      %v1999 = vpop.permute.xlu0 %1998
      %2002 = vset.pattern.permute.xlu0 0
      %2003 = vperm.xlu0 %2002, %v1917
      %v2004 = vpop.permute.xlu0 %2003
      %2007 = vset.pattern.permute.xlu0 0
      %2008 = vperm.xlu0 %2007, %v1918
      %v2009 = vpop.permute.xlu0 %2008
      %2012 = vset.pattern.permute.xlu0 0
      %2013 = vperm.xlu0 %2012, %v1919
      %v2014 = vpop.permute.xlu0 %2013
      %2017 = vset.pattern.permute.xlu0 0
      %2018 = vperm.xlu0 %2017, %v1920
      %v2019 = vpop.permute.xlu0 %2018
      %2022 = vset.pattern.permute.xlu0 0
      %2023 = vperm.xlu0 %2022, %v1921
      %v2024 = vpop.permute.xlu0 %2023
      %2027 = vset.pattern.permute.xlu0 0
      %2028 = vperm.xlu0 %2027, %v1922
      %v2029 = vpop.permute.xlu0 %2028
      %2032 = vset.pattern.permute.xlu0 0
      %2033 = vperm.xlu0 %2032, %v1923
      %v2034 = vpop.permute.xlu0 %2033
      %2037 = vset.pattern.permute.xlu0 0
      %2038 = vperm.xlu0 %2037, %v1924
      %v2039 = vpop.permute.xlu0 %2038
      %2042 = vset.pattern.permute.xlu0 0
      %2043 = vperm.xlu0 %2042, %v1925
      %v2044 = vpop.permute.xlu0 %2043
      %2047 = vset.pattern.permute.xlu0 0
      %2048 = vperm.xlu0 %2047, %v1926
      %v2049 = vpop.permute.xlu0 %2048
      %2052 = vset.pattern.permute.xlu0 0
      %2053 = vperm.xlu0 %2052, %v1927
      %v2054 = vpop.permute.xlu0 %2053
      %2057 = vset.pattern.permute.xlu0 0
      %2058 = vperm.xlu0 %2057, %v1928
      %v2059 = vpop.permute.xlu0 %2058
      %2062 = vset.pattern.permute.xlu0 0
      %2063 = vperm.xlu0 %2062, %v1929
      %v2064 = vpop.permute.xlu0 %2063
      %2067 = vset.pattern.permute.xlu0 0
      %2068 = vperm.xlu0 %2067, %v1930
      %v2069 = vpop.permute.xlu0 %2068
      %2072 = vset.pattern.permute.xlu0 0
      %2073 = vperm.xlu0 %2072, %v1931
      %v2074 = vpop.permute.xlu0 %2073
      %2077 = vset.pattern.permute.xlu0 0
      %2078 = vperm.xlu0 %2077, %v1932
      %v2079 = vpop.permute.xlu0 %2078
      %2082 = vset.pattern.permute.xlu0 0
      %2083 = vperm.xlu0 %2082, %v1933
      %v2084 = vpop.permute.xlu0 %2083
      %2087 = vset.pattern.permute.xlu0 0
      %2088 = vperm.xlu0 %2087, %v1934
      %v2089 = vpop.permute.xlu0 %2088
      %2092 = vset.pattern.permute.xlu0 0
      %2093 = vperm.xlu0 %2092, %v1935
      %v2094 = vpop.permute.xlu0 %2093
      %2097 = vset.pattern.permute.xlu0 0
      %2098 = vperm.xlu0 %2097, %v1936
      %v2099 = vpop.permute.xlu0 %2098
      %2102 = vset.pattern.permute.xlu0 0
      %2103 = vperm.xlu0 %2102, %v1937
      %v2104 = vpop.permute.xlu0 %2103
      %2107 = vset.pattern.permute.xlu0 0
      %2108 = vperm.xlu0 %2107, %v1938
      %v2109 = vpop.permute.xlu0 %2108
      %2112 = vset.pattern.permute.xlu0 0
      %2113 = vperm.xlu0 %2112, %v1939
      %v2114 = vpop.permute.xlu0 %2113
      %2117 = vset.pattern.permute.xlu0 0
      %2118 = vperm.xlu0 %2117, %v1940
      %v2119 = vpop.permute.xlu0 %2118
      %2122 = vset.pattern.permute.xlu0 0
      %2123 = vperm.xlu0 %2122, %v1941
      %v2124 = vpop.permute.xlu0 %2123
      %2127 = vset.pattern.permute.xlu0 0
      %2128 = vperm.xlu0 %2127, %v1942
      %v2129 = vpop.permute.xlu0 %2128
      %2132 = vset.pattern.permute.xlu0 0
      %2133 = vperm.xlu0 %2132, %v1943
      %v2134 = vpop.permute.xlu0 %2133
      %2137 = vset.pattern.permute.xlu0 0
      %2138 = vperm.xlu0 %2137, %v1944
      %v2139 = vpop.permute.xlu0 %2138
      %2142 = vset.pattern.permute.xlu0 0
      %2143 = vperm.xlu0 %2142, %v1945
      %v2144 = vpop.permute.xlu0 %2143
      %v2146 = vmul.f32 %v1866, %v1949
      %v2147 = vmul.f32 %v1867, %v1954
      %v2148 = vmul.f32 %v1868, %v1959
      %v2149 = vmul.f32 %v1869, %v1964
      %v2150 = vmul.f32 %v1870, %v1969
      %v2151 = vmul.f32 %v1871, %v1974
      %v2152 = vmul.f32 %v1872, %v1979
      %v2153 = vmul.f32 %v1873, %v1984
      %v2154 = vmul.f32 %v1874, %v1989
      %v2155 = vmul.f32 %v1875, %v1994
      %v2156 = vmul.f32 %v1876, %v1999
      %v2157 = vmul.f32 %v1877, %v2004
      %v2158 = vmul.f32 %v1878, %v2009
      %v2159 = vmul.f32 %v1879, %v2014
      %v2160 = vmul.f32 %v1880, %v2019
      %v2161 = vmul.f32 %v1881, %v2024
      %v2162 = vmul.f32 %v1882, %v2029
      %v2163 = vmul.f32 %v1883, %v2034
      %v2164 = vmul.f32 %v1884, %v2039
      %v2165 = vmul.f32 %v1885, %v2044
      %v2166 = vmul.f32 %v1886, %v2049
      %v2167 = vmul.f32 %v1887, %v2054
      %v2168 = vmul.f32 %v1888, %v2059
      %v2169 = vmul.f32 %v1889, %v2064
      %v2170 = vmul.f32 %v1890, %v2069
      %v2171 = vmul.f32 %v1891, %v2074
      %v2172 = vmul.f32 %v1892, %v2079
      %v2173 = vmul.f32 %v1893, %v2084
      %v2174 = vmul.f32 %v1894, %v2089
      %v2175 = vmul.f32 %v1895, %v2094
      %v2176 = vmul.f32 %v1896, %v2099
      %v2177 = vmul.f32 %v1897, %v2104
      %v2178 = vmul.f32 %v1898, %v2109
      %v2179 = vmul.f32 %v1899, %v2114
      %v2180 = vmul.f32 %v1900, %v2119
      %v2181 = vmul.f32 %v1901, %v2124
      %v2182 = vmul.f32 %v1902, %v2129
      %v2183 = vmul.f32 %v1903, %v2134
      %v2184 = vmul.f32 %v1904, %v2139
      %v2185 = vmul.f32 %v1905, %v2144
      %2186 = vst [vmem:[#allocation2] sm:$0xff] 0.0
      %2187 = vst [vmem:[#allocation2 + $0x8] sm:$0xff] 0.0
      %2188 = vst [vmem:[#allocation2 + $0x10] sm:$0xff] 0.0
      %2189 = vst [vmem:[#allocation2 + $0x158] sm:$0xff] 0.0
      %2190 = vst [vmem:[#allocation2 + $0x160] sm:$0xff] 0.0
      %2191 = vst [vmem:[#allocation2 + $0x168] sm:$0xff] 0.0
      %2192 = vst [vmem:[#allocation2 + $0x18] sm:$0xff] %v2146
      %2193 = vst [vmem:[#allocation2 + $0x20] sm:$0xff] %v2147
      %2194 = vst [vmem:[#allocation2 + $0x28] sm:$0xff] %v2148
      %2195 = vst [vmem:[#allocation2 + $0x30] sm:$0xff] %v2149
      %2196 = vst [vmem:[#allocation2 + $0x38] sm:$0xff] %v2150
      %2197 = vst [vmem:[#allocation2 + $0x40] sm:$0xff] %v2151
      %2198 = vst [vmem:[#allocation2 + $0x48] sm:$0xff] %v2152
      %2199 = vst [vmem:[#allocation2 + $0x50] sm:$0xff] %v2153
      %2200 = vst [vmem:[#allocation2 + $0x58] sm:$0xff] %v2154
      %2201 = vst [vmem:[#allocation2 + $0x60] sm:$0xff] %v2155
      %2202 = vst [vmem:[#allocation2 + $0x68] sm:$0xff] %v2156
      %2203 = vst [vmem:[#allocation2 + $0x70] sm:$0xff] %v2157
      %2204 = vst [vmem:[#allocation2 + $0x78] sm:$0xff] %v2158
      %2205 = vst [vmem:[#allocation2 + $0x80] sm:$0xff] %v2159
      %2206 = vst [vmem:[#allocation2 + $0x88] sm:$0xff] %v2160
      %2207 = vst [vmem:[#allocation2 + $0x90] sm:$0xff] %v2161
      %2208 = vst [vmem:[#allocation2 + $0x98] sm:$0xff] %v2162
      %2209 = vst [vmem:[#allocation2 + $0xa0] sm:$0xff] %v2163
      %2210 = vst [vmem:[#allocation2 + $0xa8] sm:$0xff] %v2164
      %2211 = vst [vmem:[#allocation2 + $0xb0] sm:$0xff] %v2165
      %2212 = vst [vmem:[#allocation2 + $0xb8] sm:$0xff] %v2166
      %2213 = vst [vmem:[#allocation2 + $0xc0] sm:$0xff] %v2167
      %2214 = vst [vmem:[#allocation2 + $0xc8] sm:$0xff] %v2168
      %2215 = vst [vmem:[#allocation2 + $0xd0] sm:$0xff] %v2169
      %2216 = vst [vmem:[#allocation2 + $0xd8] sm:$0xff] %v2170
      %2217 = vst [vmem:[#allocation2 + $0xe0] sm:$0xff] %v2171
      %2218 = vst [vmem:[#allocation2 + $0xe8] sm:$0xff] %v2172
      %2219 = vst [vmem:[#allocation2 + $0xf0] sm:$0xff] %v2173
      %2220 = vst [vmem:[#allocation2 + $0xf8] sm:$0xff] %v2174
      %2221 = vst [vmem:[#allocation2 + $0x100] sm:$0xff] %v2175
      %2222 = vst [vmem:[#allocation2 + $0x108] sm:$0xff] %v2176
      %2223 = vst [vmem:[#allocation2 + $0x110] sm:$0xff] %v2177
      %2224 = vst [vmem:[#allocation2 + $0x118] sm:$0xff] %v2178
      %2225 = vst [vmem:[#allocation2 + $0x120] sm:$0xff] %v2179
      %2226 = vst [vmem:[#allocation2 + $0x128] sm:$0xff] %v2180
      %2227 = vst [vmem:[#allocation2 + $0x130] sm:$0xff] %v2181
      %2228 = vst [vmem:[#allocation2 + $0x138] sm:$0xff] %v2182
      %2229 = vst [vmem:[#allocation2 + $0x140] sm:$0xff] %v2183
      %2230 = vst [vmem:[#allocation2 + $0x148] sm:$0xff] %v2184
      %2231 = vst [vmem:[#allocation2 + $0x150] sm:$0xff] %v2185
      %v2232 = vld [vmem:[#allocation2 + $0x17] sm:$0xff]
      %v2233 = vld [vmem:[#allocation2 + $0x1f] sm:$0xff]
      %v2234 = vld [vmem:[#allocation2 + $0x27] sm:$0xff]
      %v2235 = vld [vmem:[#allocation2 + $0x2f] sm:$0xff]
      %v2236 = vld [vmem:[#allocation2 + $0x37] sm:$0xff]
      %v2237 = vld [vmem:[#allocation2 + $0x3f] sm:$0xff]
      %v2238 = vld [vmem:[#allocation2 + $0x47] sm:$0xff]
      %v2239 = vld [vmem:[#allocation2 + $0x4f] sm:$0xff]
      %v2240 = vld [vmem:[#allocation2 + $0x57] sm:$0xff]
      %v2241 = vld [vmem:[#allocation2 + $0x5f] sm:$0xff]
      %v2242 = vld [vmem:[#allocation2 + $0x67] sm:$0xff]
      %v2243 = vld [vmem:[#allocation2 + $0x6f] sm:$0xff]
      %v2244 = vld [vmem:[#allocation2 + $0x77] sm:$0xff]
      %v2245 = vld [vmem:[#allocation2 + $0x7f] sm:$0xff]
      %v2246 = vld [vmem:[#allocation2 + $0x87] sm:$0xff]
      %v2247 = vld [vmem:[#allocation2 + $0x8f] sm:$0xff]
      %v2248 = vld [vmem:[#allocation2 + $0x97] sm:$0xff]
      %v2249 = vld [vmem:[#allocation2 + $0x9f] sm:$0xff]
      %v2250 = vld [vmem:[#allocation2 + $0xa7] sm:$0xff]
      %v2251 = vld [vmem:[#allocation2 + $0xaf] sm:$0xff]
      %v2252 = vld [vmem:[#allocation2 + $0xb7] sm:$0xff]
      %v2253 = vld [vmem:[#allocation2 + $0xbf] sm:$0xff]
      %v2254 = vld [vmem:[#allocation2 + $0xc7] sm:$0xff]
      %v2255 = vld [vmem:[#allocation2 + $0xcf] sm:$0xff]
      %v2256 = vld [vmem:[#allocation2 + $0xd7] sm:$0xff]
      %v2257 = vld [vmem:[#allocation2 + $0xdf] sm:$0xff]
      %v2258 = vld [vmem:[#allocation2 + $0xe7] sm:$0xff]
      %v2259 = vld [vmem:[#allocation2 + $0xef] sm:$0xff]
      %v2260 = vld [vmem:[#allocation2 + $0xf7] sm:$0xff]
      %v2261 = vld [vmem:[#allocation2 + $0xff] sm:$0xff]
      %v2262 = vld [vmem:[#allocation2 + $0x107] sm:$0xff]
      %v2263 = vld [vmem:[#allocation2 + $0x10f] sm:$0xff]
      %v2264 = vld [vmem:[#allocation2 + $0x117] sm:$0xff]
      %v2265 = vld [vmem:[#allocation2 + $0x11f] sm:$0xff]
      %v2266 = vld [vmem:[#allocation2 + $0x127] sm:$0xff]
      %v2267 = vld [vmem:[#allocation2 + $0x12f] sm:$0xff]
      %v2268 = vld [vmem:[#allocation2 + $0x137] sm:$0xff]
      %v2269 = vld [vmem:[#allocation2 + $0x13f] sm:$0xff]
      %v2270 = vld [vmem:[#allocation2 + $0x147] sm:$0xff]
      %v2271 = vld [vmem:[#allocation2 + $0x14f] sm:$0xff]
      %v2272 = vld [vmem:[#allocation2 + $0x18] sm:$0xff]
      %v2273 = vld [vmem:[#allocation2 + $0x20] sm:$0xff]
      %v2274 = vld [vmem:[#allocation2 + $0x28] sm:$0xff]
      %v2275 = vld [vmem:[#allocation2 + $0x30] sm:$0xff]
      %v2276 = vld [vmem:[#allocation2 + $0x38] sm:$0xff]
      %v2277 = vld [vmem:[#allocation2 + $0x40] sm:$0xff]
      %v2278 = vld [vmem:[#allocation2 + $0x48] sm:$0xff]
      %v2279 = vld [vmem:[#allocation2 + $0x50] sm:$0xff]
      %v2280 = vld [vmem:[#allocation2 + $0x58] sm:$0xff]
      %v2281 = vld [vmem:[#allocation2 + $0x60] sm:$0xff]
      %v2282 = vld [vmem:[#allocation2 + $0x68] sm:$0xff]
      %v2283 = vld [vmem:[#allocation2 + $0x70] sm:$0xff]
      %v2284 = vld [vmem:[#allocation2 + $0x78] sm:$0xff]
      %v2285 = vld [vmem:[#allocation2 + $0x80] sm:$0xff]
      %v2286 = vld [vmem:[#allocation2 + $0x88] sm:$0xff]
      %v2287 = vld [vmem:[#allocation2 + $0x90] sm:$0xff]
      %v2288 = vld [vmem:[#allocation2 + $0x98] sm:$0xff]
      %v2289 = vld [vmem:[#allocation2 + $0xa0] sm:$0xff]
      %v2290 = vld [vmem:[#allocation2 + $0xa8] sm:$0xff]
      %v2291 = vld [vmem:[#allocation2 + $0xb0] sm:$0xff]
      %v2292 = vld [vmem:[#allocation2 + $0xb8] sm:$0xff]
      %v2293 = vld [vmem:[#allocation2 + $0xc0] sm:$0xff]
      %v2294 = vld [vmem:[#allocation2 + $0xc8] sm:$0xff]
      %v2295 = vld [vmem:[#allocation2 + $0xd0] sm:$0xff]
      %v2296 = vld [vmem:[#allocation2 + $0xd8] sm:$0xff]
      %v2297 = vld [vmem:[#allocation2 + $0xe0] sm:$0xff]
      %v2298 = vld [vmem:[#allocation2 + $0xe8] sm:$0xff]
      %v2299 = vld [vmem:[#allocation2 + $0xf0] sm:$0xff]
      %v2300 = vld [vmem:[#allocation2 + $0xf8] sm:$0xff]
      %v2301 = vld [vmem:[#allocation2 + $0x100] sm:$0xff]
      %v2302 = vld [vmem:[#allocation2 + $0x108] sm:$0xff]
      %v2303 = vld [vmem:[#allocation2 + $0x110] sm:$0xff]
      %v2304 = vld [vmem:[#allocation2 + $0x118] sm:$0xff]
      %v2305 = vld [vmem:[#allocation2 + $0x120] sm:$0xff]
      %v2306 = vld [vmem:[#allocation2 + $0x128] sm:$0xff]
      %v2307 = vld [vmem:[#allocation2 + $0x130] sm:$0xff]
      %v2308 = vld [vmem:[#allocation2 + $0x138] sm:$0xff]
      %v2309 = vld [vmem:[#allocation2 + $0x140] sm:$0xff]
      %v2310 = vld [vmem:[#allocation2 + $0x148] sm:$0xff]
      %v2311 = vld [vmem:[#allocation2 + $0x150] sm:$0xff]
      %v2312 = vmax.f32 %v2232, %v2272
      %v2313 = vmax.f32 %v2233, %v2273
      %v2314 = vmax.f32 %v2234, %v2274
      %v2315 = vmax.f32 %v2235, %v2275
      %v2316 = vmax.f32 %v2236, %v2276
      %v2317 = vmax.f32 %v2237, %v2277
      %v2318 = vmax.f32 %v2238, %v2278
      %v2319 = vmax.f32 %v2239, %v2279
      %v2320 = vmax.f32 %v2240, %v2280
      %v2321 = vmax.f32 %v2241, %v2281
      %v2322 = vmax.f32 %v2242, %v2282
      %v2323 = vmax.f32 %v2243, %v2283
      %v2324 = vmax.f32 %v2244, %v2284
      %v2325 = vmax.f32 %v2245, %v2285
      %v2326 = vmax.f32 %v2246, %v2286
      %v2327 = vmax.f32 %v2247, %v2287
      %v2328 = vmax.f32 %v2248, %v2288
      %v2329 = vmax.f32 %v2249, %v2289
      %v2330 = vmax.f32 %v2250, %v2290
      %v2331 = vmax.f32 %v2251, %v2291
      %v2332 = vmax.f32 %v2252, %v2292
      %v2333 = vmax.f32 %v2253, %v2293
      %v2334 = vmax.f32 %v2254, %v2294
      %v2335 = vmax.f32 %v2255, %v2295
      %v2336 = vmax.f32 %v2256, %v2296
      %v2337 = vmax.f32 %v2257, %v2297
      %v2338 = vmax.f32 %v2258, %v2298
      %v2339 = vmax.f32 %v2259, %v2299
      %v2340 = vmax.f32 %v2260, %v2300
      %v2341 = vmax.f32 %v2261, %v2301
      %v2342 = vmax.f32 %v2262, %v2302
      %v2343 = vmax.f32 %v2263, %v2303
      %v2344 = vmax.f32 %v2264, %v2304
      %v2345 = vmax.f32 %v2265, %v2305
      %v2346 = vmax.f32 %v2266, %v2306
      %v2347 = vmax.f32 %v2267, %v2307
      %v2348 = vmax.f32 %v2268, %v2308
      %v2349 = vmax.f32 %v2269, %v2309
      %v2350 = vmax.f32 %v2270, %v2310
      %v2351 = vmax.f32 %v2271, %v2311
      %v2352 = vld [vmem:[#allocation2 + $0x19] sm:$0xff]
      %v2353 = vld [vmem:[#allocation2 + $0x21] sm:$0xff]
      %v2354 = vld [vmem:[#allocation2 + $0x29] sm:$0xff]
      %v2355 = vld [vmem:[#allocation2 + $0x31] sm:$0xff]
      %v2356 = vld [vmem:[#allocation2 + $0x39] sm:$0xff]
      %v2357 = vld [vmem:[#allocation2 + $0x41] sm:$0xff]
      %v2358 = vld [vmem:[#allocation2 + $0x49] sm:$0xff]
      %v2359 = vld [vmem:[#allocation2 + $0x51] sm:$0xff]
      %v2360 = vld [vmem:[#allocation2 + $0x59] sm:$0xff]
      %v2361 = vld [vmem:[#allocation2 + $0x61] sm:$0xff]
      %v2362 = vld [vmem:[#allocation2 + $0x69] sm:$0xff]
      %v2363 = vld [vmem:[#allocation2 + $0x71] sm:$0xff]
      %v2364 = vld [vmem:[#allocation2 + $0x79] sm:$0xff]
      %v2365 = vld [vmem:[#allocation2 + $0x81] sm:$0xff]
      %v2366 = vld [vmem:[#allocation2 + $0x89] sm:$0xff]
      %v2367 = vld [vmem:[#allocation2 + $0x91] sm:$0xff]
      %v2368 = vld [vmem:[#allocation2 + $0x99] sm:$0xff]
      %v2369 = vld [vmem:[#allocation2 + $0xa1] sm:$0xff]
      %v2370 = vld [vmem:[#allocation2 + $0xa9] sm:$0xff]
      %v2371 = vld [vmem:[#allocation2 + $0xb1] sm:$0xff]
      %v2372 = vld [vmem:[#allocation2 + $0xb9] sm:$0xff]
      %v2373 = vld [vmem:[#allocation2 + $0xc1] sm:$0xff]
      %v2374 = vld [vmem:[#allocation2 + $0xc9] sm:$0xff]
      %v2375 = vld [vmem:[#allocation2 + $0xd1] sm:$0xff]
      %v2376 = vld [vmem:[#allocation2 + $0xd9] sm:$0xff]
      %v2377 = vld [vmem:[#allocation2 + $0xe1] sm:$0xff]
      %v2378 = vld [vmem:[#allocation2 + $0xe9] sm:$0xff]
      %v2379 = vld [vmem:[#allocation2 + $0xf1] sm:$0xff]
      %v2380 = vld [vmem:[#allocation2 + $0xf9] sm:$0xff]
      %v2381 = vld [vmem:[#allocation2 + $0x101] sm:$0xff]
      %v2382 = vld [vmem:[#allocation2 + $0x109] sm:$0xff]
      %v2383 = vld [vmem:[#allocation2 + $0x111] sm:$0xff]
      %v2384 = vld [vmem:[#allocation2 + $0x119] sm:$0xff]
      %v2385 = vld [vmem:[#allocation2 + $0x121] sm:$0xff]
      %v2386 = vld [vmem:[#allocation2 + $0x129] sm:$0xff]
      %v2387 = vld [vmem:[#allocation2 + $0x131] sm:$0xff]
      %v2388 = vld [vmem:[#allocation2 + $0x139] sm:$0xff]
      %v2389 = vld [vmem:[#allocation2 + $0x141] sm:$0xff]
      %v2390 = vld [vmem:[#allocation2 + $0x149] sm:$0xff]
      %v2391 = vld [vmem:[#allocation2 + $0x151] sm:$0xff]
      %v2392 = vmax.f32 %v2312, %v2352
      %v2393 = vmax.f32 %v2313, %v2353
      %v2394 = vmax.f32 %v2314, %v2354
      %v2395 = vmax.f32 %v2315, %v2355
      %v2396 = vmax.f32 %v2316, %v2356
      %v2397 = vmax.f32 %v2317, %v2357
      %v2398 = vmax.f32 %v2318, %v2358
      %v2399 = vmax.f32 %v2319, %v2359
      %v2400 = vmax.f32 %v2320, %v2360
      %v2401 = vmax.f32 %v2321, %v2361
      %v2402 = vmax.f32 %v2322, %v2362
      %v2403 = vmax.f32 %v2323, %v2363
      %v2404 = vmax.f32 %v2324, %v2364
      %v2405 = vmax.f32 %v2325, %v2365
      %v2406 = vmax.f32 %v2326, %v2366
      %v2407 = vmax.f32 %v2327, %v2367
      %v2408 = vmax.f32 %v2328, %v2368
      %v2409 = vmax.f32 %v2329, %v2369
      %v2410 = vmax.f32 %v2330, %v2370
      %v2411 = vmax.f32 %v2331, %v2371
      %v2412 = vmax.f32 %v2332, %v2372
      %v2413 = vmax.f32 %v2333, %v2373
      %v2414 = vmax.f32 %v2334, %v2374
      %v2415 = vmax.f32 %v2335, %v2375
      %v2416 = vmax.f32 %v2336, %v2376
      %v2417 = vmax.f32 %v2337, %v2377
      %v2418 = vmax.f32 %v2338, %v2378
      %v2419 = vmax.f32 %v2339, %v2379
      %v2420 = vmax.f32 %v2340, %v2380
      %v2421 = vmax.f32 %v2341, %v2381
      %v2422 = vmax.f32 %v2342, %v2382
      %v2423 = vmax.f32 %v2343, %v2383
      %v2424 = vmax.f32 %v2344, %v2384
      %v2425 = vmax.f32 %v2345, %v2385
      %v2426 = vmax.f32 %v2346, %v2386
      %v2427 = vmax.f32 %v2347, %v2387
      %v2428 = vmax.f32 %v2348, %v2388
      %v2429 = vmax.f32 %v2349, %v2389
      %v2430 = vmax.f32 %v2350, %v2390
      %v2431 = vmax.f32 %v2351, %v2391
      %2432 = vst [vmem:[#allocation2 + $0x18] sm:$0xff] %v2392
      %2433 = vst [vmem:[#allocation2 + $0x20] sm:$0xff] %v2393
      %2434 = vst [vmem:[#allocation2 + $0x28] sm:$0xff] %v2394
      %2435 = vst [vmem:[#allocation2 + $0x30] sm:$0xff] %v2395
      %2436 = vst [vmem:[#allocation2 + $0x38] sm:$0xff] %v2396
      %2437 = vst [vmem:[#allocation2 + $0x40] sm:$0xff] %v2397
      %2438 = vst [vmem:[#allocation2 + $0x48] sm:$0xff] %v2398
      %2439 = vst [vmem:[#allocation2 + $0x50] sm:$0xff] %v2399
      %2440 = vst [vmem:[#allocation2 + $0x58] sm:$0xff] %v2400
      %2441 = vst [vmem:[#allocation2 + $0x60] sm:$0xff] %v2401
      %2442 = vst [vmem:[#allocation2 + $0x68] sm:$0xff] %v2402
      %2443 = vst [vmem:[#allocation2 + $0x70] sm:$0xff] %v2403
      %2444 = vst [vmem:[#allocation2 + $0x78] sm:$0xff] %v2404
      %2445 = vst [vmem:[#allocation2 + $0x80] sm:$0xff] %v2405
      %2446 = vst [vmem:[#allocation2 + $0x88] sm:$0xff] %v2406
      %2447 = vst [vmem:[#allocation2 + $0x90] sm:$0xff] %v2407
      %2448 = vst [vmem:[#allocation2 + $0x98] sm:$0xff] %v2408
      %2449 = vst [vmem:[#allocation2 + $0xa0] sm:$0xff] %v2409
      %2450 = vst [vmem:[#allocation2 + $0xa8] sm:$0xff] %v2410
      %2451 = vst [vmem:[#allocation2 + $0xb0] sm:$0xff] %v2411
      %2452 = vst [vmem:[#allocation2 + $0xb8] sm:$0xff] %v2412
      %2453 = vst [vmem:[#allocation2 + $0xc0] sm:$0xff] %v2413
      %2454 = vst [vmem:[#allocation2 + $0xc8] sm:$0xff] %v2414
      %2455 = vst [vmem:[#allocation2 + $0xd0] sm:$0xff] %v2415
      %2456 = vst [vmem:[#allocation2 + $0xd8] sm:$0xff] %v2416
      %2457 = vst [vmem:[#allocation2 + $0xe0] sm:$0xff] %v2417
      %2458 = vst [vmem:[#allocation2 + $0xe8] sm:$0xff] %v2418
      %2459 = vst [vmem:[#allocation2 + $0xf0] sm:$0xff] %v2419
      %2460 = vst [vmem:[#allocation2 + $0xf8] sm:$0xff] %v2420
      %2461 = vst [vmem:[#allocation2 + $0x100] sm:$0xff] %v2421
      %2462 = vst [vmem:[#allocation2 + $0x108] sm:$0xff] %v2422
      %2463 = vst [vmem:[#allocation2 + $0x110] sm:$0xff] %v2423
      %2464 = vst [vmem:[#allocation2 + $0x118] sm:$0xff] %v2424
      %2465 = vst [vmem:[#allocation2 + $0x120] sm:$0xff] %v2425
      %2466 = vst [vmem:[#allocation2 + $0x128] sm:$0xff] %v2426
      %2467 = vst [vmem:[#allocation2 + $0x130] sm:$0xff] %v2427
      %2468 = vst [vmem:[#allocation2 + $0x138] sm:$0xff] %v2428
      %2469 = vst [vmem:[#allocation2 + $0x140] sm:$0xff] %v2429
      %2470 = vst [vmem:[#allocation2 + $0x148] sm:$0xff] %v2430
      %2471 = vst [vmem:[#allocation2 + $0x150] sm:$0xff] %v2431
      %v2472 = vld [vmem:[#allocation2 + $0x4] sm:$0xff]
      %v2473 = vld [vmem:[#allocation2 + $0xc] sm:$0xff]
      %v2474 = vld [vmem:[#allocation2 + $0x14] sm:$0xff]
      %v2475 = vld [vmem:[#allocation2 + $0x1c] sm:$0xff]
      %v2476 = vld [vmem:[#allocation2 + $0x24] sm:$0xff]
      %v2477 = vld [vmem:[#allocation2 + $0x2c] sm:$0xff]
      %v2478 = vld [vmem:[#allocation2 + $0x34] sm:$0xff]
      %v2479 = vld [vmem:[#allocation2 + $0x3c] sm:$0xff]
      %v2480 = vld [vmem:[#allocation2 + $0x44] sm:$0xff]
      %v2481 = vld [vmem:[#allocation2 + $0x4c] sm:$0xff]
      %v2482 = vld [vmem:[#allocation2 + $0x54] sm:$0xff]
      %v2483 = vld [vmem:[#allocation2 + $0x5c] sm:$0xff]
      %v2484 = vld [vmem:[#allocation2 + $0x64] sm:$0xff]
      %v2485 = vld [vmem:[#allocation2 + $0x6c] sm:$0xff]
      %v2486 = vld [vmem:[#allocation2 + $0x74] sm:$0xff]
      %v2487 = vld [vmem:[#allocation2 + $0x7c] sm:$0xff]
      %v2488 = vld [vmem:[#allocation2 + $0x84] sm:$0xff]
      %v2489 = vld [vmem:[#allocation2 + $0x8c] sm:$0xff]
      %v2490 = vld [vmem:[#allocation2 + $0x94] sm:$0xff]
      %v2491 = vld [vmem:[#allocation2 + $0x9c] sm:$0xff]
      %v2492 = vld [vmem:[#allocation2 + $0xa4] sm:$0xff]
      %v2493 = vld [vmem:[#allocation2 + $0xac] sm:$0xff]
      %v2494 = vld [vmem:[#allocation2 + $0xb4] sm:$0xff]
      %v2495 = vld [vmem:[#allocation2 + $0xbc] sm:$0xff]
      %v2496 = vld [vmem:[#allocation2 + $0xc4] sm:$0xff]
      %v2497 = vld [vmem:[#allocation2 + $0xcc] sm:$0xff]
      %v2498 = vld [vmem:[#allocation2 + $0xd4] sm:$0xff]
      %v2499 = vld [vmem:[#allocation2 + $0xdc] sm:$0xff]
      %v2500 = vld [vmem:[#allocation2 + $0xe4] sm:$0xff]
      %v2501 = vld [vmem:[#allocation2 + $0xec] sm:$0xff]
      %v2502 = vld [vmem:[#allocation2 + $0xf4] sm:$0xff]
      %v2503 = vld [vmem:[#allocation2 + $0xfc] sm:$0xff]
      %v2504 = vld [vmem:[#allocation2 + $0x104] sm:$0xff]
      %v2505 = vld [vmem:[#allocation2 + $0x10c] sm:$0xff]
      %v2506 = vld [vmem:[#allocation2 + $0x114] sm:$0xff]
      %v2507 = vld [vmem:[#allocation2 + $0x11c] sm:$0xff]
      %v2508 = vld [vmem:[#allocation2 + $0x124] sm:$0xff]
      %v2509 = vld [vmem:[#allocation2 + $0x12c] sm:$0xff]
      %v2510 = vld [vmem:[#allocation2 + $0x134] sm:$0xff]
      %v2511 = vld [vmem:[#allocation2 + $0x13c] sm:$0xff]
      %v2512 = vld [vmem:[#allocation2 + $0x18] sm:$0xff]
      %v2513 = vld [vmem:[#allocation2 + $0x20] sm:$0xff]
      %v2514 = vld [vmem:[#allocation2 + $0x28] sm:$0xff]
      %v2515 = vld [vmem:[#allocation2 + $0x30] sm:$0xff]
      %v2516 = vld [vmem:[#allocation2 + $0x38] sm:$0xff]
      %v2517 = vld [vmem:[#allocation2 + $0x40] sm:$0xff]
      %v2518 = vld [vmem:[#allocation2 + $0x48] sm:$0xff]
      %v2519 = vld [vmem:[#allocation2 + $0x50] sm:$0xff]
      %v2520 = vld [vmem:[#allocation2 + $0x58] sm:$0xff]
      %v2521 = vld [vmem:[#allocation2 + $0x60] sm:$0xff]
      %v2522 = vld [vmem:[#allocation2 + $0x68] sm:$0xff]
      %v2523 = vld [vmem:[#allocation2 + $0x70] sm:$0xff]
      %v2524 = vld [vmem:[#allocation2 + $0x78] sm:$0xff]
      %v2525 = vld [vmem:[#allocation2 + $0x80] sm:$0xff]
      %v2526 = vld [vmem:[#allocation2 + $0x88] sm:$0xff]
      %v2527 = vld [vmem:[#allocation2 + $0x90] sm:$0xff]
      %v2528 = vld [vmem:[#allocation2 + $0x98] sm:$0xff]
      %v2529 = vld [vmem:[#allocation2 + $0xa0] sm:$0xff]
      %v2530 = vld [vmem:[#allocation2 + $0xa8] sm:$0xff]
      %v2531 = vld [vmem:[#allocation2 + $0xb0] sm:$0xff]
      %v2532 = vld [vmem:[#allocation2 + $0xb8] sm:$0xff]
      %v2533 = vld [vmem:[#allocation2 + $0xc0] sm:$0xff]
      %v2534 = vld [vmem:[#allocation2 + $0xc8] sm:$0xff]
      %v2535 = vld [vmem:[#allocation2 + $0xd0] sm:$0xff]
      %v2536 = vld [vmem:[#allocation2 + $0xd8] sm:$0xff]
      %v2537 = vld [vmem:[#allocation2 + $0xe0] sm:$0xff]
      %v2538 = vld [vmem:[#allocation2 + $0xe8] sm:$0xff]
      %v2539 = vld [vmem:[#allocation2 + $0xf0] sm:$0xff]
      %v2540 = vld [vmem:[#allocation2 + $0xf8] sm:$0xff]
      %v2541 = vld [vmem:[#allocation2 + $0x100] sm:$0xff]
      %v2542 = vld [vmem:[#allocation2 + $0x108] sm:$0xff]
      %v2543 = vld [vmem:[#allocation2 + $0x110] sm:$0xff]
      %v2544 = vld [vmem:[#allocation2 + $0x118] sm:$0xff]
      %v2545 = vld [vmem:[#allocation2 + $0x120] sm:$0xff]
      %v2546 = vld [vmem:[#allocation2 + $0x128] sm:$0xff]
      %v2547 = vld [vmem:[#allocation2 + $0x130] sm:$0xff]
      %v2548 = vld [vmem:[#allocation2 + $0x138] sm:$0xff]
      %v2549 = vld [vmem:[#allocation2 + $0x140] sm:$0xff]
      %v2550 = vld [vmem:[#allocation2 + $0x148] sm:$0xff]
      %v2551 = vld [vmem:[#allocation2 + $0x150] sm:$0xff]
      %v2552 = vmax.f32 %v2472, %v2512
      %v2553 = vmax.f32 %v2473, %v2513
      %v2554 = vmax.f32 %v2474, %v2514
      %v2555 = vmax.f32 %v2475, %v2515
      %v2556 = vmax.f32 %v2476, %v2516
      %v2557 = vmax.f32 %v2477, %v2517
      %v2558 = vmax.f32 %v2478, %v2518
      %v2559 = vmax.f32 %v2479, %v2519
      %v2560 = vmax.f32 %v2480, %v2520
      %v2561 = vmax.f32 %v2481, %v2521
      %v2562 = vmax.f32 %v2482, %v2522
      %v2563 = vmax.f32 %v2483, %v2523
      %v2564 = vmax.f32 %v2484, %v2524
      %v2565 = vmax.f32 %v2485, %v2525
      %v2566 = vmax.f32 %v2486, %v2526
      %v2567 = vmax.f32 %v2487, %v2527
      %v2568 = vmax.f32 %v2488, %v2528
      %v2569 = vmax.f32 %v2489, %v2529
      %v2570 = vmax.f32 %v2490, %v2530
      %v2571 = vmax.f32 %v2491, %v2531
      %v2572 = vmax.f32 %v2492, %v2532
      %v2573 = vmax.f32 %v2493, %v2533
      %v2574 = vmax.f32 %v2494, %v2534
      %v2575 = vmax.f32 %v2495, %v2535
      %v2576 = vmax.f32 %v2496, %v2536
      %v2577 = vmax.f32 %v2497, %v2537
      %v2578 = vmax.f32 %v2498, %v2538
      %v2579 = vmax.f32 %v2499, %v2539
      %v2580 = vmax.f32 %v2500, %v2540
      %v2581 = vmax.f32 %v2501, %v2541
      %v2582 = vmax.f32 %v2502, %v2542
      %v2583 = vmax.f32 %v2503, %v2543
      %v2584 = vmax.f32 %v2504, %v2544
      %v2585 = vmax.f32 %v2505, %v2545
      %v2586 = vmax.f32 %v2506, %v2546
      %v2587 = vmax.f32 %v2507, %v2547
      %v2588 = vmax.f32 %v2508, %v2548
      %v2589 = vmax.f32 %v2509, %v2549
      %v2590 = vmax.f32 %v2510, %v2550
      %v2591 = vmax.f32 %v2511, %v2551
      %v2592 = vld [vmem:[#allocation2 + $0x144] sm:$0xff]
      %v2593 = vld [vmem:[#allocation2 + $0x14c] sm:$0xff]
      %v2594 = vld [vmem:[#allocation2 + $0x154] sm:$0xff]
      %v2595 = vld [vmem:[#allocation2 + $0x15c] sm:$0xff]
      %v2596 = vld [vmem:[#allocation2 + $0x164] sm:$0xff]
      %v2597 = vmax.f32 %v2552, %v2477
      %v2598 = vmax.f32 %v2553, %v2478
      %v2599 = vmax.f32 %v2554, %v2479
      %v2600 = vmax.f32 %v2555, %v2480
      %v2601 = vmax.f32 %v2556, %v2481
      %v2602 = vmax.f32 %v2557, %v2482
      %v2603 = vmax.f32 %v2558, %v2483
      %v2604 = vmax.f32 %v2559, %v2484
      %v2605 = vmax.f32 %v2560, %v2485
      %v2606 = vmax.f32 %v2561, %v2486
      %v2607 = vmax.f32 %v2562, %v2487
      %v2608 = vmax.f32 %v2563, %v2488
      %v2609 = vmax.f32 %v2564, %v2489
      %v2610 = vmax.f32 %v2565, %v2490
      %v2611 = vmax.f32 %v2566, %v2491
      %v2612 = vmax.f32 %v2567, %v2492
      %v2613 = vmax.f32 %v2568, %v2493
      %v2614 = vmax.f32 %v2569, %v2494
      %v2615 = vmax.f32 %v2570, %v2495
      %v2616 = vmax.f32 %v2571, %v2496
      %v2617 = vmax.f32 %v2572, %v2497
      %v2618 = vmax.f32 %v2573, %v2498
      %v2619 = vmax.f32 %v2574, %v2499
      %v2620 = vmax.f32 %v2575, %v2500
      %v2621 = vmax.f32 %v2576, %v2501
      %v2622 = vmax.f32 %v2577, %v2502
      %v2623 = vmax.f32 %v2578, %v2503
      %v2624 = vmax.f32 %v2579, %v2504
      %v2625 = vmax.f32 %v2580, %v2505
      %v2626 = vmax.f32 %v2581, %v2506
      %v2627 = vmax.f32 %v2582, %v2507
      %v2628 = vmax.f32 %v2583, %v2508
      %v2629 = vmax.f32 %v2584, %v2509
      %v2630 = vmax.f32 %v2585, %v2510
      %v2631 = vmax.f32 %v2586, %v2511
      %v2632 = vmax.f32 %v2587, %v2592
      %v2633 = vmax.f32 %v2588, %v2593
      %v2634 = vmax.f32 %v2589, %v2594
      %v2635 = vmax.f32 %v2590, %v2595
      %v2636 = vmax.f32 %v2591, %v2596
      %v2637 = vld [vmem:[%s8] sm:$0xff]
      %v2638 = vld [vmem:[%s8 + $0x8] sm:$0xf]
      %v2639 = vld [vmem:[%s8 + $0xc] sm:$0xff]
      %v2640 = vld [vmem:[%s8 + $0x14] sm:$0xf]
      %v2641 = vld [vmem:[%s8 + $0x18] sm:$0xff]
      %v2642 = vld [vmem:[%s8 + $0x20] sm:$0xf]
      %v2643 = vld [vmem:[%s8 + $0x24] sm:$0xff]
      %v2644 = vld [vmem:[%s8 + $0x2c] sm:$0xf]
      %v2645 = vld [vmem:[%s8 + $0x30] sm:$0xff]
      %v2646 = vld [vmem:[%s8 + $0x38] sm:$0xf]
      %v2647 = vld [vmem:[%s8 + $0x3c] sm:$0xff]
      %v2648 = vld [vmem:[%s8 + $0x44] sm:$0xf]
      %v2649 = vld [vmem:[%s8 + $0x48] sm:$0xff]
      %v2650 = vld [vmem:[%s8 + $0x50] sm:$0xf]
      %v2651 = vld [vmem:[%s8 + $0x54] sm:$0xff]
      %v2652 = vld [vmem:[%s8 + $0x5c] sm:$0xf]
      %v2653 = vld [vmem:[%s8 + $0x60] sm:$0xff]
      %v2654 = vld [vmem:[%s8 + $0x68] sm:$0xf]
      %v2655 = vld [vmem:[%s8 + $0x6c] sm:$0xff]
      %v2656 = vld [vmem:[%s8 + $0x74] sm:$0xf]
      %v2657 = vld [vmem:[%s8 + $0x78] sm:$0xff]
      %v2658 = vld [vmem:[%s8 + $0x80] sm:$0xf]
      %v2659 = vld [vmem:[%s8 + $0x84] sm:$0xff]
      %v2660 = vld [vmem:[%s8 + $0x8c] sm:$0xf]
      %v2661 = vld [vmem:[%s8 + $0x90] sm:$0xff]
      %v2662 = vld [vmem:[%s8 + $0x98] sm:$0xf]
      %v2663 = vld [vmem:[%s8 + $0x9c] sm:$0xff]
      %v2664 = vld [vmem:[%s8 + $0xa4] sm:$0xf]
      %v2665 = vld [vmem:[%s8 + $0xa8] sm:$0xff]
      %v2666 = vld [vmem:[%s8 + $0xb0] sm:$0xf]
      %v2667 = vld [vmem:[%s8 + $0xb4] sm:$0xff]
      %v2668 = vld [vmem:[%s8 + $0xbc] sm:$0xf]
      %v2669 = vld [vmem:[%s8 + $0xc0] sm:$0xff]
      %v2670 = vld [vmem:[%s8 + $0xc8] sm:$0xf]
      %v2671 = vld [vmem:[%s8 + $0xcc] sm:$0xff]
      %v2672 = vld [vmem:[%s8 + $0xd4] sm:$0xf]
      %v2673 = vld [vmem:[%s8 + $0xd8] sm:$0xff]
      %v2674 = vld [vmem:[%s8 + $0xe0] sm:$0xf]
      %v2675 = vld [vmem:[%s8 + $0xe4] sm:$0xff]
      %v2676 = vld [vmem:[%s8 + $0xec] sm:$0xf]
      %v2677 = vpack.c.bf16 %v2598, %v2597
      %v2678 = vpack.c.bf16 %v2600, %v2599
      %v2679 = vpack.c.bf16 %v2602, %v2601
      %v2680 = vpack.c.bf16 %v2604, %v2603
      %v2681 = vpack.c.bf16 %v2606, %v2605
      %v2682 = vpack.c.bf16 %v2608, %v2607
      %v2683 = vpack.c.bf16 %v2610, %v2609
      %v2684 = vpack.c.bf16 %v2612, %v2611
      %v2685 = vpack.c.bf16 %v2614, %v2613
      %v2686 = vpack.c.bf16 %v2616, %v2615
      %v2687 = vpack.c.bf16 %v2618, %v2617
      %v2688 = vpack.c.bf16 %v2620, %v2619
      %v2689 = vpack.c.bf16 %v2622, %v2621
      %v2690 = vpack.c.bf16 %v2624, %v2623
      %v2691 = vpack.c.bf16 %v2626, %v2625
      %v2692 = vpack.c.bf16 %v2628, %v2627
      %v2693 = vpack.c.bf16 %v2630, %v2629
      %v2694 = vpack.c.bf16 %v2632, %v2631
      %v2695 = vpack.c.bf16 %v2634, %v2633
      %v2696 = vpack.c.bf16 %v2636, %v2635
      %v2737 = vunpack.c.l.b16 %v2637
      %v2738 = vunpack.c.h.b16 %v2637
      %v2739 = vunpack.c.l.b16 %v2638
      %v2740 = vunpack.c.l.b16 %v2639
      %v2741 = vunpack.c.h.b16 %v2639
      %v2742 = vunpack.c.l.b16 %v2640
      %v2743 = vunpack.c.l.b16 %v2641
      %v2744 = vunpack.c.h.b16 %v2641
      %v2745 = vunpack.c.l.b16 %v2642
      %v2746 = vunpack.c.l.b16 %v2643
      %v2747 = vunpack.c.h.b16 %v2643
      %v2748 = vunpack.c.l.b16 %v2644
      %v2749 = vunpack.c.l.b16 %v2645
      %v2750 = vunpack.c.h.b16 %v2645
      %v2751 = vunpack.c.l.b16 %v2646
      %v2752 = vunpack.c.l.b16 %v2647
      %v2753 = vunpack.c.h.b16 %v2647
      %v2754 = vunpack.c.l.b16 %v2648
      %v2755 = vunpack.c.l.b16 %v2649
      %v2756 = vunpack.c.h.b16 %v2649
      %v2757 = vunpack.c.l.b16 %v2650
      %v2758 = vunpack.c.l.b16 %v2651
      %v2759 = vunpack.c.h.b16 %v2651
      %v2760 = vunpack.c.l.b16 %v2652
      %v2761 = vunpack.c.l.b16 %v2653
      %v2762 = vunpack.c.h.b16 %v2653
      %v2763 = vunpack.c.l.b16 %v2654
      %v2764 = vunpack.c.l.b16 %v2655
      %v2765 = vunpack.c.h.b16 %v2655
      %v2766 = vunpack.c.l.b16 %v2656
      %v2767 = vunpack.c.l.b16 %v2657
      %v2768 = vunpack.c.h.b16 %v2657
      %v2769 = vunpack.c.l.b16 %v2658
      %v2770 = vunpack.c.l.b16 %v2659
      %v2771 = vunpack.c.h.b16 %v2659
      %v2772 = vunpack.c.l.b16 %v2660
      %v2773 = vunpack.c.l.b16 %v2661
      %v2774 = vunpack.c.h.b16 %v2661
      %v2775 = vunpack.c.l.b16 %v2662
      %v2776 = vunpack.c.l.b16 %v2663
      %v2777 = vunpack.c.h.b16 %v2663
      %v2778 = vunpack.c.l.b16 %v2664
      %v2779 = vunpack.c.l.b16 %v2665
      %v2780 = vunpack.c.h.b16 %v2665
      %v2781 = vunpack.c.l.b16 %v2666
      %v2782 = vunpack.c.l.b16 %v2667
      %v2783 = vunpack.c.h.b16 %v2667
      %v2784 = vunpack.c.l.b16 %v2668
      %v2785 = vunpack.c.l.b16 %v2669
      %v2786 = vunpack.c.h.b16 %v2669
      %v2787 = vunpack.c.l.b16 %v2670
      %v2788 = vunpack.c.l.b16 %v2671
      %v2789 = vunpack.c.h.b16 %v2671
      %v2790 = vunpack.c.l.b16 %v2672
      %v2791 = vunpack.c.l.b16 %v2673
      %v2792 = vunpack.c.h.b16 %v2673
      %v2793 = vunpack.c.l.b16 %v2674
      %v2794 = vunpack.c.l.b16 %v2675
      %v2795 = vunpack.c.h.b16 %v2675
      %v2796 = vunpack.c.l.b16 %v2676
      %v2797 = vpack.c.b16 %v2740, %v2737
      %v2798 = vpack.c.b16 %v2741, %v2738
      %v2799 = vpack.c.b16 %v2742, %v2739
      %v2800 = vpack.c.b16 %v2746, %v2743
      %v2801 = vpack.c.b16 %v2747, %v2744
      %v2802 = vpack.c.b16 %v2748, %v2745
      %v2803 = vpack.c.b16 %v2752, %v2749
      %v2804 = vpack.c.b16 %v2753, %v2750
      %v2805 = vpack.c.b16 %v2754, %v2751
      %v2806 = vpack.c.b16 %v2758, %v2755
      %v2807 = vpack.c.b16 %v2759, %v2756
      %v2808 = vpack.c.b16 %v2760, %v2757
      %v2809 = vpack.c.b16 %v2764, %v2761
      %v2810 = vpack.c.b16 %v2765, %v2762
      %v2811 = vpack.c.b16 %v2766, %v2763
      %v2812 = vpack.c.b16 %v2770, %v2767
      %v2813 = vpack.c.b16 %v2771, %v2768
      %v2814 = vpack.c.b16 %v2772, %v2769
      %v2815 = vpack.c.b16 %v2776, %v2773
      %v2816 = vpack.c.b16 %v2777, %v2774
      %v2817 = vpack.c.b16 %v2778, %v2775
      %v2818 = vpack.c.b16 %v2782, %v2779
      %v2819 = vpack.c.b16 %v2783, %v2780
      %v2820 = vpack.c.b16 %v2784, %v2781
      %v2821 = vpack.c.b16 %v2788, %v2785
      %v2822 = vpack.c.b16 %v2789, %v2786
      %v2823 = vpack.c.b16 %v2790, %v2787
      %v2824 = vpack.c.b16 %v2794, %v2791
      %v2825 = vpack.c.b16 %v2795, %v2792
      %v2826 = vpack.c.b16 %v2796, %v2793
      %v2848 = vsel %vm1111, %v2799, 0
      %v2851 = vsel %vm1111, %v2802, 0
      %v2854 = vsel %vm1111, %v2805, 0
      %v2857 = vsel %vm1111, %v2808, 0
      %v2860 = vsel %vm1111, %v2811, 0
      %v2863 = vsel %vm1111, %v2814, 0
      %v2866 = vsel %vm1111, %v2817, 0
      %v2869 = vsel %vm1111, %v2820, 0
      %v2872 = vsel %vm1111, %v2823, 0
      %v2875 = vsel %vm1111, %v2826, 0
      %2877 = vmatprep.subr.bf16.mxu0 0
      %2878 = vmatpush1.bf16.msra.mxu0 %v2677
      %2879 = vmatprep.subr.bf16.mxu0 0
      %2880 = vmatpush1.bf16.msra.mxu0 %v2678
      %2881 = vmatprep.subr.bf16.mxu0 0
      %2882 = vmatpush1.bf16.msra.mxu0 %v2679
      %2883 = vmatprep.subr.bf16.mxu0 0
      %2884 = vmatpush1.bf16.msra.mxu0 %v2680
      %2885 = vmatprep.subr.bf16.mxu0 0
      %2886 = vmatpush1.bf16.msra.mxu0 %v2681
      %2887 = vmatprep.subr.bf16.mxu0 0
      %2888 = vmatpush1.bf16.msra.mxu0 %v2682
      %2889 = vmatprep.subr.bf16.mxu0 0
      %2890 = vmatpush1.bf16.msra.mxu0 %v2683
      %2891 = vmatprep.subr.bf16.mxu0 0
      %2892 = vmatpush1.bf16.msra.mxu0 %v2684
      %2893 = vmatprep.subr.bf16.mxu0 0
      %2894 = vmatpush1.bf16.msra.mxu0 %v2685
      %2895 = vmatprep.subr.bf16.mxu0 0
      %2896 = vmatpush1.bf16.msra.mxu0 %v2686
      %2897 = vmatprep.subr.bf16.mxu0 0
      %2898 = vmatpush1.bf16.msra.mxu0 %v2687
      %2899 = vmatprep.subr.bf16.mxu0 0
      %2900 = vmatpush1.bf16.msra.mxu0 %v2688
      %2901 = vmatprep.subr.bf16.mxu0 0
      %2902 = vmatpush1.bf16.msra.mxu0 %v2689
      %2903 = vmatprep.subr.bf16.mxu0 0
      %2904 = vmatpush1.bf16.msra.mxu0 %v2690
      %2905 = vmatprep.subr.bf16.mxu0 0
      %2906 = vmatpush1.bf16.msra.mxu0 %v2691
      %2907 = vmatprep.subr.bf16.mxu0 0
      %2908 = vmatpush1.bf16.msra.mxu0 %v2692
      %2909 = vmatprep.mubr.bf16.mxu0 %v2798
      %2910 = vmatmul.mubr.bf16.gmra.mrb[0].mxu0 %v2797
      %v2911 = vpop.f32.mrb[0].mxu0
      %v2912 = vadd.f32 0.0, %v2911
      %v2913 = vpop.f32.mrb[0].mxu0
      %v2914 = vpop.f32.mrb[0].mxu0
      %v2915 = vadd.f32 0.0, %v2914
      %v2916 = vpop.f32.mrb[0].mxu0
      %2917 = vmatprep.mubr.bf16.mxu0 %v2801
      %2918 = vmatmul.mubr.bf16.gmra.mrb[0].mxu0 %v2800
      %v2919 = vpop.f32.mrb[0].mxu0
      %v2920 = vadd.f32 0.0, %v2919
      %v2921 = vpop.f32.mrb[0].mxu0
      %v2922 = vpop.f32.mrb[0].mxu0
      %v2923 = vadd.f32 0.0, %v2922
      %v2924 = vpop.f32.mrb[0].mxu0
      %2925 = vmatprep.mubr.bf16.mxu0 %v2804
      %2926 = vmatmul.mubr.bf16.gmra.mrb[0].mxu0 %v2803
      %v2927 = vpop.f32.mrb[0].mxu0
      %v2928 = vadd.f32 0.0, %v2927
      %v2929 = vpop.f32.mrb[0].mxu0
      %v2930 = vpop.f32.mrb[0].mxu0
      %v2931 = vadd.f32 0.0, %v2930
      %v2932 = vpop.f32.mrb[0].mxu0
      %2933 = vmatprep.mubr.bf16.mxu0 %v2807
      %2934 = vmatmul.mubr.bf16.gmra.mrb[0].mxu0 %v2806
      %v2935 = vpop.f32.mrb[0].mxu0
      %v2936 = vadd.f32 0.0, %v2935
      %v2937 = vpop.f32.mrb[0].mxu0
      %v2938 = vpop.f32.mrb[0].mxu0
      %v2939 = vadd.f32 0.0, %v2938
      %v2940 = vpop.f32.mrb[0].mxu0
      %2941 = vmatprep.mubr.bf16.mxu0 %v2810
      %2942 = vmatmul.mubr.bf16.gmra.mrb[0].mxu0 %v2809
      %v2943 = vpop.f32.mrb[0].mxu0
      %v2944 = vadd.f32 0.0, %v2943
      %v2945 = vpop.f32.mrb[0].mxu0
      %v2946 = vpop.f32.mrb[0].mxu0
      %v2947 = vadd.f32 0.0, %v2946
      %v2948 = vpop.f32.mrb[0].mxu0
      %2949 = vmatprep.mubr.bf16.mxu0 %v2813
      %2950 = vmatmul.mubr.bf16.gmra.mrb[0].mxu0 %v2812
      %v2951 = vpop.f32.mrb[0].mxu0
      %v2952 = vadd.f32 0.0, %v2951
      %v2953 = vpop.f32.mrb[0].mxu0
      %v2954 = vpop.f32.mrb[0].mxu0
      %v2955 = vadd.f32 0.0, %v2954
      %v2956 = vpop.f32.mrb[0].mxu0
      %2957 = vmatprep.mubr.bf16.mxu0 %v2816
      %2958 = vmatmul.mubr.bf16.gmra.mrb[0].mxu0 %v2815
      %v2959 = vpop.f32.mrb[0].mxu0
      %v2960 = vadd.f32 0.0, %v2959
      %v2961 = vpop.f32.mrb[0].mxu0
      %v2962 = vpop.f32.mrb[0].mxu0
      %v2963 = vadd.f32 0.0, %v2962
      %v2964 = vpop.f32.mrb[0].mxu0
      %2965 = vmatprep.mubr.bf16.mxu0 %v2819
      %2966 = vmatmul.mubr.bf16.gmra.mrb[0].mxu0 %v2818
      %v2967 = vpop.f32.mrb[0].mxu0
      %v2968 = vadd.f32 0.0, %v2967
      %v2969 = vpop.f32.mrb[0].mxu0
      %v2970 = vpop.f32.mrb[0].mxu0
      %v2971 = vadd.f32 0.0, %v2970
      %v2972 = vpop.f32.mrb[0].mxu0
      %2973 = vmatprep.mubr.bf16.mxu0 %v2822
      %2974 = vmatmul.mubr.bf16.gmra.mrb[0].mxu0 %v2821
      %v2975 = vpop.f32.mrb[0].mxu0
      %v2976 = vadd.f32 0.0, %v2975
      %v2977 = vpop.f32.mrb[0].mxu0
      %v2978 = vpop.f32.mrb[0].mxu0
      %v2979 = vadd.f32 0.0, %v2978
      %v2980 = vpop.f32.mrb[0].mxu0
      %2981 = vmatprep.mubr.bf16.mxu0 %v2825
      %2982 = vmatmul.mubr.bf16.gmra.mrb[0].mxu0 %v2824
      %v2983 = vpop.f32.mrb[0].mxu0
      %v2984 = vadd.f32 0.0, %v2983
      %v2985 = vpop.f32.mrb[0].mxu0
      %v2986 = vpop.f32.mrb[0].mxu0
      %v2987 = vadd.f32 0.0, %v2986
      %v2988 = vpop.f32.mrb[0].mxu0
      %2989 = vdwg.mxu0
      %2990 = vmatprep.subr.bf16.mxu0 0
      %2991 = vmatpush1.bf16.msra.mxu0 %v2693
      %2992 = vmatprep.subr.bf16.mxu0 0
      %2993 = vmatpush1.bf16.msra.mxu0 %v2694
      %2994 = vmatprep.subr.bf16.mxu0 0
      %2995 = vmatpush1.bf16.msra.mxu0 %v2695
      %2996 = vmatprep.subr.bf16.mxu0 0
      %2997 = vmatpush1.bf16.msra.mxu0 %v2696
      %2998 = vmatprep.subr.bf16.mxu0 0
      %2999 = vmatpush1.bf16.msra.mxu0 0
      %3000 = vmatprep.subr.bf16.mxu0 0
      %3001 = vmatpush1.bf16.msra.mxu0 0
      %3002 = vmatprep.subr.bf16.mxu0 0
      %3003 = vmatpush1.bf16.msra.mxu0 0
      %3004 = vmatprep.subr.bf16.mxu0 0
      %3005 = vmatpush1.bf16.msra.mxu0 0
      %3006 = vmatprep.subr.bf16.mxu0 0
      %3007 = vmatpush1.bf16.msra.mxu0 0
      %3008 = vmatprep.subr.bf16.mxu0 0
      %3009 = vmatpush1.bf16.msra.mxu0 0
      %3010 = vmatprep.subr.bf16.mxu0 0
      %3011 = vmatpush1.bf16.msra.mxu0 0
      %3012 = vmatprep.subr.bf16.mxu0 0
      %3013 = vmatpush1.bf16.msra.mxu0 0
      %3014 = vmatprep.subr.bf16.mxu0 0
      %3015 = vmatpush1.bf16.msra.mxu0 0
      %3016 = vmatprep.subr.bf16.mxu0 0
      %3017 = vmatpush1.bf16.msra.mxu0 0
      %3018 = vmatprep.subr.bf16.mxu0 0
      %3019 = vmatpush1.bf16.msra.mxu0 0
      %3020 = vmatprep.subr.bf16.mxu0 0
      %3021 = vmatpush1.bf16.msra.mxu0 0
      %3022 = vmatprep.mubr.bf16.mxu0 0
      %3023 = vmatmul.mubr.bf16.gmra.mrb[0].mxu0 %v2848
      %v3024 = vpop.f32.mrb[0].mxu0
      %v3025 = vadd.f32 %v2912, %v3024
      %v3026 = vpop.f32.mrb[0].mxu0
      %v3027 = vpop.f32.mrb[0].mxu0
      %v3028 = vadd.f32 %v2915, %v3027
      %v3029 = vpop.f32.mrb[0].mxu0
      %3030 = vmatprep.mubr.bf16.mxu0 0
      %3031 = vmatmul.mubr.bf16.gmra.mrb[0].mxu0 %v2851
      %v3032 = vpop.f32.mrb[0].mxu0
      %v3033 = vadd.f32 %v2920, %v3032
      %v3034 = vpop.f32.mrb[0].mxu0
      %v3035 = vpop.f32.mrb[0].mxu0
      %v3036 = vadd.f32 %v2923, %v3035
      %v3037 = vpop.f32.mrb[0].mxu0
      %3038 = vmatprep.mubr.bf16.mxu0 0
      %3039 = vmatmul.mubr.bf16.gmra.mrb[0].mxu0 %v2854
      %v3040 = vpop.f32.mrb[0].mxu0
      %v3041 = vadd.f32 %v2928, %v3040
      %v3042 = vpop.f32.mrb[0].mxu0
      %v3043 = vpop.f32.mrb[0].mxu0
      %v3044 = vadd.f32 %v2931, %v3043
      %v3045 = vpop.f32.mrb[0].mxu0
      %3046 = vmatprep.mubr.bf16.mxu0 0
      %3047 = vmatmul.mubr.bf16.gmra.mrb[0].mxu0 %v2857
      %v3048 = vpop.f32.mrb[0].mxu0
      %v3049 = vadd.f32 %v2936, %v3048
      %v3050 = vpop.f32.mrb[0].mxu0
      %v3051 = vpop.f32.mrb[0].mxu0
      %v3052 = vadd.f32 %v2939, %v3051
      %v3053 = vpop.f32.mrb[0].mxu0
      %3054 = vmatprep.mubr.bf16.mxu0 0
      %3055 = vmatmul.mubr.bf16.gmra.mrb[0].mxu0 %v2860
      %v3056 = vpop.f32.mrb[0].mxu0
      %v3057 = vadd.f32 %v2944, %v3056
      %v3058 = vpop.f32.mrb[0].mxu0
      %v3059 = vpop.f32.mrb[0].mxu0
      %v3060 = vadd.f32 %v2947, %v3059
      %v3061 = vpop.f32.mrb[0].mxu0
      %3062 = vmatprep.mubr.bf16.mxu0 0
      %3063 = vmatmul.mubr.bf16.gmra.mrb[0].mxu0 %v2863
      %v3064 = vpop.f32.mrb[0].mxu0
      %v3065 = vadd.f32 %v2952, %v3064
      %v3066 = vpop.f32.mrb[0].mxu0
      %v3067 = vpop.f32.mrb[0].mxu0
      %v3068 = vadd.f32 %v2955, %v3067
      %v3069 = vpop.f32.mrb[0].mxu0
      %3070 = vmatprep.mubr.bf16.mxu0 0
      %3071 = vmatmul.mubr.bf16.gmra.mrb[0].mxu0 %v2866
      %v3072 = vpop.f32.mrb[0].mxu0
      %v3073 = vadd.f32 %v2960, %v3072
      %v3074 = vpop.f32.mrb[0].mxu0
      %v3075 = vpop.f32.mrb[0].mxu0
      %v3076 = vadd.f32 %v2963, %v3075
      %v3077 = vpop.f32.mrb[0].mxu0
      %3078 = vmatprep.mubr.bf16.mxu0 0
      %3079 = vmatmul.mubr.bf16.gmra.mrb[0].mxu0 %v2869
      %v3080 = vpop.f32.mrb[0].mxu0
      %v3081 = vadd.f32 %v2968, %v3080
      %v3082 = vpop.f32.mrb[0].mxu0
      %v3083 = vpop.f32.mrb[0].mxu0
      %v3084 = vadd.f32 %v2971, %v3083
      %v3085 = vpop.f32.mrb[0].mxu0
      %3086 = vmatprep.mubr.bf16.mxu0 0
      %3087 = vmatmul.mubr.bf16.gmra.mrb[0].mxu0 %v2872
      %v3088 = vpop.f32.mrb[0].mxu0
      %v3089 = vadd.f32 %v2976, %v3088
      %v3090 = vpop.f32.mrb[0].mxu0
      %v3091 = vpop.f32.mrb[0].mxu0
      %v3092 = vadd.f32 %v2979, %v3091
      %v3093 = vpop.f32.mrb[0].mxu0
      %3094 = vmatprep.mubr.bf16.mxu0 0
      %3095 = vmatmul.mubr.bf16.gmra.mrb[0].mxu0 %v2875
      %v3096 = vpop.f32.mrb[0].mxu0
      %v3097 = vadd.f32 %v2984, %v3096
      %v3098 = vpop.f32.mrb[0].mxu0
      %v3099 = vpop.f32.mrb[0].mxu0
      %v3100 = vadd.f32 %v2987, %v3099
      %v3101 = vpop.f32.mrb[0].mxu0
      %3102 = vdwg.mxu0
      %v3103 = vpack.c.bf16 %v3028, %v3025
      %v3104 = vpack.c.bf16 %v3036, %v3033
      %v3105 = vpack.c.bf16 %v3044, %v3041
      %v3106 = vpack.c.bf16 %v3052, %v3049
      %v3107 = vpack.c.bf16 %v3060, %v3057
      %v3108 = vpack.c.bf16 %v3068, %v3065
      %v3109 = vpack.c.bf16 %v3076, %v3073
      %v3110 = vpack.c.bf16 %v3084, %v3081
      %v3111 = vpack.c.bf16 %v3092, %v3089
      %v3112 = vpack.c.bf16 %v3100, %v3097
      %v3123 = vunpack.c.l.b16 %v3103
      %v3124 = vunpack.c.h.b16 %v3103
      %v3125 = vunpack.c.l.b16 %v3104
      %v3126 = vunpack.c.h.b16 %v3104
      %v3127 = vunpack.c.l.b16 %v3105
      %v3128 = vunpack.c.h.b16 %v3105
      %v3129 = vunpack.c.l.b16 %v3106
      %v3130 = vunpack.c.h.b16 %v3106
      %v3131 = vunpack.c.l.b16 %v3107
      %v3132 = vunpack.c.h.b16 %v3107
      %v3133 = vunpack.c.l.b16 %v3108
      %v3134 = vunpack.c.h.b16 %v3108
      %v3135 = vunpack.c.l.b16 %v3109
      %v3136 = vunpack.c.h.b16 %v3109
      %v3137 = vunpack.c.l.b16 %v3110
      %v3138 = vunpack.c.h.b16 %v3110
      %v3139 = vunpack.c.l.b16 %v3111
      %v3140 = vunpack.c.h.b16 %v3111
      %v3141 = vunpack.c.l.b16 %v3112
      %v3142 = vunpack.c.h.b16 %v3112
      %v3143 = vpack.c.b16 %v3123, %v3123
      %v3144 = vpack.c.b16 %v3124, %v3124
      %v3145 = vpack.c.b16 %v3125, %v3125
      %v3146 = vpack.c.b16 %v3126, %v3126
      %v3147 = vpack.c.b16 %v3127, %v3127
      %v3148 = vpack.c.b16 %v3128, %v3128
      %v3149 = vpack.c.b16 %v3129, %v3129
      %v3150 = vpack.c.b16 %v3130, %v3130
      %v3151 = vpack.c.b16 %v3131, %v3131
      %v3152 = vpack.c.b16 %v3132, %v3132
      %v3153 = vpack.c.b16 %v3133, %v3133
      %v3154 = vpack.c.b16 %v3134, %v3134
      %v3155 = vpack.c.b16 %v3135, %v3135
      %v3156 = vpack.c.b16 %v3136, %v3136
      %v3157 = vpack.c.b16 %v3137, %v3137
      %v3158 = vpack.c.b16 %v3138, %v3138
      %v3159 = vpack.c.b16 %v3139, %v3139
      %v3160 = vpack.c.b16 %v3140, %v3140
      %v3161 = vpack.c.b16 %v3141, %v3141
      %v3162 = vpack.c.b16 %v3142, %v3142
      %3183 = vst [vmem:[%s332] sm:$0xf] %v3143
      %3184 = vst [vmem:[%s332 + $0x4] sm:$0xf] %v3144
      %3185 = vst [vmem:[%s332 + $0x8] sm:$0xf] %v3145
      %3186 = vst [vmem:[%s332 + $0xc] sm:$0xf] %v3146
      %3187 = vst [vmem:[%s332 + $0x10] sm:$0xf] %v3147
      %3188 = vst [vmem:[%s332 + $0x14] sm:$0xf] %v3148
      %3189 = vst [vmem:[%s332 + $0x18] sm:$0xf] %v3149
      %3190 = vst [vmem:[%s332 + $0x1c] sm:$0xf] %v3150
      %3191 = vst [vmem:[%s332 + $0x20] sm:$0xf] %v3151
      %3192 = vst [vmem:[%s332 + $0x24] sm:$0xf] %v3152
      %3193 = vst [vmem:[%s332 + $0x28] sm:$0xf] %v3153
      %3194 = vst [vmem:[%s332 + $0x2c] sm:$0xf] %v3154
      %3195 = vst [vmem:[%s332 + $0x30] sm:$0xf] %v3155
      %3196 = vst [vmem:[%s332 + $0x34] sm:$0xf] %v3156
      %3197 = vst [vmem:[%s332 + $0x38] sm:$0xf] %v3157
      %3198 = vst [vmem:[%s332 + $0x3c] sm:$0xf] %v3158
      %3199 = vst [vmem:[%s332 + $0x40] sm:$0xf] %v3159
      %3200 = vst [vmem:[%s332 + $0x44] sm:$0xf] %v3160
      %3201 = vst [vmem:[%s332 + $0x48] sm:$0xf] %v3161
      %3202 = vst [vmem:[%s332 + $0x4c] sm:$0xf] %v3162
      %p3203 = scmp.lt.s32.totalorder %s20, 1
      %s3204 = scalar_select %p3203, %s20, 1
      %s3205 = smul.addr %s3204, 20
      %s3206 = smul.addr %s3205, 4
      %s3207 = scalar_lea.vmem %s9, %s3206
      // Predicated region
      $region57: #{_lambda_.2} parent=55 // pred_check
        %p3208 = pneg %p232
      $region58: #{_lambda_.2} parent=55 // pred_check_branch
        %3210 = sbr.rel (%p3208) target = $region60
      $region59: #{_lambda_.2} parent=55 // pred_region
        _
      $region60: #{_lambda_.2} parent=55 // pred_fallthru
        _
    $region56: #{_lambda_.2} parent=5 // pred_fallthru
      _
    %p3211 = scmp.le.s32.totalorder 2, %s15
    // Predicated region
    $region61: #{_lambda_.2} parent=5 // pred_check
      %p3212 = pneg %p3211
    $region62: #{_lambda_.2} parent=5 // pred_check_branch
      %3214 = sbr.rel (%p3212) target = $region64
    $region63: #{_lambda_.2} parent=5 // pred_region
      %s3215 = ssub.s32 %s15, 2
      // Predicated region
      $region65: #{_lambda_.2} parent=63 // pred_check
        %p3216 = pneg %p238
      $region66: #{_lambda_.2} parent=63 // pred_check_branch
        %3218 = sbr.rel (%p3216) target = $region68
      $region67: #{_lambda_.2} parent=63 // pred_region
        %p3219 = scmp.lt.s32.totalorder %s21, 1
        %s3220 = scalar_select %p3219, %s21, 1
        %s3221 = smul.addr %s3220, 20
        %s3222 = smul.addr %s3221, 4
        %s3223 = scalar_lea.vmem %s9, %s3222
      $region68: #{_lambda_.2} parent=63 // pred_fallthru
        _
    $region64: #{_lambda_.2} parent=5 // pred_fallthru
      _
  $region6: #{_lambda_.2} parent=0 // loop_footer
    %s19 = sadd.s32 1, %s15
  $region7: #{_lambda_.2} parent=0 // loop_footer_branch
    %14 = sbr.rel target = $region3
  $region8: #{_lambda_.2} parent=0 // loop_exit
    _

// kernel: _lambda_.3
$region0: #{_lambda_.3}
  #allocation0 [shape = 'u32[]', space=smem, size = 0x4, offset = 0x4, fixed_abs, tag = 'smem constant byte address 0x4 - core index']
  #allocation1 [shape = 'u32[144,128]{1,0:T(1,128)}', space=vmem, size = 0x12000, scoped, tag = 'internal scratch']
  #allocation2 [shape = 'bf16[96,3200]{1,0:T(16,128)(2,1)}', space=vmem, size = 0x96000, scoped, tag = 'scratch operand']
  #allocation3 [shape = 'f32[128,192]{1,0:T(8,128)}', space=vmem, size = 0x20000, scoped, tag = 'scratch operand']
  %s0 = inlined_call_operand.vmem [shape: bf16[2,160,128], index: 0, kind: input, shape index: {}]
  %s1 = inlined_call_operand.vmem [shape: bf16[3200,192], index: 1, kind: input, shape index: {}]
  %s2 = inlined_call_operand.vmem [shape: f32[1,192], index: 2, kind: input, shape index: {}]
  %s3 = inlined_call_operand.vmem [shape: bf16[192,192], index: 3, kind: input, shape index: {}]
  %s4 = inlined_call_operand.vmem [shape: f32[1,192], index: 4, kind: input, shape index: {}]
  %s5 = inlined_call_operand.vmem [shape: bf16[192,192], index: 5, kind: input, shape index: {}]
  %s6 = inlined_call_operand.vmem [shape: f32[1,192], index: 6, kind: input, shape index: {}]
  %s7 = inlined_call_operand.vmem [shape: f32[96,1], index: 7, kind: input, shape index: {}]
  %s8 = inlined_call_operand.vmem [shape: bf16[16,96], index: 8, kind: input, shape index: {}]
  %s9 = inlined_call_operand.vmem [shape: f32[2,16,192], index: 9, kind: output, shape index: {}]
  %s10 = sld [smem:[#allocation0]]
  $region69: #{_lambda_.3} parent=0
    _
  %s12 = ssub.s32 1, %s10
  %s13 = scalar_select 0, %s12, %s10
  loop: start=0, step=1, limit=4
  $region2: #{_lambda_.3} parent=0 // loop_pre_header
    _
  $region3: #{_lambda_.3} parent=0 // loop_header
    %s15 = sphi 0, %s19
    %p16 = scmp.ge.s32.totalorder %s15, 4
    %s25 = sphi 0, %s27
    %s28 = sphi 0, %s25
    %s29 = sphi 0, %s28
    %s45 = sphi 0, %s29
    %s49 = sphi 0, %s49
    %s51 = sphi 0, %s49
    %s52 = sphi 0, %s51
    %s66 = sphi 0, %s52
    %s70 = sphi 0, %s70
    %s72 = sphi 0, %s70
    %s73 = sphi 0, %s72
    %s87 = sphi 0, %s73
    %s91 = sphi 0, %s91
    %s93 = sphi 0, %s91
    %s94 = sphi 0, %s93
    %s108 = sphi 0, %s94
    %s112 = sphi 0, %s112
    %s114 = sphi 0, %s112
    %s115 = sphi 0, %s114
    %s129 = sphi 0, %s115
    %s133 = sphi 0, %s133
    %s135 = sphi 0, %s133
    %s136 = sphi 0, %s135
    %s150 = sphi 0, %s136
    %s154 = sphi 0, %s154
    %s156 = sphi 0, %s154
    %s157 = sphi 0, %s156
    %s171 = sphi 0, %s157
    %s175 = sphi 0, %s175
    %s177 = sphi 0, %s175
    %s178 = sphi 0, %s177
    %s192 = sphi 0, %s178
    %s196 = sphi 0, %s196
    %s198 = sphi 0, %s196
    %s199 = sphi 0, %s198
    %s213 = sphi 0, %s199
    %s219 = sphi 0, %s221
    %s222 = sphi 0, %s219
    %s223 = sphi 0, %s222
    %s239 = sphi 0, %s223
  $region4: #{_lambda_.3} parent=0 // loop_header_branch
    %18 = sbr.rel (%p16) target = $region8
  $region5: #{_lambda_.3} parent=0 // loop_body
    %s20 = ssub.s32 %s15, 1
    %s21 = ssub.s32 %s15, 2
    %s22 = sadd.s32 %s15, 1
    %s23 = ssub.s32 %s15, %s22
    %p24 = scmp.eq.s32.totalorder %s23, 0
    %s26 = sadd.s32 %s25, 1
    %s27 = scalar_select %p24, %s25, %s26
    %p30 = pneg %p24
    %p31 = scmp.eq.s32.totalorder %s15, 1
    %p32 = por %p30, %p31
    %p33 = scmp.ne.s32.totalorder %s25, %s28
    %p34 = scmp.eq.s32.totalorder %s15, 0
    %p35 = por %p33, %p34
    %p36 = scmp.ne.s32.totalorder %s25, %s28
    %p37 = scmp.eq.s32.totalorder %s20, 1
    %p38 = por %p36, %p37
    %p39 = scmp.ne.s32.totalorder %s28, %s29
    %p40 = scmp.eq.s32.totalorder %s20, 0
    %p41 = por %p39, %p40
    %p42 = scmp.ne.s32.totalorder %s28, %s29
    %p43 = scmp.eq.s32.totalorder %s21, 1
    %p44 = por %p42, %p43
    %p46 = scmp.ne.s32.totalorder %s29, %s45
    %p47 = scmp.eq.s32.totalorder %s21, 0
    %p48 = por %p46, %p47
    %s50 = sadd.s32 %s49, 1
    %p53 = scmp.eq.s32.totalorder %s15, 1
    %p54 = scmp.ne.s32.totalorder %s49, %s51
    %p55 = scmp.eq.s32.totalorder %s15, 0
    %p56 = por %p54, %p55
    %p57 = scmp.ne.s32.totalorder %s49, %s51
    %p58 = scmp.eq.s32.totalorder %s20, 1
    %p59 = por %p57, %p58
    %p60 = scmp.ne.s32.totalorder %s51, %s52
    %p61 = scmp.eq.s32.totalorder %s20, 0
    %p62 = por %p60, %p61
    %p63 = scmp.ne.s32.totalorder %s51, %s52
    %p64 = scmp.eq.s32.totalorder %s21, 1
    %p65 = por %p63, %p64
    %p67 = scmp.ne.s32.totalorder %s52, %s66
    %p68 = scmp.eq.s32.totalorder %s21, 0
    %p69 = por %p67, %p68
    %s71 = sadd.s32 %s70, 1
    %p74 = scmp.eq.s32.totalorder %s15, 1
    %p75 = scmp.ne.s32.totalorder %s70, %s72
    %p76 = scmp.eq.s32.totalorder %s15, 0
    %p77 = por %p75, %p76
    %p78 = scmp.ne.s32.totalorder %s70, %s72
    %p79 = scmp.eq.s32.totalorder %s20, 1
    %p80 = por %p78, %p79
    %p81 = scmp.ne.s32.totalorder %s72, %s73
    %p82 = scmp.eq.s32.totalorder %s20, 0
    %p83 = por %p81, %p82
    %p84 = scmp.ne.s32.totalorder %s72, %s73
    %p85 = scmp.eq.s32.totalorder %s21, 1
    %p86 = por %p84, %p85
    %p88 = scmp.ne.s32.totalorder %s73, %s87
    %p89 = scmp.eq.s32.totalorder %s21, 0
    %p90 = por %p88, %p89
    %s92 = sadd.s32 %s91, 1
    %p95 = scmp.eq.s32.totalorder %s15, 1
    %p96 = scmp.ne.s32.totalorder %s91, %s93
    %p97 = scmp.eq.s32.totalorder %s15, 0
    %p98 = por %p96, %p97
    %p99 = scmp.ne.s32.totalorder %s91, %s93
    %p100 = scmp.eq.s32.totalorder %s20, 1
    %p101 = por %p99, %p100
    %p102 = scmp.ne.s32.totalorder %s93, %s94
    %p103 = scmp.eq.s32.totalorder %s20, 0
    %p104 = por %p102, %p103
    %p105 = scmp.ne.s32.totalorder %s93, %s94
    %p106 = scmp.eq.s32.totalorder %s21, 1
    %p107 = por %p105, %p106
    %p109 = scmp.ne.s32.totalorder %s94, %s108
    %p110 = scmp.eq.s32.totalorder %s21, 0
    %p111 = por %p109, %p110
    %s113 = sadd.s32 %s112, 1
    %p116 = scmp.eq.s32.totalorder %s15, 1
    %p117 = scmp.ne.s32.totalorder %s112, %s114
    %p118 = scmp.eq.s32.totalorder %s15, 0
    %p119 = por %p117, %p118
    %p120 = scmp.ne.s32.totalorder %s112, %s114
    %p121 = scmp.eq.s32.totalorder %s20, 1
    %p122 = por %p120, %p121
    %p123 = scmp.ne.s32.totalorder %s114, %s115
    %p124 = scmp.eq.s32.totalorder %s20, 0
    %p125 = por %p123, %p124
    %p126 = scmp.ne.s32.totalorder %s114, %s115
    %p127 = scmp.eq.s32.totalorder %s21, 1
    %p128 = por %p126, %p127
    %p130 = scmp.ne.s32.totalorder %s115, %s129
    %p131 = scmp.eq.s32.totalorder %s21, 0
    %p132 = por %p130, %p131
    %s134 = sadd.s32 %s133, 1
    %p137 = scmp.eq.s32.totalorder %s15, 1
    %p138 = scmp.ne.s32.totalorder %s133, %s135
    %p139 = scmp.eq.s32.totalorder %s15, 0
    %p140 = por %p138, %p139
    %p141 = scmp.ne.s32.totalorder %s133, %s135
    %p142 = scmp.eq.s32.totalorder %s20, 1
    %p143 = por %p141, %p142
    %p144 = scmp.ne.s32.totalorder %s135, %s136
    %p145 = scmp.eq.s32.totalorder %s20, 0
    %p146 = por %p144, %p145
    %p147 = scmp.ne.s32.totalorder %s135, %s136
    %p148 = scmp.eq.s32.totalorder %s21, 1
    %p149 = por %p147, %p148
    %p151 = scmp.ne.s32.totalorder %s136, %s150
    %p152 = scmp.eq.s32.totalorder %s21, 0
    %p153 = por %p151, %p152
    %s155 = sadd.s32 %s154, 1
    %p158 = scmp.eq.s32.totalorder %s15, 1
    %p159 = scmp.ne.s32.totalorder %s154, %s156
    %p160 = scmp.eq.s32.totalorder %s15, 0
    %p161 = por %p159, %p160
    %p162 = scmp.ne.s32.totalorder %s154, %s156
    %p163 = scmp.eq.s32.totalorder %s20, 1
    %p164 = por %p162, %p163
    %p165 = scmp.ne.s32.totalorder %s156, %s157
    %p166 = scmp.eq.s32.totalorder %s20, 0
    %p167 = por %p165, %p166
    %p168 = scmp.ne.s32.totalorder %s156, %s157
    %p169 = scmp.eq.s32.totalorder %s21, 1
    %p170 = por %p168, %p169
    %p172 = scmp.ne.s32.totalorder %s157, %s171
    %p173 = scmp.eq.s32.totalorder %s21, 0
    %p174 = por %p172, %p173
    %s176 = sadd.s32 %s175, 1
    %p179 = scmp.eq.s32.totalorder %s15, 1
    %p180 = scmp.ne.s32.totalorder %s175, %s177
    %p181 = scmp.eq.s32.totalorder %s15, 0
    %p182 = por %p180, %p181
    %p183 = scmp.ne.s32.totalorder %s175, %s177
    %p184 = scmp.eq.s32.totalorder %s20, 1
    %p185 = por %p183, %p184
    %p186 = scmp.ne.s32.totalorder %s177, %s178
    %p187 = scmp.eq.s32.totalorder %s20, 0
    %p188 = por %p186, %p187
    %p189 = scmp.ne.s32.totalorder %s177, %s178
    %p190 = scmp.eq.s32.totalorder %s21, 1
    %p191 = por %p189, %p190
    %p193 = scmp.ne.s32.totalorder %s178, %s192
    %p194 = scmp.eq.s32.totalorder %s21, 0
    %p195 = por %p193, %p194
    %s197 = sadd.s32 %s196, 1
    %p200 = scmp.eq.s32.totalorder %s15, 1
    %p201 = scmp.ne.s32.totalorder %s196, %s198
    %p202 = scmp.eq.s32.totalorder %s15, 0
    %p203 = por %p201, %p202
    %p204 = scmp.ne.s32.totalorder %s196, %s198
    %p205 = scmp.eq.s32.totalorder %s20, 1
    %p206 = por %p204, %p205
    %p207 = scmp.ne.s32.totalorder %s198, %s199
    %p208 = scmp.eq.s32.totalorder %s20, 0
    %p209 = por %p207, %p208
    %p210 = scmp.ne.s32.totalorder %s198, %s199
    %p211 = scmp.eq.s32.totalorder %s21, 1
    %p212 = por %p210, %p211
    %p214 = scmp.ne.s32.totalorder %s199, %s213
    %p215 = scmp.eq.s32.totalorder %s21, 0
    %p216 = por %p214, %p215
    %s217 = ssub.s32 %s15, %s22
    %p218 = scmp.eq.s32.totalorder %s217, 0
    %s220 = sadd.s32 %s219, 1
    %s221 = scalar_select %p218, %s219, %s220
    %p224 = pneg %p218
    %p225 = scmp.eq.s32.totalorder %s15, 1
    %p226 = por %p224, %p225
    %p227 = scmp.ne.s32.totalorder %s219, %s222
    %p228 = scmp.eq.s32.totalorder %s15, 0
    %p229 = por %p227, %p228
    %p230 = scmp.ne.s32.totalorder %s219, %s222
    %p231 = scmp.eq.s32.totalorder %s20, 1
    %p232 = por %p230, %p231
    %p233 = scmp.ne.s32.totalorder %s222, %s223
    %p234 = scmp.eq.s32.totalorder %s20, 0
    %p235 = por %p233, %p234
    %p236 = scmp.ne.s32.totalorder %s222, %s223
    %p237 = scmp.eq.s32.totalorder %s21, 1
    %p238 = por %p236, %p237
    %p240 = scmp.ne.s32.totalorder %s223, %s239
    %p241 = scmp.eq.s32.totalorder %s21, 0
    %p242 = por %p240, %p241
    %p243 = scmp.le.s32.totalorder 1, %s15
    %p244 = scmp.lt.s32.totalorder %s15, 3
    %p245 = pnand %p243, %p244
    %p246 = pneg %p245
    // Predicated region
    $region9: #{_lambda_.3} parent=5 // pred_check
      _
    $region10: #{_lambda_.3} parent=5 // pred_check_branch
      %248 = sbr.rel (%p245) target = $region12
    $region11: #{_lambda_.3} parent=5 // pred_region
      %s249 = ssub.s32 %s15, 1
      // Predicated region
      $region13: #{_lambda_.3} parent=11 // pred_check
        %p250 = pneg %p62
      $region14: #{_lambda_.3} parent=11 // pred_check_branch
        %252 = sbr.rel (%p250) target = $region16
      $region15: #{_lambda_.3} parent=11 // pred_region
        _
      $region16: #{_lambda_.3} parent=11 // pred_fallthru
        _
      // Predicated region
      $region17: #{_lambda_.3} parent=11 // pred_check
        %p253 = pneg %p83
      $region18: #{_lambda_.3} parent=11 // pred_check_branch
        %255 = sbr.rel (%p253) target = $region20
      $region19: #{_lambda_.3} parent=11 // pred_region
        _
      $region20: #{_lambda_.3} parent=11 // pred_fallthru
        _
      // Predicated region
      $region21: #{_lambda_.3} parent=11 // pred_check
        %p256 = pneg %p104
      $region22: #{_lambda_.3} parent=11 // pred_check_branch
        %258 = sbr.rel (%p256) target = $region24
      $region23: #{_lambda_.3} parent=11 // pred_region
        _
      $region24: #{_lambda_.3} parent=11 // pred_fallthru
        _
      // Predicated region
      $region25: #{_lambda_.3} parent=11 // pred_check
        %p259 = pneg %p125
      $region26: #{_lambda_.3} parent=11 // pred_check_branch
        %261 = sbr.rel (%p259) target = $region28
      $region27: #{_lambda_.3} parent=11 // pred_region
        _
      $region28: #{_lambda_.3} parent=11 // pred_fallthru
        _
      // Predicated region
      $region29: #{_lambda_.3} parent=11 // pred_check
        %p262 = pneg %p146
      $region30: #{_lambda_.3} parent=11 // pred_check_branch
        %264 = sbr.rel (%p262) target = $region32
      $region31: #{_lambda_.3} parent=11 // pred_region
        _
      $region32: #{_lambda_.3} parent=11 // pred_fallthru
        _
      // Predicated region
      $region33: #{_lambda_.3} parent=11 // pred_check
        %p265 = pneg %p167
      $region34: #{_lambda_.3} parent=11 // pred_check_branch
        %267 = sbr.rel (%p265) target = $region36
      $region35: #{_lambda_.3} parent=11 // pred_region
        _
      $region36: #{_lambda_.3} parent=11 // pred_fallthru
        _
      // Predicated region
      $region37: #{_lambda_.3} parent=11 // pred_check
        %p268 = pneg %p188
      $region38: #{_lambda_.3} parent=11 // pred_check_branch
        %270 = sbr.rel (%p268) target = $region40
      $region39: #{_lambda_.3} parent=11 // pred_region
        _
      $region40: #{_lambda_.3} parent=11 // pred_fallthru
        _
      // Predicated region
      $region41: #{_lambda_.3} parent=11 // pred_check
        %p271 = pneg %p209
      $region42: #{_lambda_.3} parent=11 // pred_check_branch
        %273 = sbr.rel (%p271) target = $region44
      $region43: #{_lambda_.3} parent=11 // pred_region
        _
      $region44: #{_lambda_.3} parent=11 // pred_fallthru
        _
    $region12: #{_lambda_.3} parent=5 // pred_fallthru
      _
    %p274 = scmp.lt.s32.totalorder %s15, 2
    // Predicated region
    $region45: #{_lambda_.3} parent=5 // pred_check
      %p275 = pneg %p274
    $region46: #{_lambda_.3} parent=5 // pred_check_branch
      %277 = sbr.rel (%p275) target = $region48
    $region47: #{_lambda_.3} parent=5 // pred_region
      // Predicated region
      $region49: #{_lambda_.3} parent=47 // pred_check
        %p278 = pneg %p35
      $region50: #{_lambda_.3} parent=47 // pred_check_branch
        %280 = sbr.rel (%p278) target = $region52
      $region51: #{_lambda_.3} parent=47 // pred_region
        %p281 = scmp.lt.s32.totalorder %s15, 1
        %s282 = scalar_select %p281, %s15, 1
        %s283 = smul.addr %s282, 20
        %s284 = smul.addr %s283, 4
        %s285 = scalar_lea.vmem %s0, %s284
      $region52: #{_lambda_.3} parent=47 // pred_fallthru
        _
    $region48: #{_lambda_.3} parent=5 // pred_fallthru
      _
    %p286 = scmp.le.s32.totalorder 1, %s15
    %p287 = scmp.lt.s32.totalorder %s15, 3
    %p288 = pnand %p286, %p287
    %p289 = pneg %p288
    // Predicated region
    $region53: #{_lambda_.3} parent=5 // pred_check
      _
    $region54: #{_lambda_.3} parent=5 // pred_check_branch
      %291 = sbr.rel (%p288) target = $region56
    $region55: #{_lambda_.3} parent=5 // pred_region
      %s292 = ssub.s32 %s15, 1
      %p293 = scmp.lt.s32.totalorder %s20, 1
      %s294 = scalar_select %p293, %s20, 1
      %s295 = smul.addr %s294, 20
      %s296 = smul.addr %s295, 4
      %s297 = scalar_lea.vmem %s0, %s296
      %p298 = pneg %p41
      %p299 = pneg %p38
      %p300 = pneg %p62
      %p301 = pneg %p59
      %p302 = pneg %p83
      %p303 = pneg %p80
      %p304 = pneg %p104
      %p305 = pneg %p101
      %p306 = pneg %p125
      %p307 = pneg %p122
      %p308 = pneg %p146
      %p309 = pneg %p143
      %p310 = pneg %p167
      %p311 = pneg %p164
      %p312 = pneg %p188
      %p313 = pneg %p185
      %p314 = pneg %p209
      %p315 = pneg %p206
      %p316 = pneg %p235
      %p317 = pneg %p232
      %p318 = scmp.lt.s32.totalorder %s20, 1
      %s319 = scalar_select %p318, %s20, 1
      %s320 = smul.addr %s319, 4
      %s321 = smul.addr %s320, 8
      %s322 = scalar_lea.vmem %s9, %s321
      %p323 = scmp.lt.s32.totalorder %s20, 1
      %s324 = scalar_select %p323, %s20, 1
      %s325 = smul.addr %s324, 20
      %s326 = smul.addr %s325, 4
      %s327 = scalar_lea.vmem %s0, %s326
      %p328 = scmp.lt.s32.totalorder %s20, 1
      %s329 = scalar_select %p328, %s20, 1
      %s330 = smul.addr %s329, 4
      %s331 = smul.addr %s330, 8
      %s332 = scalar_lea.vmem %s9, %s331
      %v334 = vld [vmem:[%s327] sm:$0xf]
      %v335 = vld [vmem:[%s327 + $0x4] sm:$0xf]
      %v336 = vld [vmem:[%s327 + $0x8] sm:$0xf]
      %v337 = vld [vmem:[%s327 + $0xc] sm:$0xf]
      %v338 = vld [vmem:[%s327 + $0x10] sm:$0xf]
      %v339 = vld [vmem:[%s327 + $0x14] sm:$0xf]
      %v340 = vld [vmem:[%s327 + $0x18] sm:$0xf]
      %v341 = vld [vmem:[%s327 + $0x1c] sm:$0xf]
      %v342 = vld [vmem:[%s327 + $0x20] sm:$0xf]
      %v343 = vld [vmem:[%s327 + $0x24] sm:$0xf]
      %v344 = vld [vmem:[%s327 + $0x28] sm:$0xf]
      %v345 = vld [vmem:[%s327 + $0x2c] sm:$0xf]
      %v358 = vunpack.c.l.b16 %v334
      %v359 = vunpack.c.l.b16 %v335
      %v360 = vunpack.c.l.b16 %v336
      %v361 = vunpack.c.l.b16 %v337
      %v362 = vunpack.c.l.b16 %v338
      %v363 = vunpack.c.l.b16 %v339
      %v364 = vunpack.c.l.b16 %v340
      %v365 = vunpack.c.l.b16 %v341
      %v366 = vunpack.c.l.b16 %v342
      %v367 = vunpack.c.l.b16 %v343
      %v368 = vunpack.c.l.b16 %v344
      %v369 = vunpack.c.l.b16 %v345
      %v370 = vpack.c.b16 %v359, %v358
      %v371 = vpack.c.b16 %v361, %v360
      %v372 = vpack.c.b16 %v363, %v362
      %v373 = vpack.c.b16 %v365, %v364
      %v374 = vpack.c.b16 %v367, %v366
      %v375 = vpack.c.b16 %v369, %v368
      %382 = vst [vmem:[#allocation2] sm:$0xff] %v370
      %383 = vst [vmem:[#allocation2 + $0xc8] sm:$0xff] %v371
      %384 = vst [vmem:[#allocation2 + $0x190] sm:$0xff] %v372
      %385 = vst [vmem:[#allocation2 + $0x258] sm:$0xff] %v373
      %386 = vst [vmem:[#allocation2 + $0x320] sm:$0xff] %v374
      %387 = vst [vmem:[#allocation2 + $0x3e8] sm:$0xff] %v375
      %v388 = vld [vmem:[%s327] sm:$0xf]
      %v389 = vld [vmem:[%s327 + $0x4] sm:$0xf]
      %v390 = vld [vmem:[%s327 + $0x8] sm:$0xf]
      %v391 = vld [vmem:[%s327 + $0xc] sm:$0xf]
      %v392 = vld [vmem:[%s327 + $0x10] sm:$0xf]
      %v393 = vld [vmem:[%s327 + $0x14] sm:$0xf]
      %v394 = vld [vmem:[%s327 + $0x18] sm:$0xf]
      %v395 = vld [vmem:[%s327 + $0x1c] sm:$0xf]
      %v396 = vld [vmem:[%s327 + $0x20] sm:$0xf]
      %v397 = vld [vmem:[%s327 + $0x24] sm:$0xf]
      %v398 = vld [vmem:[%s327 + $0x28] sm:$0xf]
      %v399 = vld [vmem:[%s327 + $0x2c] sm:$0xf]
      %v400 = vld [vmem:[%s327 + $0x30] sm:$0x1]
      %v414 = vunpack.c.l.b16 %v388
      %v415 = vunpack.c.l.b16 %v389
      %v416 = vunpack.c.l.b16 %v390
      %v417 = vunpack.c.l.b16 %v391
      %v418 = vunpack.c.l.b16 %v392
      %v419 = vunpack.c.l.b16 %v393
      %v420 = vunpack.c.l.b16 %v394
      %v421 = vunpack.c.l.b16 %v395
      %v422 = vunpack.c.l.b16 %v396
      %v423 = vunpack.c.l.b16 %v397
      %v424 = vunpack.c.l.b16 %v398
      %v425 = vunpack.c.l.b16 %v399
      %v426 = vunpack.c.l.b16 %v400
      %v427 = vpack.c.b16 %v415, %v414
      %v428 = vpack.c.b16 %v417, %v416
      %v429 = vpack.c.b16 %v419, %v418
      %v430 = vpack.c.b16 %v421, %v420
      %v431 = vpack.c.b16 %v423, %v422
      %v432 = vpack.c.b16 %v425, %v424
      %v433 = vpack.c.b16 %v426, %v426
      %vm434 = vsmask.f32 7424
      %v436 = vshrl.u32 %v427, 16
      %v438 = vshll.u32 %v427, 16
      %v440 = vrot.slane %v438, 1
      %v441 = vor.u32 %v436, %v440
      %v443 = vshll.u32 %v428, 16
      %v445 = vrot.slane %v443, 1
      %v446 = vsel %vm434, %v441, %v445
      %v447 = vshrl.u32 %v428, 16
      %v449 = vor.u32 %v447, %v445
      %v451 = vshll.u32 %v429, 16
      %v453 = vrot.slane %v451, 1
      %v454 = vsel %vm434, %v449, %v453
      %v455 = vshrl.u32 %v429, 16
      %v457 = vor.u32 %v455, %v453
      %v459 = vshll.u32 %v430, 16
      %v461 = vrot.slane %v459, 1
      %v462 = vsel %vm434, %v457, %v461
      %v463 = vshrl.u32 %v430, 16
      %v465 = vor.u32 %v463, %v461
      %v467 = vshll.u32 %v431, 16
      %v469 = vrot.slane %v467, 1
      %v470 = vsel %vm434, %v465, %v469
      %v471 = vshrl.u32 %v431, 16
      %v473 = vor.u32 %v471, %v469
      %v475 = vshll.u32 %v432, 16
      %v477 = vrot.slane %v475, 1
      %v478 = vsel %vm434, %v473, %v477
      %v479 = vshrl.u32 %v432, 16
      %v481 = vor.u32 %v479, %v477
      %v483 = vshll.u32 %v433, 16
      %v485 = vrot.slane %v483, 1
      %v486 = vsel %vm434, %v481, %v485
      %493 = vst [vmem:[#allocation2 + $0x8] sm:$0xff] %v446
      %494 = vst [vmem:[#allocation2 + $0xd0] sm:$0xff] %v454
      %495 = vst [vmem:[#allocation2 + $0x198] sm:$0xff] %v462
      %496 = vst [vmem:[#allocation2 + $0x260] sm:$0xff] %v470
      %497 = vst [vmem:[#allocation2 + $0x328] sm:$0xff] %v478
      %498 = vst [vmem:[#allocation2 + $0x3f0] sm:$0xff] %v486
      %v499 = vld [vmem:[%s327] sm:$0xe]
      %v500 = vld [vmem:[%s327 + $0x4] sm:$0xf]
      %v501 = vld [vmem:[%s327 + $0x8] sm:$0xf]
      %v502 = vld [vmem:[%s327 + $0xc] sm:$0xf]
      %v503 = vld [vmem:[%s327 + $0x10] sm:$0xf]
      %v504 = vld [vmem:[%s327 + $0x14] sm:$0xf]
      %v505 = vld [vmem:[%s327 + $0x18] sm:$0xf]
      %v506 = vld [vmem:[%s327 + $0x1c] sm:$0xf]
      %v507 = vld [vmem:[%s327 + $0x20] sm:$0xf]
      %v508 = vld [vmem:[%s327 + $0x24] sm:$0xf]
      %v509 = vld [vmem:[%s327 + $0x28] sm:$0xf]
      %v510 = vld [vmem:[%s327 + $0x2c] sm:$0xf]
      %v511 = vld [vmem:[%s327 + $0x30] sm:$0x1]
      %v525 = vunpack.c.l.b16 %v499
      %v526 = vunpack.c.l.b16 %v500
      %v527 = vunpack.c.l.b16 %v501
      %v528 = vunpack.c.l.b16 %v502
      %v529 = vunpack.c.l.b16 %v503
      %v530 = vunpack.c.l.b16 %v504
      %v531 = vunpack.c.l.b16 %v505
      %v532 = vunpack.c.l.b16 %v506
      %v533 = vunpack.c.l.b16 %v507
      %v534 = vunpack.c.l.b16 %v508
      %v535 = vunpack.c.l.b16 %v509
      %v536 = vunpack.c.l.b16 %v510
      %v537 = vunpack.c.l.b16 %v511
      %v538 = vpack.c.b16 %v526, %v525
      %v539 = vpack.c.b16 %v528, %v527
      %v540 = vpack.c.b16 %v530, %v529
      %v541 = vpack.c.b16 %v532, %v531
      %v542 = vpack.c.b16 %v534, %v533
      %v543 = vpack.c.b16 %v536, %v535
      %v544 = vpack.c.b16 %v537, %v537
      %vm545 = vcmask 1046528
      %v546 = vrot.slane %v538, 1
      %v547 = vrot.slane %v539, 1
      %v548 = vsel %vm545, %v546, %v547
      %v549 = vrot.slane %v540, 1
      %v550 = vsel %vm545, %v547, %v549
      %v551 = vrot.slane %v541, 1
      %v552 = vsel %vm545, %v549, %v551
      %v553 = vrot.slane %v542, 1
      %v554 = vsel %vm545, %v551, %v553
      %v555 = vrot.slane %v543, 1
      %v556 = vsel %vm545, %v553, %v555
      %v557 = vrot.slane %v544, 1
      %v558 = vsel %vm545, %v555, %v557
      %565 = vst [vmem:[#allocation2 + $0x10] sm:$0xff] %v548
      %566 = vst [vmem:[#allocation2 + $0xd8] sm:$0xff] %v550
      %567 = vst [vmem:[#allocation2 + $0x1a0] sm:$0xff] %v552
      %568 = vst [vmem:[#allocation2 + $0x268] sm:$0xff] %v554
      %569 = vst [vmem:[#allocation2 + $0x330] sm:$0xff] %v556
      %570 = vst [vmem:[#allocation2 + $0x3f8] sm:$0xff] %v558
      %v571 = vld [vmem:[%s327] sm:$0xe]
      %v572 = vld [vmem:[%s327 + $0x4] sm:$0xf]
      %v573 = vld [vmem:[%s327 + $0x8] sm:$0xf]
      %v574 = vld [vmem:[%s327 + $0xc] sm:$0xf]
      %v575 = vld [vmem:[%s327 + $0x10] sm:$0xf]
      %v576 = vld [vmem:[%s327 + $0x14] sm:$0xf]
      %v577 = vld [vmem:[%s327 + $0x18] sm:$0xf]
      %v578 = vld [vmem:[%s327 + $0x1c] sm:$0xf]
      %v579 = vld [vmem:[%s327 + $0x20] sm:$0xf]
      %v580 = vld [vmem:[%s327 + $0x24] sm:$0xf]
      %v581 = vld [vmem:[%s327 + $0x28] sm:$0xf]
      %v582 = vld [vmem:[%s327 + $0x2c] sm:$0xf]
      %v583 = vld [vmem:[%s327 + $0x30] sm:$0x3]
      %v597 = vunpack.c.l.b16 %v571
      %v598 = vunpack.c.l.b16 %v572
      %v599 = vunpack.c.l.b16 %v573
      %v600 = vunpack.c.l.b16 %v574
      %v601 = vunpack.c.l.b16 %v575
      %v602 = vunpack.c.l.b16 %v576
      %v603 = vunpack.c.l.b16 %v577
      %v604 = vunpack.c.l.b16 %v578
      %v605 = vunpack.c.l.b16 %v579
      %v606 = vunpack.c.l.b16 %v580
      %v607 = vunpack.c.l.b16 %v581
      %v608 = vunpack.c.l.b16 %v582
      %v609 = vunpack.c.l.b16 %v583
      %v610 = vpack.c.b16 %v598, %v597
      %v611 = vpack.c.b16 %v600, %v599
      %v612 = vpack.c.b16 %v602, %v601
      %v613 = vpack.c.b16 %v604, %v603
      %v614 = vpack.c.b16 %v606, %v605
      %v615 = vpack.c.b16 %v608, %v607
      %v616 = vpack.c.b16 %v609, %v609
      %vm617 = vsmask.f32 6400
      %v619 = vshrl.u32 %v610, 16
      %v621 = vrot.slane %v619, 1
      %v622 = vshll.u32 %v610, 16
      %v624 = vrot.slane %v622, 2
      %v625 = vor.u32 %v621, %v624
      %v627 = vshrl.u32 %v611, 16
      %v629 = vrot.slane %v627, 1
      %v630 = vshll.u32 %v611, 16
      %v632 = vrot.slane %v630, 2
      %v633 = vor.u32 %v629, %v632
      %v634 = vsel %vm617, %v625, %v633
      %v636 = vshrl.u32 %v612, 16
      %v638 = vrot.slane %v636, 1
      %v639 = vshll.u32 %v612, 16
      %v641 = vrot.slane %v639, 2
      %v642 = vor.u32 %v638, %v641
      %v643 = vsel %vm617, %v633, %v642
      %v645 = vshrl.u32 %v613, 16
      %v647 = vrot.slane %v645, 1
      %v648 = vshll.u32 %v613, 16
      %v650 = vrot.slane %v648, 2
      %v651 = vor.u32 %v647, %v650
      %v652 = vsel %vm617, %v642, %v651
      %v654 = vshrl.u32 %v614, 16
      %v656 = vrot.slane %v654, 1
      %v657 = vshll.u32 %v614, 16
      %v659 = vrot.slane %v657, 2
      %v660 = vor.u32 %v656, %v659
      %v661 = vsel %vm617, %v651, %v660
      %v663 = vshrl.u32 %v615, 16
      %v665 = vrot.slane %v663, 1
      %v666 = vshll.u32 %v615, 16
      %v668 = vrot.slane %v666, 2
      %v669 = vor.u32 %v665, %v668
      %v670 = vsel %vm617, %v660, %v669
      %v672 = vshrl.u32 %v616, 16
      %v674 = vrot.slane %v672, 1
      %v675 = vshll.u32 %v616, 16
      %v677 = vrot.slane %v675, 2
      %v678 = vor.u32 %v674, %v677
      %v679 = vsel %vm617, %v669, %v678
      %686 = vst [vmem:[#allocation2 + $0x18] sm:$0xff] %v634
      %687 = vst [vmem:[#allocation2 + $0xe0] sm:$0xff] %v643
      %688 = vst [vmem:[#allocation2 + $0x1a8] sm:$0xff] %v652
      %689 = vst [vmem:[#allocation2 + $0x270] sm:$0xff] %v661
      %690 = vst [vmem:[#allocation2 + $0x338] sm:$0xff] %v670
      %691 = vst [vmem:[#allocation2 + $0x400] sm:$0xff] %v679
      %v692 = vld [vmem:[%s327] sm:$0xc]
      %v693 = vld [vmem:[%s327 + $0x4] sm:$0xf]
      %v694 = vld [vmem:[%s327 + $0x8] sm:$0xf]
      %v695 = vld [vmem:[%s327 + $0xc] sm:$0xf]
      %v696 = vld [vmem:[%s327 + $0x10] sm:$0xf]
      %v697 = vld [vmem:[%s327 + $0x14] sm:$0xf]
      %v698 = vld [vmem:[%s327 + $0x18] sm:$0xf]
      %v699 = vld [vmem:[%s327 + $0x1c] sm:$0xf]
      %v700 = vld [vmem:[%s327 + $0x20] sm:$0xf]
      %v701 = vld [vmem:[%s327 + $0x24] sm:$0xf]
      %v702 = vld [vmem:[%s327 + $0x28] sm:$0xf]
      %v703 = vld [vmem:[%s327 + $0x2c] sm:$0xf]
      %v704 = vld [vmem:[%s327 + $0x30] sm:$0x3]
      %v718 = vunpack.c.l.b16 %v692
      %v719 = vunpack.c.l.b16 %v693
      %v720 = vunpack.c.l.b16 %v694
      %v721 = vunpack.c.l.b16 %v695
      %v722 = vunpack.c.l.b16 %v696
      %v723 = vunpack.c.l.b16 %v697
      %v724 = vunpack.c.l.b16 %v698
      %v725 = vunpack.c.l.b16 %v699
      %v726 = vunpack.c.l.b16 %v700
      %v727 = vunpack.c.l.b16 %v701
      %v728 = vunpack.c.l.b16 %v702
      %v729 = vunpack.c.l.b16 %v703
      %v730 = vunpack.c.l.b16 %v704
      %v731 = vpack.c.b16 %v719, %v718
      %v732 = vpack.c.b16 %v721, %v720
      %v733 = vpack.c.b16 %v723, %v722
      %v734 = vpack.c.b16 %v725, %v724
      %v735 = vpack.c.b16 %v727, %v726
      %v736 = vpack.c.b16 %v729, %v728
      %v737 = vpack.c.b16 %v730, %v730
      %vm738 = vcmask 1045504
      %v739 = vrot.slane %v731, 2
      %v740 = vrot.slane %v732, 2
      %v741 = vsel %vm738, %v739, %v740
      %v742 = vrot.slane %v733, 2
      %v743 = vsel %vm738, %v740, %v742
      %v744 = vrot.slane %v734, 2
      %v745 = vsel %vm738, %v742, %v744
      %v746 = vrot.slane %v735, 2
      %v747 = vsel %vm738, %v744, %v746
      %v748 = vrot.slane %v736, 2
      %v749 = vsel %vm738, %v746, %v748
      %v750 = vrot.slane %v737, 2
      %v751 = vsel %vm738, %v748, %v750
      %758 = vst [vmem:[#allocation2 + $0x20] sm:$0xff] %v741
      %759 = vst [vmem:[#allocation2 + $0xe8] sm:$0xff] %v743
      %760 = vst [vmem:[#allocation2 + $0x1b0] sm:$0xff] %v745
      %761 = vst [vmem:[#allocation2 + $0x278] sm:$0xff] %v747
      %762 = vst [vmem:[#allocation2 + $0x340] sm:$0xff] %v749
      %763 = vst [vmem:[#allocation2 + $0x408] sm:$0xff] %v751
      %v764 = vld [vmem:[%s327 + $0x4] sm:$0xc]
      %v765 = vld [vmem:[%s327 + $0x8] sm:$0xf]
      %v766 = vld [vmem:[%s327 + $0xc] sm:$0xf]
      %v767 = vld [vmem:[%s327 + $0x10] sm:$0xf]
      %v768 = vld [vmem:[%s327 + $0x14] sm:$0xf]
      %v769 = vld [vmem:[%s327 + $0x18] sm:$0xf]
      %v770 = vld [vmem:[%s327 + $0x1c] sm:$0xf]
      %v771 = vld [vmem:[%s327 + $0x20] sm:$0xf]
      %v772 = vld [vmem:[%s327 + $0x24] sm:$0xf]
      %v773 = vld [vmem:[%s327 + $0x28] sm:$0xf]
      %v774 = vld [vmem:[%s327 + $0x2c] sm:$0xf]
      %v775 = vld [vmem:[%s327 + $0x30] sm:$0xf]
      %v776 = vld [vmem:[%s327 + $0x34] sm:$0x3]
      %v790 = vunpack.c.l.b16 %v764
      %v791 = vunpack.c.l.b16 %v765
      %v792 = vunpack.c.l.b16 %v766
      %v793 = vunpack.c.l.b16 %v767
      %v794 = vunpack.c.l.b16 %v768
      %v795 = vunpack.c.l.b16 %v769
      %v796 = vunpack.c.l.b16 %v770
      %v797 = vunpack.c.l.b16 %v771
      %v798 = vunpack.c.l.b16 %v772
      %v799 = vunpack.c.l.b16 %v773
      %v800 = vunpack.c.l.b16 %v774
      %v801 = vunpack.c.l.b16 %v775
      %v802 = vunpack.c.l.b16 %v776
      %v803 = vpack.c.b16 %v791, %v790
      %v804 = vpack.c.b16 %v793, %v792
      %v805 = vpack.c.b16 %v795, %v794
      %v806 = vpack.c.b16 %v797, %v796
      %v807 = vpack.c.b16 %v799, %v798
      %v808 = vpack.c.b16 %v801, %v800
      %v809 = vpack.c.b16 %v802, %v802
      %v810 = vrot.slane %v803, 2
      %v811 = vrot.slane %v804, 2
      %v812 = vsel %vm738, %v810, %v811
      %v813 = vrot.slane %v805, 2
      %v814 = vsel %vm738, %v811, %v813
      %v815 = vrot.slane %v806, 2
      %v816 = vsel %vm738, %v813, %v815
      %v817 = vrot.slane %v807, 2
      %v818 = vsel %vm738, %v815, %v817
      %v819 = vrot.slane %v808, 2
      %v820 = vsel %vm738, %v817, %v819
      %v821 = vrot.slane %v809, 2
      %v822 = vsel %vm738, %v819, %v821
      %829 = vst [vmem:[#allocation2 + $0x28] sm:$0xff] %v812
      %830 = vst [vmem:[#allocation2 + $0xf0] sm:$0xff] %v814
      %831 = vst [vmem:[#allocation2 + $0x1b8] sm:$0xff] %v816
      %832 = vst [vmem:[#allocation2 + $0x280] sm:$0xff] %v818
      %833 = vst [vmem:[#allocation2 + $0x348] sm:$0xff] %v820
      %834 = vst [vmem:[#allocation2 + $0x410] sm:$0xff] %v822
      %v835 = vld [vmem:[%s327 + $0x4] sm:$0xc]
      %v836 = vld [vmem:[%s327 + $0x8] sm:$0xf]
      %v837 = vld [vmem:[%s327 + $0xc] sm:$0xf]
      %v838 = vld [vmem:[%s327 + $0x10] sm:$0xf]
      %v839 = vld [vmem:[%s327 + $0x14] sm:$0xf]
      %v840 = vld [vmem:[%s327 + $0x18] sm:$0xf]
      %v841 = vld [vmem:[%s327 + $0x1c] sm:$0xf]
      %v842 = vld [vmem:[%s327 + $0x20] sm:$0xf]
      %v843 = vld [vmem:[%s327 + $0x24] sm:$0xf]
      %v844 = vld [vmem:[%s327 + $0x28] sm:$0xf]
      %v845 = vld [vmem:[%s327 + $0x2c] sm:$0xf]
      %v846 = vld [vmem:[%s327 + $0x30] sm:$0xf]
      %v847 = vld [vmem:[%s327 + $0x34] sm:$0x7]
      %v861 = vunpack.c.l.b16 %v835
      %v862 = vunpack.c.l.b16 %v836
      %v863 = vunpack.c.l.b16 %v837
      %v864 = vunpack.c.l.b16 %v838
      %v865 = vunpack.c.l.b16 %v839
      %v866 = vunpack.c.l.b16 %v840
      %v867 = vunpack.c.l.b16 %v841
      %v868 = vunpack.c.l.b16 %v842
      %v869 = vunpack.c.l.b16 %v843
      %v870 = vunpack.c.l.b16 %v844
      %v871 = vunpack.c.l.b16 %v845
      %v872 = vunpack.c.l.b16 %v846
      %v873 = vunpack.c.l.b16 %v847
      %v874 = vpack.c.b16 %v862, %v861
      %v875 = vpack.c.b16 %v864, %v863
      %v876 = vpack.c.b16 %v866, %v865
      %v877 = vpack.c.b16 %v868, %v867
      %v878 = vpack.c.b16 %v870, %v869
      %v879 = vpack.c.b16 %v872, %v871
      %v880 = vpack.c.b16 %v873, %v873
      %vm881 = vsmask.f32 5376
      %v883 = vshrl.u32 %v874, 16
      %v885 = vrot.slane %v883, 2
      %v886 = vshll.u32 %v874, 16
      %v888 = vrot.slane %v886, 3
      %v889 = vor.u32 %v885, %v888
      %v891 = vshrl.u32 %v875, 16
      %v893 = vrot.slane %v891, 2
      %v894 = vshll.u32 %v875, 16
      %v896 = vrot.slane %v894, 3
      %v897 = vor.u32 %v893, %v896
      %v898 = vsel %vm881, %v889, %v897
      %v900 = vshrl.u32 %v876, 16
      %v902 = vrot.slane %v900, 2
      %v903 = vshll.u32 %v876, 16
      %v905 = vrot.slane %v903, 3
      %v906 = vor.u32 %v902, %v905
      %v907 = vsel %vm881, %v897, %v906
      %v909 = vshrl.u32 %v877, 16
      %v911 = vrot.slane %v909, 2
      %v912 = vshll.u32 %v877, 16
      %v914 = vrot.slane %v912, 3
      %v915 = vor.u32 %v911, %v914
      %v916 = vsel %vm881, %v906, %v915
      %v918 = vshrl.u32 %v878, 16
      %v920 = vrot.slane %v918, 2
      %v921 = vshll.u32 %v878, 16
      %v923 = vrot.slane %v921, 3
      %v924 = vor.u32 %v920, %v923
      %v925 = vsel %vm881, %v915, %v924
      %v927 = vshrl.u32 %v879, 16
      %v929 = vrot.slane %v927, 2
      %v930 = vshll.u32 %v879, 16
      %v932 = vrot.slane %v930, 3
      %v933 = vor.u32 %v929, %v932
      %v934 = vsel %vm881, %v924, %v933
      %v936 = vshrl.u32 %v880, 16
      %v938 = vrot.slane %v936, 2
      %v939 = vshll.u32 %v880, 16
      %v941 = vrot.slane %v939, 3
      %v942 = vor.u32 %v938, %v941
      %v943 = vsel %vm881, %v933, %v942
      %950 = vst [vmem:[#allocation2 + $0x30] sm:$0xff] %v898
      %951 = vst [vmem:[#allocation2 + $0xf8] sm:$0xff] %v907
      %952 = vst [vmem:[#allocation2 + $0x1c0] sm:$0xff] %v916
      %953 = vst [vmem:[#allocation2 + $0x288] sm:$0xff] %v925
      %954 = vst [vmem:[#allocation2 + $0x350] sm:$0xff] %v934
      %955 = vst [vmem:[#allocation2 + $0x418] sm:$0xff] %v943
      %v956 = vld [vmem:[%s327 + $0x4] sm:$0x8]
      %v957 = vld [vmem:[%s327 + $0x8] sm:$0xf]
      %v958 = vld [vmem:[%s327 + $0xc] sm:$0xf]
      %v959 = vld [vmem:[%s327 + $0x10] sm:$0xf]
      %v960 = vld [vmem:[%s327 + $0x14] sm:$0xf]
      %v961 = vld [vmem:[%s327 + $0x18] sm:$0xf]
      %v962 = vld [vmem:[%s327 + $0x1c] sm:$0xf]
      %v963 = vld [vmem:[%s327 + $0x20] sm:$0xf]
      %v964 = vld [vmem:[%s327 + $0x24] sm:$0xf]
      %v965 = vld [vmem:[%s327 + $0x28] sm:$0xf]
      %v966 = vld [vmem:[%s327 + $0x2c] sm:$0xf]
      %v967 = vld [vmem:[%s327 + $0x30] sm:$0xf]
      %v968 = vld [vmem:[%s327 + $0x34] sm:$0x7]
      %v982 = vunpack.c.l.b16 %v956
      %v983 = vunpack.c.l.b16 %v957
      %v984 = vunpack.c.l.b16 %v958
      %v985 = vunpack.c.l.b16 %v959
      %v986 = vunpack.c.l.b16 %v960
      %v987 = vunpack.c.l.b16 %v961
      %v988 = vunpack.c.l.b16 %v962
      %v989 = vunpack.c.l.b16 %v963
      %v990 = vunpack.c.l.b16 %v964
      %v991 = vunpack.c.l.b16 %v965
      %v992 = vunpack.c.l.b16 %v966
      %v993 = vunpack.c.l.b16 %v967
      %v994 = vunpack.c.l.b16 %v968
      %v995 = vpack.c.b16 %v983, %v982
      %v996 = vpack.c.b16 %v985, %v984
      %v997 = vpack.c.b16 %v987, %v986
      %v998 = vpack.c.b16 %v989, %v988
      %v999 = vpack.c.b16 %v991, %v990
      %v1000 = vpack.c.b16 %v993, %v992
      %v1001 = vpack.c.b16 %v994, %v994
      %vm1002 = vcmask 1044480
      %v1003 = vrot.slane %v995, 3
      %v1004 = vrot.slane %v996, 3
      %v1005 = vsel %vm1002, %v1003, %v1004
      %v1006 = vrot.slane %v997, 3
      %v1007 = vsel %vm1002, %v1004, %v1006
      %v1008 = vrot.slane %v998, 3
      %v1009 = vsel %vm1002, %v1006, %v1008
      %v1010 = vrot.slane %v999, 3
      %v1011 = vsel %vm1002, %v1008, %v1010
      %v1012 = vrot.slane %v1000, 3
      %v1013 = vsel %vm1002, %v1010, %v1012
      %v1014 = vrot.slane %v1001, 3
      %v1015 = vsel %vm1002, %v1012, %v1014
      %1022 = vst [vmem:[#allocation2 + $0x38] sm:$0xff] %v1005
      %1023 = vst [vmem:[#allocation2 + $0x100] sm:$0xff] %v1007
      %1024 = vst [vmem:[#allocation2 + $0x1c8] sm:$0xff] %v1009
      %1025 = vst [vmem:[#allocation2 + $0x290] sm:$0xff] %v1011
      %1026 = vst [vmem:[#allocation2 + $0x358] sm:$0xff] %v1013
      %1027 = vst [vmem:[#allocation2 + $0x420] sm:$0xff] %v1015
      %v1028 = vld [vmem:[%s327 + $0x4] sm:$0x8]
      %v1029 = vld [vmem:[%s327 + $0x8] sm:$0xf]
      %v1030 = vld [vmem:[%s327 + $0xc] sm:$0xf]
      %v1031 = vld [vmem:[%s327 + $0x10] sm:$0xf]
      %v1032 = vld [vmem:[%s327 + $0x14] sm:$0xf]
      %v1033 = vld [vmem:[%s327 + $0x18] sm:$0xf]
      %v1034 = vld [vmem:[%s327 + $0x1c] sm:$0xf]
      %v1035 = vld [vmem:[%s327 + $0x20] sm:$0xf]
      %v1036 = vld [vmem:[%s327 + $0x24] sm:$0xf]
      %v1037 = vld [vmem:[%s327 + $0x28] sm:$0xf]
      %v1038 = vld [vmem:[%s327 + $0x2c] sm:$0xf]
      %v1039 = vld [vmem:[%s327 + $0x30] sm:$0xf]
      %v1040 = vld [vmem:[%s327 + $0x34] sm:$0xf]
      %v1054 = vunpack.c.l.b16 %v1028
      %v1055 = vunpack.c.l.b16 %v1029
      %v1056 = vunpack.c.l.b16 %v1030
      %v1057 = vunpack.c.l.b16 %v1031
      %v1058 = vunpack.c.l.b16 %v1032
      %v1059 = vunpack.c.l.b16 %v1033
      %v1060 = vunpack.c.l.b16 %v1034
      %v1061 = vunpack.c.l.b16 %v1035
      %v1062 = vunpack.c.l.b16 %v1036
      %v1063 = vunpack.c.l.b16 %v1037
      %v1064 = vunpack.c.l.b16 %v1038
      %v1065 = vunpack.c.l.b16 %v1039
      %v1066 = vunpack.c.l.b16 %v1040
      %v1067 = vpack.c.b16 %v1055, %v1054
      %v1068 = vpack.c.b16 %v1057, %v1056
      %v1069 = vpack.c.b16 %v1059, %v1058
      %v1070 = vpack.c.b16 %v1061, %v1060
      %v1071 = vpack.c.b16 %v1063, %v1062
      %v1072 = vpack.c.b16 %v1065, %v1064
      %v1073 = vpack.c.b16 %v1066, %v1066
      %vm1074 = vsmask.f32 4352
      %v1076 = vshrl.u32 %v1067, 16
      %v1078 = vrot.slane %v1076, 3
      %v1079 = vshll.u32 %v1067, 16
      %v1081 = vrot.slane %v1079, 4
      %v1082 = vor.u32 %v1078, %v1081
      %v1084 = vshrl.u32 %v1068, 16
      %v1086 = vrot.slane %v1084, 3
      %v1087 = vshll.u32 %v1068, 16
      %v1089 = vrot.slane %v1087, 4
      %v1090 = vor.u32 %v1086, %v1089
      %v1091 = vsel %vm1074, %v1082, %v1090
      %v1093 = vshrl.u32 %v1069, 16
      %v1095 = vrot.slane %v1093, 3
      %v1096 = vshll.u32 %v1069, 16
      %v1098 = vrot.slane %v1096, 4
      %v1099 = vor.u32 %v1095, %v1098
      %v1100 = vsel %vm1074, %v1090, %v1099
      %v1102 = vshrl.u32 %v1070, 16
      %v1104 = vrot.slane %v1102, 3
      %v1105 = vshll.u32 %v1070, 16
      %v1107 = vrot.slane %v1105, 4
      %v1108 = vor.u32 %v1104, %v1107
      %v1109 = vsel %vm1074, %v1099, %v1108
      %v1111 = vshrl.u32 %v1071, 16
      %v1113 = vrot.slane %v1111, 3
      %v1114 = vshll.u32 %v1071, 16
      %v1116 = vrot.slane %v1114, 4
      %v1117 = vor.u32 %v1113, %v1116
      %v1118 = vsel %vm1074, %v1108, %v1117
      %v1120 = vshrl.u32 %v1072, 16
      %v1122 = vrot.slane %v1120, 3
      %v1123 = vshll.u32 %v1072, 16
      %v1125 = vrot.slane %v1123, 4
      %v1126 = vor.u32 %v1122, %v1125
      %v1127 = vsel %vm1074, %v1117, %v1126
      %v1129 = vshrl.u32 %v1073, 16
      %v1131 = vrot.slane %v1129, 3
      %v1132 = vshll.u32 %v1073, 16
      %v1134 = vrot.slane %v1132, 4
      %v1135 = vor.u32 %v1131, %v1134
      %v1136 = vsel %vm1074, %v1126, %v1135
      %1143 = vst [vmem:[#allocation2 + $0x40] sm:$0xff] %v1091
      %1144 = vst [vmem:[#allocation2 + $0x108] sm:$0xff] %v1100
      %1145 = vst [vmem:[#allocation2 + $0x1d0] sm:$0xff] %v1109
      %1146 = vst [vmem:[#allocation2 + $0x298] sm:$0xff] %v1118
      %1147 = vst [vmem:[#allocation2 + $0x360] sm:$0xff] %v1127
      %1148 = vst [vmem:[#allocation2 + $0x428] sm:$0xff] %v1136
      %v1149 = vld [vmem:[%s327 + $0x8] sm:$0xf]
      %v1150 = vld [vmem:[%s327 + $0xc] sm:$0xf]
      %v1151 = vld [vmem:[%s327 + $0x10] sm:$0xf]
      %v1152 = vld [vmem:[%s327 + $0x14] sm:$0xf]
      %v1153 = vld [vmem:[%s327 + $0x18] sm:$0xf]
      %v1154 = vld [vmem:[%s327 + $0x1c] sm:$0xf]
      %v1155 = vld [vmem:[%s327 + $0x20] sm:$0xf]
      %v1156 = vld [vmem:[%s327 + $0x24] sm:$0xf]
      %v1157 = vld [vmem:[%s327 + $0x28] sm:$0xf]
      %v1158 = vld [vmem:[%s327 + $0x2c] sm:$0xf]
      %v1159 = vld [vmem:[%s327 + $0x30] sm:$0xf]
      %v1160 = vld [vmem:[%s327 + $0x34] sm:$0xf]
      %v1173 = vunpack.c.l.b16 %v1149
      %v1174 = vunpack.c.l.b16 %v1150
      %v1175 = vunpack.c.l.b16 %v1151
      %v1176 = vunpack.c.l.b16 %v1152
      %v1177 = vunpack.c.l.b16 %v1153
      %v1178 = vunpack.c.l.b16 %v1154
      %v1179 = vunpack.c.l.b16 %v1155
      %v1180 = vunpack.c.l.b16 %v1156
      %v1181 = vunpack.c.l.b16 %v1157
      %v1182 = vunpack.c.l.b16 %v1158
      %v1183 = vunpack.c.l.b16 %v1159
      %v1184 = vunpack.c.l.b16 %v1160
      %v1185 = vpack.c.b16 %v1174, %v1173
      %v1186 = vpack.c.b16 %v1176, %v1175
      %v1187 = vpack.c.b16 %v1178, %v1177
      %v1188 = vpack.c.b16 %v1180, %v1179
      %v1189 = vpack.c.b16 %v1182, %v1181
      %v1190 = vpack.c.b16 %v1184, %v1183
      %1197 = vst [vmem:[#allocation2 + $0x48] sm:$0xff] %v1185
      %1198 = vst [vmem:[#allocation2 + $0x110] sm:$0xff] %v1186
      %1199 = vst [vmem:[#allocation2 + $0x1d8] sm:$0xff] %v1187
      %1200 = vst [vmem:[#allocation2 + $0x2a0] sm:$0xff] %v1188
      %1201 = vst [vmem:[#allocation2 + $0x368] sm:$0xff] %v1189
      %1202 = vst [vmem:[#allocation2 + $0x430] sm:$0xff] %v1190
      %v1203 = vld [vmem:[%s327 + $0xc] sm:$0xf]
      %v1204 = vld [vmem:[%s327 + $0x10] sm:$0xf]
      %v1205 = vld [vmem:[%s327 + $0x14] sm:$0xf]
      %v1206 = vld [vmem:[%s327 + $0x18] sm:$0xf]
      %v1207 = vld [vmem:[%s327 + $0x1c] sm:$0xf]
      %v1208 = vld [vmem:[%s327 + $0x20] sm:$0xf]
      %v1209 = vld [vmem:[%s327 + $0x24] sm:$0xf]
      %v1210 = vld [vmem:[%s327 + $0x28] sm:$0xf]
      %v1211 = vld [vmem:[%s327 + $0x2c] sm:$0xf]
      %v1212 = vld [vmem:[%s327 + $0x30] sm:$0xf]
      %v1213 = vld [vmem:[%s327 + $0x34] sm:$0xf]
      %v1214 = vld [vmem:[%s327 + $0x38] sm:$0xf]
      %v1227 = vunpack.c.l.b16 %v1203
      %v1228 = vunpack.c.l.b16 %v1204
      %v1229 = vunpack.c.l.b16 %v1205
      %v1230 = vunpack.c.l.b16 %v1206
      %v1231 = vunpack.c.l.b16 %v1207
      %v1232 = vunpack.c.l.b16 %v1208
      %v1233 = vunpack.c.l.b16 %v1209
      %v1234 = vunpack.c.l.b16 %v1210
      %v1235 = vunpack.c.l.b16 %v1211
      %v1236 = vunpack.c.l.b16 %v1212
      %v1237 = vunpack.c.l.b16 %v1213
      %v1238 = vunpack.c.l.b16 %v1214
      %v1239 = vpack.c.b16 %v1228, %v1227
      %v1240 = vpack.c.b16 %v1230, %v1229
      %v1241 = vpack.c.b16 %v1232, %v1231
      %v1242 = vpack.c.b16 %v1234, %v1233
      %v1243 = vpack.c.b16 %v1236, %v1235
      %v1244 = vpack.c.b16 %v1238, %v1237
      %1251 = vst [vmem:[#allocation2 + $0x50] sm:$0xff] %v1239
      %1252 = vst [vmem:[#allocation2 + $0x118] sm:$0xff] %v1240
      %1253 = vst [vmem:[#allocation2 + $0x1e0] sm:$0xff] %v1241
      %1254 = vst [vmem:[#allocation2 + $0x2a8] sm:$0xff] %v1242
      %1255 = vst [vmem:[#allocation2 + $0x370] sm:$0xff] %v1243
      %1256 = vst [vmem:[#allocation2 + $0x438] sm:$0xff] %v1244
      %v1257 = vld [vmem:[%s327 + $0xc] sm:$0xf]
      %v1258 = vld [vmem:[%s327 + $0x10] sm:$0xf]
      %v1259 = vld [vmem:[%s327 + $0x14] sm:$0xf]
      %v1260 = vld [vmem:[%s327 + $0x18] sm:$0xf]
      %v1261 = vld [vmem:[%s327 + $0x1c] sm:$0xf]
      %v1262 = vld [vmem:[%s327 + $0x20] sm:$0xf]
      %v1263 = vld [vmem:[%s327 + $0x24] sm:$0xf]
      %v1264 = vld [vmem:[%s327 + $0x28] sm:$0xf]
      %v1265 = vld [vmem:[%s327 + $0x2c] sm:$0xf]
      %v1266 = vld [vmem:[%s327 + $0x30] sm:$0xf]
      %v1267 = vld [vmem:[%s327 + $0x34] sm:$0xf]
      %v1268 = vld [vmem:[%s327 + $0x38] sm:$0xf]
      %v1269 = vld [vmem:[%s327 + $0x3c] sm:$0x1]
      %v1283 = vunpack.c.l.b16 %v1257
      %v1284 = vunpack.c.l.b16 %v1258
      %v1285 = vunpack.c.l.b16 %v1259
      %v1286 = vunpack.c.l.b16 %v1260
      %v1287 = vunpack.c.l.b16 %v1261
      %v1288 = vunpack.c.l.b16 %v1262
      %v1289 = vunpack.c.l.b16 %v1263
      %v1290 = vunpack.c.l.b16 %v1264
      %v1291 = vunpack.c.l.b16 %v1265
      %v1292 = vunpack.c.l.b16 %v1266
      %v1293 = vunpack.c.l.b16 %v1267
      %v1294 = vunpack.c.l.b16 %v1268
      %v1295 = vunpack.c.l.b16 %v1269
      %v1296 = vpack.c.b16 %v1284, %v1283
      %v1297 = vpack.c.b16 %v1286, %v1285
      %v1298 = vpack.c.b16 %v1288, %v1287
      %v1299 = vpack.c.b16 %v1290, %v1289
      %v1300 = vpack.c.b16 %v1292, %v1291
      %v1301 = vpack.c.b16 %v1294, %v1293
      %v1302 = vpack.c.b16 %v1295, %v1295
      %v1304 = vshrl.u32 %v1296, 16
      %v1306 = vshll.u32 %v1296, 16
      %v1308 = vrot.slane %v1306, 1
      %v1309 = vor.u32 %v1304, %v1308
      %v1311 = vshll.u32 %v1297, 16
      %v1313 = vrot.slane %v1311, 1
      %v1314 = vsel %vm434, %v1309, %v1313
      %v1315 = vshrl.u32 %v1297, 16
      %v1317 = vor.u32 %v1315, %v1313
      %v1319 = vshll.u32 %v1298, 16
      %v1321 = vrot.slane %v1319, 1
      %v1322 = vsel %vm434, %v1317, %v1321
      %v1323 = vshrl.u32 %v1298, 16
      %v1325 = vor.u32 %v1323, %v1321
      %v1327 = vshll.u32 %v1299, 16
      %v1329 = vrot.slane %v1327, 1
      %v1330 = vsel %vm434, %v1325, %v1329
      %v1331 = vshrl.u32 %v1299, 16
      %v1333 = vor.u32 %v1331, %v1329
      %v1335 = vshll.u32 %v1300, 16
      %v1337 = vrot.slane %v1335, 1
      %v1338 = vsel %vm434, %v1333, %v1337
      %v1339 = vshrl.u32 %v1300, 16
      %v1341 = vor.u32 %v1339, %v1337
      %v1343 = vshll.u32 %v1301, 16
      %v1345 = vrot.slane %v1343, 1
      %v1346 = vsel %vm434, %v1341, %v1345
      %v1347 = vshrl.u32 %v1301, 16
      %v1349 = vor.u32 %v1347, %v1345
      %v1351 = vshll.u32 %v1302, 16
      %v1353 = vrot.slane %v1351, 1
      %v1354 = vsel %vm434, %v1349, %v1353
      %1361 = vst [vmem:[#allocation2 + $0x58] sm:$0xff] %v1314
      %1362 = vst [vmem:[#allocation2 + $0x120] sm:$0xff] %v1322
      %1363 = vst [vmem:[#allocation2 + $0x1e8] sm:$0xff] %v1330
      %1364 = vst [vmem:[#allocation2 + $0x2b0] sm:$0xff] %v1338
      %1365 = vst [vmem:[#allocation2 + $0x378] sm:$0xff] %v1346
      %1366 = vst [vmem:[#allocation2 + $0x440] sm:$0xff] %v1354
      %v1367 = vld [vmem:[%s327 + $0xc] sm:$0xe]
      %v1368 = vld [vmem:[%s327 + $0x10] sm:$0xf]
      %v1369 = vld [vmem:[%s327 + $0x14] sm:$0xf]
      %v1370 = vld [vmem:[%s327 + $0x18] sm:$0xf]
      %v1371 = vld [vmem:[%s327 + $0x1c] sm:$0xf]
      %v1372 = vld [vmem:[%s327 + $0x20] sm:$0xf]
      %v1373 = vld [vmem:[%s327 + $0x24] sm:$0xf]
      %v1374 = vld [vmem:[%s327 + $0x28] sm:$0xf]
      %v1375 = vld [vmem:[%s327 + $0x2c] sm:$0xf]
      %v1376 = vld [vmem:[%s327 + $0x30] sm:$0xf]
      %v1377 = vld [vmem:[%s327 + $0x34] sm:$0xf]
      %v1378 = vld [vmem:[%s327 + $0x38] sm:$0xf]
      %v1379 = vld [vmem:[%s327 + $0x3c] sm:$0x1]
      %v1393 = vunpack.c.l.b16 %v1367
      %v1394 = vunpack.c.l.b16 %v1368
      %v1395 = vunpack.c.l.b16 %v1369
      %v1396 = vunpack.c.l.b16 %v1370
      %v1397 = vunpack.c.l.b16 %v1371
      %v1398 = vunpack.c.l.b16 %v1372
      %v1399 = vunpack.c.l.b16 %v1373
      %v1400 = vunpack.c.l.b16 %v1374
      %v1401 = vunpack.c.l.b16 %v1375
      %v1402 = vunpack.c.l.b16 %v1376
      %v1403 = vunpack.c.l.b16 %v1377
      %v1404 = vunpack.c.l.b16 %v1378
      %v1405 = vunpack.c.l.b16 %v1379
      %v1406 = vpack.c.b16 %v1394, %v1393
      %v1407 = vpack.c.b16 %v1396, %v1395
      %v1408 = vpack.c.b16 %v1398, %v1397
      %v1409 = vpack.c.b16 %v1400, %v1399
      %v1410 = vpack.c.b16 %v1402, %v1401
      %v1411 = vpack.c.b16 %v1404, %v1403
      %v1412 = vpack.c.b16 %v1405, %v1405
      %v1413 = vrot.slane %v1406, 1
      %v1414 = vrot.slane %v1407, 1
      %v1415 = vsel %vm545, %v1413, %v1414
      %v1416 = vrot.slane %v1408, 1
      %v1417 = vsel %vm545, %v1414, %v1416
      %v1418 = vrot.slane %v1409, 1
      %v1419 = vsel %vm545, %v1416, %v1418
      %v1420 = vrot.slane %v1410, 1
      %v1421 = vsel %vm545, %v1418, %v1420
      %v1422 = vrot.slane %v1411, 1
      %v1423 = vsel %vm545, %v1420, %v1422
      %v1424 = vrot.slane %v1412, 1
      %v1425 = vsel %vm545, %v1422, %v1424
      %1432 = vst [vmem:[#allocation2 + $0x60] sm:$0xff] %v1415
      %1433 = vst [vmem:[#allocation2 + $0x128] sm:$0xff] %v1417
      %1434 = vst [vmem:[#allocation2 + $0x1f0] sm:$0xff] %v1419
      %1435 = vst [vmem:[#allocation2 + $0x2b8] sm:$0xff] %v1421
      %1436 = vst [vmem:[#allocation2 + $0x380] sm:$0xff] %v1423
      %1437 = vst [vmem:[#allocation2 + $0x448] sm:$0xff] %v1425
      %v1438 = vld [vmem:[%s327 + $0xc] sm:$0xe]
      %v1439 = vld [vmem:[%s327 + $0x10] sm:$0xf]
      %v1440 = vld [vmem:[%s327 + $0x14] sm:$0xf]
      %v1441 = vld [vmem:[%s327 + $0x18] sm:$0xf]
      %v1442 = vld [vmem:[%s327 + $0x1c] sm:$0xf]
      %v1443 = vld [vmem:[%s327 + $0x20] sm:$0xf]
      %v1444 = vld [vmem:[%s327 + $0x24] sm:$0xf]
      %v1445 = vld [vmem:[%s327 + $0x28] sm:$0xf]
      %v1446 = vld [vmem:[%s327 + $0x2c] sm:$0xf]
      %v1447 = vld [vmem:[%s327 + $0x30] sm:$0xf]
      %v1448 = vld [vmem:[%s327 + $0x34] sm:$0xf]
      %v1449 = vld [vmem:[%s327 + $0x38] sm:$0xf]
      %v1450 = vld [vmem:[%s327 + $0x3c] sm:$0x3]
      %v1464 = vunpack.c.l.b16 %v1438
      %v1465 = vunpack.c.l.b16 %v1439
      %v1466 = vunpack.c.l.b16 %v1440
      %v1467 = vunpack.c.l.b16 %v1441
      %v1468 = vunpack.c.l.b16 %v1442
      %v1469 = vunpack.c.l.b16 %v1443
      %v1470 = vunpack.c.l.b16 %v1444
      %v1471 = vunpack.c.l.b16 %v1445
      %v1472 = vunpack.c.l.b16 %v1446
      %v1473 = vunpack.c.l.b16 %v1447
      %v1474 = vunpack.c.l.b16 %v1448
      %v1475 = vunpack.c.l.b16 %v1449
      %v1476 = vunpack.c.l.b16 %v1450
      %v1477 = vpack.c.b16 %v1465, %v1464
      %v1478 = vpack.c.b16 %v1467, %v1466
      %v1479 = vpack.c.b16 %v1469, %v1468
      %v1480 = vpack.c.b16 %v1471, %v1470
      %v1481 = vpack.c.b16 %v1473, %v1472
      %v1482 = vpack.c.b16 %v1475, %v1474
      %v1483 = vpack.c.b16 %v1476, %v1476
      %v1485 = vshrl.u32 %v1477, 16
      %v1487 = vrot.slane %v1485, 1
      %v1488 = vshll.u32 %v1477, 16
      %v1490 = vrot.slane %v1488, 2
      %v1491 = vor.u32 %v1487, %v1490
      %v1493 = vshrl.u32 %v1478, 16
      %v1495 = vrot.slane %v1493, 1
      %v1496 = vshll.u32 %v1478, 16
      %v1498 = vrot.slane %v1496, 2
      %v1499 = vor.u32 %v1495, %v1498
      %v1500 = vsel %vm617, %v1491, %v1499
      %v1502 = vshrl.u32 %v1479, 16
      %v1504 = vrot.slane %v1502, 1
      %v1505 = vshll.u32 %v1479, 16
      %v1507 = vrot.slane %v1505, 2
      %v1508 = vor.u32 %v1504, %v1507
      %v1509 = vsel %vm617, %v1499, %v1508
      %v1511 = vshrl.u32 %v1480, 16
      %v1513 = vrot.slane %v1511, 1
      %v1514 = vshll.u32 %v1480, 16
      %v1516 = vrot.slane %v1514, 2
      %v1517 = vor.u32 %v1513, %v1516
      %v1518 = vsel %vm617, %v1508, %v1517
      %v1520 = vshrl.u32 %v1481, 16
      %v1522 = vrot.slane %v1520, 1
      %v1523 = vshll.u32 %v1481, 16
      %v1525 = vrot.slane %v1523, 2
      %v1526 = vor.u32 %v1522, %v1525
      %v1527 = vsel %vm617, %v1517, %v1526
      %v1529 = vshrl.u32 %v1482, 16
      %v1531 = vrot.slane %v1529, 1
      %v1532 = vshll.u32 %v1482, 16
      %v1534 = vrot.slane %v1532, 2
      %v1535 = vor.u32 %v1531, %v1534
      %v1536 = vsel %vm617, %v1526, %v1535
      %v1538 = vshrl.u32 %v1483, 16
      %v1540 = vrot.slane %v1538, 1
      %v1541 = vshll.u32 %v1483, 16
      %v1543 = vrot.slane %v1541, 2
      %v1544 = vor.u32 %v1540, %v1543
      %v1545 = vsel %vm617, %v1535, %v1544
      %1552 = vst [vmem:[#allocation2 + $0x68] sm:$0xff] %v1500
      %1553 = vst [vmem:[#allocation2 + $0x130] sm:$0xff] %v1509
      %1554 = vst [vmem:[#allocation2 + $0x1f8] sm:$0xff] %v1518
      %1555 = vst [vmem:[#allocation2 + $0x2c0] sm:$0xff] %v1527
      %1556 = vst [vmem:[#allocation2 + $0x388] sm:$0xff] %v1536
      %1557 = vst [vmem:[#allocation2 + $0x450] sm:$0xff] %v1545
      %v1558 = vld [vmem:[%s327 + $0xc] sm:$0xc]
      %v1559 = vld [vmem:[%s327 + $0x10] sm:$0xf]
      %v1560 = vld [vmem:[%s327 + $0x14] sm:$0xf]
      %v1561 = vld [vmem:[%s327 + $0x18] sm:$0xf]
      %v1562 = vld [vmem:[%s327 + $0x1c] sm:$0xf]
      %v1563 = vld [vmem:[%s327 + $0x20] sm:$0xf]
      %v1564 = vld [vmem:[%s327 + $0x24] sm:$0xf]
      %v1565 = vld [vmem:[%s327 + $0x28] sm:$0xf]
      %v1566 = vld [vmem:[%s327 + $0x2c] sm:$0xf]
      %v1567 = vld [vmem:[%s327 + $0x30] sm:$0xf]
      %v1568 = vld [vmem:[%s327 + $0x34] sm:$0xf]
      %v1569 = vld [vmem:[%s327 + $0x38] sm:$0xf]
      %v1570 = vld [vmem:[%s327 + $0x3c] sm:$0x3]
      %v1584 = vunpack.c.l.b16 %v1558
      %v1585 = vunpack.c.l.b16 %v1559
      %v1586 = vunpack.c.l.b16 %v1560
      %v1587 = vunpack.c.l.b16 %v1561
      %v1588 = vunpack.c.l.b16 %v1562
      %v1589 = vunpack.c.l.b16 %v1563
      %v1590 = vunpack.c.l.b16 %v1564
      %v1591 = vunpack.c.l.b16 %v1565
      %v1592 = vunpack.c.l.b16 %v1566
      %v1593 = vunpack.c.l.b16 %v1567
      %v1594 = vunpack.c.l.b16 %v1568
      %v1595 = vunpack.c.l.b16 %v1569
      %v1596 = vunpack.c.l.b16 %v1570
      %v1597 = vpack.c.b16 %v1585, %v1584
      %v1598 = vpack.c.b16 %v1587, %v1586
      %v1599 = vpack.c.b16 %v1589, %v1588
      %v1600 = vpack.c.b16 %v1591, %v1590
      %v1601 = vpack.c.b16 %v1593, %v1592
      %v1602 = vpack.c.b16 %v1595, %v1594
      %v1603 = vpack.c.b16 %v1596, %v1596
      %v1604 = vrot.slane %v1597, 2
      %v1605 = vrot.slane %v1598, 2
      %v1606 = vsel %vm738, %v1604, %v1605
      %v1607 = vrot.slane %v1599, 2
      %v1608 = vsel %vm738, %v1605, %v1607
      %v1609 = vrot.slane %v1600, 2
      %v1610 = vsel %vm738, %v1607, %v1609
      %v1611 = vrot.slane %v1601, 2
      %v1612 = vsel %vm738, %v1609, %v1611
      %v1613 = vrot.slane %v1602, 2
      %v1614 = vsel %vm738, %v1611, %v1613
      %v1615 = vrot.slane %v1603, 2
      %v1616 = vsel %vm738, %v1613, %v1615
      %1623 = vst [vmem:[#allocation2 + $0x70] sm:$0xff] %v1606
      %1624 = vst [vmem:[#allocation2 + $0x138] sm:$0xff] %v1608
      %1625 = vst [vmem:[#allocation2 + $0x200] sm:$0xff] %v1610
      %1626 = vst [vmem:[#allocation2 + $0x2c8] sm:$0xff] %v1612
      %1627 = vst [vmem:[#allocation2 + $0x390] sm:$0xff] %v1614
      %1628 = vst [vmem:[#allocation2 + $0x458] sm:$0xff] %v1616
      %v1629 = vld [vmem:[%s327 + $0x10] sm:$0xc]
      %v1630 = vld [vmem:[%s327 + $0x14] sm:$0xf]
      %v1631 = vld [vmem:[%s327 + $0x18] sm:$0xf]
      %v1632 = vld [vmem:[%s327 + $0x1c] sm:$0xf]
      %v1633 = vld [vmem:[%s327 + $0x20] sm:$0xf]
      %v1634 = vld [vmem:[%s327 + $0x24] sm:$0xf]
      %v1635 = vld [vmem:[%s327 + $0x28] sm:$0xf]
      %v1636 = vld [vmem:[%s327 + $0x2c] sm:$0xf]
      %v1637 = vld [vmem:[%s327 + $0x30] sm:$0xf]
      %v1638 = vld [vmem:[%s327 + $0x34] sm:$0xf]
      %v1639 = vld [vmem:[%s327 + $0x38] sm:$0xf]
      %v1640 = vld [vmem:[%s327 + $0x3c] sm:$0xf]
      %v1641 = vld [vmem:[%s327 + $0x40] sm:$0x3]
      %v1655 = vunpack.c.l.b16 %v1629
      %v1656 = vunpack.c.l.b16 %v1630
      %v1657 = vunpack.c.l.b16 %v1631
      %v1658 = vunpack.c.l.b16 %v1632
      %v1659 = vunpack.c.l.b16 %v1633
      %v1660 = vunpack.c.l.b16 %v1634
      %v1661 = vunpack.c.l.b16 %v1635
      %v1662 = vunpack.c.l.b16 %v1636
      %v1663 = vunpack.c.l.b16 %v1637
      %v1664 = vunpack.c.l.b16 %v1638
      %v1665 = vunpack.c.l.b16 %v1639
      %v1666 = vunpack.c.l.b16 %v1640
      %v1667 = vunpack.c.l.b16 %v1641
      %v1668 = vpack.c.b16 %v1656, %v1655
      %v1669 = vpack.c.b16 %v1658, %v1657
      %v1670 = vpack.c.b16 %v1660, %v1659
      %v1671 = vpack.c.b16 %v1662, %v1661
      %v1672 = vpack.c.b16 %v1664, %v1663
      %v1673 = vpack.c.b16 %v1666, %v1665
      %v1674 = vpack.c.b16 %v1667, %v1667
      %v1675 = vrot.slane %v1668, 2
      %v1676 = vrot.slane %v1669, 2
      %v1677 = vsel %vm738, %v1675, %v1676
      %v1678 = vrot.slane %v1670, 2
      %v1679 = vsel %vm738, %v1676, %v1678
      %v1680 = vrot.slane %v1671, 2
      %v1681 = vsel %vm738, %v1678, %v1680
      %v1682 = vrot.slane %v1672, 2
      %v1683 = vsel %vm738, %v1680, %v1682
      %v1684 = vrot.slane %v1673, 2
      %v1685 = vsel %vm738, %v1682, %v1684
      %v1686 = vrot.slane %v1674, 2
      %v1687 = vsel %vm738, %v1684, %v1686
      %1694 = vst [vmem:[#allocation2 + $0x78] sm:$0xff] %v1677
      %1695 = vst [vmem:[#allocation2 + $0x140] sm:$0xff] %v1679
      %1696 = vst [vmem:[#allocation2 + $0x208] sm:$0xff] %v1681
      %1697 = vst [vmem:[#allocation2 + $0x2d0] sm:$0xff] %v1683
      %1698 = vst [vmem:[#allocation2 + $0x398] sm:$0xff] %v1685
      %1699 = vst [vmem:[#allocation2 + $0x460] sm:$0xff] %v1687
      %v1700 = vld [vmem:[%s327 + $0x10] sm:$0xc]
      %v1701 = vld [vmem:[%s327 + $0x14] sm:$0xf]
      %v1702 = vld [vmem:[%s327 + $0x18] sm:$0xf]
      %v1703 = vld [vmem:[%s327 + $0x1c] sm:$0xf]
      %v1704 = vld [vmem:[%s327 + $0x20] sm:$0xf]
      %v1705 = vld [vmem:[%s327 + $0x24] sm:$0xf]
      %v1706 = vld [vmem:[%s327 + $0x28] sm:$0xf]
      %v1707 = vld [vmem:[%s327 + $0x2c] sm:$0xf]
      %v1708 = vld [vmem:[%s327 + $0x30] sm:$0xf]
      %v1709 = vld [vmem:[%s327 + $0x34] sm:$0xf]
      %v1710 = vld [vmem:[%s327 + $0x38] sm:$0xf]
      %v1711 = vld [vmem:[%s327 + $0x3c] sm:$0xf]
      %v1712 = vld [vmem:[%s327 + $0x40] sm:$0x7]
      %v1726 = vunpack.c.l.b16 %v1700
      %v1727 = vunpack.c.l.b16 %v1701
      %v1728 = vunpack.c.l.b16 %v1702
      %v1729 = vunpack.c.l.b16 %v1703
      %v1730 = vunpack.c.l.b16 %v1704
      %v1731 = vunpack.c.l.b16 %v1705
      %v1732 = vunpack.c.l.b16 %v1706
      %v1733 = vunpack.c.l.b16 %v1707
      %v1734 = vunpack.c.l.b16 %v1708
      %v1735 = vunpack.c.l.b16 %v1709
      %v1736 = vunpack.c.l.b16 %v1710
      %v1737 = vunpack.c.l.b16 %v1711
      %v1738 = vunpack.c.l.b16 %v1712
      %v1739 = vpack.c.b16 %v1727, %v1726
      %v1740 = vpack.c.b16 %v1729, %v1728
      %v1741 = vpack.c.b16 %v1731, %v1730
      %v1742 = vpack.c.b16 %v1733, %v1732
      %v1743 = vpack.c.b16 %v1735, %v1734
      %v1744 = vpack.c.b16 %v1737, %v1736
      %v1745 = vpack.c.b16 %v1738, %v1738
      %v1747 = vshrl.u32 %v1739, 16
      %v1749 = vrot.slane %v1747, 2
      %v1750 = vshll.u32 %v1739, 16
      %v1752 = vrot.slane %v1750, 3
      %v1753 = vor.u32 %v1749, %v1752
      %v1755 = vshrl.u32 %v1740, 16
      %v1757 = vrot.slane %v1755, 2
      %v1758 = vshll.u32 %v1740, 16
      %v1760 = vrot.slane %v1758, 3
      %v1761 = vor.u32 %v1757, %v1760
      %v1762 = vsel %vm881, %v1753, %v1761
      %v1764 = vshrl.u32 %v1741, 16
      %v1766 = vrot.slane %v1764, 2
      %v1767 = vshll.u32 %v1741, 16
      %v1769 = vrot.slane %v1767, 3
      %v1770 = vor.u32 %v1766, %v1769
      %v1771 = vsel %vm881, %v1761, %v1770
      %v1773 = vshrl.u32 %v1742, 16
      %v1775 = vrot.slane %v1773, 2
      %v1776 = vshll.u32 %v1742, 16
      %v1778 = vrot.slane %v1776, 3
      %v1779 = vor.u32 %v1775, %v1778
      %v1780 = vsel %vm881, %v1770, %v1779
      %v1782 = vshrl.u32 %v1743, 16
      %v1784 = vrot.slane %v1782, 2
      %v1785 = vshll.u32 %v1743, 16
      %v1787 = vrot.slane %v1785, 3
      %v1788 = vor.u32 %v1784, %v1787
      %v1789 = vsel %vm881, %v1779, %v1788
      %v1791 = vshrl.u32 %v1744, 16
      %v1793 = vrot.slane %v1791, 2
      %v1794 = vshll.u32 %v1744, 16
      %v1796 = vrot.slane %v1794, 3
      %v1797 = vor.u32 %v1793, %v1796
      %v1798 = vsel %vm881, %v1788, %v1797
      %v1800 = vshrl.u32 %v1745, 16
      %v1802 = vrot.slane %v1800, 2
      %v1803 = vshll.u32 %v1745, 16
      %v1805 = vrot.slane %v1803, 3
      %v1806 = vor.u32 %v1802, %v1805
      %v1807 = vsel %vm881, %v1797, %v1806
      %1814 = vst [vmem:[#allocation2 + $0x80] sm:$0xff] %v1762
      %1815 = vst [vmem:[#allocation2 + $0x148] sm:$0xff] %v1771
      %1816 = vst [vmem:[#allocation2 + $0x210] sm:$0xff] %v1780
      %1817 = vst [vmem:[#allocation2 + $0x2d8] sm:$0xff] %v1789
      %1818 = vst [vmem:[#allocation2 + $0x3a0] sm:$0xff] %v1798
      %1819 = vst [vmem:[#allocation2 + $0x468] sm:$0xff] %v1807
      %v1820 = vld [vmem:[%s327 + $0x10] sm:$0x8]
      %v1821 = vld [vmem:[%s327 + $0x14] sm:$0xf]
      %v1822 = vld [vmem:[%s327 + $0x18] sm:$0xf]
      %v1823 = vld [vmem:[%s327 + $0x1c] sm:$0xf]
      %v1824 = vld [vmem:[%s327 + $0x20] sm:$0xf]
      %v1825 = vld [vmem:[%s327 + $0x24] sm:$0xf]
      %v1826 = vld [vmem:[%s327 + $0x28] sm:$0xf]
      %v1827 = vld [vmem:[%s327 + $0x2c] sm:$0xf]
      %v1828 = vld [vmem:[%s327 + $0x30] sm:$0xf]
      %v1829 = vld [vmem:[%s327 + $0x34] sm:$0xf]
      %v1830 = vld [vmem:[%s327 + $0x38] sm:$0xf]
      %v1831 = vld [vmem:[%s327 + $0x3c] sm:$0xf]
      %v1832 = vld [vmem:[%s327 + $0x40] sm:$0x7]
      %v1846 = vunpack.c.l.b16 %v1820
      %v1847 = vunpack.c.l.b16 %v1821
      %v1848 = vunpack.c.l.b16 %v1822
      %v1849 = vunpack.c.l.b16 %v1823
      %v1850 = vunpack.c.l.b16 %v1824
      %v1851 = vunpack.c.l.b16 %v1825
      %v1852 = vunpack.c.l.b16 %v1826
      %v1853 = vunpack.c.l.b16 %v1827
      %v1854 = vunpack.c.l.b16 %v1828
      %v1855 = vunpack.c.l.b16 %v1829
      %v1856 = vunpack.c.l.b16 %v1830
      %v1857 = vunpack.c.l.b16 %v1831
      %v1858 = vunpack.c.l.b16 %v1832
      %v1859 = vpack.c.b16 %v1847, %v1846
      %v1860 = vpack.c.b16 %v1849, %v1848
      %v1861 = vpack.c.b16 %v1851, %v1850
      %v1862 = vpack.c.b16 %v1853, %v1852
      %v1863 = vpack.c.b16 %v1855, %v1854
      %v1864 = vpack.c.b16 %v1857, %v1856
      %v1865 = vpack.c.b16 %v1858, %v1858
      %v1866 = vrot.slane %v1859, 3
      %v1867 = vrot.slane %v1860, 3
      %v1868 = vsel %vm1002, %v1866, %v1867
      %v1869 = vrot.slane %v1861, 3
      %v1870 = vsel %vm1002, %v1867, %v1869
      %v1871 = vrot.slane %v1862, 3
      %v1872 = vsel %vm1002, %v1869, %v1871
      %v1873 = vrot.slane %v1863, 3
      %v1874 = vsel %vm1002, %v1871, %v1873
      %v1875 = vrot.slane %v1864, 3
      %v1876 = vsel %vm1002, %v1873, %v1875
      %v1877 = vrot.slane %v1865, 3
      %v1878 = vsel %vm1002, %v1875, %v1877
      %1885 = vst [vmem:[#allocation2 + $0x88] sm:$0xff] %v1868
      %1886 = vst [vmem:[#allocation2 + $0x150] sm:$0xff] %v1870
      %1887 = vst [vmem:[#allocation2 + $0x218] sm:$0xff] %v1872
      %1888 = vst [vmem:[#allocation2 + $0x2e0] sm:$0xff] %v1874
      %1889 = vst [vmem:[#allocation2 + $0x3a8] sm:$0xff] %v1876
      %1890 = vst [vmem:[#allocation2 + $0x470] sm:$0xff] %v1878
      %v1891 = vld [vmem:[%s327 + $0x10] sm:$0x8]
      %v1892 = vld [vmem:[%s327 + $0x14] sm:$0xf]
      %v1893 = vld [vmem:[%s327 + $0x18] sm:$0xf]
      %v1894 = vld [vmem:[%s327 + $0x1c] sm:$0xf]
      %v1895 = vld [vmem:[%s327 + $0x20] sm:$0xf]
      %v1896 = vld [vmem:[%s327 + $0x24] sm:$0xf]
      %v1897 = vld [vmem:[%s327 + $0x28] sm:$0xf]
      %v1898 = vld [vmem:[%s327 + $0x2c] sm:$0xf]
      %v1899 = vld [vmem:[%s327 + $0x30] sm:$0xf]
      %v1900 = vld [vmem:[%s327 + $0x34] sm:$0xf]
      %v1901 = vld [vmem:[%s327 + $0x38] sm:$0xf]
      %v1902 = vld [vmem:[%s327 + $0x3c] sm:$0xf]
      %v1903 = vld [vmem:[%s327 + $0x40] sm:$0xf]
      %v1917 = vunpack.c.l.b16 %v1891
      %v1918 = vunpack.c.l.b16 %v1892
      %v1919 = vunpack.c.l.b16 %v1893
      %v1920 = vunpack.c.l.b16 %v1894
      %v1921 = vunpack.c.l.b16 %v1895
      %v1922 = vunpack.c.l.b16 %v1896
      %v1923 = vunpack.c.l.b16 %v1897
      %v1924 = vunpack.c.l.b16 %v1898
      %v1925 = vunpack.c.l.b16 %v1899
      %v1926 = vunpack.c.l.b16 %v1900
      %v1927 = vunpack.c.l.b16 %v1901
      %v1928 = vunpack.c.l.b16 %v1902
      %v1929 = vunpack.c.l.b16 %v1903
      %v1930 = vpack.c.b16 %v1918, %v1917
      %v1931 = vpack.c.b16 %v1920, %v1919
      %v1932 = vpack.c.b16 %v1922, %v1921
      %v1933 = vpack.c.b16 %v1924, %v1923
      %v1934 = vpack.c.b16 %v1926, %v1925
      %v1935 = vpack.c.b16 %v1928, %v1927
      %v1936 = vpack.c.b16 %v1929, %v1929
      %v1938 = vshrl.u32 %v1930, 16
      %v1940 = vrot.slane %v1938, 3
      %v1941 = vshll.u32 %v1930, 16
      %v1943 = vrot.slane %v1941, 4
      %v1944 = vor.u32 %v1940, %v1943
      %v1946 = vshrl.u32 %v1931, 16
      %v1948 = vrot.slane %v1946, 3
      %v1949 = vshll.u32 %v1931, 16
      %v1951 = vrot.slane %v1949, 4
      %v1952 = vor.u32 %v1948, %v1951
      %v1953 = vsel %vm1074, %v1944, %v1952
      %v1955 = vshrl.u32 %v1932, 16
      %v1957 = vrot.slane %v1955, 3
      %v1958 = vshll.u32 %v1932, 16
      %v1960 = vrot.slane %v1958, 4
      %v1961 = vor.u32 %v1957, %v1960
      %v1962 = vsel %vm1074, %v1952, %v1961
      %v1964 = vshrl.u32 %v1933, 16
      %v1966 = vrot.slane %v1964, 3
      %v1967 = vshll.u32 %v1933, 16
      %v1969 = vrot.slane %v1967, 4
      %v1970 = vor.u32 %v1966, %v1969
      %v1971 = vsel %vm1074, %v1961, %v1970
      %v1973 = vshrl.u32 %v1934, 16
      %v1975 = vrot.slane %v1973, 3
      %v1976 = vshll.u32 %v1934, 16
      %v1978 = vrot.slane %v1976, 4
      %v1979 = vor.u32 %v1975, %v1978
      %v1980 = vsel %vm1074, %v1970, %v1979
      %v1982 = vshrl.u32 %v1935, 16
      %v1984 = vrot.slane %v1982, 3
      %v1985 = vshll.u32 %v1935, 16
      %v1987 = vrot.slane %v1985, 4
      %v1988 = vor.u32 %v1984, %v1987
      %v1989 = vsel %vm1074, %v1979, %v1988
      %v1991 = vshrl.u32 %v1936, 16
      %v1993 = vrot.slane %v1991, 3
      %v1994 = vshll.u32 %v1936, 16
      %v1996 = vrot.slane %v1994, 4
      %v1997 = vor.u32 %v1993, %v1996
      %v1998 = vsel %vm1074, %v1988, %v1997
      %2005 = vst [vmem:[#allocation2 + $0x90] sm:$0xff] %v1953
      %2006 = vst [vmem:[#allocation2 + $0x158] sm:$0xff] %v1962
      %2007 = vst [vmem:[#allocation2 + $0x220] sm:$0xff] %v1971
      %2008 = vst [vmem:[#allocation2 + $0x2e8] sm:$0xff] %v1980
      %2009 = vst [vmem:[#allocation2 + $0x3b0] sm:$0xff] %v1989
      %2010 = vst [vmem:[#allocation2 + $0x478] sm:$0xff] %v1998
      %v2011 = vld [vmem:[%s327 + $0x14] sm:$0xf]
      %v2012 = vld [vmem:[%s327 + $0x18] sm:$0xf]
      %v2013 = vld [vmem:[%s327 + $0x1c] sm:$0xf]
      %v2014 = vld [vmem:[%s327 + $0x20] sm:$0xf]
      %v2015 = vld [vmem:[%s327 + $0x24] sm:$0xf]
      %v2016 = vld [vmem:[%s327 + $0x28] sm:$0xf]
      %v2017 = vld [vmem:[%s327 + $0x2c] sm:$0xf]
      %v2018 = vld [vmem:[%s327 + $0x30] sm:$0xf]
      %v2019 = vld [vmem:[%s327 + $0x34] sm:$0xf]
      %v2020 = vld [vmem:[%s327 + $0x38] sm:$0xf]
      %v2021 = vld [vmem:[%s327 + $0x3c] sm:$0xf]
      %v2022 = vld [vmem:[%s327 + $0x40] sm:$0xf]
      %v2035 = vunpack.c.l.b16 %v2011
      %v2036 = vunpack.c.l.b16 %v2012
      %v2037 = vunpack.c.l.b16 %v2013
      %v2038 = vunpack.c.l.b16 %v2014
      %v2039 = vunpack.c.l.b16 %v2015
      %v2040 = vunpack.c.l.b16 %v2016
      %v2041 = vunpack.c.l.b16 %v2017
      %v2042 = vunpack.c.l.b16 %v2018
      %v2043 = vunpack.c.l.b16 %v2019
      %v2044 = vunpack.c.l.b16 %v2020
      %v2045 = vunpack.c.l.b16 %v2021
      %v2046 = vunpack.c.l.b16 %v2022
      %v2047 = vpack.c.b16 %v2036, %v2035
      %v2048 = vpack.c.b16 %v2038, %v2037
      %v2049 = vpack.c.b16 %v2040, %v2039
      %v2050 = vpack.c.b16 %v2042, %v2041
      %v2051 = vpack.c.b16 %v2044, %v2043
      %v2052 = vpack.c.b16 %v2046, %v2045
      %2059 = vst [vmem:[#allocation2 + $0x98] sm:$0xff] %v2047
      %2060 = vst [vmem:[#allocation2 + $0x160] sm:$0xff] %v2048
      %2061 = vst [vmem:[#allocation2 + $0x228] sm:$0xff] %v2049
      %2062 = vst [vmem:[#allocation2 + $0x2f0] sm:$0xff] %v2050
      %2063 = vst [vmem:[#allocation2 + $0x3b8] sm:$0xff] %v2051
      %2064 = vst [vmem:[#allocation2 + $0x480] sm:$0xff] %v2052
      %v2065 = vld [vmem:[%s327 + $0x18] sm:$0xf]
      %v2066 = vld [vmem:[%s327 + $0x1c] sm:$0xf]
      %v2067 = vld [vmem:[%s327 + $0x20] sm:$0xf]
      %v2068 = vld [vmem:[%s327 + $0x24] sm:$0xf]
      %v2069 = vld [vmem:[%s327 + $0x28] sm:$0xf]
      %v2070 = vld [vmem:[%s327 + $0x2c] sm:$0xf]
      %v2071 = vld [vmem:[%s327 + $0x30] sm:$0xf]
      %v2072 = vld [vmem:[%s327 + $0x34] sm:$0xf]
      %v2073 = vld [vmem:[%s327 + $0x38] sm:$0xf]
      %v2074 = vld [vmem:[%s327 + $0x3c] sm:$0xf]
      %v2075 = vld [vmem:[%s327 + $0x40] sm:$0xf]
      %v2076 = vld [vmem:[%s327 + $0x44] sm:$0xf]
      %v2089 = vunpack.c.l.b16 %v2065
      %v2090 = vunpack.c.l.b16 %v2066
      %v2091 = vunpack.c.l.b16 %v2067
      %v2092 = vunpack.c.l.b16 %v2068
      %v2093 = vunpack.c.l.b16 %v2069
      %v2094 = vunpack.c.l.b16 %v2070
      %v2095 = vunpack.c.l.b16 %v2071
      %v2096 = vunpack.c.l.b16 %v2072
      %v2097 = vunpack.c.l.b16 %v2073
      %v2098 = vunpack.c.l.b16 %v2074
      %v2099 = vunpack.c.l.b16 %v2075
      %v2100 = vunpack.c.l.b16 %v2076
      %v2101 = vpack.c.b16 %v2090, %v2089
      %v2102 = vpack.c.b16 %v2092, %v2091
      %v2103 = vpack.c.b16 %v2094, %v2093
      %v2104 = vpack.c.b16 %v2096, %v2095
      %v2105 = vpack.c.b16 %v2098, %v2097
      %v2106 = vpack.c.b16 %v2100, %v2099
      %2113 = vst [vmem:[#allocation2 + $0xa0] sm:$0xff] %v2101
      %2114 = vst [vmem:[#allocation2 + $0x168] sm:$0xff] %v2102
      %2115 = vst [vmem:[#allocation2 + $0x230] sm:$0xff] %v2103
      %2116 = vst [vmem:[#allocation2 + $0x2f8] sm:$0xff] %v2104
      %2117 = vst [vmem:[#allocation2 + $0x3c0] sm:$0xff] %v2105
      %2118 = vst [vmem:[#allocation2 + $0x488] sm:$0xff] %v2106
      %v2119 = vld [vmem:[%s327 + $0x18] sm:$0xf]
      %v2120 = vld [vmem:[%s327 + $0x1c] sm:$0xf]
      %v2121 = vld [vmem:[%s327 + $0x20] sm:$0xf]
      %v2122 = vld [vmem:[%s327 + $0x24] sm:$0xf]
      %v2123 = vld [vmem:[%s327 + $0x28] sm:$0xf]
      %v2124 = vld [vmem:[%s327 + $0x2c] sm:$0xf]
      %v2125 = vld [vmem:[%s327 + $0x30] sm:$0xf]
      %v2126 = vld [vmem:[%s327 + $0x34] sm:$0xf]
      %v2127 = vld [vmem:[%s327 + $0x38] sm:$0xf]
      %v2128 = vld [vmem:[%s327 + $0x3c] sm:$0xf]
      %v2129 = vld [vmem:[%s327 + $0x40] sm:$0xf]
      %v2130 = vld [vmem:[%s327 + $0x44] sm:$0xf]
      %v2131 = vld [vmem:[%s327 + $0x48] sm:$0x1]
      %v2145 = vunpack.c.l.b16 %v2119
      %v2146 = vunpack.c.l.b16 %v2120
      %v2147 = vunpack.c.l.b16 %v2121
      %v2148 = vunpack.c.l.b16 %v2122
      %v2149 = vunpack.c.l.b16 %v2123
      %v2150 = vunpack.c.l.b16 %v2124
      %v2151 = vunpack.c.l.b16 %v2125
      %v2152 = vunpack.c.l.b16 %v2126
      %v2153 = vunpack.c.l.b16 %v2127
      %v2154 = vunpack.c.l.b16 %v2128
      %v2155 = vunpack.c.l.b16 %v2129
      %v2156 = vunpack.c.l.b16 %v2130
      %v2157 = vunpack.c.l.b16 %v2131
      %v2158 = vpack.c.b16 %v2146, %v2145
      %v2159 = vpack.c.b16 %v2148, %v2147
      %v2160 = vpack.c.b16 %v2150, %v2149
      %v2161 = vpack.c.b16 %v2152, %v2151
      %v2162 = vpack.c.b16 %v2154, %v2153
      %v2163 = vpack.c.b16 %v2156, %v2155
      %v2164 = vpack.c.b16 %v2157, %v2157
      %v2166 = vshrl.u32 %v2158, 16
      %v2168 = vshll.u32 %v2158, 16
      %v2170 = vrot.slane %v2168, 1
      %v2171 = vor.u32 %v2166, %v2170
      %v2173 = vshll.u32 %v2159, 16
      %v2175 = vrot.slane %v2173, 1
      %v2176 = vsel %vm434, %v2171, %v2175
      %v2177 = vshrl.u32 %v2159, 16
      %v2179 = vor.u32 %v2177, %v2175
      %v2181 = vshll.u32 %v2160, 16
      %v2183 = vrot.slane %v2181, 1
      %v2184 = vsel %vm434, %v2179, %v2183
      %v2185 = vshrl.u32 %v2160, 16
      %v2187 = vor.u32 %v2185, %v2183
      %v2189 = vshll.u32 %v2161, 16
      %v2191 = vrot.slane %v2189, 1
      %v2192 = vsel %vm434, %v2187, %v2191
      %v2193 = vshrl.u32 %v2161, 16
      %v2195 = vor.u32 %v2193, %v2191
      %v2197 = vshll.u32 %v2162, 16
      %v2199 = vrot.slane %v2197, 1
      %v2200 = vsel %vm434, %v2195, %v2199
      %v2201 = vshrl.u32 %v2162, 16
      %v2203 = vor.u32 %v2201, %v2199
      %v2205 = vshll.u32 %v2163, 16
      %v2207 = vrot.slane %v2205, 1
      %v2208 = vsel %vm434, %v2203, %v2207
      %v2209 = vshrl.u32 %v2163, 16
      %v2211 = vor.u32 %v2209, %v2207
      %v2213 = vshll.u32 %v2164, 16
      %v2215 = vrot.slane %v2213, 1
      %v2216 = vsel %vm434, %v2211, %v2215
      %2223 = vst [vmem:[#allocation2 + $0xa8] sm:$0xff] %v2176
      %2224 = vst [vmem:[#allocation2 + $0x170] sm:$0xff] %v2184
      %2225 = vst [vmem:[#allocation2 + $0x238] sm:$0xff] %v2192
      %2226 = vst [vmem:[#allocation2 + $0x300] sm:$0xff] %v2200
      %2227 = vst [vmem:[#allocation2 + $0x3c8] sm:$0xff] %v2208
      %2228 = vst [vmem:[#allocation2 + $0x490] sm:$0xff] %v2216
      %v2229 = vld [vmem:[%s327 + $0x18] sm:$0xe]
      %v2230 = vld [vmem:[%s327 + $0x1c] sm:$0xf]
      %v2231 = vld [vmem:[%s327 + $0x20] sm:$0xf]
      %v2232 = vld [vmem:[%s327 + $0x24] sm:$0xf]
      %v2233 = vld [vmem:[%s327 + $0x28] sm:$0xf]
      %v2234 = vld [vmem:[%s327 + $0x2c] sm:$0xf]
      %v2235 = vld [vmem:[%s327 + $0x30] sm:$0xf]
      %v2236 = vld [vmem:[%s327 + $0x34] sm:$0xf]
      %v2237 = vld [vmem:[%s327 + $0x38] sm:$0xf]
      %v2238 = vld [vmem:[%s327 + $0x3c] sm:$0xf]
      %v2239 = vld [vmem:[%s327 + $0x40] sm:$0xf]
      %v2240 = vld [vmem:[%s327 + $0x44] sm:$0xf]
      %v2241 = vld [vmem:[%s327 + $0x48] sm:$0x1]
      %v2255 = vunpack.c.l.b16 %v2229
      %v2256 = vunpack.c.l.b16 %v2230
      %v2257 = vunpack.c.l.b16 %v2231
      %v2258 = vunpack.c.l.b16 %v2232
      %v2259 = vunpack.c.l.b16 %v2233
      %v2260 = vunpack.c.l.b16 %v2234
      %v2261 = vunpack.c.l.b16 %v2235
      %v2262 = vunpack.c.l.b16 %v2236
      %v2263 = vunpack.c.l.b16 %v2237
      %v2264 = vunpack.c.l.b16 %v2238
      %v2265 = vunpack.c.l.b16 %v2239
      %v2266 = vunpack.c.l.b16 %v2240
      %v2267 = vunpack.c.l.b16 %v2241
      %v2268 = vpack.c.b16 %v2256, %v2255
      %v2269 = vpack.c.b16 %v2258, %v2257
      %v2270 = vpack.c.b16 %v2260, %v2259
      %v2271 = vpack.c.b16 %v2262, %v2261
      %v2272 = vpack.c.b16 %v2264, %v2263
      %v2273 = vpack.c.b16 %v2266, %v2265
      %v2274 = vpack.c.b16 %v2267, %v2267
      %v2275 = vrot.slane %v2268, 1
      %v2276 = vrot.slane %v2269, 1
      %v2277 = vsel %vm545, %v2275, %v2276
      %v2278 = vrot.slane %v2270, 1
      %v2279 = vsel %vm545, %v2276, %v2278
      %v2280 = vrot.slane %v2271, 1
      %v2281 = vsel %vm545, %v2278, %v2280
      %v2282 = vrot.slane %v2272, 1
      %v2283 = vsel %vm545, %v2280, %v2282
      %v2284 = vrot.slane %v2273, 1
      %v2285 = vsel %vm545, %v2282, %v2284
      %v2286 = vrot.slane %v2274, 1
      %v2287 = vsel %vm545, %v2284, %v2286
      %2294 = vst [vmem:[#allocation2 + $0xb0] sm:$0xff] %v2277
      %2295 = vst [vmem:[#allocation2 + $0x178] sm:$0xff] %v2279
      %2296 = vst [vmem:[#allocation2 + $0x240] sm:$0xff] %v2281
      %2297 = vst [vmem:[#allocation2 + $0x308] sm:$0xff] %v2283
      %2298 = vst [vmem:[#allocation2 + $0x3d0] sm:$0xff] %v2285
      %2299 = vst [vmem:[#allocation2 + $0x498] sm:$0xff] %v2287
      %v2300 = vld [vmem:[%s327 + $0x18] sm:$0xe]
      %v2301 = vld [vmem:[%s327 + $0x1c] sm:$0xf]
      %v2302 = vld [vmem:[%s327 + $0x20] sm:$0xf]
      %v2303 = vld [vmem:[%s327 + $0x24] sm:$0xf]
      %v2304 = vld [vmem:[%s327 + $0x28] sm:$0xf]
      %v2305 = vld [vmem:[%s327 + $0x2c] sm:$0xf]
      %v2306 = vld [vmem:[%s327 + $0x30] sm:$0xf]
      %v2307 = vld [vmem:[%s327 + $0x34] sm:$0xf]
      %v2308 = vld [vmem:[%s327 + $0x38] sm:$0xf]
      %v2309 = vld [vmem:[%s327 + $0x3c] sm:$0xf]
      %v2310 = vld [vmem:[%s327 + $0x40] sm:$0xf]
      %v2311 = vld [vmem:[%s327 + $0x44] sm:$0xf]
      %v2312 = vld [vmem:[%s327 + $0x48] sm:$0x3]
      %v2326 = vunpack.c.l.b16 %v2300
      %v2327 = vunpack.c.l.b16 %v2301
      %v2328 = vunpack.c.l.b16 %v2302
      %v2329 = vunpack.c.l.b16 %v2303
      %v2330 = vunpack.c.l.b16 %v2304
      %v2331 = vunpack.c.l.b16 %v2305
      %v2332 = vunpack.c.l.b16 %v2306
      %v2333 = vunpack.c.l.b16 %v2307
      %v2334 = vunpack.c.l.b16 %v2308
      %v2335 = vunpack.c.l.b16 %v2309
      %v2336 = vunpack.c.l.b16 %v2310
      %v2337 = vunpack.c.l.b16 %v2311
      %v2338 = vunpack.c.l.b16 %v2312
      %v2339 = vpack.c.b16 %v2327, %v2326
      %v2340 = vpack.c.b16 %v2329, %v2328
      %v2341 = vpack.c.b16 %v2331, %v2330
      %v2342 = vpack.c.b16 %v2333, %v2332
      %v2343 = vpack.c.b16 %v2335, %v2334
      %v2344 = vpack.c.b16 %v2337, %v2336
      %v2345 = vpack.c.b16 %v2338, %v2338
      %v2347 = vshrl.u32 %v2339, 16
      %v2349 = vrot.slane %v2347, 1
      %v2350 = vshll.u32 %v2339, 16
      %v2352 = vrot.slane %v2350, 2
      %v2353 = vor.u32 %v2349, %v2352
      %v2355 = vshrl.u32 %v2340, 16
      %v2357 = vrot.slane %v2355, 1
      %v2358 = vshll.u32 %v2340, 16
      %v2360 = vrot.slane %v2358, 2
      %v2361 = vor.u32 %v2357, %v2360
      %v2362 = vsel %vm617, %v2353, %v2361
      %v2364 = vshrl.u32 %v2341, 16
      %v2366 = vrot.slane %v2364, 1
      %v2367 = vshll.u32 %v2341, 16
      %v2369 = vrot.slane %v2367, 2
      %v2370 = vor.u32 %v2366, %v2369
      %v2371 = vsel %vm617, %v2361, %v2370
      %v2373 = vshrl.u32 %v2342, 16
      %v2375 = vrot.slane %v2373, 1
      %v2376 = vshll.u32 %v2342, 16
      %v2378 = vrot.slane %v2376, 2
      %v2379 = vor.u32 %v2375, %v2378
      %v2380 = vsel %vm617, %v2370, %v2379
      %v2382 = vshrl.u32 %v2343, 16
      %v2384 = vrot.slane %v2382, 1
      %v2385 = vshll.u32 %v2343, 16
      %v2387 = vrot.slane %v2385, 2
      %v2388 = vor.u32 %v2384, %v2387
      %v2389 = vsel %vm617, %v2379, %v2388
      %v2391 = vshrl.u32 %v2344, 16
      %v2393 = vrot.slane %v2391, 1
      %v2394 = vshll.u32 %v2344, 16
      %v2396 = vrot.slane %v2394, 2
      %v2397 = vor.u32 %v2393, %v2396
      %v2398 = vsel %vm617, %v2388, %v2397
      %v2400 = vshrl.u32 %v2345, 16
      %v2402 = vrot.slane %v2400, 1
      %v2403 = vshll.u32 %v2345, 16
      %v2405 = vrot.slane %v2403, 2
      %v2406 = vor.u32 %v2402, %v2405
      %v2407 = vsel %vm617, %v2397, %v2406
      %2414 = vst [vmem:[#allocation2 + $0xb8] sm:$0xff] %v2362
      %2415 = vst [vmem:[#allocation2 + $0x180] sm:$0xff] %v2371
      %2416 = vst [vmem:[#allocation2 + $0x248] sm:$0xff] %v2380
      %2417 = vst [vmem:[#allocation2 + $0x310] sm:$0xff] %v2389
      %2418 = vst [vmem:[#allocation2 + $0x3d8] sm:$0xff] %v2398
      %2419 = vst [vmem:[#allocation2 + $0x4a0] sm:$0xff] %v2407
      %v2420 = vld [vmem:[%s327 + $0x18] sm:$0xc]
      %v2421 = vld [vmem:[%s327 + $0x1c] sm:$0xf]
      %v2422 = vld [vmem:[%s327 + $0x20] sm:$0xf]
      %v2423 = vld [vmem:[%s327 + $0x24] sm:$0xf]
      %v2424 = vld [vmem:[%s327 + $0x28] sm:$0xf]
      %v2425 = vld [vmem:[%s327 + $0x2c] sm:$0xf]
      %v2426 = vld [vmem:[%s327 + $0x30] sm:$0xf]
      %v2427 = vld [vmem:[%s327 + $0x34] sm:$0xf]
      %v2428 = vld [vmem:[%s327 + $0x38] sm:$0xf]
      %v2429 = vld [vmem:[%s327 + $0x3c] sm:$0xf]
      %v2430 = vld [vmem:[%s327 + $0x40] sm:$0xf]
      %v2431 = vld [vmem:[%s327 + $0x44] sm:$0xf]
      %v2432 = vld [vmem:[%s327 + $0x48] sm:$0x3]
      %v2446 = vunpack.c.l.b16 %v2420
      %v2447 = vunpack.c.l.b16 %v2421
      %v2448 = vunpack.c.l.b16 %v2422
      %v2449 = vunpack.c.l.b16 %v2423
      %v2450 = vunpack.c.l.b16 %v2424
      %v2451 = vunpack.c.l.b16 %v2425
      %v2452 = vunpack.c.l.b16 %v2426
      %v2453 = vunpack.c.l.b16 %v2427
      %v2454 = vunpack.c.l.b16 %v2428
      %v2455 = vunpack.c.l.b16 %v2429
      %v2456 = vunpack.c.l.b16 %v2430
      %v2457 = vunpack.c.l.b16 %v2431
      %v2458 = vunpack.c.l.b16 %v2432
      %v2459 = vpack.c.b16 %v2447, %v2446
      %v2460 = vpack.c.b16 %v2449, %v2448
      %v2461 = vpack.c.b16 %v2451, %v2450
      %v2462 = vpack.c.b16 %v2453, %v2452
      %v2463 = vpack.c.b16 %v2455, %v2454
      %v2464 = vpack.c.b16 %v2457, %v2456
      %v2465 = vpack.c.b16 %v2458, %v2458
      %v2466 = vrot.slane %v2459, 2
      %v2467 = vrot.slane %v2460, 2
      %v2468 = vsel %vm738, %v2466, %v2467
      %v2469 = vrot.slane %v2461, 2
      %v2470 = vsel %vm738, %v2467, %v2469
      %v2471 = vrot.slane %v2462, 2
      %v2472 = vsel %vm738, %v2469, %v2471
      %v2473 = vrot.slane %v2463, 2
      %v2474 = vsel %vm738, %v2471, %v2473
      %v2475 = vrot.slane %v2464, 2
      %v2476 = vsel %vm738, %v2473, %v2475
      %v2477 = vrot.slane %v2465, 2
      %v2478 = vsel %vm738, %v2475, %v2477
      %2485 = vst [vmem:[#allocation2 + $0xc0] sm:$0xff] %v2468
      %2486 = vst [vmem:[#allocation2 + $0x188] sm:$0xff] %v2470
      %2487 = vst [vmem:[#allocation2 + $0x250] sm:$0xff] %v2472
      %2488 = vst [vmem:[#allocation2 + $0x318] sm:$0xff] %v2474
      %2489 = vst [vmem:[#allocation2 + $0x3e0] sm:$0xff] %v2476
      %2490 = vst [vmem:[#allocation2 + $0x4a8] sm:$0xff] %v2478
      %v2491 = vld [vmem:[#allocation2] sm:$0xff]
      %v2492 = vld [vmem:[#allocation2 + $0x8] sm:$0xff]
      %v2493 = vld [vmem:[#allocation2 + $0x10] sm:$0xff]
      %v2494 = vld [vmem:[#allocation2 + $0x18] sm:$0xff]
      %v2495 = vld [vmem:[#allocation2 + $0x20] sm:$0xff]
      %v2496 = vld [vmem:[#allocation2 + $0x28] sm:$0xff]
      %v2497 = vld [vmem:[#allocation2 + $0x30] sm:$0xff]
      %v2498 = vld [vmem:[#allocation2 + $0x38] sm:$0xff]
      %v2499 = vld [vmem:[#allocation2 + $0x40] sm:$0xff]
      %v2500 = vld [vmem:[#allocation2 + $0x48] sm:$0xff]
      %v2501 = vld [vmem:[#allocation2 + $0x50] sm:$0xff]
      %v2502 = vld [vmem:[#allocation2 + $0x58] sm:$0xff]
      %v2503 = vld [vmem:[#allocation2 + $0x60] sm:$0xff]
      %v2504 = vld [vmem:[#allocation2 + $0x68] sm:$0xff]
      %v2505 = vld [vmem:[#allocation2 + $0x70] sm:$0xff]
      %v2506 = vld [vmem:[#allocation2 + $0x78] sm:$0xff]
      %v2507 = vld [vmem:[#allocation2 + $0x80] sm:$0xff]
      %v2508 = vld [vmem:[#allocation2 + $0x88] sm:$0xff]
      %v2509 = vld [vmem:[#allocation2 + $0x90] sm:$0xff]
      %v2510 = vld [vmem:[#allocation2 + $0x98] sm:$0xff]
      %v2511 = vld [vmem:[#allocation2 + $0xa0] sm:$0xff]
      %v2512 = vld [vmem:[#allocation2 + $0xa8] sm:$0xff]
      %v2513 = vld [vmem:[#allocation2 + $0xb0] sm:$0xff]
      %v2514 = vld [vmem:[#allocation2 + $0xb8] sm:$0xff]
      %v2515 = vld [vmem:[#allocation2 + $0xc0] sm:$0xff]
      %v2516 = vld [vmem:[#allocation2 + $0xc8] sm:$0xff]
      %v2517 = vld [vmem:[#allocation2 + $0xd0] sm:$0xff]
      %v2518 = vld [vmem:[#allocation2 + $0xd8] sm:$0xff]
      %v2519 = vld [vmem:[#allocation2 + $0xe0] sm:$0xff]
      %v2520 = vld [vmem:[#allocation2 + $0xe8] sm:$0xff]
      %v2521 = vld [vmem:[#allocation2 + $0xf0] sm:$0xff]
      %v2522 = vld [vmem:[#allocation2 + $0xf8] sm:$0xff]
      %v2523 = vld [vmem:[#allocation2 + $0x100] sm:$0xff]
      %v2524 = vld [vmem:[#allocation2 + $0x108] sm:$0xff]
      %v2525 = vld [vmem:[#allocation2 + $0x110] sm:$0xff]
      %v2526 = vld [vmem:[#allocation2 + $0x118] sm:$0xff]
      %v2527 = vld [vmem:[#allocation2 + $0x120] sm:$0xff]
      %v2528 = vld [vmem:[#allocation2 + $0x128] sm:$0xff]
      %v2529 = vld [vmem:[#allocation2 + $0x130] sm:$0xff]
      %v2530 = vld [vmem:[#allocation2 + $0x138] sm:$0xff]
      %v2531 = vld [vmem:[#allocation2 + $0x140] sm:$0xff]
      %v2532 = vld [vmem:[#allocation2 + $0x148] sm:$0xff]
      %v2533 = vld [vmem:[#allocation2 + $0x150] sm:$0xff]
      %v2534 = vld [vmem:[#allocation2 + $0x158] sm:$0xff]
      %v2535 = vld [vmem:[#allocation2 + $0x160] sm:$0xff]
      %v2536 = vld [vmem:[#allocation2 + $0x168] sm:$0xff]
      %v2537 = vld [vmem:[#allocation2 + $0x170] sm:$0xff]
      %v2538 = vld [vmem:[#allocation2 + $0x178] sm:$0xff]
      %v2539 = vld [vmem:[#allocation2 + $0x180] sm:$0xff]
      %v2540 = vld [vmem:[#allocation2 + $0x188] sm:$0xff]
      %v2541 = vld [vmem:[#allocation2 + $0x190] sm:$0xff]
      %v2542 = vld [vmem:[#allocation2 + $0x198] sm:$0xff]
      %v2543 = vld [vmem:[#allocation2 + $0x1a0] sm:$0xff]
      %v2544 = vld [vmem:[#allocation2 + $0x1a8] sm:$0xff]
      %v2545 = vld [vmem:[#allocation2 + $0x1b0] sm:$0xff]
      %v2546 = vld [vmem:[#allocation2 + $0x1b8] sm:$0xff]
      %v2547 = vld [vmem:[#allocation2 + $0x1c0] sm:$0xff]
      %v2548 = vld [vmem:[#allocation2 + $0x1c8] sm:$0xff]
      %v2549 = vld [vmem:[#allocation2 + $0x1d0] sm:$0xff]
      %v2550 = vld [vmem:[#allocation2 + $0x1d8] sm:$0xff]
      %v2551 = vld [vmem:[#allocation2 + $0x1e0] sm:$0xff]
      %v2552 = vld [vmem:[#allocation2 + $0x1e8] sm:$0xff]
      %v2553 = vld [vmem:[#allocation2 + $0x1f0] sm:$0xff]
      %v2554 = vld [vmem:[#allocation2 + $0x1f8] sm:$0xff]
      %v2555 = vld [vmem:[#allocation2 + $0x200] sm:$0xff]
      %v2556 = vld [vmem:[#allocation2 + $0x208] sm:$0xff]
      %v2557 = vld [vmem:[#allocation2 + $0x210] sm:$0xff]
      %v2558 = vld [vmem:[#allocation2 + $0x218] sm:$0xff]
      %v2559 = vld [vmem:[#allocation2 + $0x220] sm:$0xff]
      %v2560 = vld [vmem:[#allocation2 + $0x228] sm:$0xff]
      %v2561 = vld [vmem:[#allocation2 + $0x230] sm:$0xff]
      %v2562 = vld [vmem:[#allocation2 + $0x238] sm:$0xff]
      %v2563 = vld [vmem:[#allocation2 + $0x240] sm:$0xff]
      %v2564 = vld [vmem:[#allocation2 + $0x248] sm:$0xff]
      %v2565 = vld [vmem:[#allocation2 + $0x250] sm:$0xff]
      %v2566 = vld [vmem:[#allocation2 + $0x258] sm:$0xff]
      %v2567 = vld [vmem:[#allocation2 + $0x260] sm:$0xff]
      %v2568 = vld [vmem:[#allocation2 + $0x268] sm:$0xff]
      %v2569 = vld [vmem:[#allocation2 + $0x270] sm:$0xff]
      %v2570 = vld [vmem:[#allocation2 + $0x278] sm:$0xff]
      %v2571 = vld [vmem:[#allocation2 + $0x280] sm:$0xff]
      %v2572 = vld [vmem:[#allocation2 + $0x288] sm:$0xff]
      %v2573 = vld [vmem:[#allocation2 + $0x290] sm:$0xff]
      %v2574 = vld [vmem:[#allocation2 + $0x298] sm:$0xff]
      %v2575 = vld [vmem:[#allocation2 + $0x2a0] sm:$0xff]
      %v2576 = vld [vmem:[#allocation2 + $0x2a8] sm:$0xff]
      %v2577 = vld [vmem:[#allocation2 + $0x2b0] sm:$0xff]
      %v2578 = vld [vmem:[#allocation2 + $0x2b8] sm:$0xff]
      %v2579 = vld [vmem:[#allocation2 + $0x2c0] sm:$0xff]
      %v2580 = vld [vmem:[#allocation2 + $0x2c8] sm:$0xff]
      %v2581 = vld [vmem:[#allocation2 + $0x2d0] sm:$0xff]
      %v2582 = vld [vmem:[#allocation2 + $0x2d8] sm:$0xff]
      %v2583 = vld [vmem:[#allocation2 + $0x2e0] sm:$0xff]
      %v2584 = vld [vmem:[#allocation2 + $0x2e8] sm:$0xff]
      %v2585 = vld [vmem:[#allocation2 + $0x2f0] sm:$0xff]
      %v2586 = vld [vmem:[#allocation2 + $0x2f8] sm:$0xff]
      %v2587 = vld [vmem:[#allocation2 + $0x300] sm:$0xff]
      %v2588 = vld [vmem:[#allocation2 + $0x308] sm:$0xff]
      %v2589 = vld [vmem:[#allocation2 + $0x310] sm:$0xff]
      %v2590 = vld [vmem:[#allocation2 + $0x318] sm:$0xff]
      %v2591 = vld [vmem:[#allocation2 + $0x320] sm:$0xff]
      %v2592 = vld [vmem:[#allocation2 + $0x328] sm:$0xff]
      %v2593 = vld [vmem:[#allocation2 + $0x330] sm:$0xff]
      %v2594 = vld [vmem:[#allocation2 + $0x338] sm:$0xff]
      %v2595 = vld [vmem:[#allocation2 + $0x340] sm:$0xff]
      %v2596 = vld [vmem:[#allocation2 + $0x348] sm:$0xff]
      %v2597 = vld [vmem:[#allocation2 + $0x350] sm:$0xff]
      %v2598 = vld [vmem:[#allocation2 + $0x358] sm:$0xff]
      %v2599 = vld [vmem:[#allocation2 + $0x360] sm:$0xff]
      %v2600 = vld [vmem:[#allocation2 + $0x368] sm:$0xff]
      %v2601 = vld [vmem:[#allocation2 + $0x370] sm:$0xff]
      %v2602 = vld [vmem:[#allocation2 + $0x378] sm:$0xff]
      %v2603 = vld [vmem:[#allocation2 + $0x380] sm:$0xff]
      %v2604 = vld [vmem:[#allocation2 + $0x388] sm:$0xff]
      %v2605 = vld [vmem:[#allocation2 + $0x390] sm:$0xff]
      %v2606 = vld [vmem:[#allocation2 + $0x398] sm:$0xff]
      %v2607 = vld [vmem:[#allocation2 + $0x3a0] sm:$0xff]
      %v2608 = vld [vmem:[#allocation2 + $0x3a8] sm:$0xff]
      %v2609 = vld [vmem:[#allocation2 + $0x3b0] sm:$0xff]
      %v2610 = vld [vmem:[#allocation2 + $0x3b8] sm:$0xff]
      %v2611 = vld [vmem:[#allocation2 + $0x3c0] sm:$0xff]
      %v2612 = vld [vmem:[#allocation2 + $0x3c8] sm:$0xff]
      %v2613 = vld [vmem:[#allocation2 + $0x3d0] sm:$0xff]
      %v2614 = vld [vmem:[#allocation2 + $0x3d8] sm:$0xff]
      %v2615 = vld [vmem:[#allocation2 + $0x3e0] sm:$0xff]
      %v2616 = vld [vmem:[#allocation2 + $0x3e8] sm:$0xff]
      %v2617 = vld [vmem:[#allocation2 + $0x3f0] sm:$0xff]
      %v2618 = vld [vmem:[#allocation2 + $0x3f8] sm:$0xff]
      %v2619 = vld [vmem:[#allocation2 + $0x400] sm:$0xff]
      %v2620 = vld [vmem:[#allocation2 + $0x408] sm:$0xff]
      %v2621 = vld [vmem:[#allocation2 + $0x410] sm:$0xff]
      %v2622 = vld [vmem:[#allocation2 + $0x418] sm:$0xff]
      %v2623 = vld [vmem:[#allocation2 + $0x420] sm:$0xff]
      %v2624 = vld [vmem:[#allocation2 + $0x428] sm:$0xff]
      %v2625 = vld [vmem:[#allocation2 + $0x430] sm:$0xff]
      %v2626 = vld [vmem:[#allocation2 + $0x438] sm:$0xff]
      %v2627 = vld [vmem:[#allocation2 + $0x440] sm:$0xff]
      %v2628 = vld [vmem:[#allocation2 + $0x448] sm:$0xff]
      %v2629 = vld [vmem:[#allocation2 + $0x450] sm:$0xff]
      %v2630 = vld [vmem:[#allocation2 + $0x458] sm:$0xff]
      %v2631 = vld [vmem:[#allocation2 + $0x460] sm:$0xff]
      %v2632 = vld [vmem:[#allocation2 + $0x468] sm:$0xff]
      %v2633 = vld [vmem:[#allocation2 + $0x470] sm:$0xff]
      %v2634 = vld [vmem:[#allocation2 + $0x478] sm:$0xff]
      %v2635 = vld [vmem:[#allocation2 + $0x480] sm:$0xff]
      %v2636 = vld [vmem:[#allocation2 + $0x488] sm:$0xff]
      %v2637 = vld [vmem:[#allocation2 + $0x490] sm:$0xff]
      %v2638 = vld [vmem:[#allocation2 + $0x498] sm:$0xff]
      %v2639 = vld [vmem:[#allocation2 + $0x4a0] sm:$0xff]
      %v2640 = vld [vmem:[#allocation2 + $0x4a8] sm:$0xff]
      %v2641 = vld [vmem:[%s1] sm:$0xff]
      %v2642 = vld [vmem:[%s1 + $0x8] sm:$0xff]
      %v2643 = vld [vmem:[%s1 + $0x10] sm:$0xff]
      %v2644 = vld [vmem:[%s1 + $0x18] sm:$0xff]
      %v2645 = vld [vmem:[%s1 + $0x20] sm:$0xff]
      %v2646 = vld [vmem:[%s1 + $0x28] sm:$0xff]
      %v2647 = vld [vmem:[%s1 + $0x30] sm:$0xff]
      %v2648 = vld [vmem:[%s1 + $0x38] sm:$0xff]
      %v2649 = vld [vmem:[%s1 + $0x40] sm:$0xff]
      %v2650 = vld [vmem:[%s1 + $0x48] sm:$0xff]
      %v2651 = vld [vmem:[%s1 + $0x50] sm:$0xff]
      %v2652 = vld [vmem:[%s1 + $0x58] sm:$0xff]
      %v2653 = vld [vmem:[%s1 + $0x60] sm:$0xff]
      %v2654 = vld [vmem:[%s1 + $0x68] sm:$0xff]
      %v2655 = vld [vmem:[%s1 + $0x70] sm:$0xff]
      %v2656 = vld [vmem:[%s1 + $0x78] sm:$0xff]
      %v2657 = vld [vmem:[%s1 + $0x80] sm:$0xff]
      %v2658 = vld [vmem:[%s1 + $0x88] sm:$0xff]
      %v2659 = vld [vmem:[%s1 + $0x90] sm:$0xff]
      %v2660 = vld [vmem:[%s1 + $0x98] sm:$0xff]
      %v2661 = vld [vmem:[%s1 + $0xa0] sm:$0xff]
      %v2662 = vld [vmem:[%s1 + $0xa8] sm:$0xff]
      %v2663 = vld [vmem:[%s1 + $0xb0] sm:$0xff]
      %v2664 = vld [vmem:[%s1 + $0xb8] sm:$0xff]
      %v2665 = vld [vmem:[%s1 + $0xc0] sm:$0xff]
      %v2666 = vld [vmem:[%s1 + $0xc8] sm:$0xff]
      %v2667 = vld [vmem:[%s1 + $0xd0] sm:$0xff]
      %v2668 = vld [vmem:[%s1 + $0xd8] sm:$0xff]
      %v2669 = vld [vmem:[%s1 + $0xe0] sm:$0xff]
      %v2670 = vld [vmem:[%s1 + $0xe8] sm:$0xff]
      %v2671 = vld [vmem:[%s1 + $0xf0] sm:$0xff]
      %v2672 = vld [vmem:[%s1 + $0xf8] sm:$0xff]
      %v2673 = vld [vmem:[%s1 + $0x100] sm:$0xff]
      %v2674 = vld [vmem:[%s1 + $0x108] sm:$0xff]
      %v2675 = vld [vmem:[%s1 + $0x110] sm:$0xff]
      %v2676 = vld [vmem:[%s1 + $0x118] sm:$0xff]
      %v2677 = vld [vmem:[%s1 + $0x120] sm:$0xff]
      %v2678 = vld [vmem:[%s1 + $0x128] sm:$0xff]
      %v2679 = vld [vmem:[%s1 + $0x130] sm:$0xff]
      %v2680 = vld [vmem:[%s1 + $0x138] sm:$0xff]
      %v2681 = vld [vmem:[%s1 + $0x140] sm:$0xff]
      %v2682 = vld [vmem:[%s1 + $0x148] sm:$0xff]
      %v2683 = vld [vmem:[%s1 + $0x150] sm:$0xff]
      %v2684 = vld [vmem:[%s1 + $0x158] sm:$0xff]
      %v2685 = vld [vmem:[%s1 + $0x160] sm:$0xff]
      %v2686 = vld [vmem:[%s1 + $0x168] sm:$0xff]
      %v2687 = vld [vmem:[%s1 + $0x170] sm:$0xff]
      %v2688 = vld [vmem:[%s1 + $0x178] sm:$0xff]
      %v2689 = vld [vmem:[%s1 + $0x180] sm:$0xff]
      %v2690 = vld [vmem:[%s1 + $0x188] sm:$0xff]
      %v2691 = vld [vmem:[%s1 + $0x190] sm:$0xff]
      %v2692 = vld [vmem:[%s1 + $0x198] sm:$0xff]
      %v2693 = vld [vmem:[%s1 + $0x1a0] sm:$0xff]
      %v2694 = vld [vmem:[%s1 + $0x1a8] sm:$0xff]
      %v2695 = vld [vmem:[%s1 + $0x1b0] sm:$0xff]
      %v2696 = vld [vmem:[%s1 + $0x1b8] sm:$0xff]
      %v2697 = vld [vmem:[%s1 + $0x1c0] sm:$0xff]
      %v2698 = vld [vmem:[%s1 + $0x1c8] sm:$0xff]
      %v2699 = vld [vmem:[%s1 + $0x1d0] sm:$0xff]
      %v2700 = vld [vmem:[%s1 + $0x1d8] sm:$0xff]
      %v2701 = vld [vmem:[%s1 + $0x1e0] sm:$0xff]
      %v2702 = vld [vmem:[%s1 + $0x1e8] sm:$0xff]
      %v2703 = vld [vmem:[%s1 + $0x1f0] sm:$0xff]
      %v2704 = vld [vmem:[%s1 + $0x1f8] sm:$0xff]
      %v2705 = vld [vmem:[%s1 + $0x200] sm:$0xff]
      %v2706 = vld [vmem:[%s1 + $0x208] sm:$0xff]
      %v2707 = vld [vmem:[%s1 + $0x210] sm:$0xff]
      %v2708 = vld [vmem:[%s1 + $0x218] sm:$0xff]
      %v2709 = vld [vmem:[%s1 + $0x220] sm:$0xff]
      %v2710 = vld [vmem:[%s1 + $0x228] sm:$0xff]
      %v2711 = vld [vmem:[%s1 + $0x230] sm:$0xff]
      %v2712 = vld [vmem:[%s1 + $0x238] sm:$0xff]
      %v2713 = vld [vmem:[%s1 + $0x240] sm:$0xff]
      %v2714 = vld [vmem:[%s1 + $0x248] sm:$0xff]
      %v2715 = vld [vmem:[%s1 + $0x250] sm:$0xff]
      %v2716 = vld [vmem:[%s1 + $0x258] sm:$0xff]
      %v2717 = vld [vmem:[%s1 + $0x260] sm:$0xff]
      %v2718 = vld [vmem:[%s1 + $0x268] sm:$0xff]
      %v2719 = vld [vmem:[%s1 + $0x270] sm:$0xff]
      %v2720 = vld [vmem:[%s1 + $0x278] sm:$0xff]
      %v2721 = vld [vmem:[%s1 + $0x280] sm:$0xff]
      %v2722 = vld [vmem:[%s1 + $0x288] sm:$0xff]
      %v2723 = vld [vmem:[%s1 + $0x290] sm:$0xff]
      %v2724 = vld [vmem:[%s1 + $0x298] sm:$0xff]
      %v2725 = vld [vmem:[%s1 + $0x2a0] sm:$0xff]
      %v2726 = vld [vmem:[%s1 + $0x2a8] sm:$0xff]
      %v2727 = vld [vmem:[%s1 + $0x2b0] sm:$0xff]
      %v2728 = vld [vmem:[%s1 + $0x2b8] sm:$0xff]
      %v2729 = vld [vmem:[%s1 + $0x2c0] sm:$0xff]
      %v2730 = vld [vmem:[%s1 + $0x2c8] sm:$0xff]
      %v2731 = vld [vmem:[%s1 + $0x2d0] sm:$0xff]
      %v2732 = vld [vmem:[%s1 + $0x2d8] sm:$0xff]
      %v2733 = vld [vmem:[%s1 + $0x2e0] sm:$0xff]
      %v2734 = vld [vmem:[%s1 + $0x2e8] sm:$0xff]
      %v2735 = vld [vmem:[%s1 + $0x2f0] sm:$0xff]
      %v2736 = vld [vmem:[%s1 + $0x2f8] sm:$0xff]
      %v2737 = vld [vmem:[%s1 + $0x300] sm:$0xff]
      %v2738 = vld [vmem:[%s1 + $0x308] sm:$0xff]
      %v2739 = vld [vmem:[%s1 + $0x310] sm:$0xff]
      %v2740 = vld [vmem:[%s1 + $0x318] sm:$0xff]
      %v2741 = vld [vmem:[%s1 + $0x320] sm:$0xff]
      %v2742 = vld [vmem:[%s1 + $0x328] sm:$0xff]
      %v2743 = vld [vmem:[%s1 + $0x330] sm:$0xff]
      %v2744 = vld [vmem:[%s1 + $0x338] sm:$0xff]
      %v2745 = vld [vmem:[%s1 + $0x340] sm:$0xff]
      %v2746 = vld [vmem:[%s1 + $0x348] sm:$0xff]
      %v2747 = vld [vmem:[%s1 + $0x350] sm:$0xff]
      %v2748 = vld [vmem:[%s1 + $0x358] sm:$0xff]
      %v2749 = vld [vmem:[%s1 + $0x360] sm:$0xff]
      %v2750 = vld [vmem:[%s1 + $0x368] sm:$0xff]
      %v2751 = vld [vmem:[%s1 + $0x370] sm:$0xff]
      %v2752 = vld [vmem:[%s1 + $0x378] sm:$0xff]
      %v2753 = vld [vmem:[%s1 + $0x380] sm:$0xff]
      %v2754 = vld [vmem:[%s1 + $0x388] sm:$0xff]
      %v2755 = vld [vmem:[%s1 + $0x390] sm:$0xff]
      %v2756 = vld [vmem:[%s1 + $0x398] sm:$0xff]
      %v2757 = vld [vmem:[%s1 + $0x3a0] sm:$0xff]
      %v2758 = vld [vmem:[%s1 + $0x3a8] sm:$0xff]
      %v2759 = vld [vmem:[%s1 + $0x3b0] sm:$0xff]
      %v2760 = vld [vmem:[%s1 + $0x3b8] sm:$0xff]
      %v2761 = vld [vmem:[%s1 + $0x3c0] sm:$0xff]
      %v2762 = vld [vmem:[%s1 + $0x3c8] sm:$0xff]
      %v2763 = vld [vmem:[%s1 + $0x3d0] sm:$0xff]
      %v2764 = vld [vmem:[%s1 + $0x3d8] sm:$0xff]
      %v2765 = vld [vmem:[%s1 + $0x3e0] sm:$0xff]
      %v2766 = vld [vmem:[%s1 + $0x3e8] sm:$0xff]
      %v2767 = vld [vmem:[%s1 + $0x3f0] sm:$0xff]
      %v2768 = vld [vmem:[%s1 + $0x3f8] sm:$0xff]
      %v2769 = vld [vmem:[%s1 + $0x400] sm:$0xff]
      %v2770 = vld [vmem:[%s1 + $0x408] sm:$0xff]
      %v2771 = vld [vmem:[%s1 + $0x410] sm:$0xff]
      %v2772 = vld [vmem:[%s1 + $0x418] sm:$0xff]
      %v2773 = vld [vmem:[%s1 + $0x420] sm:$0xff]
      %v2774 = vld [vmem:[%s1 + $0x428] sm:$0xff]
      %v2775 = vld [vmem:[%s1 + $0x430] sm:$0xff]
      %v2776 = vld [vmem:[%s1 + $0x438] sm:$0xff]
      %v2777 = vld [vmem:[%s1 + $0x440] sm:$0xff]
      %v2778 = vld [vmem:[%s1 + $0x448] sm:$0xff]
      %v2779 = vld [vmem:[%s1 + $0x450] sm:$0xff]
      %v2780 = vld [vmem:[%s1 + $0x458] sm:$0xff]
      %v2781 = vld [vmem:[%s1 + $0x460] sm:$0xff]
      %v2782 = vld [vmem:[%s1 + $0x468] sm:$0xff]
      %v2783 = vld [vmem:[%s1 + $0x470] sm:$0xff]
      %v2784 = vld [vmem:[%s1 + $0x478] sm:$0xff]
      %v2785 = vld [vmem:[%s1 + $0x480] sm:$0xff]
      %v2786 = vld [vmem:[%s1 + $0x488] sm:$0xff]
      %v2787 = vld [vmem:[%s1 + $0x490] sm:$0xff]
      %v2788 = vld [vmem:[%s1 + $0x498] sm:$0xff]
      %v2789 = vld [vmem:[%s1 + $0x4a0] sm:$0xff]
      %v2790 = vld [vmem:[%s1 + $0x4a8] sm:$0xff]
      %v2791 = vld [vmem:[%s1 + $0x4b0] sm:$0xff]
      %v2792 = vld [vmem:[%s1 + $0x4b8] sm:$0xff]
      %v2793 = vld [vmem:[%s1 + $0x4c0] sm:$0xff]
      %v2794 = vld [vmem:[%s1 + $0x4c8] sm:$0xff]
      %v2795 = vld [vmem:[%s1 + $0x4d0] sm:$0xff]
      %v2796 = vld [vmem:[%s1 + $0x4d8] sm:$0xff]
      %v2797 = vld [vmem:[%s1 + $0x4e0] sm:$0xff]
      %v2798 = vld [vmem:[%s1 + $0x4e8] sm:$0xff]
      %v2799 = vld [vmem:[%s1 + $0x4f0] sm:$0xff]
      %v2800 = vld [vmem:[%s1 + $0x4f8] sm:$0xff]
      %v2801 = vld [vmem:[%s1 + $0x500] sm:$0xff]
      %v2802 = vld [vmem:[%s1 + $0x508] sm:$0xff]
      %v2803 = vld [vmem:[%s1 + $0x510] sm:$0xff]
      %v2804 = vld [vmem:[%s1 + $0x518] sm:$0xff]
      %v2805 = vld [vmem:[%s1 + $0x520] sm:$0xff]
      %v2806 = vld [vmem:[%s1 + $0x528] sm:$0xff]
      %v2807 = vld [vmem:[%s1 + $0x530] sm:$0xff]
      %v2808 = vld [vmem:[%s1 + $0x538] sm:$0xff]
      %v2809 = vld [vmem:[%s1 + $0x540] sm:$0xff]
      %v2810 = vld [vmem:[%s1 + $0x548] sm:$0xff]
      %v2811 = vld [vmem:[%s1 + $0x550] sm:$0xff]
      %v2812 = vld [vmem:[%s1 + $0x558] sm:$0xff]
      %v2813 = vld [vmem:[%s1 + $0x560] sm:$0xff]
      %v2814 = vld [vmem:[%s1 + $0x568] sm:$0xff]
      %v2815 = vld [vmem:[%s1 + $0x570] sm:$0xff]
      %v2816 = vld [vmem:[%s1 + $0x578] sm:$0xff]
      %v2817 = vld [vmem:[%s1 + $0x580] sm:$0xff]
      %v2818 = vld [vmem:[%s1 + $0x588] sm:$0xff]
      %v2819 = vld [vmem:[%s1 + $0x590] sm:$0xff]
      %v2820 = vld [vmem:[%s1 + $0x598] sm:$0xff]
      %v2821 = vld [vmem:[%s1 + $0x5a0] sm:$0xff]
      %v2822 = vld [vmem:[%s1 + $0x5a8] sm:$0xff]
      %v2823 = vld [vmem:[%s1 + $0x5b0] sm:$0xff]
      %v2824 = vld [vmem:[%s1 + $0x5b8] sm:$0xff]
      %v2825 = vld [vmem:[%s1 + $0x5c0] sm:$0xff]
      %v2826 = vld [vmem:[%s1 + $0x5c8] sm:$0xff]
      %v2827 = vld [vmem:[%s1 + $0x5d0] sm:$0xff]
      %v2828 = vld [vmem:[%s1 + $0x5d8] sm:$0xff]
      %v2829 = vld [vmem:[%s1 + $0x5e0] sm:$0xff]
      %v2830 = vld [vmem:[%s1 + $0x5e8] sm:$0xff]
      %v2831 = vld [vmem:[%s1 + $0x5f0] sm:$0xff]
      %v2832 = vld [vmem:[%s1 + $0x5f8] sm:$0xff]
      %v2833 = vld [vmem:[%s1 + $0x600] sm:$0xff]
      %v2834 = vld [vmem:[%s1 + $0x608] sm:$0xff]
      %v2835 = vld [vmem:[%s1 + $0x610] sm:$0xff]
      %v2836 = vld [vmem:[%s1 + $0x618] sm:$0xff]
      %v2837 = vld [vmem:[%s1 + $0x620] sm:$0xff]
      %v2838 = vld [vmem:[%s1 + $0x628] sm:$0xff]
      %v2839 = vld [vmem:[%s1 + $0x630] sm:$0xff]
      %v2840 = vld [vmem:[%s1 + $0x638] sm:$0xff]
      %v2841 = vld [vmem:[%s1 + $0x640] sm:$0xff]
      %v2842 = vld [vmem:[%s1 + $0x648] sm:$0xff]
      %v2843 = vld [vmem:[%s1 + $0x650] sm:$0xff]
      %v2844 = vld [vmem:[%s1 + $0x658] sm:$0xff]
      %v2845 = vld [vmem:[%s1 + $0x660] sm:$0xff]
      %v2846 = vld [vmem:[%s1 + $0x668] sm:$0xff]
      %v2847 = vld [vmem:[%s1 + $0x670] sm:$0xff]
      %v2848 = vld [vmem:[%s1 + $0x678] sm:$0xff]
      %v2849 = vld [vmem:[%s1 + $0x680] sm:$0xff]
      %v2850 = vld [vmem:[%s1 + $0x688] sm:$0xff]
      %v2851 = vld [vmem:[%s1 + $0x690] sm:$0xff]
      %v2852 = vld [vmem:[%s1 + $0x698] sm:$0xff]
      %v2853 = vld [vmem:[%s1 + $0x6a0] sm:$0xff]
      %v2854 = vld [vmem:[%s1 + $0x6a8] sm:$0xff]
      %v2855 = vld [vmem:[%s1 + $0x6b0] sm:$0xff]
      %v2856 = vld [vmem:[%s1 + $0x6b8] sm:$0xff]
      %v2857 = vld [vmem:[%s1 + $0x6c0] sm:$0xff]
      %v2858 = vld [vmem:[%s1 + $0x6c8] sm:$0xff]
      %v2859 = vld [vmem:[%s1 + $0x6d0] sm:$0xff]
      %v2860 = vld [vmem:[%s1 + $0x6d8] sm:$0xff]
      %v2861 = vld [vmem:[%s1 + $0x6e0] sm:$0xff]
      %v2862 = vld [vmem:[%s1 + $0x6e8] sm:$0xff]
      %v2863 = vld [vmem:[%s1 + $0x6f0] sm:$0xff]
      %v2864 = vld [vmem:[%s1 + $0x6f8] sm:$0xff]
      %v2865 = vld [vmem:[%s1 + $0x700] sm:$0xff]
      %v2866 = vld [vmem:[%s1 + $0x708] sm:$0xff]
      %v2867 = vld [vmem:[%s1 + $0x710] sm:$0xff]
      %v2868 = vld [vmem:[%s1 + $0x718] sm:$0xff]
      %v2869 = vld [vmem:[%s1 + $0x720] sm:$0xff]
      %v2870 = vld [vmem:[%s1 + $0x728] sm:$0xff]
      %v2871 = vld [vmem:[%s1 + $0x730] sm:$0xff]
      %v2872 = vld [vmem:[%s1 + $0x738] sm:$0xff]
      %v2873 = vld [vmem:[%s1 + $0x740] sm:$0xff]
      %v2874 = vld [vmem:[%s1 + $0x748] sm:$0xff]
      %v2875 = vld [vmem:[%s1 + $0x750] sm:$0xff]
      %v2876 = vld [vmem:[%s1 + $0x758] sm:$0xff]
      %v2877 = vld [vmem:[%s1 + $0x760] sm:$0xff]
      %v2878 = vld [vmem:[%s1 + $0x768] sm:$0xff]
      %v2879 = vld [vmem:[%s1 + $0x770] sm:$0xff]
      %v2880 = vld [vmem:[%s1 + $0x778] sm:$0xff]
      %v2881 = vld [vmem:[%s1 + $0x780] sm:$0xff]
      %v2882 = vld [vmem:[%s1 + $0x788] sm:$0xff]
      %v2883 = vld [vmem:[%s1 + $0x790] sm:$0xff]
      %v2884 = vld [vmem:[%s1 + $0x798] sm:$0xff]
      %v2885 = vld [vmem:[%s1 + $0x7a0] sm:$0xff]
      %v2886 = vld [vmem:[%s1 + $0x7a8] sm:$0xff]
      %v2887 = vld [vmem:[%s1 + $0x7b0] sm:$0xff]
      %v2888 = vld [vmem:[%s1 + $0x7b8] sm:$0xff]
      %v2889 = vld [vmem:[%s1 + $0x7c0] sm:$0xff]
      %v2890 = vld [vmem:[%s1 + $0x7c8] sm:$0xff]
      %v2891 = vld [vmem:[%s1 + $0x7d0] sm:$0xff]
      %v2892 = vld [vmem:[%s1 + $0x7d8] sm:$0xff]
      %v2893 = vld [vmem:[%s1 + $0x7e0] sm:$0xff]
      %v2894 = vld [vmem:[%s1 + $0x7e8] sm:$0xff]
      %v2895 = vld [vmem:[%s1 + $0x7f0] sm:$0xff]
      %v2896 = vld [vmem:[%s1 + $0x7f8] sm:$0xff]
      %v2897 = vld [vmem:[%s1 + $0x800] sm:$0xff]
      %v2898 = vld [vmem:[%s1 + $0x808] sm:$0xff]
      %v2899 = vld [vmem:[%s1 + $0x810] sm:$0xff]
      %v2900 = vld [vmem:[%s1 + $0x818] sm:$0xff]
      %v2901 = vld [vmem:[%s1 + $0x820] sm:$0xff]
      %v2902 = vld [vmem:[%s1 + $0x828] sm:$0xff]
      %v2903 = vld [vmem:[%s1 + $0x830] sm:$0xff]
      %v2904 = vld [vmem:[%s1 + $0x838] sm:$0xff]
      %v2905 = vld [vmem:[%s1 + $0x840] sm:$0xff]
      %v2906 = vld [vmem:[%s1 + $0x848] sm:$0xff]
      %v2907 = vld [vmem:[%s1 + $0x850] sm:$0xff]
      %v2908 = vld [vmem:[%s1 + $0x858] sm:$0xff]
      %v2909 = vld [vmem:[%s1 + $0x860] sm:$0xff]
      %v2910 = vld [vmem:[%s1 + $0x868] sm:$0xff]
      %v2911 = vld [vmem:[%s1 + $0x870] sm:$0xff]
      %v2912 = vld [vmem:[%s1 + $0x878] sm:$0xff]
      %v2913 = vld [vmem:[%s1 + $0x880] sm:$0xff]
      %v2914 = vld [vmem:[%s1 + $0x888] sm:$0xff]
      %v2915 = vld [vmem:[%s1 + $0x890] sm:$0xff]
      %v2916 = vld [vmem:[%s1 + $0x898] sm:$0xff]
      %v2917 = vld [vmem:[%s1 + $0x8a0] sm:$0xff]
      %v2918 = vld [vmem:[%s1 + $0x8a8] sm:$0xff]
      %v2919 = vld [vmem:[%s1 + $0x8b0] sm:$0xff]
      %v2920 = vld [vmem:[%s1 + $0x8b8] sm:$0xff]
      %v2921 = vld [vmem:[%s1 + $0x8c0] sm:$0xff]
      %v2922 = vld [vmem:[%s1 + $0x8c8] sm:$0xff]
      %v2923 = vld [vmem:[%s1 + $0x8d0] sm:$0xff]
      %v2924 = vld [vmem:[%s1 + $0x8d8] sm:$0xff]
      %v2925 = vld [vmem:[%s1 + $0x8e0] sm:$0xff]
      %v2926 = vld [vmem:[%s1 + $0x8e8] sm:$0xff]
      %v2927 = vld [vmem:[%s1 + $0x8f0] sm:$0xff]
      %v2928 = vld [vmem:[%s1 + $0x8f8] sm:$0xff]
      %v2929 = vld [vmem:[%s1 + $0x900] sm:$0xff]
      %v2930 = vld [vmem:[%s1 + $0x908] sm:$0xff]
      %v2931 = vld [vmem:[%s1 + $0x910] sm:$0xff]
      %v2932 = vld [vmem:[%s1 + $0x918] sm:$0xff]
      %v2933 = vld [vmem:[%s1 + $0x920] sm:$0xff]
      %v2934 = vld [vmem:[%s1 + $0x928] sm:$0xff]
      %v2935 = vld [vmem:[%s1 + $0x930] sm:$0xff]
      %v2936 = vld [vmem:[%s1 + $0x938] sm:$0xff]
      %v2937 = vld [vmem:[%s1 + $0x940] sm:$0xff]
      %v2938 = vld [vmem:[%s1 + $0x948] sm:$0xff]
      %v2939 = vld [vmem:[%s1 + $0x950] sm:$0xff]
      %v2940 = vld [vmem:[%s1 + $0x958] sm:$0xff]
      %v2941 = vld [vmem:[%s1 + $0x960] sm:$0xff]
      %v2942 = vld [vmem:[%s1 + $0x968] sm:$0xff]
      %v2943 = vld [vmem:[%s1 + $0x970] sm:$0xff]
      %v2944 = vld [vmem:[%s1 + $0x978] sm:$0xff]
      %v2945 = vld [vmem:[%s1 + $0x980] sm:$0xff]
      %v2946 = vld [vmem:[%s1 + $0x988] sm:$0xff]
      %v2947 = vld [vmem:[%s1 + $0x990] sm:$0xff]
      %v2948 = vld [vmem:[%s1 + $0x998] sm:$0xff]
      %v2949 = vld [vmem:[%s1 + $0x9a0] sm:$0xff]
      %v2950 = vld [vmem:[%s1 + $0x9a8] sm:$0xff]
      %v2951 = vld [vmem:[%s1 + $0x9b0] sm:$0xff]
      %v2952 = vld [vmem:[%s1 + $0x9b8] sm:$0xff]
      %v2953 = vld [vmem:[%s1 + $0x9c0] sm:$0xff]
      %v2954 = vld [vmem:[%s1 + $0x9c8] sm:$0xff]
      %v2955 = vld [vmem:[%s1 + $0x9d0] sm:$0xff]
      %v2956 = vld [vmem:[%s1 + $0x9d8] sm:$0xff]
      %v2957 = vld [vmem:[%s1 + $0x9e0] sm:$0xff]
      %v2958 = vld [vmem:[%s1 + $0x9e8] sm:$0xff]
      %v2959 = vld [vmem:[%s1 + $0x9f0] sm:$0xff]
      %v2960 = vld [vmem:[%s1 + $0x9f8] sm:$0xff]
      %v2961 = vld [vmem:[%s1 + $0xa00] sm:$0xff]
      %v2962 = vld [vmem:[%s1 + $0xa08] sm:$0xff]
      %v2963 = vld [vmem:[%s1 + $0xa10] sm:$0xff]
      %v2964 = vld [vmem:[%s1 + $0xa18] sm:$0xff]
      %v2965 = vld [vmem:[%s1 + $0xa20] sm:$0xff]
      %v2966 = vld [vmem:[%s1 + $0xa28] sm:$0xff]
      %v2967 = vld [vmem:[%s1 + $0xa30] sm:$0xff]
      %v2968 = vld [vmem:[%s1 + $0xa38] sm:$0xff]
      %v2969 = vld [vmem:[%s1 + $0xa40] sm:$0xff]
      %v2970 = vld [vmem:[%s1 + $0xa48] sm:$0xff]
      %v2971 = vld [vmem:[%s1 + $0xa50] sm:$0xff]
      %v2972 = vld [vmem:[%s1 + $0xa58] sm:$0xff]
      %v2973 = vld [vmem:[%s1 + $0xa60] sm:$0xff]
      %v2974 = vld [vmem:[%s1 + $0xa68] sm:$0xff]
      %v2975 = vld [vmem:[%s1 + $0xa70] sm:$0xff]
      %v2976 = vld [vmem:[%s1 + $0xa78] sm:$0xff]
      %v2977 = vld [vmem:[%s1 + $0xa80] sm:$0xff]
      %v2978 = vld [vmem:[%s1 + $0xa88] sm:$0xff]
      %v2979 = vld [vmem:[%s1 + $0xa90] sm:$0xff]
      %v2980 = vld [vmem:[%s1 + $0xa98] sm:$0xff]
      %v2981 = vld [vmem:[%s1 + $0xaa0] sm:$0xff]
      %v2982 = vld [vmem:[%s1 + $0xaa8] sm:$0xff]
      %v2983 = vld [vmem:[%s1 + $0xab0] sm:$0xff]
      %v2984 = vld [vmem:[%s1 + $0xab8] sm:$0xff]
      %v2985 = vld [vmem:[%s1 + $0xac0] sm:$0xff]
      %v2986 = vld [vmem:[%s1 + $0xac8] sm:$0xff]
      %v2987 = vld [vmem:[%s1 + $0xad0] sm:$0xff]
      %v2988 = vld [vmem:[%s1 + $0xad8] sm:$0xff]
      %v2989 = vld [vmem:[%s1 + $0xae0] sm:$0xff]
      %v2990 = vld [vmem:[%s1 + $0xae8] sm:$0xff]
      %v2991 = vld [vmem:[%s1 + $0xaf0] sm:$0xff]
      %v2992 = vld [vmem:[%s1 + $0xaf8] sm:$0xff]
      %v2993 = vld [vmem:[%s1 + $0xb00] sm:$0xff]
      %v2994 = vld [vmem:[%s1 + $0xb08] sm:$0xff]
      %v2995 = vld [vmem:[%s1 + $0xb10] sm:$0xff]
      %v2996 = vld [vmem:[%s1 + $0xb18] sm:$0xff]
      %v2997 = vld [vmem:[%s1 + $0xb20] sm:$0xff]
      %v2998 = vld [vmem:[%s1 + $0xb28] sm:$0xff]
      %v2999 = vld [vmem:[%s1 + $0xb30] sm:$0xff]
      %v3000 = vld [vmem:[%s1 + $0xb38] sm:$0xff]
      %v3001 = vld [vmem:[%s1 + $0xb40] sm:$0xff]
      %v3002 = vld [vmem:[%s1 + $0xb48] sm:$0xff]
      %v3003 = vld [vmem:[%s1 + $0xb50] sm:$0xff]
      %v3004 = vld [vmem:[%s1 + $0xb58] sm:$0xff]
      %v3005 = vld [vmem:[%s1 + $0xb60] sm:$0xff]
      %v3006 = vld [vmem:[%s1 + $0xb68] sm:$0xff]
      %v3007 = vld [vmem:[%s1 + $0xb70] sm:$0xff]
      %v3008 = vld [vmem:[%s1 + $0xb78] sm:$0xff]
      %v3009 = vld [vmem:[%s1 + $0xb80] sm:$0xff]
      %v3010 = vld [vmem:[%s1 + $0xb88] sm:$0xff]
      %v3011 = vld [vmem:[%s1 + $0xb90] sm:$0xff]
      %v3012 = vld [vmem:[%s1 + $0xb98] sm:$0xff]
      %v3013 = vld [vmem:[%s1 + $0xba0] sm:$0xff]
      %v3014 = vld [vmem:[%s1 + $0xba8] sm:$0xff]
      %v3015 = vld [vmem:[%s1 + $0xbb0] sm:$0xff]
      %v3016 = vld [vmem:[%s1 + $0xbb8] sm:$0xff]
      %v3017 = vld [vmem:[%s1 + $0xbc0] sm:$0xff]
      %v3018 = vld [vmem:[%s1 + $0xbc8] sm:$0xff]
      %v3019 = vld [vmem:[%s1 + $0xbd0] sm:$0xff]
      %v3020 = vld [vmem:[%s1 + $0xbd8] sm:$0xff]
      %v3021 = vld [vmem:[%s1 + $0xbe0] sm:$0xff]
      %v3022 = vld [vmem:[%s1 + $0xbe8] sm:$0xff]
      %v3023 = vld [vmem:[%s1 + $0xbf0] sm:$0xff]
      %v3024 = vld [vmem:[%s1 + $0xbf8] sm:$0xff]
      %v3025 = vld [vmem:[%s1 + $0xc00] sm:$0xff]
      %v3026 = vld [vmem:[%s1 + $0xc08] sm:$0xff]
      %v3027 = vld [vmem:[%s1 + $0xc10] sm:$0xff]
      %v3028 = vld [vmem:[%s1 + $0xc18] sm:$0xff]
      %v3029 = vld [vmem:[%s1 + $0xc20] sm:$0xff]
      %v3030 = vld [vmem:[%s1 + $0xc28] sm:$0xff]
      %v3031 = vld [vmem:[%s1 + $0xc30] sm:$0xff]
      %v3032 = vld [vmem:[%s1 + $0xc38] sm:$0xff]
      %v3033 = vld [vmem:[%s1 + $0xc40] sm:$0xff]
      %v3034 = vld [vmem:[%s1 + $0xc48] sm:$0xff]
      %v3035 = vld [vmem:[%s1 + $0xc50] sm:$0xff]
      %v3036 = vld [vmem:[%s1 + $0xc58] sm:$0xff]
      %v3037 = vld [vmem:[%s1 + $0xc60] sm:$0xff]
      %v3038 = vld [vmem:[%s1 + $0xc68] sm:$0xff]
      %v3039 = vld [vmem:[%s1 + $0xc70] sm:$0xff]
      %v3040 = vld [vmem:[%s1 + $0xc78] sm:$0xff]
      %v3041 = vld [vmem:[%s2] sm:$0x3]
      %v3043 = vlaneseq
      %v3044 = vshrl.u32 %v3043, 7
      %v3045 = vsub.s32 0, %v3044
      %v3046 = vrot.slane %v3041, %v3045
      %v3047 = vlaneseq
      %v3048 = vshrl.u32 %v3047, 7
      %v3049 = vsub.s32 1, %v3048
      %v3050 = vrot.slane %v3041, %v3049
      %v3453 = vunpack.c.l.b16 %v2641
      %v3454 = vunpack.c.h.b16 %v2641
      %v3455 = vunpack.c.l.b16 %v2642
      %v3456 = vunpack.c.h.b16 %v2642
      %v3457 = vunpack.c.l.b16 %v2643
      %v3458 = vunpack.c.h.b16 %v2643
      %v3459 = vunpack.c.l.b16 %v2644
      %v3460 = vunpack.c.h.b16 %v2644
      %v3461 = vunpack.c.l.b16 %v2645
      %v3462 = vunpack.c.h.b16 %v2645
      %v3463 = vunpack.c.l.b16 %v2646
      %v3464 = vunpack.c.h.b16 %v2646
      %v3465 = vunpack.c.l.b16 %v2647
      %v3466 = vunpack.c.h.b16 %v2647
      %v3467 = vunpack.c.l.b16 %v2648
      %v3468 = vunpack.c.h.b16 %v2648
      %v3469 = vunpack.c.l.b16 %v2649
      %v3470 = vunpack.c.h.b16 %v2649
      %v3471 = vunpack.c.l.b16 %v2650
      %v3472 = vunpack.c.h.b16 %v2650
      %v3473 = vunpack.c.l.b16 %v2651
      %v3474 = vunpack.c.h.b16 %v2651
      %v3475 = vunpack.c.l.b16 %v2652
      %v3476 = vunpack.c.h.b16 %v2652
      %v3477 = vunpack.c.l.b16 %v2653
      %v3478 = vunpack.c.h.b16 %v2653
      %v3479 = vunpack.c.l.b16 %v2654
      %v3480 = vunpack.c.h.b16 %v2654
      %v3481 = vunpack.c.l.b16 %v2655
      %v3482 = vunpack.c.h.b16 %v2655
      %v3483 = vunpack.c.l.b16 %v2656
      %v3484 = vunpack.c.h.b16 %v2656
      %v3485 = vunpack.c.l.b16 %v2657
      %v3486 = vunpack.c.h.b16 %v2657
      %v3487 = vunpack.c.l.b16 %v2658
      %v3488 = vunpack.c.h.b16 %v2658
      %v3489 = vunpack.c.l.b16 %v2659
      %v3490 = vunpack.c.h.b16 %v2659
      %v3491 = vunpack.c.l.b16 %v2660
      %v3492 = vunpack.c.h.b16 %v2660
      %v3493 = vunpack.c.l.b16 %v2661
      %v3494 = vunpack.c.h.b16 %v2661
      %v3495 = vunpack.c.l.b16 %v2662
      %v3496 = vunpack.c.h.b16 %v2662
      %v3497 = vunpack.c.l.b16 %v2663
      %v3498 = vunpack.c.h.b16 %v2663
      %v3499 = vunpack.c.l.b16 %v2664
      %v3500 = vunpack.c.h.b16 %v2664
      %v3501 = vunpack.c.l.b16 %v2665
      %v3502 = vunpack.c.h.b16 %v2665
      %v3503 = vunpack.c.l.b16 %v2666
      %v3504 = vunpack.c.h.b16 %v2666
      %v3505 = vunpack.c.l.b16 %v2667
      %v3506 = vunpack.c.h.b16 %v2667
      %v3507 = vunpack.c.l.b16 %v2668
      %v3508 = vunpack.c.h.b16 %v2668
      %v3509 = vunpack.c.l.b16 %v2669
      %v3510 = vunpack.c.h.b16 %v2669
      %v3511 = vunpack.c.l.b16 %v2670
      %v3512 = vunpack.c.h.b16 %v2670
      %v3513 = vunpack.c.l.b16 %v2671
      %v3514 = vunpack.c.h.b16 %v2671
      %v3515 = vunpack.c.l.b16 %v2672
      %v3516 = vunpack.c.h.b16 %v2672
      %v3517 = vunpack.c.l.b16 %v2673
      %v3518 = vunpack.c.h.b16 %v2673
      %v3519 = vunpack.c.l.b16 %v2674
      %v3520 = vunpack.c.h.b16 %v2674
      %v3521 = vunpack.c.l.b16 %v2675
      %v3522 = vunpack.c.h.b16 %v2675
      %v3523 = vunpack.c.l.b16 %v2676
      %v3524 = vunpack.c.h.b16 %v2676
      %v3525 = vunpack.c.l.b16 %v2677
      %v3526 = vunpack.c.h.b16 %v2677
      %v3527 = vunpack.c.l.b16 %v2678
      %v3528 = vunpack.c.h.b16 %v2678
      %v3529 = vunpack.c.l.b16 %v2679
      %v3530 = vunpack.c.h.b16 %v2679
      %v3531 = vunpack.c.l.b16 %v2680
      %v3532 = vunpack.c.h.b16 %v2680
      %v3533 = vunpack.c.l.b16 %v2681
      %v3534 = vunpack.c.h.b16 %v2681
      %v3535 = vunpack.c.l.b16 %v2682
      %v3536 = vunpack.c.h.b16 %v2682
      %v3537 = vunpack.c.l.b16 %v2683
      %v3538 = vunpack.c.h.b16 %v2683
      %v3539 = vunpack.c.l.b16 %v2684
      %v3540 = vunpack.c.h.b16 %v2684
      %v3541 = vunpack.c.l.b16 %v2685
      %v3542 = vunpack.c.h.b16 %v2685
      %v3543 = vunpack.c.l.b16 %v2686
      %v3544 = vunpack.c.h.b16 %v2686
      %v3545 = vunpack.c.l.b16 %v2687
      %v3546 = vunpack.c.h.b16 %v2687
      %v3547 = vunpack.c.l.b16 %v2688
      %v3548 = vunpack.c.h.b16 %v2688
      %v3549 = vunpack.c.l.b16 %v2689
      %v3550 = vunpack.c.h.b16 %v2689
      %v3551 = vunpack.c.l.b16 %v2690
      %v3552 = vunpack.c.h.b16 %v2690
      %v3553 = vunpack.c.l.b16 %v2691
      %v3554 = vunpack.c.h.b16 %v2691
      %v3555 = vunpack.c.l.b16 %v2692
      %v3556 = vunpack.c.h.b16 %v2692
      %v3557 = vunpack.c.l.b16 %v2693
      %v3558 = vunpack.c.h.b16 %v2693
      %v3559 = vunpack.c.l.b16 %v2694
      %v3560 = vunpack.c.h.b16 %v2694
      %v3561 = vunpack.c.l.b16 %v2695
      %v3562 = vunpack.c.h.b16 %v2695
      %v3563 = vunpack.c.l.b16 %v2696
      %v3564 = vunpack.c.h.b16 %v2696
      %v3565 = vunpack.c.l.b16 %v2697
      %v3566 = vunpack.c.h.b16 %v2697
      %v3567 = vunpack.c.l.b16 %v2698
      %v3568 = vunpack.c.h.b16 %v2698
      %v3569 = vunpack.c.l.b16 %v2699
      %v3570 = vunpack.c.h.b16 %v2699
      %v3571 = vunpack.c.l.b16 %v2700
      %v3572 = vunpack.c.h.b16 %v2700
      %v3573 = vunpack.c.l.b16 %v2701
      %v3574 = vunpack.c.h.b16 %v2701
      %v3575 = vunpack.c.l.b16 %v2702
      %v3576 = vunpack.c.h.b16 %v2702
      %v3577 = vunpack.c.l.b16 %v2703
      %v3578 = vunpack.c.h.b16 %v2703
      %v3579 = vunpack.c.l.b16 %v2704
      %v3580 = vunpack.c.h.b16 %v2704
      %v3581 = vunpack.c.l.b16 %v2705
      %v3582 = vunpack.c.h.b16 %v2705
      %v3583 = vunpack.c.l.b16 %v2706
      %v3584 = vunpack.c.h.b16 %v2706
      %v3585 = vunpack.c.l.b16 %v2707
      %v3586 = vunpack.c.h.b16 %v2707
      %v3587 = vunpack.c.l.b16 %v2708
      %v3588 = vunpack.c.h.b16 %v2708
      %v3589 = vunpack.c.l.b16 %v2709
      %v3590 = vunpack.c.h.b16 %v2709
      %v3591 = vunpack.c.l.b16 %v2710
      %v3592 = vunpack.c.h.b16 %v2710
      %v3593 = vunpack.c.l.b16 %v2711
      %v3594 = vunpack.c.h.b16 %v2711
      %v3595 = vunpack.c.l.b16 %v2712
      %v3596 = vunpack.c.h.b16 %v2712
      %v3597 = vunpack.c.l.b16 %v2713
      %v3598 = vunpack.c.h.b16 %v2713
      %v3599 = vunpack.c.l.b16 %v2714
      %v3600 = vunpack.c.h.b16 %v2714
      %v3601 = vunpack.c.l.b16 %v2715
      %v3602 = vunpack.c.h.b16 %v2715
      %v3603 = vunpack.c.l.b16 %v2716
      %v3604 = vunpack.c.h.b16 %v2716
      %v3605 = vunpack.c.l.b16 %v2717
      %v3606 = vunpack.c.h.b16 %v2717
      %v3607 = vunpack.c.l.b16 %v2718
      %v3608 = vunpack.c.h.b16 %v2718
      %v3609 = vunpack.c.l.b16 %v2719
      %v3610 = vunpack.c.h.b16 %v2719
      %v3611 = vunpack.c.l.b16 %v2720
      %v3612 = vunpack.c.h.b16 %v2720
      %v3613 = vunpack.c.l.b16 %v2721
      %v3614 = vunpack.c.h.b16 %v2721
      %v3615 = vunpack.c.l.b16 %v2722
      %v3616 = vunpack.c.h.b16 %v2722
      %v3617 = vunpack.c.l.b16 %v2723
      %v3618 = vunpack.c.h.b16 %v2723
      %v3619 = vunpack.c.l.b16 %v2724
      %v3620 = vunpack.c.h.b16 %v2724
      %v3621 = vunpack.c.l.b16 %v2725
      %v3622 = vunpack.c.h.b16 %v2725
      %v3623 = vunpack.c.l.b16 %v2726
      %v3624 = vunpack.c.h.b16 %v2726
      %v3625 = vunpack.c.l.b16 %v2727
      %v3626 = vunpack.c.h.b16 %v2727
      %v3627 = vunpack.c.l.b16 %v2728
      %v3628 = vunpack.c.h.b16 %v2728
      %v3629 = vunpack.c.l.b16 %v2729
      %v3630 = vunpack.c.h.b16 %v2729
      %v3631 = vunpack.c.l.b16 %v2730
      %v3632 = vunpack.c.h.b16 %v2730
      %v3633 = vunpack.c.l.b16 %v2731
      %v3634 = vunpack.c.h.b16 %v2731
      %v3635 = vunpack.c.l.b16 %v2732
      %v3636 = vunpack.c.h.b16 %v2732
      %v3637 = vunpack.c.l.b16 %v2733
      %v3638 = vunpack.c.h.b16 %v2733
      %v3639 = vunpack.c.l.b16 %v2734
      %v3640 = vunpack.c.h.b16 %v2734
      %v3641 = vunpack.c.l.b16 %v2735
      %v3642 = vunpack.c.h.b16 %v2735
      %v3643 = vunpack.c.l.b16 %v2736
      %v3644 = vunpack.c.h.b16 %v2736
      %v3645 = vunpack.c.l.b16 %v2737
      %v3646 = vunpack.c.h.b16 %v2737
      %v3647 = vunpack.c.l.b16 %v2738
      %v3648 = vunpack.c.h.b16 %v2738
      %v3649 = vunpack.c.l.b16 %v2739
      %v3650 = vunpack.c.h.b16 %v2739
      %v3651 = vunpack.c.l.b16 %v2740
      %v3652 = vunpack.c.h.b16 %v2740
      %v3653 = vunpack.c.l.b16 %v2741
      %v3654 = vunpack.c.h.b16 %v2741
      %v3655 = vunpack.c.l.b16 %v2742
      %v3656 = vunpack.c.h.b16 %v2742
      %v3657 = vunpack.c.l.b16 %v2743
      %v3658 = vunpack.c.h.b16 %v2743
      %v3659 = vunpack.c.l.b16 %v2744
      %v3660 = vunpack.c.h.b16 %v2744
      %v3661 = vunpack.c.l.b16 %v2745
      %v3662 = vunpack.c.h.b16 %v2745
      %v3663 = vunpack.c.l.b16 %v2746
      %v3664 = vunpack.c.h.b16 %v2746
      %v3665 = vunpack.c.l.b16 %v2747
      %v3666 = vunpack.c.h.b16 %v2747
      %v3667 = vunpack.c.l.b16 %v2748
      %v3668 = vunpack.c.h.b16 %v2748
      %v3669 = vunpack.c.l.b16 %v2749
      %v3670 = vunpack.c.h.b16 %v2749
      %v3671 = vunpack.c.l.b16 %v2750
      %v3672 = vunpack.c.h.b16 %v2750
      %v3673 = vunpack.c.l.b16 %v2751
      %v3674 = vunpack.c.h.b16 %v2751
      %v3675 = vunpack.c.l.b16 %v2752
      %v3676 = vunpack.c.h.b16 %v2752
      %v3677 = vunpack.c.l.b16 %v2753
      %v3678 = vunpack.c.h.b16 %v2753
      %v3679 = vunpack.c.l.b16 %v2754
      %v3680 = vunpack.c.h.b16 %v2754
      %v3681 = vunpack.c.l.b16 %v2755
      %v3682 = vunpack.c.h.b16 %v2755
      %v3683 = vunpack.c.l.b16 %v2756
      %v3684 = vunpack.c.h.b16 %v2756
      %v3685 = vunpack.c.l.b16 %v2757
      %v3686 = vunpack.c.h.b16 %v2757
      %v3687 = vunpack.c.l.b16 %v2758
      %v3688 = vunpack.c.h.b16 %v2758
      %v3689 = vunpack.c.l.b16 %v2759
      %v3690 = vunpack.c.h.b16 %v2759
      %v3691 = vunpack.c.l.b16 %v2760
      %v3692 = vunpack.c.h.b16 %v2760
      %v3693 = vunpack.c.l.b16 %v2761
      %v3694 = vunpack.c.h.b16 %v2761
      %v3695 = vunpack.c.l.b16 %v2762
      %v3696 = vunpack.c.h.b16 %v2762
      %v3697 = vunpack.c.l.b16 %v2763
      %v3698 = vunpack.c.h.b16 %v2763
      %v3699 = vunpack.c.l.b16 %v2764
      %v3700 = vunpack.c.h.b16 %v2764
      %v3701 = vunpack.c.l.b16 %v2765
      %v3702 = vunpack.c.h.b16 %v2765
      %v3703 = vunpack.c.l.b16 %v2766
      %v3704 = vunpack.c.h.b16 %v2766
      %v3705 = vunpack.c.l.b16 %v2767
      %v3706 = vunpack.c.h.b16 %v2767
      %v3707 = vunpack.c.l.b16 %v2768
      %v3708 = vunpack.c.h.b16 %v2768
      %v3709 = vunpack.c.l.b16 %v2769
      %v3710 = vunpack.c.h.b16 %v2769
      %v3711 = vunpack.c.l.b16 %v2770
      %v3712 = vunpack.c.h.b16 %v2770
      %v3713 = vunpack.c.l.b16 %v2771
      %v3714 = vunpack.c.h.b16 %v2771
      %v3715 = vunpack.c.l.b16 %v2772
      %v3716 = vunpack.c.h.b16 %v2772
      %v3717 = vunpack.c.l.b16 %v2773
      %v3718 = vunpack.c.h.b16 %v2773
      %v3719 = vunpack.c.l.b16 %v2774
      %v3720 = vunpack.c.h.b16 %v2774
      %v3721 = vunpack.c.l.b16 %v2775
      %v3722 = vunpack.c.h.b16 %v2775
      %v3723 = vunpack.c.l.b16 %v2776
      %v3724 = vunpack.c.h.b16 %v2776
      %v3725 = vunpack.c.l.b16 %v2777
      %v3726 = vunpack.c.h.b16 %v2777
      %v3727 = vunpack.c.l.b16 %v2778
      %v3728 = vunpack.c.h.b16 %v2778
      %v3729 = vunpack.c.l.b16 %v2779
      %v3730 = vunpack.c.h.b16 %v2779
      %v3731 = vunpack.c.l.b16 %v2780
      %v3732 = vunpack.c.h.b16 %v2780
      %v3733 = vunpack.c.l.b16 %v2781
      %v3734 = vunpack.c.h.b16 %v2781
      %v3735 = vunpack.c.l.b16 %v2782
      %v3736 = vunpack.c.h.b16 %v2782
      %v3737 = vunpack.c.l.b16 %v2783
      %v3738 = vunpack.c.h.b16 %v2783
      %v3739 = vunpack.c.l.b16 %v2784
      %v3740 = vunpack.c.h.b16 %v2784
      %v3741 = vunpack.c.l.b16 %v2785
      %v3742 = vunpack.c.h.b16 %v2785
      %v3743 = vunpack.c.l.b16 %v2786
      %v3744 = vunpack.c.h.b16 %v2786
      %v3745 = vunpack.c.l.b16 %v2787
      %v3746 = vunpack.c.h.b16 %v2787
      %v3747 = vunpack.c.l.b16 %v2788
      %v3748 = vunpack.c.h.b16 %v2788
      %v3749 = vunpack.c.l.b16 %v2789
      %v3750 = vunpack.c.h.b16 %v2789
      %v3751 = vunpack.c.l.b16 %v2790
      %v3752 = vunpack.c.h.b16 %v2790
      %v3753 = vunpack.c.l.b16 %v2791
      %v3754 = vunpack.c.h.b16 %v2791
      %v3755 = vunpack.c.l.b16 %v2792
      %v3756 = vunpack.c.h.b16 %v2792
      %v3757 = vunpack.c.l.b16 %v2793
      %v3758 = vunpack.c.h.b16 %v2793
      %v3759 = vunpack.c.l.b16 %v2794
      %v3760 = vunpack.c.h.b16 %v2794
      %v3761 = vunpack.c.l.b16 %v2795
      %v3762 = vunpack.c.h.b16 %v2795
      %v3763 = vunpack.c.l.b16 %v2796
      %v3764 = vunpack.c.h.b16 %v2796
      %v3765 = vunpack.c.l.b16 %v2797
      %v3766 = vunpack.c.h.b16 %v2797
      %v3767 = vunpack.c.l.b16 %v2798
      %v3768 = vunpack.c.h.b16 %v2798
      %v3769 = vunpack.c.l.b16 %v2799
      %v3770 = vunpack.c.h.b16 %v2799
      %v3771 = vunpack.c.l.b16 %v2800
      %v3772 = vunpack.c.h.b16 %v2800
      %v3773 = vunpack.c.l.b16 %v2801
      %v3774 = vunpack.c.h.b16 %v2801
      %v3775 = vunpack.c.l.b16 %v2802
      %v3776 = vunpack.c.h.b16 %v2802
      %v3777 = vunpack.c.l.b16 %v2803
      %v3778 = vunpack.c.h.b16 %v2803
      %v3779 = vunpack.c.l.b16 %v2804
      %v3780 = vunpack.c.h.b16 %v2804
      %v3781 = vunpack.c.l.b16 %v2805
      %v3782 = vunpack.c.h.b16 %v2805
      %v3783 = vunpack.c.l.b16 %v2806
      %v3784 = vunpack.c.h.b16 %v2806
      %v3785 = vunpack.c.l.b16 %v2807
      %v3786 = vunpack.c.h.b16 %v2807
      %v3787 = vunpack.c.l.b16 %v2808
      %v3788 = vunpack.c.h.b16 %v2808
      %v3789 = vunpack.c.l.b16 %v2809
      %v3790 = vunpack.c.h.b16 %v2809
      %v3791 = vunpack.c.l.b16 %v2810
      %v3792 = vunpack.c.h.b16 %v2810
      %v3793 = vunpack.c.l.b16 %v2811
      %v3794 = vunpack.c.h.b16 %v2811
      %v3795 = vunpack.c.l.b16 %v2812
      %v3796 = vunpack.c.h.b16 %v2812
      %v3797 = vunpack.c.l.b16 %v2813
      %v3798 = vunpack.c.h.b16 %v2813
      %v3799 = vunpack.c.l.b16 %v2814
      %v3800 = vunpack.c.h.b16 %v2814
      %v3801 = vunpack.c.l.b16 %v2815
      %v3802 = vunpack.c.h.b16 %v2815
      %v3803 = vunpack.c.l.b16 %v2816
      %v3804 = vunpack.c.h.b16 %v2816
      %v3805 = vunpack.c.l.b16 %v2817
      %v3806 = vunpack.c.h.b16 %v2817
      %v3807 = vunpack.c.l.b16 %v2818
      %v3808 = vunpack.c.h.b16 %v2818
      %v3809 = vunpack.c.l.b16 %v2819
      %v3810 = vunpack.c.h.b16 %v2819
      %v3811 = vunpack.c.l.b16 %v2820
      %v3812 = vunpack.c.h.b16 %v2820
      %v3813 = vunpack.c.l.b16 %v2821
      %v3814 = vunpack.c.h.b16 %v2821
      %v3815 = vunpack.c.l.b16 %v2822
      %v3816 = vunpack.c.h.b16 %v2822
      %v3817 = vunpack.c.l.b16 %v2823
      %v3818 = vunpack.c.h.b16 %v2823
      %v3819 = vunpack.c.l.b16 %v2824
      %v3820 = vunpack.c.h.b16 %v2824
      %v3821 = vunpack.c.l.b16 %v2825
      %v3822 = vunpack.c.h.b16 %v2825
      %v3823 = vunpack.c.l.b16 %v2826
      %v3824 = vunpack.c.h.b16 %v2826
      %v3825 = vunpack.c.l.b16 %v2827
      %v3826 = vunpack.c.h.b16 %v2827
      %v3827 = vunpack.c.l.b16 %v2828
      %v3828 = vunpack.c.h.b16 %v2828
      %v3829 = vunpack.c.l.b16 %v2829
      %v3830 = vunpack.c.h.b16 %v2829
      %v3831 = vunpack.c.l.b16 %v2830
      %v3832 = vunpack.c.h.b16 %v2830
      %v3833 = vunpack.c.l.b16 %v2831
      %v3834 = vunpack.c.h.b16 %v2831
      %v3835 = vunpack.c.l.b16 %v2832
      %v3836 = vunpack.c.h.b16 %v2832
      %v3837 = vunpack.c.l.b16 %v2833
      %v3838 = vunpack.c.h.b16 %v2833
      %v3839 = vunpack.c.l.b16 %v2834
      %v3840 = vunpack.c.h.b16 %v2834
      %v3841 = vunpack.c.l.b16 %v2835
      %v3842 = vunpack.c.h.b16 %v2835
      %v3843 = vunpack.c.l.b16 %v2836
      %v3844 = vunpack.c.h.b16 %v2836
      %v3845 = vunpack.c.l.b16 %v2837
      %v3846 = vunpack.c.h.b16 %v2837
      %v3847 = vunpack.c.l.b16 %v2838
      %v3848 = vunpack.c.h.b16 %v2838
      %v3849 = vunpack.c.l.b16 %v2839
      %v3850 = vunpack.c.h.b16 %v2839
      %v3851 = vunpack.c.l.b16 %v2840
      %v3852 = vunpack.c.h.b16 %v2840
      %v3853 = vunpack.c.l.b16 %v2841
      %v3854 = vunpack.c.h.b16 %v2841
      %v3855 = vunpack.c.l.b16 %v2842
      %v3856 = vunpack.c.h.b16 %v2842
      %v3857 = vunpack.c.l.b16 %v2843
      %v3858 = vunpack.c.h.b16 %v2843
      %v3859 = vunpack.c.l.b16 %v2844
      %v3860 = vunpack.c.h.b16 %v2844
      %v3861 = vunpack.c.l.b16 %v2845
      %v3862 = vunpack.c.h.b16 %v2845
      %v3863 = vunpack.c.l.b16 %v2846
      %v3864 = vunpack.c.h.b16 %v2846
      %v3865 = vunpack.c.l.b16 %v2847
      %v3866 = vunpack.c.h.b16 %v2847
      %v3867 = vunpack.c.l.b16 %v2848
      %v3868 = vunpack.c.h.b16 %v2848
      %v3869 = vunpack.c.l.b16 %v2849
      %v3870 = vunpack.c.h.b16 %v2849
      %v3871 = vunpack.c.l.b16 %v2850
      %v3872 = vunpack.c.h.b16 %v2850
      %v3873 = vunpack.c.l.b16 %v2851
      %v3874 = vunpack.c.h.b16 %v2851
      %v3875 = vunpack.c.l.b16 %v2852
      %v3876 = vunpack.c.h.b16 %v2852
      %v3877 = vunpack.c.l.b16 %v2853
      %v3878 = vunpack.c.h.b16 %v2853
      %v3879 = vunpack.c.l.b16 %v2854
      %v3880 = vunpack.c.h.b16 %v2854
      %v3881 = vunpack.c.l.b16 %v2855
      %v3882 = vunpack.c.h.b16 %v2855
      %v3883 = vunpack.c.l.b16 %v2856
      %v3884 = vunpack.c.h.b16 %v2856
      %v3885 = vunpack.c.l.b16 %v2857
      %v3886 = vunpack.c.h.b16 %v2857
      %v3887 = vunpack.c.l.b16 %v2858
      %v3888 = vunpack.c.h.b16 %v2858
      %v3889 = vunpack.c.l.b16 %v2859
      %v3890 = vunpack.c.h.b16 %v2859
      %v3891 = vunpack.c.l.b16 %v2860
      %v3892 = vunpack.c.h.b16 %v2860
      %v3893 = vunpack.c.l.b16 %v2861
      %v3894 = vunpack.c.h.b16 %v2861
      %v3895 = vunpack.c.l.b16 %v2862
      %v3896 = vunpack.c.h.b16 %v2862
      %v3897 = vunpack.c.l.b16 %v2863
      %v3898 = vunpack.c.h.b16 %v2863
      %v3899 = vunpack.c.l.b16 %v2864
      %v3900 = vunpack.c.h.b16 %v2864
      %v3901 = vunpack.c.l.b16 %v2865
      %v3902 = vunpack.c.h.b16 %v2865
      %v3903 = vunpack.c.l.b16 %v2866
      %v3904 = vunpack.c.h.b16 %v2866
      %v3905 = vunpack.c.l.b16 %v2867
      %v3906 = vunpack.c.h.b16 %v2867
      %v3907 = vunpack.c.l.b16 %v2868
      %v3908 = vunpack.c.h.b16 %v2868
      %v3909 = vunpack.c.l.b16 %v2869
      %v3910 = vunpack.c.h.b16 %v2869
      %v3911 = vunpack.c.l.b16 %v2870
      %v3912 = vunpack.c.h.b16 %v2870
      %v3913 = vunpack.c.l.b16 %v2871
      %v3914 = vunpack.c.h.b16 %v2871
      %v3915 = vunpack.c.l.b16 %v2872
      %v3916 = vunpack.c.h.b16 %v2872
      %v3917 = vunpack.c.l.b16 %v2873
      %v3918 = vunpack.c.h.b16 %v2873
      %v3919 = vunpack.c.l.b16 %v2874
      %v3920 = vunpack.c.h.b16 %v2874
      %v3921 = vunpack.c.l.b16 %v2875
      %v3922 = vunpack.c.h.b16 %v2875
      %v3923 = vunpack.c.l.b16 %v2876
      %v3924 = vunpack.c.h.b16 %v2876
      %v3925 = vunpack.c.l.b16 %v2877
      %v3926 = vunpack.c.h.b16 %v2877
      %v3927 = vunpack.c.l.b16 %v2878
      %v3928 = vunpack.c.h.b16 %v2878
      %v3929 = vunpack.c.l.b16 %v2879
      %v3930 = vunpack.c.h.b16 %v2879
      %v3931 = vunpack.c.l.b16 %v2880
      %v3932 = vunpack.c.h.b16 %v2880
      %v3933 = vunpack.c.l.b16 %v2881
      %v3934 = vunpack.c.h.b16 %v2881
      %v3935 = vunpack.c.l.b16 %v2882
      %v3936 = vunpack.c.h.b16 %v2882
      %v3937 = vunpack.c.l.b16 %v2883
      %v3938 = vunpack.c.h.b16 %v2883
      %v3939 = vunpack.c.l.b16 %v2884
      %v3940 = vunpack.c.h.b16 %v2884
      %v3941 = vunpack.c.l.b16 %v2885
      %v3942 = vunpack.c.h.b16 %v2885
      %v3943 = vunpack.c.l.b16 %v2886
      %v3944 = vunpack.c.h.b16 %v2886
      %v3945 = vunpack.c.l.b16 %v2887
      %v3946 = vunpack.c.h.b16 %v2887
      %v3947 = vunpack.c.l.b16 %v2888
      %v3948 = vunpack.c.h.b16 %v2888
      %v3949 = vunpack.c.l.b16 %v2889
      %v3950 = vunpack.c.h.b16 %v2889
      %v3951 = vunpack.c.l.b16 %v2890
      %v3952 = vunpack.c.h.b16 %v2890
      %v3953 = vunpack.c.l.b16 %v2891
      %v3954 = vunpack.c.h.b16 %v2891
      %v3955 = vunpack.c.l.b16 %v2892
      %v3956 = vunpack.c.h.b16 %v2892
      %v3957 = vunpack.c.l.b16 %v2893
      %v3958 = vunpack.c.h.b16 %v2893
      %v3959 = vunpack.c.l.b16 %v2894
      %v3960 = vunpack.c.h.b16 %v2894
      %v3961 = vunpack.c.l.b16 %v2895
      %v3962 = vunpack.c.h.b16 %v2895
      %v3963 = vunpack.c.l.b16 %v2896
      %v3964 = vunpack.c.h.b16 %v2896
      %v3965 = vunpack.c.l.b16 %v2897
      %v3966 = vunpack.c.h.b16 %v2897
      %v3967 = vunpack.c.l.b16 %v2898
      %v3968 = vunpack.c.h.b16 %v2898
      %v3969 = vunpack.c.l.b16 %v2899
      %v3970 = vunpack.c.h.b16 %v2899
      %v3971 = vunpack.c.l.b16 %v2900
      %v3972 = vunpack.c.h.b16 %v2900
      %v3973 = vunpack.c.l.b16 %v2901
      %v3974 = vunpack.c.h.b16 %v2901
      %v3975 = vunpack.c.l.b16 %v2902
      %v3976 = vunpack.c.h.b16 %v2902
      %v3977 = vunpack.c.l.b16 %v2903
      %v3978 = vunpack.c.h.b16 %v2903
      %v3979 = vunpack.c.l.b16 %v2904
      %v3980 = vunpack.c.h.b16 %v2904
      %v3981 = vunpack.c.l.b16 %v2905
      %v3982 = vunpack.c.h.b16 %v2905
      %v3983 = vunpack.c.l.b16 %v2906
      %v3984 = vunpack.c.h.b16 %v2906
      %v3985 = vunpack.c.l.b16 %v2907
      %v3986 = vunpack.c.h.b16 %v2907
      %v3987 = vunpack.c.l.b16 %v2908
      %v3988 = vunpack.c.h.b16 %v2908
      %v3989 = vunpack.c.l.b16 %v2909
      %v3990 = vunpack.c.h.b16 %v2909
      %v3991 = vunpack.c.l.b16 %v2910
      %v3992 = vunpack.c.h.b16 %v2910
      %v3993 = vunpack.c.l.b16 %v2911
      %v3994 = vunpack.c.h.b16 %v2911
      %v3995 = vunpack.c.l.b16 %v2912
      %v3996 = vunpack.c.h.b16 %v2912
      %v3997 = vunpack.c.l.b16 %v2913
      %v3998 = vunpack.c.h.b16 %v2913
      %v3999 = vunpack.c.l.b16 %v2914
      %v4000 = vunpack.c.h.b16 %v2914
      %v4001 = vunpack.c.l.b16 %v2915
      %v4002 = vunpack.c.h.b16 %v2915
      %v4003 = vunpack.c.l.b16 %v2916
      %v4004 = vunpack.c.h.b16 %v2916
      %v4005 = vunpack.c.l.b16 %v2917
      %v4006 = vunpack.c.h.b16 %v2917
      %v4007 = vunpack.c.l.b16 %v2918
      %v4008 = vunpack.c.h.b16 %v2918
      %v4009 = vunpack.c.l.b16 %v2919
      %v4010 = vunpack.c.h.b16 %v2919
      %v4011 = vunpack.c.l.b16 %v2920
      %v4012 = vunpack.c.h.b16 %v2920
      %v4013 = vunpack.c.l.b16 %v2921
      %v4014 = vunpack.c.h.b16 %v2921
      %v4015 = vunpack.c.l.b16 %v2922
      %v4016 = vunpack.c.h.b16 %v2922
      %v4017 = vunpack.c.l.b16 %v2923
      %v4018 = vunpack.c.h.b16 %v2923
      %v4019 = vunpack.c.l.b16 %v2924
      %v4020 = vunpack.c.h.b16 %v2924
      %v4021 = vunpack.c.l.b16 %v2925
      %v4022 = vunpack.c.h.b16 %v2925
      %v4023 = vunpack.c.l.b16 %v2926
      %v4024 = vunpack.c.h.b16 %v2926
      %v4025 = vunpack.c.l.b16 %v2927
      %v4026 = vunpack.c.h.b16 %v2927
      %v4027 = vunpack.c.l.b16 %v2928
      %v4028 = vunpack.c.h.b16 %v2928
      %v4029 = vunpack.c.l.b16 %v2929
      %v4030 = vunpack.c.h.b16 %v2929
      %v4031 = vunpack.c.l.b16 %v2930
      %v4032 = vunpack.c.h.b16 %v2930
      %v4033 = vunpack.c.l.b16 %v2931
      %v4034 = vunpack.c.h.b16 %v2931
      %v4035 = vunpack.c.l.b16 %v2932
      %v4036 = vunpack.c.h.b16 %v2932
      %v4037 = vunpack.c.l.b16 %v2933
      %v4038 = vunpack.c.h.b16 %v2933
      %v4039 = vunpack.c.l.b16 %v2934
      %v4040 = vunpack.c.h.b16 %v2934
      %v4041 = vunpack.c.l.b16 %v2935
      %v4042 = vunpack.c.h.b16 %v2935
      %v4043 = vunpack.c.l.b16 %v2936
      %v4044 = vunpack.c.h.b16 %v2936
      %v4045 = vunpack.c.l.b16 %v2937
      %v4046 = vunpack.c.h.b16 %v2937
      %v4047 = vunpack.c.l.b16 %v2938
      %v4048 = vunpack.c.h.b16 %v2938
      %v4049 = vunpack.c.l.b16 %v2939
      %v4050 = vunpack.c.h.b16 %v2939
      %v4051 = vunpack.c.l.b16 %v2940
      %v4052 = vunpack.c.h.b16 %v2940
      %v4053 = vunpack.c.l.b16 %v2941
      %v4054 = vunpack.c.h.b16 %v2941
      %v4055 = vunpack.c.l.b16 %v2942
      %v4056 = vunpack.c.h.b16 %v2942
      %v4057 = vunpack.c.l.b16 %v2943
      %v4058 = vunpack.c.h.b16 %v2943
      %v4059 = vunpack.c.l.b16 %v2944
      %v4060 = vunpack.c.h.b16 %v2944
      %v4061 = vunpack.c.l.b16 %v2945
      %v4062 = vunpack.c.h.b16 %v2945
      %v4063 = vunpack.c.l.b16 %v2946
      %v4064 = vunpack.c.h.b16 %v2946
      %v4065 = vunpack.c.l.b16 %v2947
      %v4066 = vunpack.c.h.b16 %v2947
      %v4067 = vunpack.c.l.b16 %v2948
      %v4068 = vunpack.c.h.b16 %v2948
      %v4069 = vunpack.c.l.b16 %v2949
      %v4070 = vunpack.c.h.b16 %v2949
      %v4071 = vunpack.c.l.b16 %v2950
      %v4072 = vunpack.c.h.b16 %v2950
      %v4073 = vunpack.c.l.b16 %v2951
      %v4074 = vunpack.c.h.b16 %v2951
      %v4075 = vunpack.c.l.b16 %v2952
      %v4076 = vunpack.c.h.b16 %v2952
      %v4077 = vunpack.c.l.b16 %v2953
      %v4078 = vunpack.c.h.b16 %v2953
      %v4079 = vunpack.c.l.b16 %v2954
      %v4080 = vunpack.c.h.b16 %v2954
      %v4081 = vunpack.c.l.b16 %v2955
      %v4082 = vunpack.c.h.b16 %v2955
      %v4083 = vunpack.c.l.b16 %v2956
      %v4084 = vunpack.c.h.b16 %v2956
      %v4085 = vunpack.c.l.b16 %v2957
      %v4086 = vunpack.c.h.b16 %v2957
      %v4087 = vunpack.c.l.b16 %v2958
      %v4088 = vunpack.c.h.b16 %v2958
      %v4089 = vunpack.c.l.b16 %v2959
      %v4090 = vunpack.c.h.b16 %v2959
      %v4091 = vunpack.c.l.b16 %v2960
      %v4092 = vunpack.c.h.b16 %v2960
      %v4093 = vunpack.c.l.b16 %v2961
      %v4094 = vunpack.c.h.b16 %v2961
      %v4095 = vunpack.c.l.b16 %v2962
      %v4096 = vunpack.c.h.b16 %v2962
      %v4097 = vunpack.c.l.b16 %v2963
      %v4098 = vunpack.c.h.b16 %v2963
      %v4099 = vunpack.c.l.b16 %v2964
      %v4100 = vunpack.c.h.b16 %v2964
      %v4101 = vunpack.c.l.b16 %v2965
      %v4102 = vunpack.c.h.b16 %v2965
      %v4103 = vunpack.c.l.b16 %v2966
      %v4104 = vunpack.c.h.b16 %v2966
      %v4105 = vunpack.c.l.b16 %v2967
      %v4106 = vunpack.c.h.b16 %v2967
      %v4107 = vunpack.c.l.b16 %v2968
      %v4108 = vunpack.c.h.b16 %v2968
      %v4109 = vunpack.c.l.b16 %v2969
      %v4110 = vunpack.c.h.b16 %v2969
      %v4111 = vunpack.c.l.b16 %v2970
      %v4112 = vunpack.c.h.b16 %v2970
      %v4113 = vunpack.c.l.b16 %v2971
      %v4114 = vunpack.c.h.b16 %v2971
      %v4115 = vunpack.c.l.b16 %v2972
      %v4116 = vunpack.c.h.b16 %v2972
      %v4117 = vunpack.c.l.b16 %v2973
      %v4118 = vunpack.c.h.b16 %v2973
      %v4119 = vunpack.c.l.b16 %v2974
      %v4120 = vunpack.c.h.b16 %v2974
      %v4121 = vunpack.c.l.b16 %v2975
      %v4122 = vunpack.c.h.b16 %v2975
      %v4123 = vunpack.c.l.b16 %v2976
      %v4124 = vunpack.c.h.b16 %v2976
      %v4125 = vunpack.c.l.b16 %v2977
      %v4126 = vunpack.c.h.b16 %v2977
      %v4127 = vunpack.c.l.b16 %v2978
      %v4128 = vunpack.c.h.b16 %v2978
      %v4129 = vunpack.c.l.b16 %v2979
      %v4130 = vunpack.c.h.b16 %v2979
      %v4131 = vunpack.c.l.b16 %v2980
      %v4132 = vunpack.c.h.b16 %v2980
      %v4133 = vunpack.c.l.b16 %v2981
      %v4134 = vunpack.c.h.b16 %v2981
      %v4135 = vunpack.c.l.b16 %v2982
      %v4136 = vunpack.c.h.b16 %v2982
      %v4137 = vunpack.c.l.b16 %v2983
      %v4138 = vunpack.c.h.b16 %v2983
      %v4139 = vunpack.c.l.b16 %v2984
      %v4140 = vunpack.c.h.b16 %v2984
      %v4141 = vunpack.c.l.b16 %v2985
      %v4142 = vunpack.c.h.b16 %v2985
      %v4143 = vunpack.c.l.b16 %v2986
      %v4144 = vunpack.c.h.b16 %v2986
      %v4145 = vunpack.c.l.b16 %v2987
      %v4146 = vunpack.c.h.b16 %v2987
      %v4147 = vunpack.c.l.b16 %v2988
      %v4148 = vunpack.c.h.b16 %v2988
      %v4149 = vunpack.c.l.b16 %v2989
      %v4150 = vunpack.c.h.b16 %v2989
      %v4151 = vunpack.c.l.b16 %v2990
      %v4152 = vunpack.c.h.b16 %v2990
      %v4153 = vunpack.c.l.b16 %v2991
      %v4154 = vunpack.c.h.b16 %v2991
      %v4155 = vunpack.c.l.b16 %v2992
      %v4156 = vunpack.c.h.b16 %v2992
      %v4157 = vunpack.c.l.b16 %v2993
      %v4158 = vunpack.c.h.b16 %v2993
      %v4159 = vunpack.c.l.b16 %v2994
      %v4160 = vunpack.c.h.b16 %v2994
      %v4161 = vunpack.c.l.b16 %v2995
      %v4162 = vunpack.c.h.b16 %v2995
      %v4163 = vunpack.c.l.b16 %v2996
      %v4164 = vunpack.c.h.b16 %v2996
      %v4165 = vunpack.c.l.b16 %v2997
      %v4166 = vunpack.c.h.b16 %v2997
      %v4167 = vunpack.c.l.b16 %v2998
      %v4168 = vunpack.c.h.b16 %v2998
      %v4169 = vunpack.c.l.b16 %v2999
      %v4170 = vunpack.c.h.b16 %v2999
      %v4171 = vunpack.c.l.b16 %v3000
      %v4172 = vunpack.c.h.b16 %v3000
      %v4173 = vunpack.c.l.b16 %v3001
      %v4174 = vunpack.c.h.b16 %v3001
      %v4175 = vunpack.c.l.b16 %v3002
      %v4176 = vunpack.c.h.b16 %v3002
      %v4177 = vunpack.c.l.b16 %v3003
      %v4178 = vunpack.c.h.b16 %v3003
      %v4179 = vunpack.c.l.b16 %v3004
      %v4180 = vunpack.c.h.b16 %v3004
      %v4181 = vunpack.c.l.b16 %v3005
      %v4182 = vunpack.c.h.b16 %v3005
      %v4183 = vunpack.c.l.b16 %v3006
      %v4184 = vunpack.c.h.b16 %v3006
      %v4185 = vunpack.c.l.b16 %v3007
      %v4186 = vunpack.c.h.b16 %v3007
      %v4187 = vunpack.c.l.b16 %v3008
      %v4188 = vunpack.c.h.b16 %v3008
      %v4189 = vunpack.c.l.b16 %v3009
      %v4190 = vunpack.c.h.b16 %v3009
      %v4191 = vunpack.c.l.b16 %v3010
      %v4192 = vunpack.c.h.b16 %v3010
      %v4193 = vunpack.c.l.b16 %v3011
      %v4194 = vunpack.c.h.b16 %v3011
      %v4195 = vunpack.c.l.b16 %v3012
      %v4196 = vunpack.c.h.b16 %v3012
      %v4197 = vunpack.c.l.b16 %v3013
      %v4198 = vunpack.c.h.b16 %v3013
      %v4199 = vunpack.c.l.b16 %v3014
      %v4200 = vunpack.c.h.b16 %v3014
      %v4201 = vunpack.c.l.b16 %v3015
      %v4202 = vunpack.c.h.b16 %v3015
      %v4203 = vunpack.c.l.b16 %v3016
      %v4204 = vunpack.c.h.b16 %v3016
      %v4205 = vunpack.c.l.b16 %v3017
      %v4206 = vunpack.c.h.b16 %v3017
      %v4207 = vunpack.c.l.b16 %v3018
      %v4208 = vunpack.c.h.b16 %v3018
      %v4209 = vunpack.c.l.b16 %v3019
      %v4210 = vunpack.c.h.b16 %v3019
      %v4211 = vunpack.c.l.b16 %v3020
      %v4212 = vunpack.c.h.b16 %v3020
      %v4213 = vunpack.c.l.b16 %v3021
      %v4214 = vunpack.c.h.b16 %v3021
      %v4215 = vunpack.c.l.b16 %v3022
      %v4216 = vunpack.c.h.b16 %v3022
      %v4217 = vunpack.c.l.b16 %v3023
      %v4218 = vunpack.c.h.b16 %v3023
      %v4219 = vunpack.c.l.b16 %v3024
      %v4220 = vunpack.c.h.b16 %v3024
      %v4221 = vunpack.c.l.b16 %v3025
      %v4222 = vunpack.c.h.b16 %v3025
      %v4223 = vunpack.c.l.b16 %v3026
      %v4224 = vunpack.c.h.b16 %v3026
      %v4225 = vunpack.c.l.b16 %v3027
      %v4226 = vunpack.c.h.b16 %v3027
      %v4227 = vunpack.c.l.b16 %v3028
      %v4228 = vunpack.c.h.b16 %v3028
      %v4229 = vunpack.c.l.b16 %v3029
      %v4230 = vunpack.c.h.b16 %v3029
      %v4231 = vunpack.c.l.b16 %v3030
      %v4232 = vunpack.c.h.b16 %v3030
      %v4233 = vunpack.c.l.b16 %v3031
      %v4234 = vunpack.c.h.b16 %v3031
      %v4235 = vunpack.c.l.b16 %v3032
      %v4236 = vunpack.c.h.b16 %v3032
      %v4237 = vunpack.c.l.b16 %v3033
      %v4238 = vunpack.c.h.b16 %v3033
      %v4239 = vunpack.c.l.b16 %v3034
      %v4240 = vunpack.c.h.b16 %v3034
      %v4241 = vunpack.c.l.b16 %v3035
      %v4242 = vunpack.c.h.b16 %v3035
      %v4243 = vunpack.c.l.b16 %v3036
      %v4244 = vunpack.c.h.b16 %v3036
      %v4245 = vunpack.c.l.b16 %v3037
      %v4246 = vunpack.c.h.b16 %v3037
      %v4247 = vunpack.c.l.b16 %v3038
      %v4248 = vunpack.c.h.b16 %v3038
      %v4249 = vunpack.c.l.b16 %v3039
      %v4250 = vunpack.c.h.b16 %v3039
      %v4251 = vunpack.c.l.b16 %v3040
      %v4252 = vunpack.c.h.b16 %v3040
      %v4253 = vpack.c.b16 %v3455, %v3453
      %v4254 = vpack.c.b16 %v3456, %v3454
      %v4255 = vpack.c.b16 %v3459, %v3457
      %v4256 = vpack.c.b16 %v3460, %v3458
      %v4257 = vpack.c.b16 %v3463, %v3461
      %v4258 = vpack.c.b16 %v3464, %v3462
      %v4259 = vpack.c.b16 %v3467, %v3465
      %v4260 = vpack.c.b16 %v3468, %v3466
      %v4261 = vpack.c.b16 %v3471, %v3469
      %v4262 = vpack.c.b16 %v3472, %v3470
      %v4263 = vpack.c.b16 %v3475, %v3473
      %v4264 = vpack.c.b16 %v3476, %v3474
      %v4265 = vpack.c.b16 %v3479, %v3477
      %v4266 = vpack.c.b16 %v3480, %v3478
      %v4267 = vpack.c.b16 %v3483, %v3481
      %v4268 = vpack.c.b16 %v3484, %v3482
      %v4269 = vpack.c.b16 %v3487, %v3485
      %v4270 = vpack.c.b16 %v3488, %v3486
      %v4271 = vpack.c.b16 %v3491, %v3489
      %v4272 = vpack.c.b16 %v3492, %v3490
      %v4273 = vpack.c.b16 %v3495, %v3493
      %v4274 = vpack.c.b16 %v3496, %v3494
      %v4275 = vpack.c.b16 %v3499, %v3497
      %v4276 = vpack.c.b16 %v3500, %v3498
      %v4277 = vpack.c.b16 %v3503, %v3501
      %v4278 = vpack.c.b16 %v3504, %v3502
      %v4279 = vpack.c.b16 %v3507, %v3505
      %v4280 = vpack.c.b16 %v3508, %v3506
      %v4281 = vpack.c.b16 %v3511, %v3509
      %v4282 = vpack.c.b16 %v3512, %v3510
      %v4283 = vpack.c.b16 %v3515, %v3513
      %v4284 = vpack.c.b16 %v3516, %v3514
      %v4285 = vpack.c.b16 %v3519, %v3517
      %v4286 = vpack.c.b16 %v3520, %v3518
      %v4287 = vpack.c.b16 %v3523, %v3521
      %v4288 = vpack.c.b16 %v3524, %v3522
      %v4289 = vpack.c.b16 %v3527, %v3525
      %v4290 = vpack.c.b16 %v3528, %v3526
      %v4291 = vpack.c.b16 %v3531, %v3529
      %v4292 = vpack.c.b16 %v3532, %v3530
      %v4293 = vpack.c.b16 %v3535, %v3533
      %v4294 = vpack.c.b16 %v3536, %v3534
      %v4295 = vpack.c.b16 %v3539, %v3537
      %v4296 = vpack.c.b16 %v3540, %v3538
      %v4297 = vpack.c.b16 %v3543, %v3541
      %v4298 = vpack.c.b16 %v3544, %v3542
      %v4299 = vpack.c.b16 %v3547, %v3545
      %v4300 = vpack.c.b16 %v3548, %v3546
      %v4301 = vpack.c.b16 %v3551, %v3549
      %v4302 = vpack.c.b16 %v3552, %v3550
      %v4303 = vpack.c.b16 %v3555, %v3553
      %v4304 = vpack.c.b16 %v3556, %v3554
      %v4305 = vpack.c.b16 %v3559, %v3557
      %v4306 = vpack.c.b16 %v3560, %v3558
      %v4307 = vpack.c.b16 %v3563, %v3561
      %v4308 = vpack.c.b16 %v3564, %v3562
      %v4309 = vpack.c.b16 %v3567, %v3565
      %v4310 = vpack.c.b16 %v3568, %v3566
      %v4311 = vpack.c.b16 %v3571, %v3569
      %v4312 = vpack.c.b16 %v3572, %v3570
      %v4313 = vpack.c.b16 %v3575, %v3573
      %v4314 = vpack.c.b16 %v3576, %v3574
      %v4315 = vpack.c.b16 %v3579, %v3577
      %v4316 = vpack.c.b16 %v3580, %v3578
      %v4317 = vpack.c.b16 %v3583, %v3581
      %v4318 = vpack.c.b16 %v3584, %v3582
      %v4319 = vpack.c.b16 %v3587, %v3585
      %v4320 = vpack.c.b16 %v3588, %v3586
      %v4321 = vpack.c.b16 %v3591, %v3589
      %v4322 = vpack.c.b16 %v3592, %v3590
      %v4323 = vpack.c.b16 %v3595, %v3593
      %v4324 = vpack.c.b16 %v3596, %v3594
      %v4325 = vpack.c.b16 %v3599, %v3597
      %v4326 = vpack.c.b16 %v3600, %v3598
      %v4327 = vpack.c.b16 %v3603, %v3601
      %v4328 = vpack.c.b16 %v3604, %v3602
      %v4329 = vpack.c.b16 %v3607, %v3605
      %v4330 = vpack.c.b16 %v3608, %v3606
      %v4331 = vpack.c.b16 %v3611, %v3609
      %v4332 = vpack.c.b16 %v3612, %v3610
      %v4333 = vpack.c.b16 %v3615, %v3613
      %v4334 = vpack.c.b16 %v3616, %v3614
      %v4335 = vpack.c.b16 %v3619, %v3617
      %v4336 = vpack.c.b16 %v3620, %v3618
      %v4337 = vpack.c.b16 %v3623, %v3621
      %v4338 = vpack.c.b16 %v3624, %v3622
      %v4339 = vpack.c.b16 %v3627, %v3625
      %v4340 = vpack.c.b16 %v3628, %v3626
      %v4341 = vpack.c.b16 %v3631, %v3629
      %v4342 = vpack.c.b16 %v3632, %v3630
      %v4343 = vpack.c.b16 %v3635, %v3633
      %v4344 = vpack.c.b16 %v3636, %v3634
      %v4345 = vpack.c.b16 %v3639, %v3637
      %v4346 = vpack.c.b16 %v3640, %v3638
      %v4347 = vpack.c.b16 %v3643, %v3641
      %v4348 = vpack.c.b16 %v3644, %v3642
      %v4349 = vpack.c.b16 %v3647, %v3645
      %v4350 = vpack.c.b16 %v3648, %v3646
      %v4351 = vpack.c.b16 %v3651, %v3649
      %v4352 = vpack.c.b16 %v3652, %v3650
      %v4353 = vpack.c.b16 %v3655, %v3653
      %v4354 = vpack.c.b16 %v3656, %v3654
      %v4355 = vpack.c.b16 %v3659, %v3657
      %v4356 = vpack.c.b16 %v3660, %v3658
      %v4357 = vpack.c.b16 %v3663, %v3661
      %v4358 = vpack.c.b16 %v3664, %v3662
      %v4359 = vpack.c.b16 %v3667, %v3665
      %v4360 = vpack.c.b16 %v3668, %v3666
      %v4361 = vpack.c.b16 %v3671, %v3669
      %v4362 = vpack.c.b16 %v3672, %v3670
      %v4363 = vpack.c.b16 %v3675, %v3673
      %v4364 = vpack.c.b16 %v3676, %v3674
      %v4365 = vpack.c.b16 %v3679, %v3677
      %v4366 = vpack.c.b16 %v3680, %v3678
      %v4367 = vpack.c.b16 %v3683, %v3681
      %v4368 = vpack.c.b16 %v3684, %v3682
      %v4369 = vpack.c.b16 %v3687, %v3685
      %v4370 = vpack.c.b16 %v3688, %v3686
      %v4371 = vpack.c.b16 %v3691, %v3689
      %v4372 = vpack.c.b16 %v3692, %v3690
      %v4373 = vpack.c.b16 %v3695, %v3693
      %v4374 = vpack.c.b16 %v3696, %v3694
      %v4375 = vpack.c.b16 %v3699, %v3697
      %v4376 = vpack.c.b16 %v3700, %v3698
      %v4377 = vpack.c.b16 %v3703, %v3701
      %v4378 = vpack.c.b16 %v3704, %v3702
      %v4379 = vpack.c.b16 %v3707, %v3705
      %v4380 = vpack.c.b16 %v3708, %v3706
      %v4381 = vpack.c.b16 %v3711, %v3709
      %v4382 = vpack.c.b16 %v3712, %v3710
      %v4383 = vpack.c.b16 %v3715, %v3713
      %v4384 = vpack.c.b16 %v3716, %v3714
      %v4385 = vpack.c.b16 %v3719, %v3717
      %v4386 = vpack.c.b16 %v3720, %v3718
      %v4387 = vpack.c.b16 %v3723, %v3721
      %v4388 = vpack.c.b16 %v3724, %v3722
      %v4389 = vpack.c.b16 %v3727, %v3725
      %v4390 = vpack.c.b16 %v3728, %v3726
      %v4391 = vpack.c.b16 %v3731, %v3729
      %v4392 = vpack.c.b16 %v3732, %v3730
      %v4393 = vpack.c.b16 %v3735, %v3733
      %v4394 = vpack.c.b16 %v3736, %v3734
      %v4395 = vpack.c.b16 %v3739, %v3737
      %v4396 = vpack.c.b16 %v3740, %v3738
      %v4397 = vpack.c.b16 %v3743, %v3741
      %v4398 = vpack.c.b16 %v3744, %v3742
      %v4399 = vpack.c.b16 %v3747, %v3745
      %v4400 = vpack.c.b16 %v3748, %v3746
      %v4401 = vpack.c.b16 %v3751, %v3749
      %v4402 = vpack.c.b16 %v3752, %v3750
      %v4403 = vpack.c.b16 %v3755, %v3753
      %v4404 = vpack.c.b16 %v3756, %v3754
      %v4405 = vpack.c.b16 %v3759, %v3757
      %v4406 = vpack.c.b16 %v3760, %v3758
      %v4407 = vpack.c.b16 %v3763, %v3761
      %v4408 = vpack.c.b16 %v3764, %v3762
      %v4409 = vpack.c.b16 %v3767, %v3765
      %v4410 = vpack.c.b16 %v3768, %v3766
      %v4411 = vpack.c.b16 %v3771, %v3769
      %v4412 = vpack.c.b16 %v3772, %v3770
      %v4413 = vpack.c.b16 %v3775, %v3773
      %v4414 = vpack.c.b16 %v3776, %v3774
      %v4415 = vpack.c.b16 %v3779, %v3777
      %v4416 = vpack.c.b16 %v3780, %v3778
      %v4417 = vpack.c.b16 %v3783, %v3781
      %v4418 = vpack.c.b16 %v3784, %v3782
      %v4419 = vpack.c.b16 %v3787, %v3785
      %v4420 = vpack.c.b16 %v3788, %v3786
      %v4421 = vpack.c.b16 %v3791, %v3789
      %v4422 = vpack.c.b16 %v3792, %v3790
      %v4423 = vpack.c.b16 %v3795, %v3793
      %v4424 = vpack.c.b16 %v3796, %v3794
      %v4425 = vpack.c.b16 %v3799, %v3797
      %v4426 = vpack.c.b16 %v3800, %v3798
      %v4427 = vpack.c.b16 %v3803, %v3801
      %v4428 = vpack.c.b16 %v3804, %v3802
      %v4429 = vpack.c.b16 %v3807, %v3805
      %v4430 = vpack.c.b16 %v3808, %v3806
      %v4431 = vpack.c.b16 %v3811, %v3809
      %v4432 = vpack.c.b16 %v3812, %v3810
      %v4433 = vpack.c.b16 %v3815, %v3813
      %v4434 = vpack.c.b16 %v3816, %v3814
      %v4435 = vpack.c.b16 %v3819, %v3817
      %v4436 = vpack.c.b16 %v3820, %v3818
      %v4437 = vpack.c.b16 %v3823, %v3821
      %v4438 = vpack.c.b16 %v3824, %v3822
      %v4439 = vpack.c.b16 %v3827, %v3825
      %v4440 = vpack.c.b16 %v3828, %v3826
      %v4441 = vpack.c.b16 %v3831, %v3829
      %v4442 = vpack.c.b16 %v3832, %v3830
      %v4443 = vpack.c.b16 %v3835, %v3833
      %v4444 = vpack.c.b16 %v3836, %v3834
      %v4445 = vpack.c.b16 %v3839, %v3837
      %v4446 = vpack.c.b16 %v3840, %v3838
      %v4447 = vpack.c.b16 %v3843, %v3841
      %v4448 = vpack.c.b16 %v3844, %v3842
      %v4449 = vpack.c.b16 %v3847, %v3845
      %v4450 = vpack.c.b16 %v3848, %v3846
      %v4451 = vpack.c.b16 %v3851, %v3849
      %v4452 = vpack.c.b16 %v3852, %v3850
      %v4453 = vpack.c.b16 %v3855, %v3853
      %v4454 = vpack.c.b16 %v3856, %v3854
      %v4455 = vpack.c.b16 %v3859, %v3857
      %v4456 = vpack.c.b16 %v3860, %v3858
      %v4457 = vpack.c.b16 %v3863, %v3861
      %v4458 = vpack.c.b16 %v3864, %v3862
      %v4459 = vpack.c.b16 %v3867, %v3865
      %v4460 = vpack.c.b16 %v3868, %v3866
      %v4461 = vpack.c.b16 %v3871, %v3869
      %v4462 = vpack.c.b16 %v3872, %v3870
      %v4463 = vpack.c.b16 %v3875, %v3873
      %v4464 = vpack.c.b16 %v3876, %v3874
      %v4465 = vpack.c.b16 %v3879, %v3877
      %v4466 = vpack.c.b16 %v3880, %v3878
      %v4467 = vpack.c.b16 %v3883, %v3881
      %v4468 = vpack.c.b16 %v3884, %v3882
      %v4469 = vpack.c.b16 %v3887, %v3885
      %v4470 = vpack.c.b16 %v3888, %v3886
      %v4471 = vpack.c.b16 %v3891, %v3889
      %v4472 = vpack.c.b16 %v3892, %v3890
      %v4473 = vpack.c.b16 %v3895, %v3893
      %v4474 = vpack.c.b16 %v3896, %v3894
      %v4475 = vpack.c.b16 %v3899, %v3897
      %v4476 = vpack.c.b16 %v3900, %v3898
      %v4477 = vpack.c.b16 %v3903, %v3901
      %v4478 = vpack.c.b16 %v3904, %v3902
      %v4479 = vpack.c.b16 %v3907, %v3905
      %v4480 = vpack.c.b16 %v3908, %v3906
      %v4481 = vpack.c.b16 %v3911, %v3909
      %v4482 = vpack.c.b16 %v3912, %v3910
      %v4483 = vpack.c.b16 %v3915, %v3913
      %v4484 = vpack.c.b16 %v3916, %v3914
      %v4485 = vpack.c.b16 %v3919, %v3917
      %v4486 = vpack.c.b16 %v3920, %v3918
      %v4487 = vpack.c.b16 %v3923, %v3921
      %v4488 = vpack.c.b16 %v3924, %v3922
      %v4489 = vpack.c.b16 %v3927, %v3925
      %v4490 = vpack.c.b16 %v3928, %v3926
      %v4491 = vpack.c.b16 %v3931, %v3929
      %v4492 = vpack.c.b16 %v3932, %v3930
      %v4493 = vpack.c.b16 %v3935, %v3933
      %v4494 = vpack.c.b16 %v3936, %v3934
      %v4495 = vpack.c.b16 %v3939, %v3937
      %v4496 = vpack.c.b16 %v3940, %v3938
      %v4497 = vpack.c.b16 %v3943, %v3941
      %v4498 = vpack.c.b16 %v3944, %v3942
      %v4499 = vpack.c.b16 %v3947, %v3945
      %v4500 = vpack.c.b16 %v3948, %v3946
      %v4501 = vpack.c.b16 %v3951, %v3949
      %v4502 = vpack.c.b16 %v3952, %v3950
      %v4503 = vpack.c.b16 %v3955, %v3953
      %v4504 = vpack.c.b16 %v3956, %v3954
      %v4505 = vpack.c.b16 %v3959, %v3957
      %v4506 = vpack.c.b16 %v3960, %v3958
      %v4507 = vpack.c.b16 %v3963, %v3961
      %v4508 = vpack.c.b16 %v3964, %v3962
      %v4509 = vpack.c.b16 %v3967, %v3965
      %v4510 = vpack.c.b16 %v3968, %v3966
      %v4511 = vpack.c.b16 %v3971, %v3969
      %v4512 = vpack.c.b16 %v3972, %v3970
      %v4513 = vpack.c.b16 %v3975, %v3973
      %v4514 = vpack.c.b16 %v3976, %v3974
      %v4515 = vpack.c.b16 %v3979, %v3977
      %v4516 = vpack.c.b16 %v3980, %v3978
      %v4517 = vpack.c.b16 %v3983, %v3981
      %v4518 = vpack.c.b16 %v3984, %v3982
      %v4519 = vpack.c.b16 %v3987, %v3985
      %v4520 = vpack.c.b16 %v3988, %v3986
      %v4521 = vpack.c.b16 %v3991, %v3989
      %v4522 = vpack.c.b16 %v3992, %v3990
      %v4523 = vpack.c.b16 %v3995, %v3993
      %v4524 = vpack.c.b16 %v3996, %v3994
      %v4525 = vpack.c.b16 %v3999, %v3997
      %v4526 = vpack.c.b16 %v4000, %v3998
      %v4527 = vpack.c.b16 %v4003, %v4001
      %v4528 = vpack.c.b16 %v4004, %v4002
      %v4529 = vpack.c.b16 %v4007, %v4005
      %v4530 = vpack.c.b16 %v4008, %v4006
      %v4531 = vpack.c.b16 %v4011, %v4009
      %v4532 = vpack.c.b16 %v4012, %v4010
      %v4533 = vpack.c.b16 %v4015, %v4013
      %v4534 = vpack.c.b16 %v4016, %v4014
      %v4535 = vpack.c.b16 %v4019, %v4017
      %v4536 = vpack.c.b16 %v4020, %v4018
      %v4537 = vpack.c.b16 %v4023, %v4021
      %v4538 = vpack.c.b16 %v4024, %v4022
      %v4539 = vpack.c.b16 %v4027, %v4025
      %v4540 = vpack.c.b16 %v4028, %v4026
      %v4541 = vpack.c.b16 %v4031, %v4029
      %v4542 = vpack.c.b16 %v4032, %v4030
      %v4543 = vpack.c.b16 %v4035, %v4033
      %v4544 = vpack.c.b16 %v4036, %v4034
      %v4545 = vpack.c.b16 %v4039, %v4037
      %v4546 = vpack.c.b16 %v4040, %v4038
      %v4547 = vpack.c.b16 %v4043, %v4041
      %v4548 = vpack.c.b16 %v4044, %v4042
      %v4549 = vpack.c.b16 %v4047, %v4045
      %v4550 = vpack.c.b16 %v4048, %v4046
      %v4551 = vpack.c.b16 %v4051, %v4049
      %v4552 = vpack.c.b16 %v4052, %v4050
      %v4553 = vpack.c.b16 %v4055, %v4053
      %v4554 = vpack.c.b16 %v4056, %v4054
      %v4555 = vpack.c.b16 %v4059, %v4057
      %v4556 = vpack.c.b16 %v4060, %v4058
      %v4557 = vpack.c.b16 %v4063, %v4061
      %v4558 = vpack.c.b16 %v4064, %v4062
      %v4559 = vpack.c.b16 %v4067, %v4065
      %v4560 = vpack.c.b16 %v4068, %v4066
      %v4561 = vpack.c.b16 %v4071, %v4069
      %v4562 = vpack.c.b16 %v4072, %v4070
      %v4563 = vpack.c.b16 %v4075, %v4073
      %v4564 = vpack.c.b16 %v4076, %v4074
      %v4565 = vpack.c.b16 %v4079, %v4077
      %v4566 = vpack.c.b16 %v4080, %v4078
      %v4567 = vpack.c.b16 %v4083, %v4081
      %v4568 = vpack.c.b16 %v4084, %v4082
      %v4569 = vpack.c.b16 %v4087, %v4085
      %v4570 = vpack.c.b16 %v4088, %v4086
      %v4571 = vpack.c.b16 %v4091, %v4089
      %v4572 = vpack.c.b16 %v4092, %v4090
      %v4573 = vpack.c.b16 %v4095, %v4093
      %v4574 = vpack.c.b16 %v4096, %v4094
      %v4575 = vpack.c.b16 %v4099, %v4097
      %v4576 = vpack.c.b16 %v4100, %v4098
      %v4577 = vpack.c.b16 %v4103, %v4101
      %v4578 = vpack.c.b16 %v4104, %v4102
      %v4579 = vpack.c.b16 %v4107, %v4105
      %v4580 = vpack.c.b16 %v4108, %v4106
      %v4581 = vpack.c.b16 %v4111, %v4109
      %v4582 = vpack.c.b16 %v4112, %v4110
      %v4583 = vpack.c.b16 %v4115, %v4113
      %v4584 = vpack.c.b16 %v4116, %v4114
      %v4585 = vpack.c.b16 %v4119, %v4117
      %v4586 = vpack.c.b16 %v4120, %v4118
      %v4587 = vpack.c.b16 %v4123, %v4121
      %v4588 = vpack.c.b16 %v4124, %v4122
      %v4589 = vpack.c.b16 %v4127, %v4125
      %v4590 = vpack.c.b16 %v4128, %v4126
      %v4591 = vpack.c.b16 %v4131, %v4129
      %v4592 = vpack.c.b16 %v4132, %v4130
      %v4593 = vpack.c.b16 %v4135, %v4133
      %v4594 = vpack.c.b16 %v4136, %v4134
      %v4595 = vpack.c.b16 %v4139, %v4137
      %v4596 = vpack.c.b16 %v4140, %v4138
      %v4597 = vpack.c.b16 %v4143, %v4141
      %v4598 = vpack.c.b16 %v4144, %v4142
      %v4599 = vpack.c.b16 %v4147, %v4145
      %v4600 = vpack.c.b16 %v4148, %v4146
      %v4601 = vpack.c.b16 %v4151, %v4149
      %v4602 = vpack.c.b16 %v4152, %v4150
      %v4603 = vpack.c.b16 %v4155, %v4153
      %v4604 = vpack.c.b16 %v4156, %v4154
      %v4605 = vpack.c.b16 %v4159, %v4157
      %v4606 = vpack.c.b16 %v4160, %v4158
      %v4607 = vpack.c.b16 %v4163, %v4161
      %v4608 = vpack.c.b16 %v4164, %v4162
      %v4609 = vpack.c.b16 %v4167, %v4165
      %v4610 = vpack.c.b16 %v4168, %v4166
      %v4611 = vpack.c.b16 %v4171, %v4169
      %v4612 = vpack.c.b16 %v4172, %v4170
      %v4613 = vpack.c.b16 %v4175, %v4173
      %v4614 = vpack.c.b16 %v4176, %v4174
      %v4615 = vpack.c.b16 %v4179, %v4177
      %v4616 = vpack.c.b16 %v4180, %v4178
      %v4617 = vpack.c.b16 %v4183, %v4181
      %v4618 = vpack.c.b16 %v4184, %v4182
      %v4619 = vpack.c.b16 %v4187, %v4185
      %v4620 = vpack.c.b16 %v4188, %v4186
      %v4621 = vpack.c.b16 %v4191, %v4189
      %v4622 = vpack.c.b16 %v4192, %v4190
      %v4623 = vpack.c.b16 %v4195, %v4193
      %v4624 = vpack.c.b16 %v4196, %v4194
      %v4625 = vpack.c.b16 %v4199, %v4197
      %v4626 = vpack.c.b16 %v4200, %v4198
      %v4627 = vpack.c.b16 %v4203, %v4201
      %v4628 = vpack.c.b16 %v4204, %v4202
      %v4629 = vpack.c.b16 %v4207, %v4205
      %v4630 = vpack.c.b16 %v4208, %v4206
      %v4631 = vpack.c.b16 %v4211, %v4209
      %v4632 = vpack.c.b16 %v4212, %v4210
      %v4633 = vpack.c.b16 %v4215, %v4213
      %v4634 = vpack.c.b16 %v4216, %v4214
      %v4635 = vpack.c.b16 %v4219, %v4217
      %v4636 = vpack.c.b16 %v4220, %v4218
      %v4637 = vpack.c.b16 %v4223, %v4221
      %v4638 = vpack.c.b16 %v4224, %v4222
      %v4639 = vpack.c.b16 %v4227, %v4225
      %v4640 = vpack.c.b16 %v4228, %v4226
      %v4641 = vpack.c.b16 %v4231, %v4229
      %v4642 = vpack.c.b16 %v4232, %v4230
      %v4643 = vpack.c.b16 %v4235, %v4233
      %v4644 = vpack.c.b16 %v4236, %v4234
      %v4645 = vpack.c.b16 %v4239, %v4237
      %v4646 = vpack.c.b16 %v4240, %v4238
      %v4647 = vpack.c.b16 %v4243, %v4241
      %v4648 = vpack.c.b16 %v4244, %v4242
      %v4649 = vpack.c.b16 %v4247, %v4245
      %v4650 = vpack.c.b16 %v4248, %v4246
      %v4651 = vpack.c.b16 %v4251, %v4249
      %v4652 = vpack.c.b16 %v4252, %v4250
      %5053 = vmatprep.subr.bf16.mxu0 %v4254
      %5054 = vmatpush1.bf16.msra.mxu0 %v4253
      %5055 = vmatprep.subr.bf16.mxu0 %v4256
      %5056 = vmatpush1.bf16.msra.mxu0 %v4255
      %5057 = vmatprep.subr.bf16.mxu0 %v4258
      %5058 = vmatpush1.bf16.msra.mxu0 %v4257
      %5059 = vmatprep.subr.bf16.mxu0 %v4260
      %5060 = vmatpush1.bf16.msra.mxu0 %v4259
      %5061 = vmatprep.subr.bf16.mxu0 %v4262
      %5062 = vmatpush1.bf16.msra.mxu0 %v4261
      %5063 = vmatprep.subr.bf16.mxu0 %v4264
      %5064 = vmatpush1.bf16.msra.mxu0 %v4263
      %5065 = vmatprep.subr.bf16.mxu0 %v4266
      %5066 = vmatpush1.bf16.msra.mxu0 %v4265
      %5067 = vmatprep.subr.bf16.mxu0 %v4268
      %5068 = vmatpush1.bf16.msra.mxu0 %v4267
      %5069 = vmatprep.subr.bf16.mxu0 %v4270
      %5070 = vmatpush1.bf16.msra.mxu0 %v4269
      %5071 = vmatprep.subr.bf16.mxu0 %v4272
      %5072 = vmatpush1.bf16.msra.mxu0 %v4271
      %5073 = vmatprep.subr.bf16.mxu0 %v4274
      %5074 = vmatpush1.bf16.msra.mxu0 %v4273
      %5075 = vmatprep.subr.bf16.mxu0 %v4276
      %5076 = vmatpush1.bf16.msra.mxu0 %v4275
      %5077 = vmatprep.subr.bf16.mxu0 %v4278
      %5078 = vmatpush1.bf16.msra.mxu0 %v4277
      %5079 = vmatprep.subr.bf16.mxu0 %v4280
      %5080 = vmatpush1.bf16.msra.mxu0 %v4279
      %5081 = vmatprep.subr.bf16.mxu0 %v4282
      %5082 = vmatpush1.bf16.msra.mxu0 %v4281
      %5083 = vmatprep.subr.bf16.mxu0 %v4284
      %5084 = vmatpush1.bf16.msra.mxu0 %v4283
      %5085 = vmatprep.mubr.bf16.mxu0 %v2492
      %5086 = vmatmul.mubr.bf16.gmra.mrb[0].mxu0 %v2491
      %v5087 = vpop.f32.mrb[0].mxu0
      %v5088 = vadd.f32 %v3046, %v5087
      %v5089 = vpop.f32.mrb[0].mxu0
      %v5090 = vadd.f32 %v3050, %v5089
      %v5091 = vpop.f32.mrb[0].mxu0
      %v5092 = vadd.f32 %v3046, %v5091
      %v5093 = vpop.f32.mrb[0].mxu0
      %v5094 = vadd.f32 %v3050, %v5093
      %5095 = vmatprep.mubr.bf16.mxu0 %v2517
      %5096 = vmatmul.mubr.bf16.gmra.mrb[0].mxu0 %v2516
      %v5097 = vpop.f32.mrb[0].mxu0
      %v5098 = vadd.f32 %v3046, %v5097
      %v5099 = vpop.f32.mrb[0].mxu0
      %v5100 = vadd.f32 %v3050, %v5099
      %v5101 = vpop.f32.mrb[0].mxu0
      %v5102 = vadd.f32 %v3046, %v5101
      %v5103 = vpop.f32.mrb[0].mxu0
      %v5104 = vadd.f32 %v3050, %v5103
      %5105 = vmatprep.mubr.bf16.mxu0 %v2542
      %5106 = vmatmul.mubr.bf16.gmra.mrb[0].mxu0 %v2541
      %v5107 = vpop.f32.mrb[0].mxu0
      %v5108 = vadd.f32 %v3046, %v5107
      %v5109 = vpop.f32.mrb[0].mxu0
      %v5110 = vadd.f32 %v3050, %v5109
      %v5111 = vpop.f32.mrb[0].mxu0
      %v5112 = vadd.f32 %v3046, %v5111
      %v5113 = vpop.f32.mrb[0].mxu0
      %v5114 = vadd.f32 %v3050, %v5113
      %5115 = vmatprep.mubr.bf16.mxu0 %v2567
      %5116 = vmatmul.mubr.bf16.gmra.mrb[0].mxu0 %v2566
      %v5117 = vpop.f32.mrb[0].mxu0
      %v5118 = vadd.f32 %v3046, %v5117
      %v5119 = vpop.f32.mrb[0].mxu0
      %v5120 = vadd.f32 %v3050, %v5119
      %v5121 = vpop.f32.mrb[0].mxu0
      %v5122 = vadd.f32 %v3046, %v5121
      %v5123 = vpop.f32.mrb[0].mxu0
      %v5124 = vadd.f32 %v3050, %v5123
      %5125 = vmatprep.mubr.bf16.mxu0 %v2592
      %5126 = vmatmul.mubr.bf16.gmra.mrb[0].mxu0 %v2591
      %v5127 = vpop.f32.mrb[0].mxu0
      %v5128 = vadd.f32 %v3046, %v5127
      %v5129 = vpop.f32.mrb[0].mxu0
      %v5130 = vadd.f32 %v3050, %v5129
      %v5131 = vpop.f32.mrb[0].mxu0
      %v5132 = vadd.f32 %v3046, %v5131
      %v5133 = vpop.f32.mrb[0].mxu0
      %v5134 = vadd.f32 %v3050, %v5133
      %5135 = vmatprep.mubr.bf16.mxu0 %v2617
      %5136 = vmatmul.mubr.bf16.gmra.mrb[0].mxu0 %v2616
      %v5137 = vpop.f32.mrb[0].mxu0
      %v5138 = vadd.f32 %v3046, %v5137
      %v5139 = vpop.f32.mrb[0].mxu0
      %v5140 = vadd.f32 %v3050, %v5139
      %v5141 = vpop.f32.mrb[0].mxu0
      %v5142 = vadd.f32 %v3046, %v5141
      %v5143 = vpop.f32.mrb[0].mxu0
      %v5144 = vadd.f32 %v3050, %v5143
      %5145 = vdwg.mxu0
      %5146 = vmatprep.subr.bf16.mxu0 %v4286
      %5147 = vmatpush1.bf16.msra.mxu0 %v4285
      %5148 = vmatprep.subr.bf16.mxu0 %v4288
      %5149 = vmatpush1.bf16.msra.mxu0 %v4287
      %5150 = vmatprep.subr.bf16.mxu0 %v4290
      %5151 = vmatpush1.bf16.msra.mxu0 %v4289
      %5152 = vmatprep.subr.bf16.mxu0 %v4292
      %5153 = vmatpush1.bf16.msra.mxu0 %v4291
      %5154 = vmatprep.subr.bf16.mxu0 %v4294
      %5155 = vmatpush1.bf16.msra.mxu0 %v4293
      %5156 = vmatprep.subr.bf16.mxu0 %v4296
      %5157 = vmatpush1.bf16.msra.mxu0 %v4295
      %5158 = vmatprep.subr.bf16.mxu0 %v4298
      %5159 = vmatpush1.bf16.msra.mxu0 %v4297
      %5160 = vmatprep.subr.bf16.mxu0 %v4300
      %5161 = vmatpush1.bf16.msra.mxu0 %v4299
      %5162 = vmatprep.subr.bf16.mxu0 %v4302
      %5163 = vmatpush1.bf16.msra.mxu0 %v4301
      %5164 = vmatprep.subr.bf16.mxu0 %v4304
      %5165 = vmatpush1.bf16.msra.mxu0 %v4303
      %5166 = vmatprep.subr.bf16.mxu0 %v4306
      %5167 = vmatpush1.bf16.msra.mxu0 %v4305
      %5168 = vmatprep.subr.bf16.mxu0 %v4308
      %5169 = vmatpush1.bf16.msra.mxu0 %v4307
      %5170 = vmatprep.subr.bf16.mxu0 %v4310
      %5171 = vmatpush1.bf16.msra.mxu0 %v4309
      %5172 = vmatprep.subr.bf16.mxu0 %v4312
      %5173 = vmatpush1.bf16.msra.mxu0 %v4311
      %5174 = vmatprep.subr.bf16.mxu0 %v4314
      %5175 = vmatpush1.bf16.msra.mxu0 %v4313
      %5176 = vmatprep.subr.bf16.mxu0 %v4316
      %5177 = vmatpush1.bf16.msra.mxu0 %v4315
      %5178 = vmatprep.mubr.bf16.mxu0 %v2494
      %5179 = vmatmul.mubr.bf16.gmra.mrb[0].mxu0 %v2493
      %v5180 = vpop.f32.mrb[0].mxu0
      %v5181 = vadd.f32 %v5088, %v5180
      %v5182 = vpop.f32.mrb[0].mxu0
      %v5183 = vadd.f32 %v5090, %v5182
      %v5184 = vpop.f32.mrb[0].mxu0
      %v5185 = vadd.f32 %v5092, %v5184
      %v5186 = vpop.f32.mrb[0].mxu0
      %v5187 = vadd.f32 %v5094, %v5186
      %5188 = vmatprep.mubr.bf16.mxu0 %v2519
      %5189 = vmatmul.mubr.bf16.gmra.mrb[0].mxu0 %v2518
      %v5190 = vpop.f32.mrb[0].mxu0
      %v5191 = vadd.f32 %v5098, %v5190
      %v5192 = vpop.f32.mrb[0].mxu0
      %v5193 = vadd.f32 %v5100, %v5192
      %v5194 = vpop.f32.mrb[0].mxu0
      %v5195 = vadd.f32 %v5102, %v5194
      %v5196 = vpop.f32.mrb[0].mxu0
      %v5197 = vadd.f32 %v5104, %v5196
      %5198 = vmatprep.mubr.bf16.mxu0 %v2544
      %5199 = vmatmul.mubr.bf16.gmra.mrb[0].mxu0 %v2543
      %v5200 = vpop.f32.mrb[0].mxu0
      %v5201 = vadd.f32 %v5108, %v5200
      %v5202 = vpop.f32.mrb[0].mxu0
      %v5203 = vadd.f32 %v5110, %v5202
      %v5204 = vpop.f32.mrb[0].mxu0
      %v5205 = vadd.f32 %v5112, %v5204
      %v5206 = vpop.f32.mrb[0].mxu0
      %v5207 = vadd.f32 %v5114, %v5206
      %5208 = vmatprep.mubr.bf16.mxu0 %v2569
      %5209 = vmatmul.mubr.bf16.gmra.mrb[0].mxu0 %v2568
      %v5210 = vpop.f32.mrb[0].mxu0
      %v5211 = vadd.f32 %v5118, %v5210
      %v5212 = vpop.f32.mrb[0].mxu0
      %v5213 = vadd.f32 %v5120, %v5212
      %v5214 = vpop.f32.mrb[0].mxu0
      %v5215 = vadd.f32 %v5122, %v5214
      %v5216 = vpop.f32.mrb[0].mxu0
      %v5217 = vadd.f32 %v5124, %v5216
      %5218 = vmatprep.mubr.bf16.mxu0 %v2594
      %5219 = vmatmul.mubr.bf16.gmra.mrb[0].mxu0 %v2593
      %v5220 = vpop.f32.mrb[0].mxu0
      %v5221 = vadd.f32 %v5128, %v5220
      %v5222 = vpop.f32.mrb[0].mxu0
      %v5223 = vadd.f32 %v5130, %v5222
      %v5224 = vpop.f32.mrb[0].mxu0
      %v5225 = vadd.f32 %v5132, %v5224
      %v5226 = vpop.f32.mrb[0].mxu0
      %v5227 = vadd.f32 %v5134, %v5226
      %5228 = vmatprep.mubr.bf16.mxu0 %v2619
      %5229 = vmatmul.mubr.bf16.gmra.mrb[0].mxu0 %v2618
      %v5230 = vpop.f32.mrb[0].mxu0
      %v5231 = vadd.f32 %v5138, %v5230
      %v5232 = vpop.f32.mrb[0].mxu0
      %v5233 = vadd.f32 %v5140, %v5232
      %v5234 = vpop.f32.mrb[0].mxu0
      %v5235 = vadd.f32 %v5142, %v5234
      %v5236 = vpop.f32.mrb[0].mxu0
      %v5237 = vadd.f32 %v5144, %v5236
      %5238 = vdwg.mxu0
      %5239 = vmatprep.subr.bf16.mxu0 %v4318
      %5240 = vmatpush1.bf16.msra.mxu0 %v4317
      %5241 = vmatprep.subr.bf16.mxu0 %v4320
      %5242 = vmatpush1.bf16.msra.mxu0 %v4319
      %5243 = vmatprep.subr.bf16.mxu0 %v4322
      %5244 = vmatpush1.bf16.msra.mxu0 %v4321
      %5245 = vmatprep.subr.bf16.mxu0 %v4324
      %5246 = vmatpush1.bf16.msra.mxu0 %v4323
      %5247 = vmatprep.subr.bf16.mxu0 %v4326
      %5248 = vmatpush1.bf16.msra.mxu0 %v4325
      %5249 = vmatprep.subr.bf16.mxu0 %v4328
      %5250 = vmatpush1.bf16.msra.mxu0 %v4327
      %5251 = vmatprep.subr.bf16.mxu0 %v4330
      %5252 = vmatpush1.bf16.msra.mxu0 %v4329
      %5253 = vmatprep.subr.bf16.mxu0 %v4332
      %5254 = vmatpush1.bf16.msra.mxu0 %v4331
      %5255 = vmatprep.subr.bf16.mxu0 %v4334
      %5256 = vmatpush1.bf16.msra.mxu0 %v4333
      %5257 = vmatprep.subr.bf16.mxu0 %v4336
      %5258 = vmatpush1.bf16.msra.mxu0 %v4335
      %5259 = vmatprep.subr.bf16.mxu0 %v4338
      %5260 = vmatpush1.bf16.msra.mxu0 %v4337
      %5261 = vmatprep.subr.bf16.mxu0 %v4340
      %5262 = vmatpush1.bf16.msra.mxu0 %v4339
      %5263 = vmatprep.subr.bf16.mxu0 %v4342
      %5264 = vmatpush1.bf16.msra.mxu0 %v4341
      %5265 = vmatprep.subr.bf16.mxu0 %v4344
      %5266 = vmatpush1.bf16.msra.mxu0 %v4343
      %5267 = vmatprep.subr.bf16.mxu0 %v4346
      %5268 = vmatpush1.bf16.msra.mxu0 %v4345
      %5269 = vmatprep.subr.bf16.mxu0 %v4348
      %5270 = vmatpush1.bf16.msra.mxu0 %v4347
      %5271 = vmatprep.mubr.bf16.mxu0 %v2496
      %5272 = vmatmul.mubr.bf16.gmra.mrb[0].mxu0 %v2495
      %v5273 = vpop.f32.mrb[0].mxu0
      %v5274 = vadd.f32 %v5181, %v5273
      %v5275 = vpop.f32.mrb[0].mxu0
      %v5276 = vadd.f32 %v5183, %v5275
      %v5277 = vpop.f32.mrb[0].mxu0
      %v5278 = vadd.f32 %v5185, %v5277
      %v5279 = vpop.f32.mrb[0].mxu0
      %v5280 = vadd.f32 %v5187, %v5279
      %5281 = vmatprep.mubr.bf16.mxu0 %v2521
      %5282 = vmatmul.mubr.bf16.gmra.mrb[0].mxu0 %v2520
      %v5283 = vpop.f32.mrb[0].mxu0
      %v5284 = vadd.f32 %v5191, %v5283
      %v5285 = vpop.f32.mrb[0].mxu0
      %v5286 = vadd.f32 %v5193, %v5285
      %v5287 = vpop.f32.mrb[0].mxu0
      %v5288 = vadd.f32 %v5195, %v5287
      %v5289 = vpop.f32.mrb[0].mxu0
      %v5290 = vadd.f32 %v5197, %v5289
      %5291 = vmatprep.mubr.bf16.mxu0 %v2546
      %5292 = vmatmul.mubr.bf16.gmra.mrb[0].mxu0 %v2545
      %v5293 = vpop.f32.mrb[0].mxu0
      %v5294 = vadd.f32 %v5201, %v5293
      %v5295 = vpop.f32.mrb[0].mxu0
      %v5296 = vadd.f32 %v5203, %v5295
      %v5297 = vpop.f32.mrb[0].mxu0
      %v5298 = vadd.f32 %v5205, %v5297
      %v5299 = vpop.f32.mrb[0].mxu0
      %v5300 = vadd.f32 %v5207, %v5299
      %5301 = vmatprep.mubr.bf16.mxu0 %v2571
      %5302 = vmatmul.mubr.bf16.gmra.mrb[0].mxu0 %v2570
      %v5303 = vpop.f32.mrb[0].mxu0
      %v5304 = vadd.f32 %v5211, %v5303
      %v5305 = vpop.f32.mrb[0].mxu0
      %v5306 = vadd.f32 %v5213, %v5305
      %v5307 = vpop.f32.mrb[0].mxu0
      %v5308 = vadd.f32 %v5215, %v5307
      %v5309 = vpop.f32.mrb[0].mxu0
      %v5310 = vadd.f32 %v5217, %v5309
      %5311 = vmatprep.mubr.bf16.mxu0 %v2596
      %5312 = vmatmul.mubr.bf16.gmra.mrb[0].mxu0 %v2595
      %v5313 = vpop.f32.mrb[0].mxu0
      %v5314 = vadd.f32 %v5221, %v5313
      %v5315 = vpop.f32.mrb[0].mxu0
      %v5316 = vadd.f32 %v5223, %v5315
      %v5317 = vpop.f32.mrb[0].mxu0
      %v5318 = vadd.f32 %v5225, %v5317
      %v5319 = vpop.f32.mrb[0].mxu0
      %v5320 = vadd.f32 %v5227, %v5319
      %5321 = vmatprep.mubr.bf16.mxu0 %v2621
      %5322 = vmatmul.mubr.bf16.gmra.mrb[0].mxu0 %v2620
      %v5323 = vpop.f32.mrb[0].mxu0
      %v5324 = vadd.f32 %v5231, %v5323
      %v5325 = vpop.f32.mrb[0].mxu0
      %v5326 = vadd.f32 %v5233, %v5325
      %v5327 = vpop.f32.mrb[0].mxu0
      %v5328 = vadd.f32 %v5235, %v5327
      %v5329 = vpop.f32.mrb[0].mxu0
      %v5330 = vadd.f32 %v5237, %v5329
      %5331 = vdwg.mxu0
      %5332 = vmatprep.subr.bf16.mxu0 %v4350
      %5333 = vmatpush1.bf16.msra.mxu0 %v4349
      %5334 = vmatprep.subr.bf16.mxu0 %v4352
      %5335 = vmatpush1.bf16.msra.mxu0 %v4351
      %5336 = vmatprep.subr.bf16.mxu0 %v4354
      %5337 = vmatpush1.bf16.msra.mxu0 %v4353
      %5338 = vmatprep.subr.bf16.mxu0 %v4356
      %5339 = vmatpush1.bf16.msra.mxu0 %v4355
      %5340 = vmatprep.subr.bf16.mxu0 %v4358
      %5341 = vmatpush1.bf16.msra.mxu0 %v4357
      %5342 = vmatprep.subr.bf16.mxu0 %v4360
      %5343 = vmatpush1.bf16.msra.mxu0 %v4359
      %5344 = vmatprep.subr.bf16.mxu0 %v4362
      %5345 = vmatpush1.bf16.msra.mxu0 %v4361
      %5346 = vmatprep.subr.bf16.mxu0 %v4364
      %5347 = vmatpush1.bf16.msra.mxu0 %v4363
      %5348 = vmatprep.subr.bf16.mxu0 %v4366
      %5349 = vmatpush1.bf16.msra.mxu0 %v4365
      %5350 = vmatprep.subr.bf16.mxu0 %v4368
      %5351 = vmatpush1.bf16.msra.mxu0 %v4367
      %5352 = vmatprep.subr.bf16.mxu0 %v4370
      %5353 = vmatpush1.bf16.msra.mxu0 %v4369
      %5354 = vmatprep.subr.bf16.mxu0 %v4372
      %5355 = vmatpush1.bf16.msra.mxu0 %v4371
      %5356 = vmatprep.subr.bf16.mxu0 %v4374
      %5357 = vmatpush1.bf16.msra.mxu0 %v4373
      %5358 = vmatprep.subr.bf16.mxu0 %v4376
      %5359 = vmatpush1.bf16.msra.mxu0 %v4375
      %5360 = vmatprep.subr.bf16.mxu0 %v4378
      %5361 = vmatpush1.bf16.msra.mxu0 %v4377
      %5362 = vmatprep.subr.bf16.mxu0 %v4380
      %5363 = vmatpush1.bf16.msra.mxu0 %v4379
      %5364 = vmatprep.mubr.bf16.mxu0 %v2498
      %5365 = vmatmul.mubr.bf16.gmra.mrb[0].mxu0 %v2497
      %v5366 = vpop.f32.mrb[0].mxu0
      %v5367 = vadd.f32 %v5274, %v5366
      %v5368 = vpop.f32.mrb[0].mxu0
      %v5369 = vadd.f32 %v5276, %v5368
      %v5370 = vpop.f32.mrb[0].mxu0
      %v5371 = vadd.f32 %v5278, %v5370
      %v5372 = vpop.f32.mrb[0].mxu0
      %v5373 = vadd.f32 %v5280, %v5372
      %5374 = vmatprep.mubr.bf16.mxu0 %v2523
      %5375 = vmatmul.mubr.bf16.gmra.mrb[0].mxu0 %v2522
      %v5376 = vpop.f32.mrb[0].mxu0
      %v5377 = vadd.f32 %v5284, %v5376
      %v5378 = vpop.f32.mrb[0].mxu0
      %v5379 = vadd.f32 %v5286, %v5378
      %v5380 = vpop.f32.mrb[0].mxu0
      %v5381 = vadd.f32 %v5288, %v5380
      %v5382 = vpop.f32.mrb[0].mxu0
      %v5383 = vadd.f32 %v5290, %v5382
      %5384 = vmatprep.mubr.bf16.mxu0 %v2548
      %5385 = vmatmul.mubr.bf16.gmra.mrb[0].mxu0 %v2547
      %v5386 = vpop.f32.mrb[0].mxu0
      %v5387 = vadd.f32 %v5294, %v5386
      %v5388 = vpop.f32.mrb[0].mxu0
      %v5389 = vadd.f32 %v5296, %v5388
      %v5390 = vpop.f32.mrb[0].mxu0
      %v5391 = vadd.f32 %v5298, %v5390
      %v5392 = vpop.f32.mrb[0].mxu0
      %v5393 = vadd.f32 %v5300, %v5392
      %5394 = vmatprep.mubr.bf16.mxu0 %v2573
      %5395 = vmatmul.mubr.bf16.gmra.mrb[0].mxu0 %v2572
      %v5396 = vpop.f32.mrb[0].mxu0
      %v5397 = vadd.f32 %v5304, %v5396
      %v5398 = vpop.f32.mrb[0].mxu0
      %v5399 = vadd.f32 %v5306, %v5398
      %v5400 = vpop.f32.mrb[0].mxu0
      %v5401 = vadd.f32 %v5308, %v5400
      %v5402 = vpop.f32.mrb[0].mxu0
      %v5403 = vadd.f32 %v5310, %v5402
      %5404 = vmatprep.mubr.bf16.mxu0 %v2598
      %5405 = vmatmul.mubr.bf16.gmra.mrb[0].mxu0 %v2597
      %v5406 = vpop.f32.mrb[0].mxu0
      %v5407 = vadd.f32 %v5314, %v5406
      %v5408 = vpop.f32.mrb[0].mxu0
      %v5409 = vadd.f32 %v5316, %v5408
      %v5410 = vpop.f32.mrb[0].mxu0
      %v5411 = vadd.f32 %v5318, %v5410
      %v5412 = vpop.f32.mrb[0].mxu0
      %v5413 = vadd.f32 %v5320, %v5412
      %5414 = vmatprep.mubr.bf16.mxu0 %v2623
      %5415 = vmatmul.mubr.bf16.gmra.mrb[0].mxu0 %v2622
      %v5416 = vpop.f32.mrb[0].mxu0
      %v5417 = vadd.f32 %v5324, %v5416
      %v5418 = vpop.f32.mrb[0].mxu0
      %v5419 = vadd.f32 %v5326, %v5418
      %v5420 = vpop.f32.mrb[0].mxu0
      %v5421 = vadd.f32 %v5328, %v5420
      %v5422 = vpop.f32.mrb[0].mxu0
      %v5423 = vadd.f32 %v5330, %v5422
      %5424 = vdwg.mxu0
      %5425 = vmatprep.subr.bf16.mxu0 %v4382
      %5426 = vmatpush1.bf16.msra.mxu0 %v4381
      %5427 = vmatprep.subr.bf16.mxu0 %v4384
      %5428 = vmatpush1.bf16.msra.mxu0 %v4383
      %5429 = vmatprep.subr.bf16.mxu0 %v4386
      %5430 = vmatpush1.bf16.msra.mxu0 %v4385
      %5431 = vmatprep.subr.bf16.mxu0 %v4388
      %5432 = vmatpush1.bf16.msra.mxu0 %v4387
      %5433 = vmatprep.subr.bf16.mxu0 %v4390
      %5434 = vmatpush1.bf16.msra.mxu0 %v4389
      %5435 = vmatprep.subr.bf16.mxu0 %v4392
      %5436 = vmatpush1.bf16.msra.mxu0 %v4391
      %5437 = vmatprep.subr.bf16.mxu0 %v4394
      %5438 = vmatpush1.bf16.msra.mxu0 %v4393
      %5439 = vmatprep.subr.bf16.mxu0 %v4396
      %5440 = vmatpush1.bf16.msra.mxu0 %v4395
      %5441 = vmatprep.subr.bf16.mxu0 %v4398
      %5442 = vmatpush1.bf16.msra.mxu0 %v4397
      %5443 = vmatprep.subr.bf16.mxu0 %v4400
      %5444 = vmatpush1.bf16.msra.mxu0 %v4399
      %5445 = vmatprep.subr.bf16.mxu0 %v4402
      %5446 = vmatpush1.bf16.msra.mxu0 %v4401
      %5447 = vmatprep.subr.bf16.mxu0 %v4404
      %5448 = vmatpush1.bf16.msra.mxu0 %v4403
      %5449 = vmatprep.subr.bf16.mxu0 %v4406
      %5450 = vmatpush1.bf16.msra.mxu0 %v4405
      %5451 = vmatprep.subr.bf16.mxu0 %v4408
      %5452 = vmatpush1.bf16.msra.mxu0 %v4407
      %5453 = vmatprep.subr.bf16.mxu0 %v4410
      %5454 = vmatpush1.bf16.msra.mxu0 %v4409
      %5455 = vmatprep.subr.bf16.mxu0 %v4412
      %5456 = vmatpush1.bf16.msra.mxu0 %v4411
      %5457 = vmatprep.mubr.bf16.mxu0 %v2500
      %5458 = vmatmul.mubr.bf16.gmra.mrb[0].mxu0 %v2499
      %v5459 = vpop.f32.mrb[0].mxu0
      %v5460 = vadd.f32 %v5367, %v5459
      %v5461 = vpop.f32.mrb[0].mxu0
      %v5462 = vadd.f32 %v5369, %v5461
      %v5463 = vpop.f32.mrb[0].mxu0
      %v5464 = vadd.f32 %v5371, %v5463
      %v5465 = vpop.f32.mrb[0].mxu0
      %v5466 = vadd.f32 %v5373, %v5465
      %5467 = vmatprep.mubr.bf16.mxu0 %v2525
      %5468 = vmatmul.mubr.bf16.gmra.mrb[0].mxu0 %v2524
      %v5469 = vpop.f32.mrb[0].mxu0
      %v5470 = vadd.f32 %v5377, %v5469
      %v5471 = vpop.f32.mrb[0].mxu0
      %v5472 = vadd.f32 %v5379, %v5471
      %v5473 = vpop.f32.mrb[0].mxu0
      %v5474 = vadd.f32 %v5381, %v5473
      %v5475 = vpop.f32.mrb[0].mxu0
      %v5476 = vadd.f32 %v5383, %v5475
      %5477 = vmatprep.mubr.bf16.mxu0 %v2550
      %5478 = vmatmul.mubr.bf16.gmra.mrb[0].mxu0 %v2549
      %v5479 = vpop.f32.mrb[0].mxu0
      %v5480 = vadd.f32 %v5387, %v5479
      %v5481 = vpop.f32.mrb[0].mxu0
      %v5482 = vadd.f32 %v5389, %v5481
      %v5483 = vpop.f32.mrb[0].mxu0
      %v5484 = vadd.f32 %v5391, %v5483
      %v5485 = vpop.f32.mrb[0].mxu0
      %v5486 = vadd.f32 %v5393, %v5485
      %5487 = vmatprep.mubr.bf16.mxu0 %v2575
      %5488 = vmatmul.mubr.bf16.gmra.mrb[0].mxu0 %v2574
      %v5489 = vpop.f32.mrb[0].mxu0
      %v5490 = vadd.f32 %v5397, %v5489
      %v5491 = vpop.f32.mrb[0].mxu0
      %v5492 = vadd.f32 %v5399, %v5491
      %v5493 = vpop.f32.mrb[0].mxu0
      %v5494 = vadd.f32 %v5401, %v5493
      %v5495 = vpop.f32.mrb[0].mxu0
      %v5496 = vadd.f32 %v5403, %v5495
      %5497 = vmatprep.mubr.bf16.mxu0 %v2600
      %5498 = vmatmul.mubr.bf16.gmra.mrb[0].mxu0 %v2599
      %v5499 = vpop.f32.mrb[0].mxu0
      %v5500 = vadd.f32 %v5407, %v5499
      %v5501 = vpop.f32.mrb[0].mxu0
      %v5502 = vadd.f32 %v5409, %v5501
      %v5503 = vpop.f32.mrb[0].mxu0
      %v5504 = vadd.f32 %v5411, %v5503
      %v5505 = vpop.f32.mrb[0].mxu0
      %v5506 = vadd.f32 %v5413, %v5505
      %5507 = vmatprep.mubr.bf16.mxu0 %v2625
      %5508 = vmatmul.mubr.bf16.gmra.mrb[0].mxu0 %v2624
      %v5509 = vpop.f32.mrb[0].mxu0
      %v5510 = vadd.f32 %v5417, %v5509
      %v5511 = vpop.f32.mrb[0].mxu0
      %v5512 = vadd.f32 %v5419, %v5511
      %v5513 = vpop.f32.mrb[0].mxu0
      %v5514 = vadd.f32 %v5421, %v5513
      %v5515 = vpop.f32.mrb[0].mxu0
      %v5516 = vadd.f32 %v5423, %v5515
      %5517 = vdwg.mxu0
      %5518 = vmatprep.subr.bf16.mxu0 %v4414
      %5519 = vmatpush1.bf16.msra.mxu0 %v4413
      %5520 = vmatprep.subr.bf16.mxu0 %v4416
      %5521 = vmatpush1.bf16.msra.mxu0 %v4415
      %5522 = vmatprep.subr.bf16.mxu0 %v4418
      %5523 = vmatpush1.bf16.msra.mxu0 %v4417
      %5524 = vmatprep.subr.bf16.mxu0 %v4420
      %5525 = vmatpush1.bf16.msra.mxu0 %v4419
      %5526 = vmatprep.subr.bf16.mxu0 %v4422
      %5527 = vmatpush1.bf16.msra.mxu0 %v4421
      %5528 = vmatprep.subr.bf16.mxu0 %v4424
      %5529 = vmatpush1.bf16.msra.mxu0 %v4423
      %5530 = vmatprep.subr.bf16.mxu0 %v4426
      %5531 = vmatpush1.bf16.msra.mxu0 %v4425
      %5532 = vmatprep.subr.bf16.mxu0 %v4428
      %5533 = vmatpush1.bf16.msra.mxu0 %v4427
      %5534 = vmatprep.subr.bf16.mxu0 %v4430
      %5535 = vmatpush1.bf16.msra.mxu0 %v4429
      %5536 = vmatprep.subr.bf16.mxu0 %v4432
      %5537 = vmatpush1.bf16.msra.mxu0 %v4431
      %5538 = vmatprep.subr.bf16.mxu0 %v4434
      %5539 = vmatpush1.bf16.msra.mxu0 %v4433
      %5540 = vmatprep.subr.bf16.mxu0 %v4436
      %5541 = vmatpush1.bf16.msra.mxu0 %v4435
      %5542 = vmatprep.subr.bf16.mxu0 %v4438
      %5543 = vmatpush1.bf16.msra.mxu0 %v4437
      %5544 = vmatprep.subr.bf16.mxu0 %v4440
      %5545 = vmatpush1.bf16.msra.mxu0 %v4439
      %5546 = vmatprep.subr.bf16.mxu0 %v4442
      %5547 = vmatpush1.bf16.msra.mxu0 %v4441
      %5548 = vmatprep.subr.bf16.mxu0 %v4444
      %5549 = vmatpush1.bf16.msra.mxu0 %v4443
      %5550 = vmatprep.mubr.bf16.mxu0 %v2502
      %5551 = vmatmul.mubr.bf16.gmra.mrb[0].mxu0 %v2501
      %v5552 = vpop.f32.mrb[0].mxu0
      %v5553 = vadd.f32 %v5460, %v5552
      %v5554 = vpop.f32.mrb[0].mxu0
      %v5555 = vadd.f32 %v5462, %v5554
      %v5556 = vpop.f32.mrb[0].mxu0
      %v5557 = vadd.f32 %v5464, %v5556
      %v5558 = vpop.f32.mrb[0].mxu0
      %v5559 = vadd.f32 %v5466, %v5558
      %5560 = vmatprep.mubr.bf16.mxu0 %v2527
      %5561 = vmatmul.mubr.bf16.gmra.mrb[0].mxu0 %v2526
      %v5562 = vpop.f32.mrb[0].mxu0
      %v5563 = vadd.f32 %v5470, %v5562
      %v5564 = vpop.f32.mrb[0].mxu0
      %v5565 = vadd.f32 %v5472, %v5564
      %v5566 = vpop.f32.mrb[0].mxu0
      %v5567 = vadd.f32 %v5474, %v5566
      %v5568 = vpop.f32.mrb[0].mxu0
      %v5569 = vadd.f32 %v5476, %v5568
      %5570 = vmatprep.mubr.bf16.mxu0 %v2552
      %5571 = vmatmul.mubr.bf16.gmra.mrb[0].mxu0 %v2551
      %v5572 = vpop.f32.mrb[0].mxu0
      %v5573 = vadd.f32 %v5480, %v5572
      %v5574 = vpop.f32.mrb[0].mxu0
      %v5575 = vadd.f32 %v5482, %v5574
      %v5576 = vpop.f32.mrb[0].mxu0
      %v5577 = vadd.f32 %v5484, %v5576
      %v5578 = vpop.f32.mrb[0].mxu0
      %v5579 = vadd.f32 %v5486, %v5578
      %5580 = vmatprep.mubr.bf16.mxu0 %v2577
      %5581 = vmatmul.mubr.bf16.gmra.mrb[0].mxu0 %v2576
      %v5582 = vpop.f32.mrb[0].mxu0
      %v5583 = vadd.f32 %v5490, %v5582
      %v5584 = vpop.f32.mrb[0].mxu0
      %v5585 = vadd.f32 %v5492, %v5584
      %v5586 = vpop.f32.mrb[0].mxu0
      %v5587 = vadd.f32 %v5494, %v5586
      %v5588 = vpop.f32.mrb[0].mxu0
      %v5589 = vadd.f32 %v5496, %v5588
      %5590 = vmatprep.mubr.bf16.mxu0 %v2602
      %5591 = vmatmul.mubr.bf16.gmra.mrb[0].mxu0 %v2601
      %v5592 = vpop.f32.mrb[0].mxu0
      %v5593 = vadd.f32 %v5500, %v5592
      %v5594 = vpop.f32.mrb[0].mxu0
      %v5595 = vadd.f32 %v5502, %v5594
      %v5596 = vpop.f32.mrb[0].mxu0
      %v5597 = vadd.f32 %v5504, %v5596
      %v5598 = vpop.f32.mrb[0].mxu0
      %v5599 = vadd.f32 %v5506, %v5598
      %5600 = vmatprep.mubr.bf16.mxu0 %v2627
      %5601 = vmatmul.mubr.bf16.gmra.mrb[0].mxu0 %v2626
      %v5602 = vpop.f32.mrb[0].mxu0
      %v5603 = vadd.f32 %v5510, %v5602
      %v5604 = vpop.f32.mrb[0].mxu0
      %v5605 = vadd.f32 %v5512, %v5604
      %v5606 = vpop.f32.mrb[0].mxu0
      %v5607 = vadd.f32 %v5514, %v5606
      %v5608 = vpop.f32.mrb[0].mxu0
      %v5609 = vadd.f32 %v5516, %v5608
      %5610 = vdwg.mxu0
      %5611 = vmatprep.subr.bf16.mxu0 %v4446
      %5612 = vmatpush1.bf16.msra.mxu0 %v4445
      %5613 = vmatprep.subr.bf16.mxu0 %v4448
      %5614 = vmatpush1.bf16.msra.mxu0 %v4447
      %5615 = vmatprep.subr.bf16.mxu0 %v4450
      %5616 = vmatpush1.bf16.msra.mxu0 %v4449
      %5617 = vmatprep.subr.bf16.mxu0 %v4452
      %5618 = vmatpush1.bf16.msra.mxu0 %v4451
      %5619 = vmatprep.subr.bf16.mxu0 %v4454
      %5620 = vmatpush1.bf16.msra.mxu0 %v4453
      %5621 = vmatprep.subr.bf16.mxu0 %v4456
      %5622 = vmatpush1.bf16.msra.mxu0 %v4455
      %5623 = vmatprep.subr.bf16.mxu0 %v4458
      %5624 = vmatpush1.bf16.msra.mxu0 %v4457
      %5625 = vmatprep.subr.bf16.mxu0 %v4460
      %5626 = vmatpush1.bf16.msra.mxu0 %v4459
      %5627 = vmatprep.subr.bf16.mxu0 %v4462
      %5628 = vmatpush1.bf16.msra.mxu0 %v4461
      %5629 = vmatprep.subr.bf16.mxu0 %v4464
      %5630 = vmatpush1.bf16.msra.mxu0 %v4463
      %5631 = vmatprep.subr.bf16.mxu0 %v4466
      %5632 = vmatpush1.bf16.msra.mxu0 %v4465
      %5633 = vmatprep.subr.bf16.mxu0 %v4468
      %5634 = vmatpush1.bf16.msra.mxu0 %v4467
      %5635 = vmatprep.subr.bf16.mxu0 %v4470
      %5636 = vmatpush1.bf16.msra.mxu0 %v4469
      %5637 = vmatprep.subr.bf16.mxu0 %v4472
      %5638 = vmatpush1.bf16.msra.mxu0 %v4471
      %5639 = vmatprep.subr.bf16.mxu0 %v4474
      %5640 = vmatpush1.bf16.msra.mxu0 %v4473
      %5641 = vmatprep.subr.bf16.mxu0 %v4476
      %5642 = vmatpush1.bf16.msra.mxu0 %v4475
      %5643 = vmatprep.mubr.bf16.mxu0 %v2504
      %5644 = vmatmul.mubr.bf16.gmra.mrb[0].mxu0 %v2503
      %v5645 = vpop.f32.mrb[0].mxu0
      %v5646 = vadd.f32 %v5553, %v5645
      %v5647 = vpop.f32.mrb[0].mxu0
      %v5648 = vadd.f32 %v5555, %v5647
      %v5649 = vpop.f32.mrb[0].mxu0
      %v5650 = vadd.f32 %v5557, %v5649
      %v5651 = vpop.f32.mrb[0].mxu0
      %v5652 = vadd.f32 %v5559, %v5651
      %5653 = vmatprep.mubr.bf16.mxu0 %v2529
      %5654 = vmatmul.mubr.bf16.gmra.mrb[0].mxu0 %v2528
      %v5655 = vpop.f32.mrb[0].mxu0
      %v5656 = vadd.f32 %v5563, %v5655
      %v5657 = vpop.f32.mrb[0].mxu0
      %v5658 = vadd.f32 %v5565, %v5657
      %v5659 = vpop.f32.mrb[0].mxu0
      %v5660 = vadd.f32 %v5567, %v5659
      %v5661 = vpop.f32.mrb[0].mxu0
      %v5662 = vadd.f32 %v5569, %v5661
      %5663 = vmatprep.mubr.bf16.mxu0 %v2554
      %5664 = vmatmul.mubr.bf16.gmra.mrb[0].mxu0 %v2553
      %v5665 = vpop.f32.mrb[0].mxu0
      %v5666 = vadd.f32 %v5573, %v5665
      %v5667 = vpop.f32.mrb[0].mxu0
      %v5668 = vadd.f32 %v5575, %v5667
      %v5669 = vpop.f32.mrb[0].mxu0
      %v5670 = vadd.f32 %v5577, %v5669
      %v5671 = vpop.f32.mrb[0].mxu0
      %v5672 = vadd.f32 %v5579, %v5671
      %5673 = vmatprep.mubr.bf16.mxu0 %v2579
      %5674 = vmatmul.mubr.bf16.gmra.mrb[0].mxu0 %v2578
      %v5675 = vpop.f32.mrb[0].mxu0
      %v5676 = vadd.f32 %v5583, %v5675
      %v5677 = vpop.f32.mrb[0].mxu0
      %v5678 = vadd.f32 %v5585, %v5677
      %v5679 = vpop.f32.mrb[0].mxu0
      %v5680 = vadd.f32 %v5587, %v5679
      %v5681 = vpop.f32.mrb[0].mxu0
      %v5682 = vadd.f32 %v5589, %v5681
      %5683 = vmatprep.mubr.bf16.mxu0 %v2604
      %5684 = vmatmul.mubr.bf16.gmra.mrb[0].mxu0 %v2603
      %v5685 = vpop.f32.mrb[0].mxu0
      %v5686 = vadd.f32 %v5593, %v5685
      %v5687 = vpop.f32.mrb[0].mxu0
      %v5688 = vadd.f32 %v5595, %v5687
      %v5689 = vpop.f32.mrb[0].mxu0
      %v5690 = vadd.f32 %v5597, %v5689
      %v5691 = vpop.f32.mrb[0].mxu0
      %v5692 = vadd.f32 %v5599, %v5691
      %5693 = vmatprep.mubr.bf16.mxu0 %v2629
      %5694 = vmatmul.mubr.bf16.gmra.mrb[0].mxu0 %v2628
      %v5695 = vpop.f32.mrb[0].mxu0
      %v5696 = vadd.f32 %v5603, %v5695
      %v5697 = vpop.f32.mrb[0].mxu0
      %v5698 = vadd.f32 %v5605, %v5697
      %v5699 = vpop.f32.mrb[0].mxu0
      %v5700 = vadd.f32 %v5607, %v5699
      %v5701 = vpop.f32.mrb[0].mxu0
      %v5702 = vadd.f32 %v5609, %v5701
      %5703 = vdwg.mxu0
      %5704 = vmatprep.subr.bf16.mxu0 %v4478
      %5705 = vmatpush1.bf16.msra.mxu0 %v4477
      %5706 = vmatprep.subr.bf16.mxu0 %v4480
      %5707 = vmatpush1.bf16.msra.mxu0 %v4479
      %5708 = vmatprep.subr.bf16.mxu0 %v4482
      %5709 = vmatpush1.bf16.msra.mxu0 %v4481
      %5710 = vmatprep.subr.bf16.mxu0 %v4484
      %5711 = vmatpush1.bf16.msra.mxu0 %v4483
      %5712 = vmatprep.subr.bf16.mxu0 %v4486
      %5713 = vmatpush1.bf16.msra.mxu0 %v4485
      %5714 = vmatprep.subr.bf16.mxu0 %v4488
      %5715 = vmatpush1.bf16.msra.mxu0 %v4487
      %5716 = vmatprep.subr.bf16.mxu0 %v4490
      %5717 = vmatpush1.bf16.msra.mxu0 %v4489
      %5718 = vmatprep.subr.bf16.mxu0 %v4492
      %5719 = vmatpush1.bf16.msra.mxu0 %v4491
      %5720 = vmatprep.subr.bf16.mxu0 %v4494
      %5721 = vmatpush1.bf16.msra.mxu0 %v4493
      %5722 = vmatprep.subr.bf16.mxu0 %v4496
      %5723 = vmatpush1.bf16.msra.mxu0 %v4495
      %5724 = vmatprep.subr.bf16.mxu0 %v4498
      %5725 = vmatpush1.bf16.msra.mxu0 %v4497
      %5726 = vmatprep.subr.bf16.mxu0 %v4500
      %5727 = vmatpush1.bf16.msra.mxu0 %v4499
      %5728 = vmatprep.subr.bf16.mxu0 %v4502
      %5729 = vmatpush1.bf16.msra.mxu0 %v4501
      %5730 = vmatprep.subr.bf16.mxu0 %v4504
      %5731 = vmatpush1.bf16.msra.mxu0 %v4503
      %5732 = vmatprep.subr.bf16.mxu0 %v4506
      %5733 = vmatpush1.bf16.msra.mxu0 %v4505
      %5734 = vmatprep.subr.bf16.mxu0 %v4508
      %5735 = vmatpush1.bf16.msra.mxu0 %v4507
      %5736 = vmatprep.mubr.bf16.mxu0 %v2506
      %5737 = vmatmul.mubr.bf16.gmra.mrb[0].mxu0 %v2505
      %v5738 = vpop.f32.mrb[0].mxu0
      %v5739 = vadd.f32 %v5646, %v5738
      %v5740 = vpop.f32.mrb[0].mxu0
      %v5741 = vadd.f32 %v5648, %v5740
      %v5742 = vpop.f32.mrb[0].mxu0
      %v5743 = vadd.f32 %v5650, %v5742
      %v5744 = vpop.f32.mrb[0].mxu0
      %v5745 = vadd.f32 %v5652, %v5744
      %5746 = vmatprep.mubr.bf16.mxu0 %v2531
      %5747 = vmatmul.mubr.bf16.gmra.mrb[0].mxu0 %v2530
      %v5748 = vpop.f32.mrb[0].mxu0
      %v5749 = vadd.f32 %v5656, %v5748
      %v5750 = vpop.f32.mrb[0].mxu0
      %v5751 = vadd.f32 %v5658, %v5750
      %v5752 = vpop.f32.mrb[0].mxu0
      %v5753 = vadd.f32 %v5660, %v5752
      %v5754 = vpop.f32.mrb[0].mxu0
      %v5755 = vadd.f32 %v5662, %v5754
      %5756 = vmatprep.mubr.bf16.mxu0 %v2556
      %5757 = vmatmul.mubr.bf16.gmra.mrb[0].mxu0 %v2555
      %v5758 = vpop.f32.mrb[0].mxu0
      %v5759 = vadd.f32 %v5666, %v5758
      %v5760 = vpop.f32.mrb[0].mxu0
      %v5761 = vadd.f32 %v5668, %v5760
      %v5762 = vpop.f32.mrb[0].mxu0
      %v5763 = vadd.f32 %v5670, %v5762
      %v5764 = vpop.f32.mrb[0].mxu0
      %v5765 = vadd.f32 %v5672, %v5764
      %5766 = vmatprep.mubr.bf16.mxu0 %v2581
      %5767 = vmatmul.mubr.bf16.gmra.mrb[0].mxu0 %v2580
      %v5768 = vpop.f32.mrb[0].mxu0
      %v5769 = vadd.f32 %v5676, %v5768
      %v5770 = vpop.f32.mrb[0].mxu0
      %v5771 = vadd.f32 %v5678, %v5770
      %v5772 = vpop.f32.mrb[0].mxu0
      %v5773 = vadd.f32 %v5680, %v5772
      %v5774 = vpop.f32.mrb[0].mxu0
      %v5775 = vadd.f32 %v5682, %v5774
      %5776 = vmatprep.mubr.bf16.mxu0 %v2606
      %5777 = vmatmul.mubr.bf16.gmra.mrb[0].mxu0 %v2605
      %v5778 = vpop.f32.mrb[0].mxu0
      %v5779 = vadd.f32 %v5686, %v5778
      %v5780 = vpop.f32.mrb[0].mxu0
      %v5781 = vadd.f32 %v5688, %v5780
      %v5782 = vpop.f32.mrb[0].mxu0
      %v5783 = vadd.f32 %v5690, %v5782
      %v5784 = vpop.f32.mrb[0].mxu0
      %v5785 = vadd.f32 %v5692, %v5784
      %5786 = vmatprep.mubr.bf16.mxu0 %v2631
      %5787 = vmatmul.mubr.bf16.gmra.mrb[0].mxu0 %v2630
      %v5788 = vpop.f32.mrb[0].mxu0
      %v5789 = vadd.f32 %v5696, %v5788
      %v5790 = vpop.f32.mrb[0].mxu0
      %v5791 = vadd.f32 %v5698, %v5790
      %v5792 = vpop.f32.mrb[0].mxu0
      %v5793 = vadd.f32 %v5700, %v5792
      %v5794 = vpop.f32.mrb[0].mxu0
      %v5795 = vadd.f32 %v5702, %v5794
      %5796 = vdwg.mxu0
      %5797 = vmatprep.subr.bf16.mxu0 %v4510
      %5798 = vmatpush1.bf16.msra.mxu0 %v4509
      %5799 = vmatprep.subr.bf16.mxu0 %v4512
      %5800 = vmatpush1.bf16.msra.mxu0 %v4511
      %5801 = vmatprep.subr.bf16.mxu0 %v4514
      %5802 = vmatpush1.bf16.msra.mxu0 %v4513
      %5803 = vmatprep.subr.bf16.mxu0 %v4516
      %5804 = vmatpush1.bf16.msra.mxu0 %v4515
      %5805 = vmatprep.subr.bf16.mxu0 %v4518
      %5806 = vmatpush1.bf16.msra.mxu0 %v4517
      %5807 = vmatprep.subr.bf16.mxu0 %v4520
      %5808 = vmatpush1.bf16.msra.mxu0 %v4519
      %5809 = vmatprep.subr.bf16.mxu0 %v4522
      %5810 = vmatpush1.bf16.msra.mxu0 %v4521
      %5811 = vmatprep.subr.bf16.mxu0 %v4524
      %5812 = vmatpush1.bf16.msra.mxu0 %v4523
      %5813 = vmatprep.subr.bf16.mxu0 %v4526
      %5814 = vmatpush1.bf16.msra.mxu0 %v4525
      %5815 = vmatprep.subr.bf16.mxu0 %v4528
      %5816 = vmatpush1.bf16.msra.mxu0 %v4527
      %5817 = vmatprep.subr.bf16.mxu0 %v4530
      %5818 = vmatpush1.bf16.msra.mxu0 %v4529
      %5819 = vmatprep.subr.bf16.mxu0 %v4532
      %5820 = vmatpush1.bf16.msra.mxu0 %v4531
      %5821 = vmatprep.subr.bf16.mxu0 %v4534
      %5822 = vmatpush1.bf16.msra.mxu0 %v4533
      %5823 = vmatprep.subr.bf16.mxu0 %v4536
      %5824 = vmatpush1.bf16.msra.mxu0 %v4535
      %5825 = vmatprep.subr.bf16.mxu0 %v4538
      %5826 = vmatpush1.bf16.msra.mxu0 %v4537
      %5827 = vmatprep.subr.bf16.mxu0 %v4540
      %5828 = vmatpush1.bf16.msra.mxu0 %v4539
      %5829 = vmatprep.mubr.bf16.mxu0 %v2508
      %5830 = vmatmul.mubr.bf16.gmra.mrb[0].mxu0 %v2507
      %v5831 = vpop.f32.mrb[0].mxu0
      %v5832 = vadd.f32 %v5739, %v5831
      %v5833 = vpop.f32.mrb[0].mxu0
      %v5834 = vadd.f32 %v5741, %v5833
      %v5835 = vpop.f32.mrb[0].mxu0
      %v5836 = vadd.f32 %v5743, %v5835
      %v5837 = vpop.f32.mrb[0].mxu0
      %v5838 = vadd.f32 %v5745, %v5837
      %5839 = vmatprep.mubr.bf16.mxu0 %v2533
      %5840 = vmatmul.mubr.bf16.gmra.mrb[0].mxu0 %v2532
      %v5841 = vpop.f32.mrb[0].mxu0
      %v5842 = vadd.f32 %v5749, %v5841
      %v5843 = vpop.f32.mrb[0].mxu0
      %v5844 = vadd.f32 %v5751, %v5843
      %v5845 = vpop.f32.mrb[0].mxu0
      %v5846 = vadd.f32 %v5753, %v5845
      %v5847 = vpop.f32.mrb[0].mxu0
      %v5848 = vadd.f32 %v5755, %v5847
      %5849 = vmatprep.mubr.bf16.mxu0 %v2558
      %5850 = vmatmul.mubr.bf16.gmra.mrb[0].mxu0 %v2557
      %v5851 = vpop.f32.mrb[0].mxu0
      %v5852 = vadd.f32 %v5759, %v5851
      %v5853 = vpop.f32.mrb[0].mxu0
      %v5854 = vadd.f32 %v5761, %v5853
      %v5855 = vpop.f32.mrb[0].mxu0
      %v5856 = vadd.f32 %v5763, %v5855
      %v5857 = vpop.f32.mrb[0].mxu0
      %v5858 = vadd.f32 %v5765, %v5857
      %5859 = vmatprep.mubr.bf16.mxu0 %v2583
      %5860 = vmatmul.mubr.bf16.gmra.mrb[0].mxu0 %v2582
      %v5861 = vpop.f32.mrb[0].mxu0
      %v5862 = vadd.f32 %v5769, %v5861
      %v5863 = vpop.f32.mrb[0].mxu0
      %v5864 = vadd.f32 %v5771, %v5863
      %v5865 = vpop.f32.mrb[0].mxu0
      %v5866 = vadd.f32 %v5773, %v5865
      %v5867 = vpop.f32.mrb[0].mxu0
      %v5868 = vadd.f32 %v5775, %v5867
      %5869 = vmatprep.mubr.bf16.mxu0 %v2608
      %5870 = vmatmul.mubr.bf16.gmra.mrb[0].mxu0 %v2607
      %v5871 = vpop.f32.mrb[0].mxu0
      %v5872 = vadd.f32 %v5779, %v5871
      %v5873 = vpop.f32.mrb[0].mxu0
      %v5874 = vadd.f32 %v5781, %v5873
      %v5875 = vpop.f32.mrb[0].mxu0
      %v5876 = vadd.f32 %v5783, %v5875
      %v5877 = vpop.f32.mrb[0].mxu0
      %v5878 = vadd.f32 %v5785, %v5877
      %5879 = vmatprep.mubr.bf16.mxu0 %v2633
      %5880 = vmatmul.mubr.bf16.gmra.mrb[0].mxu0 %v2632
      %v5881 = vpop.f32.mrb[0].mxu0
      %v5882 = vadd.f32 %v5789, %v5881
      %v5883 = vpop.f32.mrb[0].mxu0
      %v5884 = vadd.f32 %v5791, %v5883
      %v5885 = vpop.f32.mrb[0].mxu0
      %v5886 = vadd.f32 %v5793, %v5885
      %v5887 = vpop.f32.mrb[0].mxu0
      %v5888 = vadd.f32 %v5795, %v5887
      %5889 = vdwg.mxu0
      %5890 = vmatprep.subr.bf16.mxu0 %v4542
      %5891 = vmatpush1.bf16.msra.mxu0 %v4541
      %5892 = vmatprep.subr.bf16.mxu0 %v4544
      %5893 = vmatpush1.bf16.msra.mxu0 %v4543
      %5894 = vmatprep.subr.bf16.mxu0 %v4546
      %5895 = vmatpush1.bf16.msra.mxu0 %v4545
      %5896 = vmatprep.subr.bf16.mxu0 %v4548
      %5897 = vmatpush1.bf16.msra.mxu0 %v4547
      %5898 = vmatprep.subr.bf16.mxu0 %v4550
      %5899 = vmatpush1.bf16.msra.mxu0 %v4549
      %5900 = vmatprep.subr.bf16.mxu0 %v4552
      %5901 = vmatpush1.bf16.msra.mxu0 %v4551
      %5902 = vmatprep.subr.bf16.mxu0 %v4554
      %5903 = vmatpush1.bf16.msra.mxu0 %v4553
      %5904 = vmatprep.subr.bf16.mxu0 %v4556
      %5905 = vmatpush1.bf16.msra.mxu0 %v4555
      %5906 = vmatprep.subr.bf16.mxu0 %v4558
      %5907 = vmatpush1.bf16.msra.mxu0 %v4557
      %5908 = vmatprep.subr.bf16.mxu0 %v4560
      %5909 = vmatpush1.bf16.msra.mxu0 %v4559
      %5910 = vmatprep.subr.bf16.mxu0 %v4562
      %5911 = vmatpush1.bf16.msra.mxu0 %v4561
      %5912 = vmatprep.subr.bf16.mxu0 %v4564
      %5913 = vmatpush1.bf16.msra.mxu0 %v4563
      %5914 = vmatprep.subr.bf16.mxu0 %v4566
      %5915 = vmatpush1.bf16.msra.mxu0 %v4565
      %5916 = vmatprep.subr.bf16.mxu0 %v4568
      %5917 = vmatpush1.bf16.msra.mxu0 %v4567
      %5918 = vmatprep.subr.bf16.mxu0 %v4570
      %5919 = vmatpush1.bf16.msra.mxu0 %v4569
      %5920 = vmatprep.subr.bf16.mxu0 %v4572
      %5921 = vmatpush1.bf16.msra.mxu0 %v4571
      %5922 = vmatprep.mubr.bf16.mxu0 %v2510
      %5923 = vmatmul.mubr.bf16.gmra.mrb[0].mxu0 %v2509
      %v5924 = vpop.f32.mrb[0].mxu0
      %v5925 = vadd.f32 %v5832, %v5924
      %v5926 = vpop.f32.mrb[0].mxu0
      %v5927 = vadd.f32 %v5834, %v5926
      %v5928 = vpop.f32.mrb[0].mxu0
      %v5929 = vadd.f32 %v5836, %v5928
      %v5930 = vpop.f32.mrb[0].mxu0
      %v5931 = vadd.f32 %v5838, %v5930
      %5932 = vmatprep.mubr.bf16.mxu0 %v2535
      %5933 = vmatmul.mubr.bf16.gmra.mrb[0].mxu0 %v2534
      %v5934 = vpop.f32.mrb[0].mxu0
      %v5935 = vadd.f32 %v5842, %v5934
      %v5936 = vpop.f32.mrb[0].mxu0
      %v5937 = vadd.f32 %v5844, %v5936
      %v5938 = vpop.f32.mrb[0].mxu0
      %v5939 = vadd.f32 %v5846, %v5938
      %v5940 = vpop.f32.mrb[0].mxu0
      %v5941 = vadd.f32 %v5848, %v5940
      %5942 = vmatprep.mubr.bf16.mxu0 %v2560
      %5943 = vmatmul.mubr.bf16.gmra.mrb[0].mxu0 %v2559
      %v5944 = vpop.f32.mrb[0].mxu0
      %v5945 = vadd.f32 %v5852, %v5944
      %v5946 = vpop.f32.mrb[0].mxu0
      %v5947 = vadd.f32 %v5854, %v5946
      %v5948 = vpop.f32.mrb[0].mxu0
      %v5949 = vadd.f32 %v5856, %v5948
      %v5950 = vpop.f32.mrb[0].mxu0
      %v5951 = vadd.f32 %v5858, %v5950
      %5952 = vmatprep.mubr.bf16.mxu0 %v2585
      %5953 = vmatmul.mubr.bf16.gmra.mrb[0].mxu0 %v2584
      %v5954 = vpop.f32.mrb[0].mxu0
      %v5955 = vadd.f32 %v5862, %v5954
      %v5956 = vpop.f32.mrb[0].mxu0
      %v5957 = vadd.f32 %v5864, %v5956
      %v5958 = vpop.f32.mrb[0].mxu0
      %v5959 = vadd.f32 %v5866, %v5958
      %v5960 = vpop.f32.mrb[0].mxu0
      %v5961 = vadd.f32 %v5868, %v5960
      %5962 = vmatprep.mubr.bf16.mxu0 %v2610
      %5963 = vmatmul.mubr.bf16.gmra.mrb[0].mxu0 %v2609
      %v5964 = vpop.f32.mrb[0].mxu0
      %v5965 = vadd.f32 %v5872, %v5964
      %v5966 = vpop.f32.mrb[0].mxu0
      %v5967 = vadd.f32 %v5874, %v5966
      %v5968 = vpop.f32.mrb[0].mxu0
      %v5969 = vadd.f32 %v5876, %v5968
      %v5970 = vpop.f32.mrb[0].mxu0
      %v5971 = vadd.f32 %v5878, %v5970
      %5972 = vmatprep.mubr.bf16.mxu0 %v2635
      %5973 = vmatmul.mubr.bf16.gmra.mrb[0].mxu0 %v2634
      %v5974 = vpop.f32.mrb[0].mxu0
      %v5975 = vadd.f32 %v5882, %v5974
      %v5976 = vpop.f32.mrb[0].mxu0
      %v5977 = vadd.f32 %v5884, %v5976
      %v5978 = vpop.f32.mrb[0].mxu0
      %v5979 = vadd.f32 %v5886, %v5978
      %v5980 = vpop.f32.mrb[0].mxu0
      %v5981 = vadd.f32 %v5888, %v5980
      %5982 = vdwg.mxu0
      %5983 = vmatprep.subr.bf16.mxu0 %v4574
      %5984 = vmatpush1.bf16.msra.mxu0 %v4573
      %5985 = vmatprep.subr.bf16.mxu0 %v4576
      %5986 = vmatpush1.bf16.msra.mxu0 %v4575
      %5987 = vmatprep.subr.bf16.mxu0 %v4578
      %5988 = vmatpush1.bf16.msra.mxu0 %v4577
      %5989 = vmatprep.subr.bf16.mxu0 %v4580
      %5990 = vmatpush1.bf16.msra.mxu0 %v4579
      %5991 = vmatprep.subr.bf16.mxu0 %v4582
      %5992 = vmatpush1.bf16.msra.mxu0 %v4581
      %5993 = vmatprep.subr.bf16.mxu0 %v4584
      %5994 = vmatpush1.bf16.msra.mxu0 %v4583
      %5995 = vmatprep.subr.bf16.mxu0 %v4586
      %5996 = vmatpush1.bf16.msra.mxu0 %v4585
      %5997 = vmatprep.subr.bf16.mxu0 %v4588
      %5998 = vmatpush1.bf16.msra.mxu0 %v4587
      %5999 = vmatprep.subr.bf16.mxu0 %v4590
      %6000 = vmatpush1.bf16.msra.mxu0 %v4589
      %6001 = vmatprep.subr.bf16.mxu0 %v4592
      %6002 = vmatpush1.bf16.msra.mxu0 %v4591
      %6003 = vmatprep.subr.bf16.mxu0 %v4594
      %6004 = vmatpush1.bf16.msra.mxu0 %v4593
      %6005 = vmatprep.subr.bf16.mxu0 %v4596
      %6006 = vmatpush1.bf16.msra.mxu0 %v4595
      %6007 = vmatprep.subr.bf16.mxu0 %v4598
      %6008 = vmatpush1.bf16.msra.mxu0 %v4597
      %6009 = vmatprep.subr.bf16.mxu0 %v4600
      %6010 = vmatpush1.bf16.msra.mxu0 %v4599
      %6011 = vmatprep.subr.bf16.mxu0 %v4602
      %6012 = vmatpush1.bf16.msra.mxu0 %v4601
      %6013 = vmatprep.subr.bf16.mxu0 %v4604
      %6014 = vmatpush1.bf16.msra.mxu0 %v4603
      %6015 = vmatprep.mubr.bf16.mxu0 %v2512
      %6016 = vmatmul.mubr.bf16.gmra.mrb[0].mxu0 %v2511
      %v6017 = vpop.f32.mrb[0].mxu0
      %v6018 = vadd.f32 %v5925, %v6017
      %v6019 = vpop.f32.mrb[0].mxu0
      %v6020 = vadd.f32 %v5927, %v6019
      %v6021 = vpop.f32.mrb[0].mxu0
      %v6022 = vadd.f32 %v5929, %v6021
      %v6023 = vpop.f32.mrb[0].mxu0
      %v6024 = vadd.f32 %v5931, %v6023
      %6025 = vmatprep.mubr.bf16.mxu0 %v2537
      %6026 = vmatmul.mubr.bf16.gmra.mrb[0].mxu0 %v2536
      %v6027 = vpop.f32.mrb[0].mxu0
      %v6028 = vadd.f32 %v5935, %v6027
      %v6029 = vpop.f32.mrb[0].mxu0
      %v6030 = vadd.f32 %v5937, %v6029
      %v6031 = vpop.f32.mrb[0].mxu0
      %v6032 = vadd.f32 %v5939, %v6031
      %v6033 = vpop.f32.mrb[0].mxu0
      %v6034 = vadd.f32 %v5941, %v6033
      %6035 = vmatprep.mubr.bf16.mxu0 %v2562
      %6036 = vmatmul.mubr.bf16.gmra.mrb[0].mxu0 %v2561
      %v6037 = vpop.f32.mrb[0].mxu0
      %v6038 = vadd.f32 %v5945, %v6037
      %v6039 = vpop.f32.mrb[0].mxu0
      %v6040 = vadd.f32 %v5947, %v6039
      %v6041 = vpop.f32.mrb[0].mxu0
      %v6042 = vadd.f32 %v5949, %v6041
      %v6043 = vpop.f32.mrb[0].mxu0
      %v6044 = vadd.f32 %v5951, %v6043
      %6045 = vmatprep.mubr.bf16.mxu0 %v2587
      %6046 = vmatmul.mubr.bf16.gmra.mrb[0].mxu0 %v2586
      %v6047 = vpop.f32.mrb[0].mxu0
      %v6048 = vadd.f32 %v5955, %v6047
      %v6049 = vpop.f32.mrb[0].mxu0
      %v6050 = vadd.f32 %v5957, %v6049
      %v6051 = vpop.f32.mrb[0].mxu0
      %v6052 = vadd.f32 %v5959, %v6051
      %v6053 = vpop.f32.mrb[0].mxu0
      %v6054 = vadd.f32 %v5961, %v6053
      %6055 = vmatprep.mubr.bf16.mxu0 %v2612
      %6056 = vmatmul.mubr.bf16.gmra.mrb[0].mxu0 %v2611
      %v6057 = vpop.f32.mrb[0].mxu0
      %v6058 = vadd.f32 %v5965, %v6057
      %v6059 = vpop.f32.mrb[0].mxu0
      %v6060 = vadd.f32 %v5967, %v6059
      %v6061 = vpop.f32.mrb[0].mxu0
      %v6062 = vadd.f32 %v5969, %v6061
      %v6063 = vpop.f32.mrb[0].mxu0
      %v6064 = vadd.f32 %v5971, %v6063
      %6065 = vmatprep.mubr.bf16.mxu0 %v2637
      %6066 = vmatmul.mubr.bf16.gmra.mrb[0].mxu0 %v2636
      %v6067 = vpop.f32.mrb[0].mxu0
      %v6068 = vadd.f32 %v5975, %v6067
      %v6069 = vpop.f32.mrb[0].mxu0
      %v6070 = vadd.f32 %v5977, %v6069
      %v6071 = vpop.f32.mrb[0].mxu0
      %v6072 = vadd.f32 %v5979, %v6071
      %v6073 = vpop.f32.mrb[0].mxu0
      %v6074 = vadd.f32 %v5981, %v6073
      %6075 = vdwg.mxu0
      %6076 = vmatprep.subr.bf16.mxu0 %v4606
      %6077 = vmatpush1.bf16.msra.mxu0 %v4605
      %6078 = vmatprep.subr.bf16.mxu0 %v4608
      %6079 = vmatpush1.bf16.msra.mxu0 %v4607
      %6080 = vmatprep.subr.bf16.mxu0 %v4610
      %6081 = vmatpush1.bf16.msra.mxu0 %v4609
      %6082 = vmatprep.subr.bf16.mxu0 %v4612
      %6083 = vmatpush1.bf16.msra.mxu0 %v4611
      %6084 = vmatprep.subr.bf16.mxu0 %v4614
      %6085 = vmatpush1.bf16.msra.mxu0 %v4613
      %6086 = vmatprep.subr.bf16.mxu0 %v4616
      %6087 = vmatpush1.bf16.msra.mxu0 %v4615
      %6088 = vmatprep.subr.bf16.mxu0 %v4618
      %6089 = vmatpush1.bf16.msra.mxu0 %v4617
      %6090 = vmatprep.subr.bf16.mxu0 %v4620
      %6091 = vmatpush1.bf16.msra.mxu0 %v4619
      %6092 = vmatprep.subr.bf16.mxu0 %v4622
      %6093 = vmatpush1.bf16.msra.mxu0 %v4621
      %6094 = vmatprep.subr.bf16.mxu0 %v4624
      %6095 = vmatpush1.bf16.msra.mxu0 %v4623
      %6096 = vmatprep.subr.bf16.mxu0 %v4626
      %6097 = vmatpush1.bf16.msra.mxu0 %v4625
      %6098 = vmatprep.subr.bf16.mxu0 %v4628
      %6099 = vmatpush1.bf16.msra.mxu0 %v4627
      %6100 = vmatprep.subr.bf16.mxu0 %v4630
      %6101 = vmatpush1.bf16.msra.mxu0 %v4629
      %6102 = vmatprep.subr.bf16.mxu0 %v4632
      %6103 = vmatpush1.bf16.msra.mxu0 %v4631
      %6104 = vmatprep.subr.bf16.mxu0 %v4634
      %6105 = vmatpush1.bf16.msra.mxu0 %v4633
      %6106 = vmatprep.subr.bf16.mxu0 %v4636
      %6107 = vmatpush1.bf16.msra.mxu0 %v4635
      %6108 = vmatprep.mubr.bf16.mxu0 %v2514
      %6109 = vmatmul.mubr.bf16.gmra.mrb[0].mxu0 %v2513
      %v6110 = vpop.f32.mrb[0].mxu0
      %v6111 = vadd.f32 %v6018, %v6110
      %v6112 = vpop.f32.mrb[0].mxu0
      %v6113 = vadd.f32 %v6020, %v6112
      %v6114 = vpop.f32.mrb[0].mxu0
      %v6115 = vadd.f32 %v6022, %v6114
      %v6116 = vpop.f32.mrb[0].mxu0
      %v6117 = vadd.f32 %v6024, %v6116
      %6118 = vmatprep.mubr.bf16.mxu0 %v2539
      %6119 = vmatmul.mubr.bf16.gmra.mrb[0].mxu0 %v2538
      %v6120 = vpop.f32.mrb[0].mxu0
      %v6121 = vadd.f32 %v6028, %v6120
      %v6122 = vpop.f32.mrb[0].mxu0
      %v6123 = vadd.f32 %v6030, %v6122
      %v6124 = vpop.f32.mrb[0].mxu0
      %v6125 = vadd.f32 %v6032, %v6124
      %v6126 = vpop.f32.mrb[0].mxu0
      %v6127 = vadd.f32 %v6034, %v6126
      %6128 = vmatprep.mubr.bf16.mxu0 %v2564
      %6129 = vmatmul.mubr.bf16.gmra.mrb[0].mxu0 %v2563
      %v6130 = vpop.f32.mrb[0].mxu0
      %v6131 = vadd.f32 %v6038, %v6130
      %v6132 = vpop.f32.mrb[0].mxu0
      %v6133 = vadd.f32 %v6040, %v6132
      %v6134 = vpop.f32.mrb[0].mxu0
      %v6135 = vadd.f32 %v6042, %v6134
      %v6136 = vpop.f32.mrb[0].mxu0
      %v6137 = vadd.f32 %v6044, %v6136
      %6138 = vmatprep.mubr.bf16.mxu0 %v2589
      %6139 = vmatmul.mubr.bf16.gmra.mrb[0].mxu0 %v2588
      %v6140 = vpop.f32.mrb[0].mxu0
      %v6141 = vadd.f32 %v6048, %v6140
      %v6142 = vpop.f32.mrb[0].mxu0
      %v6143 = vadd.f32 %v6050, %v6142
      %v6144 = vpop.f32.mrb[0].mxu0
      %v6145 = vadd.f32 %v6052, %v6144
      %v6146 = vpop.f32.mrb[0].mxu0
      %v6147 = vadd.f32 %v6054, %v6146
      %6148 = vmatprep.mubr.bf16.mxu0 %v2614
      %6149 = vmatmul.mubr.bf16.gmra.mrb[0].mxu0 %v2613
      %v6150 = vpop.f32.mrb[0].mxu0
      %v6151 = vadd.f32 %v6058, %v6150
      %v6152 = vpop.f32.mrb[0].mxu0
      %v6153 = vadd.f32 %v6060, %v6152
      %v6154 = vpop.f32.mrb[0].mxu0
      %v6155 = vadd.f32 %v6062, %v6154
      %v6156 = vpop.f32.mrb[0].mxu0
      %v6157 = vadd.f32 %v6064, %v6156
      %6158 = vmatprep.mubr.bf16.mxu0 %v2639
      %6159 = vmatmul.mubr.bf16.gmra.mrb[0].mxu0 %v2638
      %v6160 = vpop.f32.mrb[0].mxu0
      %v6161 = vadd.f32 %v6068, %v6160
      %v6162 = vpop.f32.mrb[0].mxu0
      %v6163 = vadd.f32 %v6070, %v6162
      %v6164 = vpop.f32.mrb[0].mxu0
      %v6165 = vadd.f32 %v6072, %v6164
      %v6166 = vpop.f32.mrb[0].mxu0
      %v6167 = vadd.f32 %v6074, %v6166
      %6168 = vdwg.mxu0
      %6169 = vmatprep.subr.bf16.mxu0 %v4638
      %6170 = vmatpush1.bf16.msra.mxu0 %v4637
      %6171 = vmatprep.subr.bf16.mxu0 %v4640
      %6172 = vmatpush1.bf16.msra.mxu0 %v4639
      %6173 = vmatprep.subr.bf16.mxu0 %v4642
      %6174 = vmatpush1.bf16.msra.mxu0 %v4641
      %6175 = vmatprep.subr.bf16.mxu0 %v4644
      %6176 = vmatpush1.bf16.msra.mxu0 %v4643
      %6177 = vmatprep.subr.bf16.mxu0 %v4646
      %6178 = vmatpush1.bf16.msra.mxu0 %v4645
      %6179 = vmatprep.subr.bf16.mxu0 %v4648
      %6180 = vmatpush1.bf16.msra.mxu0 %v4647
      %6181 = vmatprep.subr.bf16.mxu0 %v4650
      %6182 = vmatpush1.bf16.msra.mxu0 %v4649
      %6183 = vmatprep.subr.bf16.mxu0 %v4652
      %6184 = vmatpush1.bf16.msra.mxu0 %v4651
      %6185 = vmatprep.subr.bf16.mxu0 0
      %6186 = vmatpush1.bf16.msra.mxu0 0
      %6187 = vmatprep.subr.bf16.mxu0 0
      %6188 = vmatpush1.bf16.msra.mxu0 0
      %6189 = vmatprep.subr.bf16.mxu0 0
      %6190 = vmatpush1.bf16.msra.mxu0 0
      %6191 = vmatprep.subr.bf16.mxu0 0
      %6192 = vmatpush1.bf16.msra.mxu0 0
      %6193 = vmatprep.subr.bf16.mxu0 0
      %6194 = vmatpush1.bf16.msra.mxu0 0
      %6195 = vmatprep.subr.bf16.mxu0 0
      %6196 = vmatpush1.bf16.msra.mxu0 0
      %6197 = vmatprep.subr.bf16.mxu0 0
      %6198 = vmatpush1.bf16.msra.mxu0 0
      %6199 = vmatprep.subr.bf16.mxu0 0
      %6200 = vmatpush1.bf16.msra.mxu0 0
      %6201 = vmatprep.mubr.bf16.mxu0 0
      %6202 = vmatmul.mubr.bf16.gmra.mrb[0].mxu0 %v2515
      %v6203 = vpop.f32.mrb[0].mxu0
      %v6204 = vadd.f32 %v6111, %v6203
      %v6205 = vpop.f32.mrb[0].mxu0
      %v6206 = vadd.f32 %v6113, %v6205
      %v6207 = vpop.f32.mrb[0].mxu0
      %v6208 = vadd.f32 %v6115, %v6207
      %v6209 = vpop.f32.mrb[0].mxu0
      %v6210 = vadd.f32 %v6117, %v6209
      %6211 = vmatprep.mubr.bf16.mxu0 0
      %6212 = vmatmul.mubr.bf16.gmra.mrb[0].mxu0 %v2540
      %v6213 = vpop.f32.mrb[0].mxu0
      %v6214 = vadd.f32 %v6121, %v6213
      %v6215 = vpop.f32.mrb[0].mxu0
      %v6216 = vadd.f32 %v6123, %v6215
      %v6217 = vpop.f32.mrb[0].mxu0
      %v6218 = vadd.f32 %v6125, %v6217
      %v6219 = vpop.f32.mrb[0].mxu0
      %v6220 = vadd.f32 %v6127, %v6219
      %6221 = vmatprep.mubr.bf16.mxu0 0
      %6222 = vmatmul.mubr.bf16.gmra.mrb[0].mxu0 %v2565
      %v6223 = vpop.f32.mrb[0].mxu0
      %v6224 = vadd.f32 %v6131, %v6223
      %v6225 = vpop.f32.mrb[0].mxu0
      %v6226 = vadd.f32 %v6133, %v6225
      %v6227 = vpop.f32.mrb[0].mxu0
      %v6228 = vadd.f32 %v6135, %v6227
      %v6229 = vpop.f32.mrb[0].mxu0
      %v6230 = vadd.f32 %v6137, %v6229
      %6231 = vmatprep.mubr.bf16.mxu0 0
      %6232 = vmatmul.mubr.bf16.gmra.mrb[0].mxu0 %v2590
      %v6233 = vpop.f32.mrb[0].mxu0
      %v6234 = vadd.f32 %v6141, %v6233
      %v6235 = vpop.f32.mrb[0].mxu0
      %v6236 = vadd.f32 %v6143, %v6235
      %v6237 = vpop.f32.mrb[0].mxu0
      %v6238 = vadd.f32 %v6145, %v6237
      %v6239 = vpop.f32.mrb[0].mxu0
      %v6240 = vadd.f32 %v6147, %v6239
      %6241 = vmatprep.mubr.bf16.mxu0 0
      %6242 = vmatmul.mubr.bf16.gmra.mrb[0].mxu0 %v2615
      %v6243 = vpop.f32.mrb[0].mxu0
      %v6244 = vadd.f32 %v6151, %v6243
      %v6245 = vpop.f32.mrb[0].mxu0
      %v6246 = vadd.f32 %v6153, %v6245
      %v6247 = vpop.f32.mrb[0].mxu0
      %v6248 = vadd.f32 %v6155, %v6247
      %v6249 = vpop.f32.mrb[0].mxu0
      %v6250 = vadd.f32 %v6157, %v6249
      %6251 = vmatprep.mubr.bf16.mxu0 0
      %6252 = vmatmul.mubr.bf16.gmra.mrb[0].mxu0 %v2640
      %v6253 = vpop.f32.mrb[0].mxu0
      %v6254 = vadd.f32 %v6161, %v6253
      %v6255 = vpop.f32.mrb[0].mxu0
      %v6256 = vadd.f32 %v6163, %v6255
      %v6257 = vpop.f32.mrb[0].mxu0
      %v6258 = vadd.f32 %v6165, %v6257
      %v6259 = vpop.f32.mrb[0].mxu0
      %v6260 = vadd.f32 %v6167, %v6259
      %6261 = vdwg.mxu0
      %v6262 = vmax.f32 %v6204, 0.0
      %v6263 = vmax.f32 %v6206, 0.0
      %v6264 = vmax.f32 %v6208, 0.0
      %v6265 = vmax.f32 %v6210, 0.0
      %v6266 = vmax.f32 %v6214, 0.0
      %v6267 = vmax.f32 %v6216, 0.0
      %v6268 = vmax.f32 %v6218, 0.0
      %v6269 = vmax.f32 %v6220, 0.0
      %v6270 = vmax.f32 %v6224, 0.0
      %v6271 = vmax.f32 %v6226, 0.0
      %v6272 = vmax.f32 %v6228, 0.0
      %v6273 = vmax.f32 %v6230, 0.0
      %v6274 = vmax.f32 %v6234, 0.0
      %v6275 = vmax.f32 %v6236, 0.0
      %v6276 = vmax.f32 %v6238, 0.0
      %v6277 = vmax.f32 %v6240, 0.0
      %v6278 = vmax.f32 %v6244, 0.0
      %v6279 = vmax.f32 %v6246, 0.0
      %v6280 = vmax.f32 %v6248, 0.0
      %v6281 = vmax.f32 %v6250, 0.0
      %v6282 = vmax.f32 %v6254, 0.0
      %v6283 = vmax.f32 %v6256, 0.0
      %v6284 = vmax.f32 %v6258, 0.0
      %v6285 = vmax.f32 %v6260, 0.0
      %v6286 = vpack.c.bf16 %v6264, %v6262
      %v6287 = vpack.c.bf16 %v6265, %v6263
      %v6288 = vpack.c.bf16 %v6268, %v6266
      %v6289 = vpack.c.bf16 %v6269, %v6267
      %v6290 = vpack.c.bf16 %v6272, %v6270
      %v6291 = vpack.c.bf16 %v6273, %v6271
      %v6292 = vpack.c.bf16 %v6276, %v6274
      %v6293 = vpack.c.bf16 %v6277, %v6275
      %v6294 = vpack.c.bf16 %v6280, %v6278
      %v6295 = vpack.c.bf16 %v6281, %v6279
      %v6296 = vpack.c.bf16 %v6284, %v6282
      %v6297 = vpack.c.bf16 %v6285, %v6283
      %v6298 = vld [vmem:[%s3] sm:$0xff]
      %v6299 = vld [vmem:[%s3 + $0x8] sm:$0xff]
      %v6300 = vld [vmem:[%s3 + $0x10] sm:$0xff]
      %v6301 = vld [vmem:[%s3 + $0x18] sm:$0xff]
      %v6302 = vld [vmem:[%s3 + $0x20] sm:$0xff]
      %v6303 = vld [vmem:[%s3 + $0x28] sm:$0xff]
      %v6304 = vld [vmem:[%s3 + $0x30] sm:$0xff]
      %v6305 = vld [vmem:[%s3 + $0x38] sm:$0xff]
      %v6306 = vld [vmem:[%s3 + $0x40] sm:$0xff]
      %v6307 = vld [vmem:[%s3 + $0x48] sm:$0xff]
      %v6308 = vld [vmem:[%s3 + $0x50] sm:$0xff]
      %v6309 = vld [vmem:[%s3 + $0x58] sm:$0xff]
      %v6310 = vld [vmem:[%s3 + $0x60] sm:$0xff]
      %v6311 = vld [vmem:[%s3 + $0x68] sm:$0xff]
      %v6312 = vld [vmem:[%s3 + $0x70] sm:$0xff]
      %v6313 = vld [vmem:[%s3 + $0x78] sm:$0xff]
      %v6314 = vld [vmem:[%s3 + $0x80] sm:$0xff]
      %v6315 = vld [vmem:[%s3 + $0x88] sm:$0xff]
      %v6316 = vld [vmem:[%s3 + $0x90] sm:$0xff]
      %v6317 = vld [vmem:[%s3 + $0x98] sm:$0xff]
      %v6318 = vld [vmem:[%s3 + $0xa0] sm:$0xff]
      %v6319 = vld [vmem:[%s3 + $0xa8] sm:$0xff]
      %v6320 = vld [vmem:[%s3 + $0xb0] sm:$0xff]
      %v6321 = vld [vmem:[%s3 + $0xb8] sm:$0xff]
      %v6322 = vld [vmem:[%s4] sm:$0x3]
      %v6324 = vlaneseq
      %v6325 = vshrl.u32 %v6324, 7
      %v6326 = vsub.s32 0, %v6325
      %v6327 = vrot.slane %v6322, %v6326
      %v6328 = vlaneseq
      %v6329 = vshrl.u32 %v6328, 7
      %v6330 = vsub.s32 1, %v6329
      %v6331 = vrot.slane %v6322, %v6330
      %v6358 = vunpack.c.l.b16 %v6298
      %v6359 = vunpack.c.h.b16 %v6298
      %v6360 = vunpack.c.l.b16 %v6299
      %v6361 = vunpack.c.h.b16 %v6299
      %v6362 = vunpack.c.l.b16 %v6300
      %v6363 = vunpack.c.h.b16 %v6300
      %v6364 = vunpack.c.l.b16 %v6301
      %v6365 = vunpack.c.h.b16 %v6301
      %v6366 = vunpack.c.l.b16 %v6302
      %v6367 = vunpack.c.h.b16 %v6302
      %v6368 = vunpack.c.l.b16 %v6303
      %v6369 = vunpack.c.h.b16 %v6303
      %v6370 = vunpack.c.l.b16 %v6304
      %v6371 = vunpack.c.h.b16 %v6304
      %v6372 = vunpack.c.l.b16 %v6305
      %v6373 = vunpack.c.h.b16 %v6305
      %v6374 = vunpack.c.l.b16 %v6306
      %v6375 = vunpack.c.h.b16 %v6306
      %v6376 = vunpack.c.l.b16 %v6307
      %v6377 = vunpack.c.h.b16 %v6307
      %v6378 = vunpack.c.l.b16 %v6308
      %v6379 = vunpack.c.h.b16 %v6308
      %v6380 = vunpack.c.l.b16 %v6309
      %v6381 = vunpack.c.h.b16 %v6309
      %v6382 = vunpack.c.l.b16 %v6310
      %v6383 = vunpack.c.h.b16 %v6310
      %v6384 = vunpack.c.l.b16 %v6311
      %v6385 = vunpack.c.h.b16 %v6311
      %v6386 = vunpack.c.l.b16 %v6312
      %v6387 = vunpack.c.h.b16 %v6312
      %v6388 = vunpack.c.l.b16 %v6313
      %v6389 = vunpack.c.h.b16 %v6313
      %v6390 = vunpack.c.l.b16 %v6314
      %v6391 = vunpack.c.h.b16 %v6314
      %v6392 = vunpack.c.l.b16 %v6315
      %v6393 = vunpack.c.h.b16 %v6315
      %v6394 = vunpack.c.l.b16 %v6316
      %v6395 = vunpack.c.h.b16 %v6316
      %v6396 = vunpack.c.l.b16 %v6317
      %v6397 = vunpack.c.h.b16 %v6317
      %v6398 = vunpack.c.l.b16 %v6318
      %v6399 = vunpack.c.h.b16 %v6318
      %v6400 = vunpack.c.l.b16 %v6319
      %v6401 = vunpack.c.h.b16 %v6319
      %v6402 = vunpack.c.l.b16 %v6320
      %v6403 = vunpack.c.h.b16 %v6320
      %v6404 = vunpack.c.l.b16 %v6321
      %v6405 = vunpack.c.h.b16 %v6321
      %v6406 = vpack.c.b16 %v6360, %v6358
      %v6407 = vpack.c.b16 %v6361, %v6359
      %v6408 = vpack.c.b16 %v6364, %v6362
      %v6409 = vpack.c.b16 %v6365, %v6363
      %v6410 = vpack.c.b16 %v6368, %v6366
      %v6411 = vpack.c.b16 %v6369, %v6367
      %v6412 = vpack.c.b16 %v6372, %v6370
      %v6413 = vpack.c.b16 %v6373, %v6371
      %v6414 = vpack.c.b16 %v6376, %v6374
      %v6415 = vpack.c.b16 %v6377, %v6375
      %v6416 = vpack.c.b16 %v6380, %v6378
      %v6417 = vpack.c.b16 %v6381, %v6379
      %v6418 = vpack.c.b16 %v6384, %v6382
      %v6419 = vpack.c.b16 %v6385, %v6383
      %v6420 = vpack.c.b16 %v6388, %v6386
      %v6421 = vpack.c.b16 %v6389, %v6387
      %v6422 = vpack.c.b16 %v6392, %v6390
      %v6423 = vpack.c.b16 %v6393, %v6391
      %v6424 = vpack.c.b16 %v6396, %v6394
      %v6425 = vpack.c.b16 %v6397, %v6395
      %v6426 = vpack.c.b16 %v6400, %v6398
      %v6427 = vpack.c.b16 %v6401, %v6399
      %v6428 = vpack.c.b16 %v6404, %v6402
      %v6429 = vpack.c.b16 %v6405, %v6403
      %vm6454 = vcmask 523264
      %v6456 = vsel %vm6454, %v6287, 0
      %v6459 = vsel %vm6454, %v6289, 0
      %v6462 = vsel %vm6454, %v6291, 0
      %v6465 = vsel %vm6454, %v6293, 0
      %v6468 = vsel %vm6454, %v6295, 0
      %v6471 = vsel %vm6454, %v6297, 0
      %6473 = vmatprep.subr.bf16.mxu0 %v6407
      %6474 = vmatpush1.bf16.msra.mxu0 %v6406
      %6475 = vmatprep.subr.bf16.mxu0 %v6409
      %6476 = vmatpush1.bf16.msra.mxu0 %v6408
      %6477 = vmatprep.subr.bf16.mxu0 %v6411
      %6478 = vmatpush1.bf16.msra.mxu0 %v6410
      %6479 = vmatprep.subr.bf16.mxu0 %v6413
      %6480 = vmatpush1.bf16.msra.mxu0 %v6412
      %6481 = vmatprep.subr.bf16.mxu0 %v6415
      %6482 = vmatpush1.bf16.msra.mxu0 %v6414
      %6483 = vmatprep.subr.bf16.mxu0 %v6417
      %6484 = vmatpush1.bf16.msra.mxu0 %v6416
      %6485 = vmatprep.subr.bf16.mxu0 %v6419
      %6486 = vmatpush1.bf16.msra.mxu0 %v6418
      %6487 = vmatprep.subr.bf16.mxu0 %v6421
      %6488 = vmatpush1.bf16.msra.mxu0 %v6420
      %6489 = vmatprep.subr.bf16.mxu0 %v6423
      %6490 = vmatpush1.bf16.msra.mxu0 %v6422
      %6491 = vmatprep.subr.bf16.mxu0 %v6425
      %6492 = vmatpush1.bf16.msra.mxu0 %v6424
      %6493 = vmatprep.subr.bf16.mxu0 %v6427
      %6494 = vmatpush1.bf16.msra.mxu0 %v6426
      %6495 = vmatprep.subr.bf16.mxu0 %v6429
      %6496 = vmatpush1.bf16.msra.mxu0 %v6428
      %6497 = vmatprep.subr.bf16.mxu0 0
      %6498 = vmatpush1.bf16.msra.mxu0 0
      %6499 = vmatprep.subr.bf16.mxu0 0
      %6500 = vmatpush1.bf16.msra.mxu0 0
      %6501 = vmatprep.subr.bf16.mxu0 0
      %6502 = vmatpush1.bf16.msra.mxu0 0
      %6503 = vmatprep.subr.bf16.mxu0 0
      %6504 = vmatpush1.bf16.msra.mxu0 0
      %6505 = vmatprep.mubr.bf16.mxu0 %v6456
      %6506 = vmatmul.mubr.bf16.gmra.mrb[0].mxu0 %v6286
      %v6507 = vpop.f32.mrb[0].mxu0
      %v6508 = vadd.f32 %v6327, %v6507
      %v6509 = vpop.f32.mrb[0].mxu0
      %v6510 = vadd.f32 %v6331, %v6509
      %v6511 = vpop.f32.mrb[0].mxu0
      %v6512 = vadd.f32 %v6327, %v6511
      %v6513 = vpop.f32.mrb[0].mxu0
      %v6514 = vadd.f32 %v6331, %v6513
      %6515 = vmatprep.mubr.bf16.mxu0 %v6459
      %6516 = vmatmul.mubr.bf16.gmra.mrb[0].mxu0 %v6288
      %v6517 = vpop.f32.mrb[0].mxu0
      %v6518 = vadd.f32 %v6327, %v6517
      %v6519 = vpop.f32.mrb[0].mxu0
      %v6520 = vadd.f32 %v6331, %v6519
      %v6521 = vpop.f32.mrb[0].mxu0
      %v6522 = vadd.f32 %v6327, %v6521
      %v6523 = vpop.f32.mrb[0].mxu0
      %v6524 = vadd.f32 %v6331, %v6523
      %6525 = vmatprep.mubr.bf16.mxu0 %v6462
      %6526 = vmatmul.mubr.bf16.gmra.mrb[0].mxu0 %v6290
      %v6527 = vpop.f32.mrb[0].mxu0
      %v6528 = vadd.f32 %v6327, %v6527
      %v6529 = vpop.f32.mrb[0].mxu0
      %v6530 = vadd.f32 %v6331, %v6529
      %v6531 = vpop.f32.mrb[0].mxu0
      %v6532 = vadd.f32 %v6327, %v6531
      %v6533 = vpop.f32.mrb[0].mxu0
      %v6534 = vadd.f32 %v6331, %v6533
      %6535 = vmatprep.mubr.bf16.mxu0 %v6465
      %6536 = vmatmul.mubr.bf16.gmra.mrb[0].mxu0 %v6292
      %v6537 = vpop.f32.mrb[0].mxu0
      %v6538 = vadd.f32 %v6327, %v6537
      %v6539 = vpop.f32.mrb[0].mxu0
      %v6540 = vadd.f32 %v6331, %v6539
      %v6541 = vpop.f32.mrb[0].mxu0
      %v6542 = vadd.f32 %v6327, %v6541
      %v6543 = vpop.f32.mrb[0].mxu0
      %v6544 = vadd.f32 %v6331, %v6543
      %6545 = vmatprep.mubr.bf16.mxu0 %v6468
      %6546 = vmatmul.mubr.bf16.gmra.mrb[0].mxu0 %v6294
      %v6547 = vpop.f32.mrb[0].mxu0
      %v6548 = vadd.f32 %v6327, %v6547
      %v6549 = vpop.f32.mrb[0].mxu0
      %v6550 = vadd.f32 %v6331, %v6549
      %v6551 = vpop.f32.mrb[0].mxu0
      %v6552 = vadd.f32 %v6327, %v6551
      %v6553 = vpop.f32.mrb[0].mxu0
      %v6554 = vadd.f32 %v6331, %v6553
      %6555 = vmatprep.mubr.bf16.mxu0 %v6471
      %6556 = vmatmul.mubr.bf16.gmra.mrb[0].mxu0 %v6296
      %v6557 = vpop.f32.mrb[0].mxu0
      %v6558 = vadd.f32 %v6327, %v6557
      %v6559 = vpop.f32.mrb[0].mxu0
      %v6560 = vadd.f32 %v6331, %v6559
      %v6561 = vpop.f32.mrb[0].mxu0
      %v6562 = vadd.f32 %v6327, %v6561
      %v6563 = vpop.f32.mrb[0].mxu0
      %v6564 = vadd.f32 %v6331, %v6563
      %6565 = vdwg.mxu0
      %v6566 = vmax.f32 %v6508, 0.0
      %v6567 = vmax.f32 %v6510, 0.0
      %v6568 = vmax.f32 %v6512, 0.0
      %v6569 = vmax.f32 %v6514, 0.0
      %v6570 = vmax.f32 %v6518, 0.0
      %v6571 = vmax.f32 %v6520, 0.0
      %v6572 = vmax.f32 %v6522, 0.0
      %v6573 = vmax.f32 %v6524, 0.0
      %v6574 = vmax.f32 %v6528, 0.0
      %v6575 = vmax.f32 %v6530, 0.0
      %v6576 = vmax.f32 %v6532, 0.0
      %v6577 = vmax.f32 %v6534, 0.0
      %v6578 = vmax.f32 %v6538, 0.0
      %v6579 = vmax.f32 %v6540, 0.0
      %v6580 = vmax.f32 %v6542, 0.0
      %v6581 = vmax.f32 %v6544, 0.0
      %v6582 = vmax.f32 %v6548, 0.0
      %v6583 = vmax.f32 %v6550, 0.0
      %v6584 = vmax.f32 %v6552, 0.0
      %v6585 = vmax.f32 %v6554, 0.0
      %v6586 = vmax.f32 %v6558, 0.0
      %v6587 = vmax.f32 %v6560, 0.0
      %v6588 = vmax.f32 %v6562, 0.0
      %v6589 = vmax.f32 %v6564, 0.0
      %v6590 = vpack.c.bf16 %v6568, %v6566
      %v6591 = vpack.c.bf16 %v6569, %v6567
      %v6592 = vpack.c.bf16 %v6572, %v6570
      %v6593 = vpack.c.bf16 %v6573, %v6571
      %v6594 = vpack.c.bf16 %v6576, %v6574
      %v6595 = vpack.c.bf16 %v6577, %v6575
      %v6596 = vpack.c.bf16 %v6580, %v6578
      %v6597 = vpack.c.bf16 %v6581, %v6579
      %v6598 = vpack.c.bf16 %v6584, %v6582
      %v6599 = vpack.c.bf16 %v6585, %v6583
      %v6600 = vpack.c.bf16 %v6588, %v6586
      %v6601 = vpack.c.bf16 %v6589, %v6587
      %v6602 = vld [vmem:[%s5] sm:$0xff]
      %v6603 = vld [vmem:[%s5 + $0x8] sm:$0xff]
      %v6604 = vld [vmem:[%s5 + $0x10] sm:$0xff]
      %v6605 = vld [vmem:[%s5 + $0x18] sm:$0xff]
      %v6606 = vld [vmem:[%s5 + $0x20] sm:$0xff]
      %v6607 = vld [vmem:[%s5 + $0x28] sm:$0xff]
      %v6608 = vld [vmem:[%s5 + $0x30] sm:$0xff]
      %v6609 = vld [vmem:[%s5 + $0x38] sm:$0xff]
      %v6610 = vld [vmem:[%s5 + $0x40] sm:$0xff]
      %v6611 = vld [vmem:[%s5 + $0x48] sm:$0xff]
      %v6612 = vld [vmem:[%s5 + $0x50] sm:$0xff]
      %v6613 = vld [vmem:[%s5 + $0x58] sm:$0xff]
      %v6614 = vld [vmem:[%s5 + $0x60] sm:$0xff]
      %v6615 = vld [vmem:[%s5 + $0x68] sm:$0xff]
      %v6616 = vld [vmem:[%s5 + $0x70] sm:$0xff]
      %v6617 = vld [vmem:[%s5 + $0x78] sm:$0xff]
      %v6618 = vld [vmem:[%s5 + $0x80] sm:$0xff]
      %v6619 = vld [vmem:[%s5 + $0x88] sm:$0xff]
      %v6620 = vld [vmem:[%s5 + $0x90] sm:$0xff]
      %v6621 = vld [vmem:[%s5 + $0x98] sm:$0xff]
      %v6622 = vld [vmem:[%s5 + $0xa0] sm:$0xff]
      %v6623 = vld [vmem:[%s5 + $0xa8] sm:$0xff]
      %v6624 = vld [vmem:[%s5 + $0xb0] sm:$0xff]
      %v6625 = vld [vmem:[%s5 + $0xb8] sm:$0xff]
      %v6626 = vld [vmem:[%s6] sm:$0x3]
      %v6628 = vlaneseq
      %v6629 = vshrl.u32 %v6628, 7
      %v6630 = vsub.s32 0, %v6629
      %v6631 = vrot.slane %v6626, %v6630
      %v6632 = vlaneseq
      %v6633 = vshrl.u32 %v6632, 7
      %v6634 = vsub.s32 1, %v6633
      %v6635 = vrot.slane %v6626, %v6634
      %v6662 = vunpack.c.l.b16 %v6602
      %v6663 = vunpack.c.h.b16 %v6602
      %v6664 = vunpack.c.l.b16 %v6603
      %v6665 = vunpack.c.h.b16 %v6603
      %v6666 = vunpack.c.l.b16 %v6604
      %v6667 = vunpack.c.h.b16 %v6604
      %v6668 = vunpack.c.l.b16 %v6605
      %v6669 = vunpack.c.h.b16 %v6605
      %v6670 = vunpack.c.l.b16 %v6606
      %v6671 = vunpack.c.h.b16 %v6606
      %v6672 = vunpack.c.l.b16 %v6607
      %v6673 = vunpack.c.h.b16 %v6607
      %v6674 = vunpack.c.l.b16 %v6608
      %v6675 = vunpack.c.h.b16 %v6608
      %v6676 = vunpack.c.l.b16 %v6609
      %v6677 = vunpack.c.h.b16 %v6609
      %v6678 = vunpack.c.l.b16 %v6610
      %v6679 = vunpack.c.h.b16 %v6610
      %v6680 = vunpack.c.l.b16 %v6611
      %v6681 = vunpack.c.h.b16 %v6611
      %v6682 = vunpack.c.l.b16 %v6612
      %v6683 = vunpack.c.h.b16 %v6612
      %v6684 = vunpack.c.l.b16 %v6613
      %v6685 = vunpack.c.h.b16 %v6613
      %v6686 = vunpack.c.l.b16 %v6614
      %v6687 = vunpack.c.h.b16 %v6614
      %v6688 = vunpack.c.l.b16 %v6615
      %v6689 = vunpack.c.h.b16 %v6615
      %v6690 = vunpack.c.l.b16 %v6616
      %v6691 = vunpack.c.h.b16 %v6616
      %v6692 = vunpack.c.l.b16 %v6617
      %v6693 = vunpack.c.h.b16 %v6617
      %v6694 = vunpack.c.l.b16 %v6618
      %v6695 = vunpack.c.h.b16 %v6618
      %v6696 = vunpack.c.l.b16 %v6619
      %v6697 = vunpack.c.h.b16 %v6619
      %v6698 = vunpack.c.l.b16 %v6620
      %v6699 = vunpack.c.h.b16 %v6620
      %v6700 = vunpack.c.l.b16 %v6621
      %v6701 = vunpack.c.h.b16 %v6621
      %v6702 = vunpack.c.l.b16 %v6622
      %v6703 = vunpack.c.h.b16 %v6622
      %v6704 = vunpack.c.l.b16 %v6623
      %v6705 = vunpack.c.h.b16 %v6623
      %v6706 = vunpack.c.l.b16 %v6624
      %v6707 = vunpack.c.h.b16 %v6624
      %v6708 = vunpack.c.l.b16 %v6625
      %v6709 = vunpack.c.h.b16 %v6625
      %v6710 = vpack.c.b16 %v6664, %v6662
      %v6711 = vpack.c.b16 %v6665, %v6663
      %v6712 = vpack.c.b16 %v6668, %v6666
      %v6713 = vpack.c.b16 %v6669, %v6667
      %v6714 = vpack.c.b16 %v6672, %v6670
      %v6715 = vpack.c.b16 %v6673, %v6671
      %v6716 = vpack.c.b16 %v6676, %v6674
      %v6717 = vpack.c.b16 %v6677, %v6675
      %v6718 = vpack.c.b16 %v6680, %v6678
      %v6719 = vpack.c.b16 %v6681, %v6679
      %v6720 = vpack.c.b16 %v6684, %v6682
      %v6721 = vpack.c.b16 %v6685, %v6683
      %v6722 = vpack.c.b16 %v6688, %v6686
      %v6723 = vpack.c.b16 %v6689, %v6687
      %v6724 = vpack.c.b16 %v6692, %v6690
      %v6725 = vpack.c.b16 %v6693, %v6691
      %v6726 = vpack.c.b16 %v6696, %v6694
      %v6727 = vpack.c.b16 %v6697, %v6695
      %v6728 = vpack.c.b16 %v6700, %v6698
      %v6729 = vpack.c.b16 %v6701, %v6699
      %v6730 = vpack.c.b16 %v6704, %v6702
      %v6731 = vpack.c.b16 %v6705, %v6703
      %v6732 = vpack.c.b16 %v6708, %v6706
      %v6733 = vpack.c.b16 %v6709, %v6707
      %v6759 = vsel %vm6454, %v6591, 0
      %v6762 = vsel %vm6454, %v6593, 0
      %v6765 = vsel %vm6454, %v6595, 0
      %v6768 = vsel %vm6454, %v6597, 0
      %v6771 = vsel %vm6454, %v6599, 0
      %v6774 = vsel %vm6454, %v6601, 0
      %6776 = vmatprep.subr.bf16.mxu0 %v6711
      %6777 = vmatpush1.bf16.msra.mxu0 %v6710
      %6778 = vmatprep.subr.bf16.mxu0 %v6713
      %6779 = vmatpush1.bf16.msra.mxu0 %v6712
      %6780 = vmatprep.subr.bf16.mxu0 %v6715
      %6781 = vmatpush1.bf16.msra.mxu0 %v6714
      %6782 = vmatprep.subr.bf16.mxu0 %v6717
      %6783 = vmatpush1.bf16.msra.mxu0 %v6716
      %6784 = vmatprep.subr.bf16.mxu0 %v6719
      %6785 = vmatpush1.bf16.msra.mxu0 %v6718
      %6786 = vmatprep.subr.bf16.mxu0 %v6721
      %6787 = vmatpush1.bf16.msra.mxu0 %v6720
      %6788 = vmatprep.subr.bf16.mxu0 %v6723
      %6789 = vmatpush1.bf16.msra.mxu0 %v6722
      %6790 = vmatprep.subr.bf16.mxu0 %v6725
      %6791 = vmatpush1.bf16.msra.mxu0 %v6724
      %6792 = vmatprep.subr.bf16.mxu0 %v6727
      %6793 = vmatpush1.bf16.msra.mxu0 %v6726
      %6794 = vmatprep.subr.bf16.mxu0 %v6729
      %6795 = vmatpush1.bf16.msra.mxu0 %v6728
      %6796 = vmatprep.subr.bf16.mxu0 %v6731
      %6797 = vmatpush1.bf16.msra.mxu0 %v6730
      %6798 = vmatprep.subr.bf16.mxu0 %v6733
      %6799 = vmatpush1.bf16.msra.mxu0 %v6732
      %6800 = vmatprep.subr.bf16.mxu0 0
      %6801 = vmatpush1.bf16.msra.mxu0 0
      %6802 = vmatprep.subr.bf16.mxu0 0
      %6803 = vmatpush1.bf16.msra.mxu0 0
      %6804 = vmatprep.subr.bf16.mxu0 0
      %6805 = vmatpush1.bf16.msra.mxu0 0
      %6806 = vmatprep.subr.bf16.mxu0 0
      %6807 = vmatpush1.bf16.msra.mxu0 0
      %6808 = vmatprep.mubr.bf16.mxu0 %v6759
      %6809 = vmatmul.mubr.bf16.gmra.mrb[0].mxu0 %v6590
      %v6810 = vpop.f32.mrb[0].mxu0
      %v6811 = vadd.f32 %v6631, %v6810
      %v6812 = vpop.f32.mrb[0].mxu0
      %v6813 = vadd.f32 %v6635, %v6812
      %v6814 = vpop.f32.mrb[0].mxu0
      %v6815 = vadd.f32 %v6631, %v6814
      %v6816 = vpop.f32.mrb[0].mxu0
      %v6817 = vadd.f32 %v6635, %v6816
      %6818 = vmatprep.mubr.bf16.mxu0 %v6762
      %6819 = vmatmul.mubr.bf16.gmra.mrb[0].mxu0 %v6592
      %v6820 = vpop.f32.mrb[0].mxu0
      %v6821 = vadd.f32 %v6631, %v6820
      %v6822 = vpop.f32.mrb[0].mxu0
      %v6823 = vadd.f32 %v6635, %v6822
      %v6824 = vpop.f32.mrb[0].mxu0
      %v6825 = vadd.f32 %v6631, %v6824
      %v6826 = vpop.f32.mrb[0].mxu0
      %v6827 = vadd.f32 %v6635, %v6826
      %6828 = vmatprep.mubr.bf16.mxu0 %v6765
      %6829 = vmatmul.mubr.bf16.gmra.mrb[0].mxu0 %v6594
      %v6830 = vpop.f32.mrb[0].mxu0
      %v6831 = vadd.f32 %v6631, %v6830
      %v6832 = vpop.f32.mrb[0].mxu0
      %v6833 = vadd.f32 %v6635, %v6832
      %v6834 = vpop.f32.mrb[0].mxu0
      %v6835 = vadd.f32 %v6631, %v6834
      %v6836 = vpop.f32.mrb[0].mxu0
      %v6837 = vadd.f32 %v6635, %v6836
      %6838 = vmatprep.mubr.bf16.mxu0 %v6768
      %6839 = vmatmul.mubr.bf16.gmra.mrb[0].mxu0 %v6596
      %v6840 = vpop.f32.mrb[0].mxu0
      %v6841 = vadd.f32 %v6631, %v6840
      %v6842 = vpop.f32.mrb[0].mxu0
      %v6843 = vadd.f32 %v6635, %v6842
      %v6844 = vpop.f32.mrb[0].mxu0
      %v6845 = vadd.f32 %v6631, %v6844
      %v6846 = vpop.f32.mrb[0].mxu0
      %v6847 = vadd.f32 %v6635, %v6846
      %6848 = vmatprep.mubr.bf16.mxu0 %v6771
      %6849 = vmatmul.mubr.bf16.gmra.mrb[0].mxu0 %v6598
      %v6850 = vpop.f32.mrb[0].mxu0
      %v6851 = vadd.f32 %v6631, %v6850
      %v6852 = vpop.f32.mrb[0].mxu0
      %v6853 = vadd.f32 %v6635, %v6852
      %v6854 = vpop.f32.mrb[0].mxu0
      %v6855 = vadd.f32 %v6631, %v6854
      %v6856 = vpop.f32.mrb[0].mxu0
      %v6857 = vadd.f32 %v6635, %v6856
      %6858 = vmatprep.mubr.bf16.mxu0 %v6774
      %6859 = vmatmul.mubr.bf16.gmra.mrb[0].mxu0 %v6600
      %v6860 = vpop.f32.mrb[0].mxu0
      %v6861 = vadd.f32 %v6631, %v6860
      %v6862 = vpop.f32.mrb[0].mxu0
      %v6863 = vadd.f32 %v6635, %v6862
      %v6864 = vpop.f32.mrb[0].mxu0
      %v6865 = vadd.f32 %v6631, %v6864
      %v6866 = vpop.f32.mrb[0].mxu0
      %v6867 = vadd.f32 %v6635, %v6866
      %6868 = vdwg.mxu0
      %v6869 = vmax.f32 %v6811, 0.0
      %v6870 = vmax.f32 %v6813, 0.0
      %v6871 = vmax.f32 %v6815, 0.0
      %v6872 = vmax.f32 %v6817, 0.0
      %v6873 = vmax.f32 %v6821, 0.0
      %v6874 = vmax.f32 %v6823, 0.0
      %v6875 = vmax.f32 %v6825, 0.0
      %v6876 = vmax.f32 %v6827, 0.0
      %v6877 = vmax.f32 %v6831, 0.0
      %v6878 = vmax.f32 %v6833, 0.0
      %v6879 = vmax.f32 %v6835, 0.0
      %v6880 = vmax.f32 %v6837, 0.0
      %v6881 = vmax.f32 %v6841, 0.0
      %v6882 = vmax.f32 %v6843, 0.0
      %v6883 = vmax.f32 %v6845, 0.0
      %v6884 = vmax.f32 %v6847, 0.0
      %v6885 = vmax.f32 %v6851, 0.0
      %v6886 = vmax.f32 %v6853, 0.0
      %v6887 = vmax.f32 %v6855, 0.0
      %v6888 = vmax.f32 %v6857, 0.0
      %v6889 = vmax.f32 %v6861, 0.0
      %v6890 = vmax.f32 %v6863, 0.0
      %v6891 = vmax.f32 %v6865, 0.0
      %v6892 = vmax.f32 %v6867, 0.0
      %v6893 = vld [vmem:[%s7] sm:$0xff]
      %v6894 = vld [vmem:[%s7 + $0x8] sm:$0xff]
      %v6895 = vld [vmem:[%s7 + $0x10] sm:$0xff]
      %v6896 = vld [vmem:[%s7 + $0x18] sm:$0xff]
      %v6897 = vld [vmem:[%s7 + $0x20] sm:$0xff]
      %v6898 = vld [vmem:[%s7 + $0x28] sm:$0xff]
      %v6899 = vld [vmem:[%s7 + $0x30] sm:$0xff]
      %v6900 = vld [vmem:[%s7 + $0x38] sm:$0xff]
      %v6901 = vld [vmem:[%s7 + $0x40] sm:$0xff]
      %v6902 = vld [vmem:[%s7 + $0x48] sm:$0xff]
      %v6903 = vld [vmem:[%s7 + $0x50] sm:$0xff]
      %v6904 = vld [vmem:[%s7 + $0x58] sm:$0xff]
      %6906 = vset.pattern.permute.xlu0 0
      %6907 = vperm.xlu0 %6906, %v6893
      %v6908 = vpop.permute.xlu0 %6907
      %6911 = vset.pattern.permute.xlu0 0
      %6912 = vperm.xlu0 %6911, %v6894
      %v6913 = vpop.permute.xlu0 %6912
      %6916 = vset.pattern.permute.xlu0 0
      %6917 = vperm.xlu0 %6916, %v6895
      %v6918 = vpop.permute.xlu0 %6917
      %6921 = vset.pattern.permute.xlu0 0
      %6922 = vperm.xlu0 %6921, %v6896
      %v6923 = vpop.permute.xlu0 %6922
      %6926 = vset.pattern.permute.xlu0 0
      %6927 = vperm.xlu0 %6926, %v6897
      %v6928 = vpop.permute.xlu0 %6927
      %6931 = vset.pattern.permute.xlu0 0
      %6932 = vperm.xlu0 %6931, %v6898
      %v6933 = vpop.permute.xlu0 %6932
      %6936 = vset.pattern.permute.xlu0 0
      %6937 = vperm.xlu0 %6936, %v6899
      %v6938 = vpop.permute.xlu0 %6937
      %6941 = vset.pattern.permute.xlu0 0
      %6942 = vperm.xlu0 %6941, %v6900
      %v6943 = vpop.permute.xlu0 %6942
      %6946 = vset.pattern.permute.xlu0 0
      %6947 = vperm.xlu0 %6946, %v6901
      %v6948 = vpop.permute.xlu0 %6947
      %6951 = vset.pattern.permute.xlu0 0
      %6952 = vperm.xlu0 %6951, %v6902
      %v6953 = vpop.permute.xlu0 %6952
      %6956 = vset.pattern.permute.xlu0 0
      %6957 = vperm.xlu0 %6956, %v6903
      %v6958 = vpop.permute.xlu0 %6957
      %6961 = vset.pattern.permute.xlu0 0
      %6962 = vperm.xlu0 %6961, %v6904
      %v6963 = vpop.permute.xlu0 %6962
      %v6965 = vmul.f32 %v6869, %v6908
      %v6966 = vmul.f32 %v6870, %v6908
      %v6967 = vmul.f32 %v6871, %v6913
      %v6968 = vmul.f32 %v6872, %v6913
      %v6969 = vmul.f32 %v6873, %v6918
      %v6970 = vmul.f32 %v6874, %v6918
      %v6971 = vmul.f32 %v6875, %v6923
      %v6972 = vmul.f32 %v6876, %v6923
      %v6973 = vmul.f32 %v6877, %v6928
      %v6974 = vmul.f32 %v6878, %v6928
      %v6975 = vmul.f32 %v6879, %v6933
      %v6976 = vmul.f32 %v6880, %v6933
      %v6977 = vmul.f32 %v6881, %v6938
      %v6978 = vmul.f32 %v6882, %v6938
      %v6979 = vmul.f32 %v6883, %v6943
      %v6980 = vmul.f32 %v6884, %v6943
      %v6981 = vmul.f32 %v6885, %v6948
      %v6982 = vmul.f32 %v6886, %v6948
      %v6983 = vmul.f32 %v6887, %v6953
      %v6984 = vmul.f32 %v6888, %v6953
      %v6985 = vmul.f32 %v6889, %v6958
      %v6986 = vmul.f32 %v6890, %v6958
      %v6987 = vmul.f32 %v6891, %v6963
      %v6988 = vmul.f32 %v6892, %v6963
      %6989 = vst [vmem:[#allocation3] sm:$0xff] 0.0
      %6990 = vst.msk [vmem:[#allocation3 + $0x8] sm:$0xff] %vm6454, 0.0
      %6991 = vst [vmem:[#allocation3 + $0x10] sm:$0xff] 0.0
      %6992 = vst.msk [vmem:[#allocation3 + $0x18] sm:$0xff] %vm6454, 0.0
      %6993 = vst [vmem:[#allocation3 + $0xe0] sm:$0xff] 0.0
      %6994 = vst.msk [vmem:[#allocation3 + $0xe8] sm:$0xff] %vm6454, 0.0
      %6995 = vst [vmem:[#allocation3 + $0xf0] sm:$0xff] 0.0
      %6996 = vst.msk [vmem:[#allocation3 + $0xf8] sm:$0xff] %vm6454, 0.0
      %6997 = vst [vmem:[#allocation3 + $0x20] sm:$0xff] %v6965
      %6998 = vst.msk [vmem:[#allocation3 + $0x28] sm:$0xff] %vm6454, %v6966
      %6999 = vst [vmem:[#allocation3 + $0x30] sm:$0xff] %v6967
      %7000 = vst.msk [vmem:[#allocation3 + $0x38] sm:$0xff] %vm6454, %v6968
      %7001 = vst [vmem:[#allocation3 + $0x40] sm:$0xff] %v6969
      %7002 = vst.msk [vmem:[#allocation3 + $0x48] sm:$0xff] %vm6454, %v6970
      %7003 = vst [vmem:[#allocation3 + $0x50] sm:$0xff] %v6971
      %7004 = vst.msk [vmem:[#allocation3 + $0x58] sm:$0xff] %vm6454, %v6972
      %7005 = vst [vmem:[#allocation3 + $0x60] sm:$0xff] %v6973
      %7006 = vst.msk [vmem:[#allocation3 + $0x68] sm:$0xff] %vm6454, %v6974
      %7007 = vst [vmem:[#allocation3 + $0x70] sm:$0xff] %v6975
      %7008 = vst.msk [vmem:[#allocation3 + $0x78] sm:$0xff] %vm6454, %v6976
      %7009 = vst [vmem:[#allocation3 + $0x80] sm:$0xff] %v6977
      %7010 = vst.msk [vmem:[#allocation3 + $0x88] sm:$0xff] %vm6454, %v6978
      %7011 = vst [vmem:[#allocation3 + $0x90] sm:$0xff] %v6979
      %7012 = vst.msk [vmem:[#allocation3 + $0x98] sm:$0xff] %vm6454, %v6980
      %7013 = vst [vmem:[#allocation3 + $0xa0] sm:$0xff] %v6981
      %7014 = vst.msk [vmem:[#allocation3 + $0xa8] sm:$0xff] %vm6454, %v6982
      %7015 = vst [vmem:[#allocation3 + $0xb0] sm:$0xff] %v6983
      %7016 = vst.msk [vmem:[#allocation3 + $0xb8] sm:$0xff] %vm6454, %v6984
      %7017 = vst [vmem:[#allocation3 + $0xc0] sm:$0xff] %v6985
      %7018 = vst.msk [vmem:[#allocation3 + $0xc8] sm:$0xff] %vm6454, %v6986
      %7019 = vst [vmem:[#allocation3 + $0xd0] sm:$0xff] %v6987
      %7020 = vst.msk [vmem:[#allocation3 + $0xd8] sm:$0xff] %vm6454, %v6988
      %v7021 = vld [vmem:[#allocation3 + $0x10] sm:$0x80]
      %v7022 = vld [vmem:[#allocation3 + $0x18] sm:$0x80]
      %v7023 = vld [vmem:[#allocation3 + $0x20] sm:$0xff]
      %v7024 = vld [vmem:[#allocation3 + $0x28] sm:$0xff]
      %v7025 = vld [vmem:[#allocation3 + $0x30] sm:$0xff]
      %v7026 = vld [vmem:[#allocation3 + $0x38] sm:$0xff]
      %v7027 = vld [vmem:[#allocation3 + $0x40] sm:$0xff]
      %v7028 = vld [vmem:[#allocation3 + $0x48] sm:$0xff]
      %v7029 = vld [vmem:[#allocation3 + $0x50] sm:$0xff]
      %v7030 = vld [vmem:[#allocation3 + $0x58] sm:$0xff]
      %v7031 = vld [vmem:[#allocation3 + $0x60] sm:$0xff]
      %v7032 = vld [vmem:[#allocation3 + $0x68] sm:$0xff]
      %v7033 = vld [vmem:[#allocation3 + $0x70] sm:$0xff]
      %v7034 = vld [vmem:[#allocation3 + $0x78] sm:$0xff]
      %v7035 = vld [vmem:[#allocation3 + $0x80] sm:$0xff]
      %v7036 = vld [vmem:[#allocation3 + $0x88] sm:$0xff]
      %v7037 = vld [vmem:[#allocation3 + $0x90] sm:$0xff]
      %v7038 = vld [vmem:[#allocation3 + $0x98] sm:$0xff]
      %v7039 = vld [vmem:[#allocation3 + $0xa0] sm:$0xff]
      %v7040 = vld [vmem:[#allocation3 + $0xa8] sm:$0xff]
      %v7041 = vld [vmem:[#allocation3 + $0xb0] sm:$0xff]
      %v7042 = vld [vmem:[#allocation3 + $0xb8] sm:$0xff]
      %v7043 = vld [vmem:[#allocation3 + $0xc0] sm:$0xff]
      %v7044 = vld [vmem:[#allocation3 + $0xc8] sm:$0xff]
      %v7045 = vld [vmem:[#allocation3 + $0xd0] sm:$0x7f]
      %v7046 = vld [vmem:[#allocation3 + $0xd8] sm:$0x7f]
      %v7047 = vld [vmem:[#allocation3 + $0xd0] sm:$0xff]
      %v7048 = vld [vmem:[#allocation3 + $0xd8] sm:$0xff]
      %vm7073 = vcmask 1046528
      %v7074 = vrot.slane %v7023, 1
      %v7075 = vrot.slane %v7024, 1
      %v7076 = vrot.slane %v7025, 1
      %v7077 = vsel %vm7073, %v7074, %v7076
      %v7078 = vrot.slane %v7026, 1
      %v7079 = vsel %vm7073, %v7075, %v7078
      %v7080 = vrot.slane %v7027, 1
      %v7081 = vsel %vm7073, %v7076, %v7080
      %v7082 = vrot.slane %v7028, 1
      %v7083 = vsel %vm7073, %v7078, %v7082
      %v7084 = vrot.slane %v7029, 1
      %v7085 = vsel %vm7073, %v7080, %v7084
      %v7086 = vrot.slane %v7030, 1
      %v7087 = vsel %vm7073, %v7082, %v7086
      %v7088 = vrot.slane %v7031, 1
      %v7089 = vsel %vm7073, %v7084, %v7088
      %v7090 = vrot.slane %v7032, 1
      %v7091 = vsel %vm7073, %v7086, %v7090
      %v7092 = vrot.slane %v7033, 1
      %v7093 = vsel %vm7073, %v7088, %v7092
      %v7094 = vrot.slane %v7034, 1
      %v7095 = vsel %vm7073, %v7090, %v7094
      %v7096 = vrot.slane %v7035, 1
      %v7097 = vsel %vm7073, %v7092, %v7096
      %v7098 = vrot.slane %v7036, 1
      %v7099 = vsel %vm7073, %v7094, %v7098
      %v7100 = vrot.slane %v7037, 1
      %v7101 = vsel %vm7073, %v7096, %v7100
      %v7102 = vrot.slane %v7038, 1
      %v7103 = vsel %vm7073, %v7098, %v7102
      %v7104 = vrot.slane %v7039, 1
      %v7105 = vsel %vm7073, %v7100, %v7104
      %v7106 = vrot.slane %v7040, 1
      %v7107 = vsel %vm7073, %v7102, %v7106
      %v7108 = vrot.slane %v7041, 1
      %v7109 = vsel %vm7073, %v7104, %v7108
      %v7110 = vrot.slane %v7042, 1
      %v7111 = vsel %vm7073, %v7106, %v7110
      %v7112 = vrot.slane %v7043, 1
      %v7113 = vsel %vm7073, %v7108, %v7112
      %v7114 = vrot.slane %v7044, 1
      %v7115 = vsel %vm7073, %v7110, %v7114
      %v7116 = vrot.slane %v7047, 1
      %v7117 = vsel %vm7073, %v7112, %v7116
      %v7118 = vrot.slane %v7048, 1
      %v7119 = vsel %vm7073, %v7114, %v7118
      %v7146 = vmax.f32 %v7021, %v7074
      %v7147 = vmax.f32 %v7022, %v7075
      %v7148 = vmax.f32 %v7023, %v7077
      %v7149 = vmax.f32 %v7024, %v7079
      %v7150 = vmax.f32 %v7025, %v7081
      %v7151 = vmax.f32 %v7026, %v7083
      %v7152 = vmax.f32 %v7027, %v7085
      %v7153 = vmax.f32 %v7028, %v7087
      %v7154 = vmax.f32 %v7029, %v7089
      %v7155 = vmax.f32 %v7030, %v7091
      %v7156 = vmax.f32 %v7031, %v7093
      %v7157 = vmax.f32 %v7032, %v7095
      %v7158 = vmax.f32 %v7033, %v7097
      %v7159 = vmax.f32 %v7034, %v7099
      %v7160 = vmax.f32 %v7035, %v7101
      %v7161 = vmax.f32 %v7036, %v7103
      %v7162 = vmax.f32 %v7037, %v7105
      %v7163 = vmax.f32 %v7038, %v7107
      %v7164 = vmax.f32 %v7039, %v7109
      %v7165 = vmax.f32 %v7040, %v7111
      %v7166 = vmax.f32 %v7041, %v7113
      %v7167 = vmax.f32 %v7042, %v7115
      %v7168 = vmax.f32 %v7043, %v7117
      %v7169 = vmax.f32 %v7044, %v7119
      %v7170 = vmax.f32 %v7045, %v7116
      %v7171 = vmax.f32 %v7046, %v7118
      %v7172 = vld [vmem:[#allocation3 + $0x20] sm:$0xfe]
      %v7173 = vld [vmem:[#allocation3 + $0x28] sm:$0xfe]
      %v7174 = vld [vmem:[#allocation3 + $0xe0] sm:$0x1]
      %v7175 = vld [vmem:[#allocation3 + $0xe8] sm:$0x1]
      %vm7180 = vcmask 1045504
      %v7181 = vrot.slane %v7172, 2
      %v7182 = vrot.slane %v7173, 2
      %v7183 = vrot.slane %v7025, 2
      %v7184 = vsel %vm7180, %v7181, %v7183
      %v7185 = vrot.slane %v7026, 2
      %v7186 = vsel %vm7180, %v7182, %v7185
      %v7187 = vrot.slane %v7027, 2
      %v7188 = vsel %vm7180, %v7183, %v7187
      %v7189 = vrot.slane %v7028, 2
      %v7190 = vsel %vm7180, %v7185, %v7189
      %v7191 = vrot.slane %v7029, 2
      %v7192 = vsel %vm7180, %v7187, %v7191
      %v7193 = vrot.slane %v7030, 2
      %v7194 = vsel %vm7180, %v7189, %v7193
      %v7195 = vrot.slane %v7031, 2
      %v7196 = vsel %vm7180, %v7191, %v7195
      %v7197 = vrot.slane %v7032, 2
      %v7198 = vsel %vm7180, %v7193, %v7197
      %v7199 = vrot.slane %v7033, 2
      %v7200 = vsel %vm7180, %v7195, %v7199
      %v7201 = vrot.slane %v7034, 2
      %v7202 = vsel %vm7180, %v7197, %v7201
      %v7203 = vrot.slane %v7035, 2
      %v7204 = vsel %vm7180, %v7199, %v7203
      %v7205 = vrot.slane %v7036, 2
      %v7206 = vsel %vm7180, %v7201, %v7205
      %v7207 = vrot.slane %v7037, 2
      %v7208 = vsel %vm7180, %v7203, %v7207
      %v7209 = vrot.slane %v7038, 2
      %v7210 = vsel %vm7180, %v7205, %v7209
      %v7211 = vrot.slane %v7039, 2
      %v7212 = vsel %vm7180, %v7207, %v7211
      %v7213 = vrot.slane %v7040, 2
      %v7214 = vsel %vm7180, %v7209, %v7213
      %v7215 = vrot.slane %v7041, 2
      %v7216 = vsel %vm7180, %v7211, %v7215
      %v7217 = vrot.slane %v7042, 2
      %v7218 = vsel %vm7180, %v7213, %v7217
      %v7219 = vrot.slane %v7043, 2
      %v7220 = vsel %vm7180, %v7215, %v7219
      %v7221 = vrot.slane %v7044, 2
      %v7222 = vsel %vm7180, %v7217, %v7221
      %v7223 = vrot.slane %v7047, 2
      %v7224 = vsel %vm7180, %v7219, %v7223
      %v7225 = vrot.slane %v7048, 2
      %v7226 = vsel %vm7180, %v7221, %v7225
      %v7227 = vrot.slane %v7174, 2
      %v7228 = vsel %vm7180, %v7223, %v7227
      %v7229 = vrot.slane %v7175, 2
      %v7230 = vsel %vm7180, %v7225, %v7229
      %v7257 = vmax.f32 %v7146, %v7181
      %v7258 = vmax.f32 %v7147, %v7182
      %v7259 = vmax.f32 %v7148, %v7184
      %v7260 = vmax.f32 %v7149, %v7186
      %v7261 = vmax.f32 %v7150, %v7188
      %v7262 = vmax.f32 %v7151, %v7190
      %v7263 = vmax.f32 %v7152, %v7192
      %v7264 = vmax.f32 %v7153, %v7194
      %v7265 = vmax.f32 %v7154, %v7196
      %v7266 = vmax.f32 %v7155, %v7198
      %v7267 = vmax.f32 %v7156, %v7200
      %v7268 = vmax.f32 %v7157, %v7202
      %v7269 = vmax.f32 %v7158, %v7204
      %v7270 = vmax.f32 %v7159, %v7206
      %v7271 = vmax.f32 %v7160, %v7208
      %v7272 = vmax.f32 %v7161, %v7210
      %v7273 = vmax.f32 %v7162, %v7212
      %v7274 = vmax.f32 %v7163, %v7214
      %v7275 = vmax.f32 %v7164, %v7216
      %v7276 = vmax.f32 %v7165, %v7218
      %v7277 = vmax.f32 %v7166, %v7220
      %v7278 = vmax.f32 %v7167, %v7222
      %v7279 = vmax.f32 %v7168, %v7224
      %v7280 = vmax.f32 %v7169, %v7226
      %v7281 = vmax.f32 %v7170, %v7228
      %v7282 = vmax.f32 %v7171, %v7230
      %vm7309 = vcmask 1040384
      %v7310 = vrot.slane %v7257, 7
      %v7311 = vrot.slane %v7259, 7
      %v7312 = vsel %vm7309, %v7310, %v7311
      %v7313 = vrot.slane %v7258, 7
      %v7314 = vrot.slane %v7260, 7
      %v7315 = vsel %vm7309, %v7313, %v7314
      %v7316 = vrot.slane %v7261, 7
      %v7317 = vsel %vm7309, %v7311, %v7316
      %v7318 = vrot.slane %v7262, 7
      %v7319 = vsel %vm7309, %v7314, %v7318
      %v7320 = vrot.slane %v7263, 7
      %v7321 = vsel %vm7309, %v7316, %v7320
      %v7322 = vrot.slane %v7264, 7
      %v7323 = vsel %vm7309, %v7318, %v7322
      %v7324 = vrot.slane %v7265, 7
      %v7325 = vsel %vm7309, %v7320, %v7324
      %v7326 = vrot.slane %v7266, 7
      %v7327 = vsel %vm7309, %v7322, %v7326
      %v7328 = vrot.slane %v7267, 7
      %v7329 = vsel %vm7309, %v7324, %v7328
      %v7330 = vrot.slane %v7268, 7
      %v7331 = vsel %vm7309, %v7326, %v7330
      %v7332 = vrot.slane %v7269, 7
      %v7333 = vsel %vm7309, %v7328, %v7332
      %v7334 = vrot.slane %v7270, 7
      %v7335 = vsel %vm7309, %v7330, %v7334
      %v7336 = vrot.slane %v7271, 7
      %v7337 = vsel %vm7309, %v7332, %v7336
      %v7338 = vrot.slane %v7272, 7
      %v7339 = vsel %vm7309, %v7334, %v7338
      %v7340 = vrot.slane %v7273, 7
      %v7341 = vsel %vm7309, %v7336, %v7340
      %v7342 = vrot.slane %v7274, 7
      %v7343 = vsel %vm7309, %v7338, %v7342
      %v7344 = vrot.slane %v7275, 7
      %v7345 = vsel %vm7309, %v7340, %v7344
      %v7346 = vrot.slane %v7276, 7
      %v7347 = vsel %vm7309, %v7342, %v7346
      %v7348 = vrot.slane %v7277, 7
      %v7349 = vsel %vm7309, %v7344, %v7348
      %v7350 = vrot.slane %v7278, 7
      %v7351 = vsel %vm7309, %v7346, %v7350
      %v7352 = vrot.slane %v7279, 7
      %v7353 = vsel %vm7309, %v7348, %v7352
      %v7354 = vrot.slane %v7280, 7
      %v7355 = vsel %vm7309, %v7350, %v7354
      %v7356 = vrot.slane %v7281, 7
      %v7357 = vsel %vm7309, %v7352, %v7356
      %v7358 = vrot.slane %v7282, 7
      %v7359 = vsel %vm7309, %v7354, %v7358
      %7384 = vst [vmem:[#allocation3 + $0x20] sm:$0xff] %v7312
      %7385 = vst.msk [vmem:[#allocation3 + $0x28] sm:$0xff] %vm6454, %v7315
      %7386 = vst [vmem:[#allocation3 + $0x30] sm:$0xff] %v7317
      %7387 = vst.msk [vmem:[#allocation3 + $0x38] sm:$0xff] %vm6454, %v7319
      %7388 = vst [vmem:[#allocation3 + $0x40] sm:$0xff] %v7321
      %7389 = vst.msk [vmem:[#allocation3 + $0x48] sm:$0xff] %vm6454, %v7323
      %7390 = vst [vmem:[#allocation3 + $0x50] sm:$0xff] %v7325
      %7391 = vst.msk [vmem:[#allocation3 + $0x58] sm:$0xff] %vm6454, %v7327
      %7392 = vst [vmem:[#allocation3 + $0x60] sm:$0xff] %v7329
      %7393 = vst.msk [vmem:[#allocation3 + $0x68] sm:$0xff] %vm6454, %v7331
      %7394 = vst [vmem:[#allocation3 + $0x70] sm:$0xff] %v7333
      %7395 = vst.msk [vmem:[#allocation3 + $0x78] sm:$0xff] %vm6454, %v7335
      %7396 = vst [vmem:[#allocation3 + $0x80] sm:$0xff] %v7337
      %7397 = vst.msk [vmem:[#allocation3 + $0x88] sm:$0xff] %vm6454, %v7339
      %7398 = vst [vmem:[#allocation3 + $0x90] sm:$0xff] %v7341
      %7399 = vst.msk [vmem:[#allocation3 + $0x98] sm:$0xff] %vm6454, %v7343
      %7400 = vst [vmem:[#allocation3 + $0xa0] sm:$0xff] %v7345
      %7401 = vst.msk [vmem:[#allocation3 + $0xa8] sm:$0xff] %vm6454, %v7347
      %7402 = vst [vmem:[#allocation3 + $0xb0] sm:$0xff] %v7349
      %7403 = vst.msk [vmem:[#allocation3 + $0xb8] sm:$0xff] %vm6454, %v7351
      %7404 = vst [vmem:[#allocation3 + $0xc0] sm:$0xff] %v7353
      %7405 = vst.msk [vmem:[#allocation3 + $0xc8] sm:$0xff] %vm6454, %v7355
      %7406 = vst [vmem:[#allocation3 + $0xd0] sm:$0xff] %v7357
      %7407 = vst.msk [vmem:[#allocation3 + $0xd8] sm:$0xff] %vm6454, %v7359
      %v7408 = vld [vmem:[#allocation3] sm:$0xf0]
      %v7409 = vld [vmem:[#allocation3 + $0x8] sm:$0xf0]
      %v7410 = vld [vmem:[#allocation3 + $0x10] sm:$0xff]
      %v7411 = vld [vmem:[#allocation3 + $0x18] sm:$0xff]
      %v7412 = vld [vmem:[#allocation3 + $0x20] sm:$0xff]
      %v7413 = vld [vmem:[#allocation3 + $0x28] sm:$0xff]
      %v7414 = vld [vmem:[#allocation3 + $0x30] sm:$0xff]
      %v7415 = vld [vmem:[#allocation3 + $0x38] sm:$0xff]
      %v7416 = vld [vmem:[#allocation3 + $0x40] sm:$0xff]
      %v7417 = vld [vmem:[#allocation3 + $0x48] sm:$0xff]
      %v7418 = vld [vmem:[#allocation3 + $0x50] sm:$0xff]
      %v7419 = vld [vmem:[#allocation3 + $0x58] sm:$0xff]
      %v7420 = vld [vmem:[#allocation3 + $0x60] sm:$0xff]
      %v7421 = vld [vmem:[#allocation3 + $0x68] sm:$0xff]
      %v7422 = vld [vmem:[#allocation3 + $0x70] sm:$0xff]
      %v7423 = vld [vmem:[#allocation3 + $0x78] sm:$0xff]
      %v7424 = vld [vmem:[#allocation3 + $0x80] sm:$0xff]
      %v7425 = vld [vmem:[#allocation3 + $0x88] sm:$0xff]
      %v7426 = vld [vmem:[#allocation3 + $0x90] sm:$0xff]
      %v7427 = vld [vmem:[#allocation3 + $0x98] sm:$0xff]
      %v7428 = vld [vmem:[#allocation3 + $0xa0] sm:$0xff]
      %v7429 = vld [vmem:[#allocation3 + $0xa8] sm:$0xff]
      %v7430 = vld [vmem:[#allocation3 + $0xb0] sm:$0xff]
      %v7431 = vld [vmem:[#allocation3 + $0xb8] sm:$0xff]
      %v7432 = vld [vmem:[#allocation3 + $0xc0] sm:$0xf]
      %v7433 = vld [vmem:[#allocation3 + $0xc8] sm:$0xf]
      %v7434 = vld [vmem:[#allocation3 + $0xc0] sm:$0xff]
      %v7435 = vld [vmem:[#allocation3 + $0xc8] sm:$0xff]
      %v7436 = vld [vmem:[#allocation3 + $0xd0] sm:$0xff]
      %v7437 = vld [vmem:[#allocation3 + $0xd8] sm:$0xff]
      %vm7462 = vcmask 1043456
      %v7463 = vrot.slane %v7412, 4
      %v7464 = vrot.slane %v7413, 4
      %v7465 = vrot.slane %v7414, 4
      %v7466 = vsel %vm7462, %v7463, %v7465
      %v7467 = vrot.slane %v7415, 4
      %v7468 = vsel %vm7462, %v7464, %v7467
      %v7469 = vrot.slane %v7416, 4
      %v7470 = vsel %vm7462, %v7465, %v7469
      %v7471 = vrot.slane %v7417, 4
      %v7472 = vsel %vm7462, %v7467, %v7471
      %v7473 = vrot.slane %v7418, 4
      %v7474 = vsel %vm7462, %v7469, %v7473
      %v7475 = vrot.slane %v7419, 4
      %v7476 = vsel %vm7462, %v7471, %v7475
      %v7477 = vrot.slane %v7420, 4
      %v7478 = vsel %vm7462, %v7473, %v7477
      %v7479 = vrot.slane %v7421, 4
      %v7480 = vsel %vm7462, %v7475, %v7479
      %v7481 = vrot.slane %v7422, 4
      %v7482 = vsel %vm7462, %v7477, %v7481
      %v7483 = vrot.slane %v7423, 4
      %v7484 = vsel %vm7462, %v7479, %v7483
      %v7485 = vrot.slane %v7424, 4
      %v7486 = vsel %vm7462, %v7481, %v7485
      %v7487 = vrot.slane %v7425, 4
      %v7488 = vsel %vm7462, %v7483, %v7487
      %v7489 = vrot.slane %v7426, 4
      %v7490 = vsel %vm7462, %v7485, %v7489
      %v7491 = vrot.slane %v7427, 4
      %v7492 = vsel %vm7462, %v7487, %v7491
      %v7493 = vrot.slane %v7428, 4
      %v7494 = vsel %vm7462, %v7489, %v7493
      %v7495 = vrot.slane %v7429, 4
      %v7496 = vsel %vm7462, %v7491, %v7495
      %v7497 = vrot.slane %v7430, 4
      %v7498 = vsel %vm7462, %v7493, %v7497
      %v7499 = vrot.slane %v7431, 4
      %v7500 = vsel %vm7462, %v7495, %v7499
      %v7501 = vrot.slane %v7434, 4
      %v7502 = vsel %vm7462, %v7497, %v7501
      %v7503 = vrot.slane %v7435, 4
      %v7504 = vsel %vm7462, %v7499, %v7503
      %v7505 = vrot.slane %v7436, 4
      %v7506 = vsel %vm7462, %v7501, %v7505
      %v7507 = vrot.slane %v7437, 4
      %v7508 = vsel %vm7462, %v7503, %v7507
      %v7535 = vmax.f32 %v7408, %v7463
      %v7536 = vmax.f32 %v7409, %v7464
      %v7537 = vmax.f32 %v7410, %v7466
      %v7538 = vmax.f32 %v7411, %v7468
      %v7539 = vmax.f32 %v7412, %v7470
      %v7540 = vmax.f32 %v7413, %v7472
      %v7541 = vmax.f32 %v7414, %v7474
      %v7542 = vmax.f32 %v7415, %v7476
      %v7543 = vmax.f32 %v7416, %v7478
      %v7544 = vmax.f32 %v7417, %v7480
      %v7545 = vmax.f32 %v7418, %v7482
      %v7546 = vmax.f32 %v7419, %v7484
      %v7547 = vmax.f32 %v7420, %v7486
      %v7548 = vmax.f32 %v7421, %v7488
      %v7549 = vmax.f32 %v7422, %v7490
      %v7550 = vmax.f32 %v7423, %v7492
      %v7551 = vmax.f32 %v7424, %v7494
      %v7552 = vmax.f32 %v7425, %v7496
      %v7553 = vmax.f32 %v7426, %v7498
      %v7554 = vmax.f32 %v7427, %v7500
      %v7555 = vmax.f32 %v7428, %v7502
      %v7556 = vmax.f32 %v7429, %v7504
      %v7557 = vmax.f32 %v7430, %v7506
      %v7558 = vmax.f32 %v7431, %v7508
      %v7559 = vmax.f32 %v7432, %v7505
      %v7560 = vmax.f32 %v7433, %v7507
      %v7561 = vld [vmem:[#allocation3 + $0x30] sm:$0xf0]
      %v7562 = vld [vmem:[#allocation3 + $0x38] sm:$0xf0]
      %v7563 = vld [vmem:[#allocation3 + $0xe0] sm:$0xff]
      %v7564 = vld [vmem:[#allocation3 + $0xe8] sm:$0xff]
      %v7565 = vld [vmem:[#allocation3 + $0xf0] sm:$0xf]
      %v7566 = vld [vmem:[#allocation3 + $0xf8] sm:$0xf]
      %v7567 = vmax.f32 %v7535, %v7561
      %v7568 = vmax.f32 %v7536, %v7562
      %v7569 = vmax.f32 %v7537, %v7416
      %v7570 = vmax.f32 %v7538, %v7417
      %v7571 = vmax.f32 %v7539, %v7418
      %v7572 = vmax.f32 %v7540, %v7419
      %v7573 = vmax.f32 %v7541, %v7420
      %v7574 = vmax.f32 %v7542, %v7421
      %v7575 = vmax.f32 %v7543, %v7422
      %v7576 = vmax.f32 %v7544, %v7423
      %v7577 = vmax.f32 %v7545, %v7424
      %v7578 = vmax.f32 %v7546, %v7425
      %v7579 = vmax.f32 %v7547, %v7426
      %v7580 = vmax.f32 %v7548, %v7427
      %v7581 = vmax.f32 %v7549, %v7428
      %v7582 = vmax.f32 %v7550, %v7429
      %v7583 = vmax.f32 %v7551, %v7430
      %v7584 = vmax.f32 %v7552, %v7431
      %v7585 = vmax.f32 %v7553, %v7434
      %v7586 = vmax.f32 %v7554, %v7435
      %v7587 = vmax.f32 %v7555, %v7436
      %v7588 = vmax.f32 %v7556, %v7437
      %v7589 = vmax.f32 %v7557, %v7563
      %v7590 = vmax.f32 %v7558, %v7564
      %v7591 = vmax.f32 %v7559, %v7565
      %v7592 = vmax.f32 %v7560, %v7566
      %v7593 = vld [vmem:[%s8] sm:$0xf]
      %v7594 = vld [vmem:[%s8 + $0x4] sm:$0xf]
      %v7595 = vpack.c.bf16 %v7569, %v7567
      %v7596 = vpack.c.bf16 %v7570, %v7568
      %v7597 = vpack.c.bf16 %v7573, %v7571
      %v7598 = vpack.c.bf16 %v7574, %v7572
      %v7599 = vpack.c.bf16 %v7577, %v7575
      %v7600 = vpack.c.bf16 %v7578, %v7576
      %v7601 = vpack.c.bf16 %v7581, %v7579
      %v7602 = vpack.c.bf16 %v7582, %v7580
      %v7603 = vpack.c.bf16 %v7585, %v7583
      %v7604 = vpack.c.bf16 %v7586, %v7584
      %v7605 = vpack.c.bf16 %v7589, %v7587
      %v7606 = vpack.c.bf16 %v7590, %v7588
      %v7607 = vpack.c.bf16 %v7591, %v7591
      %v7608 = vpack.c.bf16 %v7592, %v7592
      %v7611 = vunpack.c.l.b16 %v7593
      %v7612 = vunpack.c.l.b16 %v7594
      %v7613 = vpack.c.b16 %v7612, %v7611
      %v7628 = vrot.slane %v7595, 2
      %v7629 = vrot.slane %v7597, 2
      %v7630 = vsel %vm738, %v7628, %v7629
      %v7631 = vrot.slane %v7596, 2
      %v7632 = vrot.slane %v7598, 2
      %v7633 = vsel %vm738, %v7631, %v7632
      %v7634 = vrot.slane %v7599, 2
      %v7635 = vsel %vm738, %v7629, %v7634
      %v7636 = vrot.slane %v7600, 2
      %v7637 = vsel %vm738, %v7632, %v7636
      %v7638 = vrot.slane %v7601, 2
      %v7639 = vsel %vm738, %v7634, %v7638
      %v7640 = vrot.slane %v7602, 2
      %v7641 = vsel %vm738, %v7636, %v7640
      %v7642 = vrot.slane %v7603, 2
      %v7643 = vsel %vm738, %v7638, %v7642
      %v7644 = vrot.slane %v7604, 2
      %v7645 = vsel %vm738, %v7640, %v7644
      %v7646 = vrot.slane %v7605, 2
      %v7647 = vsel %vm738, %v7642, %v7646
      %v7648 = vrot.slane %v7606, 2
      %v7649 = vsel %vm738, %v7644, %v7648
      %v7650 = vrot.slane %v7607, 2
      %v7651 = vsel %vm738, %v7646, %v7650
      %v7652 = vrot.slane %v7608, 2
      %v7653 = vsel %vm738, %v7648, %v7652
      %vm7666 = vcmask 785408
      %v7668 = vsel %vm7666, %v7613, 0
      %7670 = vmatprep.subr.bf16.mxu0 %v7633
      %7671 = vmatpush1.bf16.msra.mxu0 %v7630
      %7672 = vmatprep.subr.bf16.mxu0 %v7637
      %7673 = vmatpush1.bf16.msra.mxu0 %v7635
      %7674 = vmatprep.subr.bf16.mxu0 %v7641
      %7675 = vmatpush1.bf16.msra.mxu0 %v7639
      %7676 = vmatprep.subr.bf16.mxu0 %v7645
      %7677 = vmatpush1.bf16.msra.mxu0 %v7643
      %7678 = vmatprep.subr.bf16.mxu0 %v7649
      %7679 = vmatpush1.bf16.msra.mxu0 %v7647
      %7680 = vmatprep.subr.bf16.mxu0 %v7653
      %7681 = vmatpush1.bf16.msra.mxu0 %v7651
      %7682 = vmatprep.subr.bf16.mxu0 0
      %7683 = vmatpush1.bf16.msra.mxu0 0
      %7684 = vmatprep.subr.bf16.mxu0 0
      %7685 = vmatpush1.bf16.msra.mxu0 0
      %7686 = vmatprep.subr.bf16.mxu0 0
      %7687 = vmatpush1.bf16.msra.mxu0 0
      %7688 = vmatprep.subr.bf16.mxu0 0
      %7689 = vmatpush1.bf16.msra.mxu0 0
      %7690 = vmatprep.subr.bf16.mxu0 0
      %7691 = vmatpush1.bf16.msra.mxu0 0
      %7692 = vmatprep.subr.bf16.mxu0 0
      %7693 = vmatpush1.bf16.msra.mxu0 0
      %7694 = vmatprep.subr.bf16.mxu0 0
      %7695 = vmatpush1.bf16.msra.mxu0 0
      %7696 = vmatprep.subr.bf16.mxu0 0
      %7697 = vmatpush1.bf16.msra.mxu0 0
      %7698 = vmatprep.subr.bf16.mxu0 0
      %7699 = vmatpush1.bf16.msra.mxu0 0
      %7700 = vmatprep.subr.bf16.mxu0 0
      %7701 = vmatpush1.bf16.msra.mxu0 0
      %7702 = vmatprep.mubr.bf16.mxu0 0
      %7703 = vmatmul.mubr.bf16.gmra.mrb[0].mxu0 %v7668
      %v7704 = vpop.f32.mrb[0].mxu0
      %v7705 = vadd.f32 0.0, %v7704
      %v7706 = vpop.f32.mrb[0].mxu0
      %v7707 = vadd.f32 0.0, %v7706
      %v7708 = vpop.f32.mrb[0].mxu0
      %v7709 = vadd.f32 0.0, %v7708
      %v7710 = vpop.f32.mrb[0].mxu0
      %v7711 = vadd.f32 0.0, %v7710
      %7712 = vdwg.mxu0
      %7713 = vst [vmem:[%s332] sm:$0xff] %v7705
      %7714 = vst.msk [vmem:[%s332 + $0x8] sm:$0xff] %vm6454, %v7707
      %7715 = vst [vmem:[%s332 + $0x10] sm:$0xff] %v7709
      %7716 = vst.msk [vmem:[%s332 + $0x18] sm:$0xff] %vm6454, %v7711
      %p7717 = scmp.lt.s32.totalorder %s20, 1
      %s7718 = scalar_select %p7717, %s20, 1
      %s7719 = smul.addr %s7718, 4
      %s7720 = smul.addr %s7719, 8
      %s7721 = scalar_lea.vmem %s9, %s7720
      // Predicated region
      $region57: #{_lambda_.3} parent=55 // pred_check
        %p7722 = pneg %p232
      $region58: #{_lambda_.3} parent=55 // pred_check_branch
        %7724 = sbr.rel (%p7722) target = $region60
      $region59: #{_lambda_.3} parent=55 // pred_region
        _
      $region60: #{_lambda_.3} parent=55 // pred_fallthru
        _
    $region56: #{_lambda_.3} parent=5 // pred_fallthru
      _
    %p7725 = scmp.le.s32.totalorder 2, %s15
    // Predicated region
    $region61: #{_lambda_.3} parent=5 // pred_check
      %p7726 = pneg %p7725
    $region62: #{_lambda_.3} parent=5 // pred_check_branch
      %7728 = sbr.rel (%p7726) target = $region64
    $region63: #{_lambda_.3} parent=5 // pred_region
      %s7729 = ssub.s32 %s15, 2
      // Predicated region
      $region65: #{_lambda_.3} parent=63 // pred_check
        %p7730 = pneg %p238
      $region66: #{_lambda_.3} parent=63 // pred_check_branch
        %7732 = sbr.rel (%p7730) target = $region68
      $region67: #{_lambda_.3} parent=63 // pred_region
        %p7733 = scmp.lt.s32.totalorder %s21, 1
        %s7734 = scalar_select %p7733, %s21, 1
        %s7735 = smul.addr %s7734, 4
        %s7736 = smul.addr %s7735, 8
        %s7737 = scalar_lea.vmem %s9, %s7736
      $region68: #{_lambda_.3} parent=63 // pred_fallthru
        _
    $region64: #{_lambda_.3} parent=5 // pred_fallthru
      _
  $region6: #{_lambda_.3} parent=0 // loop_footer
    %s19 = sadd.s32 1, %s15
  $region7: #{_lambda_.3} parent=0 // loop_footer_branch
    %14 = sbr.rel target = $region3
  $region8: #{_lambda_.3} parent=0 // loop_exit
    _

</llo_original>
